<compile_context>
chip_gen: v6e
topology: v6e:2x2x1
jax: 0.10.0
libtpu: 0.0.40
codegen_flags: <defaults>
</compile_context>

<pallas_src>
import functools

import jax
import jax.numpy as jnp
from jax.experimental import pallas as pl
from jax.experimental.pallas import tpu as pltpu


# ----------------------------------------------------------------------------
# In-kernel 3x3 "valid" conv (dilation d) of a VMEM tile.
#   tile : (ho + 2*d, wo + 2*d, Cin) value, already in compute dtype
#   out  : (ho, wo, Cout) float32
# Two paths:
#   * im2col (C % 128 == 0): 9 lane-aligned stores into `patch_ref`
#     (>=ho, wo, 9*Cin), then ONE dot_general with K = 9*Cin (MXU accumulates
#     internally -> no chain of VPU adds on a full fp32 tensor).
#   * tap loop (small / unaligned C): 9 small matmuls accumulated in fp32.
# ----------------------------------------------------------------------------
def _conv3x3(tile, w_ref, d, ho, wo, use_im2col, patch_ref):
    cin = tile.shape[-1]
    if use_im2col:
        for k in range(9):
            ky, kx = divmod(k, 3)
            patch_ref[0:ho, 0:wo, k * cin:(k + 1) * cin] = (
                tile[ky * d:ky * d + ho, kx * d:kx * d + wo, :])
        return jax.lax.dot_general(
            patch_ref[0:ho, 0:wo, :],
            w_ref[...],                                  # (9*Cin, Cout)
            dimension_numbers=(((2,), (0,)), ((), ())),
            preferred_element_type=jnp.float32,
        )
    cout = w_ref.shape[-1]
    acc = jnp.zeros((ho, wo, cout), jnp.float32)
    for ky in range(3):
        for kx in range(3):
            acc = acc + jax.lax.dot_general(
                tile[ky * d:ky * d + ho, kx * d:kx * d + wo, :],
                w_ref[ky, kx],                            # (Cin, Cout)
                dimension_numbers=(((2,), (0,)), ((), ())),
                preferred_element_type=jnp.float32,
            )
    return acc


# ----------------------------------------------------------------------------
# Fused kernel: one grid step = one batch image.
#   x_ref   : (1, H, W, C)  raw (unpadded) input image
#   w*_ref  : (9C, C) [im2col] or (3, 3, C, C) [tap loop]
#   o_ref   : (1, H, W, C)
#   xpad_ref: VMEM scratch (H + 2d, W + 2d, C) -- reflect-padded x (in-kernel)
#   y_ref   : VMEM scratch (H + 2,  W + 2,  C) -- relu(conv1) with 1-px reflect
#   patch_ref: VMEM scratch (chunk, W, 9C)     -- im2col patch (im2col path only)
# Nothing intermediate ever touches HBM.
# ----------------------------------------------------------------------------
def _block_kernel(x_ref, w1_ref, w2_ref, o_ref, xpad_ref, y_ref,
                  patch_ref=None, *, dil, chunk, use_im2col, compute_dtype):
    d = dil
    _, H, W, C = o_ref.shape

    # ---- in-VMEM ReflectionPad2d(d) of x -----------------------------------
    xpad_ref[d:d + H, d:d + W, :] = x_ref[0].astype(compute_dtype)
    for k in range(1, d + 1):                       # columns (interior rows)
        xpad_ref[d:d + H, d - k:d - k + 1, :] = (
            xpad_ref[d:d + H, d + k:d + k + 1, :])
        xpad_ref[d:d + H, d + W - 1 + k:d + W + k, :] = (
            xpad_ref[d:d + H, d + W - 1 - k:d + W - k, :])
    for k in range(1, d + 1):                       # rows (full padded width)
        xpad_ref[d - k:d - k + 1, :, :] = xpad_ref[d + k:d + k + 1, :, :]
        xpad_ref[d + H - 1 + k:d + H + k, :, :] = (
            xpad_ref[d + H - 1 - k:d + H - k, :, :])

    # ---- conv1 (dilated) + ReLU -> interior of y ----------------------------
    for r0 in range(0, H, chunk):
        rows = min(chunk, H - r0)
        tile = xpad_ref[r0:r0 + rows + 2 * d, :, :]
        y = _conv3x3(tile, w1_ref, d, rows, W, use_im2col, patch_ref)
        y_ref[1 + r0:1 + r0 + rows, 1:W + 1, :] = (
            jnp.maximum(y, 0.0).astype(compute_dtype))

    # ---- in-VMEM ReflectionPad2d(1) of y ------------------------------------
    y_ref[1:H + 1, 0:1, :] = y_ref[1:H + 1, 2:3, :]            # left  col
    y_ref[1:H + 1, W + 1:W + 2, :] = y_ref[1:H + 1, W - 1:W, :]  # right col
    y_ref[0:1, :, :] = y_ref[2:3, :, :]                          # top row
    y_ref[H + 1:H + 2, :, :] = y_ref[H - 1:H, :, :]              # bottom row

    # ---- conv2 + residual add ------------------------------------------------
    for r0 in range(0, H, chunk):
        rows = min(chunk, H - r0)
        tile = y_ref[r0:r0 + rows + 2, :, :]
        z = _conv3x3(tile, w2_ref, 1, rows, W, use_im2col, patch_ref)
        res = x_ref[0, r0:r0 + rows, :, :].astype(jnp.float32)
        o_ref[0, r0:r0 + rows, :, :] = (res + z).astype(o_ref.dtype)


# ----------------------------------------------------------------------------
# Row-chunk height for the in-kernel conv loops (bounds fp32 accumulator and
# im2col patch VMEM; no HBM impact).
# ----------------------------------------------------------------------------
def _pick_chunk(H, W, C, c_bytes, use_im2col, budget_bytes=6 * 1024 * 1024):
    lane_c = max(C, 128)

    def cost(c):
        b = c * W * lane_c * 4                      # fp32 accumulator
        if use_im2col:
            b += c * W * 9 * C * c_bytes            # im2col patch rows
        return b

    ch = H
    while ch > 8 and cost(ch) > budget_bytes:
        ch = -(-ch // 2)
    return max(1, ch)


# ----------------------------------------------------------------------------
# Full forward: x (NCHW) -> x + conv_block(x)  (NCHW)
# ----------------------------------------------------------------------------
def resnet_block_remove_in(x_nchw, w1_hwio, w2_hwio, dilation=1, *,
                           chunk=None, compute_dtype=jnp.bfloat16,
                           vmem_limit_bytes=48 * 1024 * 1024):
    d = int(dilation)
    x = jnp.transpose(x_nchw, (0, 2, 3, 1))              # NCHW -> NHWC
    N, H, W, C = x.shape

    use_im2col = (C % 128 == 0)
    xb = jnp.dtype(x.dtype).itemsize
    cb = jnp.dtype(compute_dtype).itemsize
    ch = chunk if chunk is not None else _pick_chunk(H, W, C, cb, use_im2col)

    # Conservative per-step VMEM estimate (double-buffered in/out + scratch).
    lane_c = max(C, 128)
    est = (2 * 2 * H * W * lane_c * xb
           + (H + 2 * d) * (W + 2 * d) * lane_c * cb
           + (H + 2) * (W + 2) * lane_c * cb
           + ch * W * lane_c * 4)
    if use_im2col:
        est += ch * W * 9 * C * cb
    # TODO(synk): add a row-tiled (manual halo-DMA) variant for feature maps
    # that exceed whole-image-per-step VMEM; typical ResNet-block feature maps
    # fit comfortably.
    assert est < 40 * 1024 * 1024, (
        f"feature map too large for whole-image VMEM path (~{est / 2**20:.1f} MiB)")

    if use_im2col:
        w1k = w1_hwio.reshape(9 * C, C).astype(compute_dtype)
        w2k = w2_hwio.reshape(9 * C, C).astype(compute_dtype)
        w_spec = pl.BlockSpec((9 * C, C), lambda n: (0, 0))
    else:
        w1k = w1_hwio.astype(compute_dtype)
        w2k = w2_hwio.astype(compute_dtype)
        w_spec = pl.BlockSpec((3, 3, C, C), lambda n: (0, 0, 0, 0))

    scratch = [pltpu.VMEM((H + 2 * d, W + 2 * d, C), compute_dtype),
               pltpu.VMEM((H + 2, W + 2, C), compute_dtype)]
    if use_im2col:
        scratch.append(pltpu.VMEM((ch, W, 9 * C), compute_dtype))

    kernel = functools.partial(
        _block_kernel, dil=d, chunk=ch, use_im2col=use_im2col,
        compute_dtype=compute_dtype)

    out_nhwc = pl.pallas_call(
        kernel,
        out_shape=jax.ShapeDtypeStruct((N, H, W, C), x.dtype),
        grid_spec=pltpu.PrefetchScalarGridSpec(
            num_scalar_prefetch=0,
            grid=(N,),
            in_specs=[
                pl.BlockSpec((1, H, W, C), lambda n: (n, 0, 0, 0)),
                w_spec,
                w_spec,
            ],
            out_specs=pl.BlockSpec((1, H, W, C), lambda n: (n, 0, 0, 0)),
            scratch_shapes=scratch,
        ),
        compiler_params=pltpu.CompilerParams(
            dimension_semantics=("parallel",),
            vmem_limit_bytes=vmem_limit_bytes,
        ),
    )(x, w1k, w2k)

    return jnp.transpose(out_nhwc, (0, 3, 1, 2))         # NHWC -> NCHW


# ----------------------------------------------------------------------------
# Parameter setup (deterministic, in-script).
# ----------------------------------------------------------------------------
def _power_iteration_sigma(mat, iters=50):
    """Top singular value via power iteration (converged value of
    nn.utils.spectral_norm's power iteration)."""
    u = jnp.ones((mat.shape[0],), mat.dtype) / jnp.sqrt(jnp.float32(mat.shape[0]))

    def body(_, u):
        v = mat.T @ u
        v = v / (jnp.linalg.norm(v) + 1e-12)
        u = mat @ v
        u = u / (jnp.linalg.norm(u) + 1e-12)
        return u

    u = jax.lax.fori_loop(0, iters, body, u)
    v = mat.T @ u
    v = v / (jnp.linalg.norm(v) + 1e-12)
    return u @ (mat @ v)


def _spectral_normalize(w_oihw):
    cout = w_oihw.shape[0]
    sigma = _power_iteration_sigma(w_oihw.reshape(cout, -1))
    return w_oihw / sigma


def init_params(dim, key):
    """Conv2d-shaped deterministic init + spectral normalization; returns HWIO."""
    k1, k2 = jax.random.split(key)
    fan_in = dim * 3 * 3
    bound = 1.0 / (fan_in ** 0.5)
    w1 = jax.random.uniform(k1, (dim, dim, 3, 3), jnp.float32, -bound, bound)
    w2 = jax.random.uniform(k2, (dim, dim, 3, 3), jnp.float32, -bound, bound)
    w1 = _spectral_normalize(w1)
    w2 = _spectral_normalize(w2)
    # OIHW -> HWIO
    return jnp.transpose(w1, (2, 3, 1, 0)), jnp.transpose(w2, (2, 3, 1, 0))


# ----------------------------------------------------------------------------
# Pure-JAX reference (for correctness checks).
# ----------------------------------------------------------------------------
def _reference_block(x_nchw, w1_hwio, w2_hwio, dilation=1):
    d = dilation
    x = jnp.transpose(x_nchw, (0, 2, 3, 1))
    xpad = jnp.pad(x, ((0, 0), (d, d), (d, d), (0, 0)), mode="reflect")
    y = jax.lax.conv_general_dilated(
        xpad, w1_hwio, window_strides=(1, 1), padding="VALID",
        rhs_dilation=(d, d), dimension_numbers=("NHWC", "HWIO", "NHWC"),
        precision=jax.lax.Precision.HIGHEST)
    y = jnp.maximum(y, 0.0)
    ypad = jnp.pad(y, ((0, 0), (1, 1), (1, 1), (0, 0)), mode="reflect")
    z = jax.lax.conv_general_dilated(
        ypad, w2_hwio, window_strides=(1, 1), padding="VALID",
        dimension_numbers=("NHWC", "HWIO", "NHWC"),
        precision=jax.lax.Precision.HIGHEST)
    return jnp.transpose(x + z, (0, 3, 1, 2))


if __name__ == "__main__":
    key = jax.random.PRNGKey(0)
    kx1, kp1, kx2, kp2 = jax.random.split(key, 4)

    # --- Config 1: module's small smoke-test shape (dim=4), 9-tap fallback path.
    N, C, H, W, d = 2, 4, 16, 16, 1
    x = jax.random.normal(kx1, (N, C, H, W), jnp.float32)
    w1, w2 = init_params(C, kp1)

    fwd_bf16 = jax.jit(functools.partial(resnet_block_remove_in, dilation=d))
    fwd_fp32 = jax.jit(functools.partial(resnet_block_remove_in, dilation=d,
                                         compute_dtype=jnp.float32))
    out = fwd_bf16(x, w1, w2)
    jax.block_until_ready(out)
    assert out.shape == (N, C, H, W), out.shape

    ref = jax.jit(functools.partial(_reference_block, dilation=d))(x, w1, w2)
    out32 = fwd_fp32(x, w1, w2)
    err32 = float(jnp.max(jnp.abs(out32 - ref)))
    err16 = float(jnp.max(jnp.abs(out - ref)))
    assert err32 < 5e-3, f"fp32-compute mismatch: {err32}"
    assert err16 < 2.5e-1, f"bf16-compute mismatch: {err16}"

    # --- Config 2: lane-aligned channels (C % 128 == 0) exercising the fused
    #     single-matmul im2col path (K = 9*C), with dilation=2.
    N2, C2, H2, W2, d2 = 1, 128, 8, 8, 2
    x2 = jax.random.normal(kx2, (N2, C2, H2, W2), jnp.float32)
    w1b, w2b = init_params(C2, kp2)

    out2_32 = jax.jit(functools.partial(resnet_block_remove_in, dilation=d2,
                                        compute_dtype=jnp.float32))(x2, w1b, w2b)
    out2_16 = jax.jit(functools.partial(resnet_block_remove_in,
                                        dilation=d2))(x2, w1b, w2b)
    jax.block_until_ready((out2_32, out2_16))
    ref2 = jax.jit(functools.partial(_reference_block, dilation=d2))(x2, w1b, w2b)
    err2_32 = float(jnp.max(jnp.abs(out2_32 - ref2)))
    err2_16 = float(jnp.max(jnp.abs(out2_16 - ref2)))
    assert err2_32 < 5e-3, f"im2col fp32 mismatch: {err2_32}"
    assert err2_16 < 2.5e-1, f"im2col bf16 mismatch: {err2_16}"

    print("KERNEL_OK")
</pallas_src>

<mosaic_0001>
module attributes {stable_mosaic.version = 11 : i64} {
  func.func @_block_kernel(%arg0: i32, %arg1: memref<1x16x16x4xf32, #tpu.memory_space<vmem>>, %arg2: memref<3x3x4x4xbf16, #tpu.memory_space<vmem>>, %arg3: memref<3x3x4x4xbf16, #tpu.memory_space<vmem>>, %arg4: memref<1x16x16x4xf32, #tpu.memory_space<vmem>>, %arg5: memref<18x18x4xbf16, #tpu.memory_space<vmem>>, %arg6: memref<18x18x4xbf16, #tpu.memory_space<vmem>>) attributes {dimension_semantics = [#tpu.dimension_semantics<parallel>], iteration_bounds = array<i64: 2>, scalar_prefetch = 0 : i64, scratch_operands = 2 : i64, tpu.core_type = #tpu.core_type<tc>, window_params = [{transform_indices = @transform_0, window_bounds = array<i64: 1, 16, 16, 4>}, {pipeline_mode = #tpu.pipeline_mode<synchronous>, transform_indices = @transform_1, window_bounds = array<i64: 3, 3, 4, 4>}, {pipeline_mode = #tpu.pipeline_mode<synchronous>, transform_indices = @transform_2, window_bounds = array<i64: 3, 3, 4, 4>}, {transform_indices = @transform_3, window_bounds = array<i64: 1, 16, 16, 4>}]} {
    %c0 = arith.constant 0 : index
    %c0_0 = arith.constant 0 : index
    %c0_1 = arith.constant 0 : index
    %c0_2 = arith.constant 0 : index
    %0 = vector.load %arg1[%c0, %c0_0, %c0_1, %c0_2] : memref<1x16x16x4xf32, #tpu.memory_space<vmem>>, vector<1x16x16x4xf32>
    %1 = vector.shape_cast %0 : vector<1x16x16x4xf32> to vector<16x16x4xf32>
    %2 = arith.truncf %1 : vector<16x16x4xf32> to vector<16x16x4xbf16>
    %c1 = arith.constant 1 : index
    %c1_3 = arith.constant 1 : index
    %c0_4 = arith.constant 0 : index
    %3 = vector.load %arg5[%c1, %c1_3, %c0_4] : memref<18x18x4xbf16, #tpu.memory_space<vmem>>, vector<16x16x4xbf16>
    tpu.vector_store %arg5[%c1, %c1_3, %c0_4], %2 {strides = array<i32>} : memref<18x18x4xbf16, #tpu.memory_space<vmem>>, vector<16x16x4xbf16>,
    %c1_5 = arith.constant 1 : index
    %c2 = arith.constant 2 : index
    %c0_6 = arith.constant 0 : index
    %4 = vector.load %arg5[%c1_5, %c2, %c0_6] : memref<18x18x4xbf16, #tpu.memory_space<vmem>>, vector<16x1x4xbf16>
    %c1_7 = arith.constant 1 : index
    %c0_8 = arith.constant 0 : index
    %c0_9 = arith.constant 0 : index
    %5 = vector.load %arg5[%c1_7, %c0_8, %c0_9] : memref<18x18x4xbf16, #tpu.memory_space<vmem>>, vector<16x1x4xbf16>
    tpu.vector_store %arg5[%c1_7, %c0_8, %c0_9], %4 {strides = array<i32>} : memref<18x18x4xbf16, #tpu.memory_space<vmem>>, vector<16x1x4xbf16>,
    %c1_10 = arith.constant 1 : index
    %c15 = arith.constant 15 : index
    %c0_11 = arith.constant 0 : index
    %6 = vector.load %arg5[%c1_10, %c15, %c0_11] : memref<18x18x4xbf16, #tpu.memory_space<vmem>>, vector<16x1x4xbf16>
    %c1_12 = arith.constant 1 : index
    %c17 = arith.constant 17 : index
    %c0_13 = arith.constant 0 : index
    %7 = vector.load %arg5[%c1_12, %c17, %c0_13] : memref<18x18x4xbf16, #tpu.memory_space<vmem>>, vector<16x1x4xbf16>
    tpu.vector_store %arg5[%c1_12, %c17, %c0_13], %6 {strides = array<i32>} : memref<18x18x4xbf16, #tpu.memory_space<vmem>>, vector<16x1x4xbf16>,
    %c2_14 = arith.constant 2 : index
    %c0_15 = arith.constant 0 : index
    %c0_16 = arith.constant 0 : index
    %8 = vector.load %arg5[%c2_14, %c0_15, %c0_16] : memref<18x18x4xbf16, #tpu.memory_space<vmem>>, vector<1x18x4xbf16>
    %c0_17 = arith.constant 0 : index
    %c0_18 = arith.constant 0 : index
    %c0_19 = arith.constant 0 : index
    %9 = vector.load %arg5[%c0_17, %c0_18, %c0_19] : memref<18x18x4xbf16, #tpu.memory_space<vmem>>, vector<1x18x4xbf16>
    tpu.vector_store %arg5[%c0_17, %c0_18, %c0_19], %8 {strides = array<i32>} : memref<18x18x4xbf16, #tpu.memory_space<vmem>>, vector<1x18x4xbf16>,
    %c15_20 = arith.constant 15 : index
    %c0_21 = arith.constant 0 : index
    %c0_22 = arith.constant 0 : index
    %10 = vector.load %arg5[%c15_20, %c0_21, %c0_22] : memref<18x18x4xbf16, #tpu.memory_space<vmem>>, vector<1x18x4xbf16>
    %c17_23 = arith.constant 17 : index
    %c0_24 = arith.constant 0 : index
    %c0_25 = arith.constant 0 : index
    %11 = vector.load %arg5[%c17_23, %c0_24, %c0_25] : memref<18x18x4xbf16, #tpu.memory_space<vmem>>, vector<1x18x4xbf16>
    tpu.vector_store %arg5[%c17_23, %c0_24, %c0_25], %10 {strides = array<i32>} : memref<18x18x4xbf16, #tpu.memory_space<vmem>>, vector<1x18x4xbf16>,
    %c0_26 = arith.constant 0 : index
    %c0_27 = arith.constant 0 : index
    %c0_28 = arith.constant 0 : index
    %12 = vector.load %arg5[%c0_26, %c0_27, %c0_28] : memref<18x18x4xbf16, #tpu.memory_space<vmem>>, vector<18x18x4xbf16>
    %cst = arith.constant 0.000000e+00 : f32
    %13 = vector.broadcast %cst : f32 to vector<16x16x4xf32>
    %14 = vector.extract_strided_slice %12 {offsets = [0, 0, 0], sizes = [16, 16, 4], strides = [1, 1, 1]} : vector<18x18x4xbf16> to vector<16x16x4xbf16>
    %c0_29 = arith.constant 0 : index
    %c0_30 = arith.constant 0 : index
    %c0_31 = arith.constant 0 : index
    %c0_32 = arith.constant 0 : index
    %15 = vector.load %arg2[%c0_29, %c0_30, %c0_31, %c0_32] : memref<3x3x4x4xbf16, #tpu.memory_space<vmem>>, vector<1x1x4x4xbf16>
    %16 = vector.shape_cast %15 : vector<1x1x4x4xbf16> to vector<4x4xbf16>
    %cst_33 = arith.constant dense<0.000000e+00> : vector<16x16x4xf32>
    %17 = tpu.matmul %14, %16, %cst_33 {dimension_numbers = #tpu.dot_dimension_numbers<[2], [0], [0, 1], [1], [0, 0, 0, 1, 1, 1], [], []>} : vector<16x16x4xbf16>, vector<4x4xbf16>, vector<16x16x4xf32> -> vector<16x16x4xf32>
    %18 = arith.addf %13, %17 : vector<16x16x4xf32>
    %19 = vector.extract_strided_slice %12 {offsets = [0, 1, 0], sizes = [16, 16, 4], strides = [1, 1, 1]} : vector<18x18x4xbf16> to vector<16x16x4xbf16>
    %c0_34 = arith.constant 0 : index
    %c1_35 = arith.constant 1 : index
    %c0_36 = arith.constant 0 : index
    %c0_37 = arith.constant 0 : index
    %20 = vector.load %arg2[%c0_34, %c1_35, %c0_36, %c0_37] : memref<3x3x4x4xbf16, #tpu.memory_space<vmem>>, vector<1x1x4x4xbf16>
    %21 = vector.shape_cast %20 : vector<1x1x4x4xbf16> to vector<4x4xbf16>
    %cst_38 = arith.constant dense<0.000000e+00> : vector<16x16x4xf32>
    %22 = tpu.matmul %19, %21, %cst_38 {dimension_numbers = #tpu.dot_dimension_numbers<[2], [0], [0, 1], [1], [0, 0, 0, 1, 1, 1], [], []>} : vector<16x16x4xbf16>, vector<4x4xbf16>, vector<16x16x4xf32> -> vector<16x16x4xf32>
    %23 = arith.addf %18, %22 : vector<16x16x4xf32>
    %24 = vector.extract_strided_slice %12 {offsets = [0, 2, 0], sizes = [16, 16, 4], strides = [1, 1, 1]} : vector<18x18x4xbf16> to vector<16x16x4xbf16>
    %c0_39 = arith.constant 0 : index
    %c2_40 = arith.constant 2 : index
    %c0_41 = arith.constant 0 : index
    %c0_42 = arith.constant 0 : index
    %25 = vector.load %arg2[%c0_39, %c2_40, %c0_41, %c0_42] : memref<3x3x4x4xbf16, #tpu.memory_space<vmem>>, vector<1x1x4x4xbf16>
    %26 = vector.shape_cast %25 : vector<1x1x4x4xbf16> to vector<4x4xbf16>
    %cst_43 = arith.constant dense<0.000000e+00> : vector<16x16x4xf32>
    %27 = tpu.matmul %24, %26, %cst_43 {dimension_numbers = #tpu.dot_dimension_numbers<[2], [0], [0, 1], [1], [0, 0, 0, 1, 1, 1], [], []>} : vector<16x16x4xbf16>, vector<4x4xbf16>, vector<16x16x4xf32> -> vector<16x16x4xf32>
    %28 = arith.addf %23, %27 : vector<16x16x4xf32>
    %29 = vector.extract_strided_slice %12 {offsets = [1, 0, 0], sizes = [16, 16, 4], strides = [1, 1, 1]} : vector<18x18x4xbf16> to vector<16x16x4xbf16>
    %c1_44 = arith.constant 1 : index
    %c0_45 = arith.constant 0 : index
    %c0_46 = arith.constant 0 : index
    %c0_47 = arith.constant 0 : index
    %30 = vector.load %arg2[%c1_44, %c0_45, %c0_46, %c0_47] : memref<3x3x4x4xbf16, #tpu.memory_space<vmem>>, vector<1x1x4x4xbf16>
    %31 = vector.shape_cast %30 : vector<1x1x4x4xbf16> to vector<4x4xbf16>
    %cst_48 = arith.constant dense<0.000000e+00> : vector<16x16x4xf32>
    %32 = tpu.matmul %29, %31, %cst_48 {dimension_numbers = #tpu.dot_dimension_numbers<[2], [0], [0, 1], [1], [0, 0, 0, 1, 1, 1], [], []>} : vector<16x16x4xbf16>, vector<4x4xbf16>, vector<16x16x4xf32> -> vector<16x16x4xf32>
    %33 = arith.addf %28, %32 : vector<16x16x4xf32>
    %34 = vector.extract_strided_slice %12 {offsets = [1, 1, 0], sizes = [16, 16, 4], strides = [1, 1, 1]} : vector<18x18x4xbf16> to vector<16x16x4xbf16>
    %c1_49 = arith.constant 1 : index
    %c1_50 = arith.constant 1 : index
    %c0_51 = arith.constant 0 : index
    %c0_52 = arith.constant 0 : index
    %35 = vector.load %arg2[%c1_49, %c1_50, %c0_51, %c0_52] : memref<3x3x4x4xbf16, #tpu.memory_space<vmem>>, vector<1x1x4x4xbf16>
    %36 = vector.shape_cast %35 : vector<1x1x4x4xbf16> to vector<4x4xbf16>
    %cst_53 = arith.constant dense<0.000000e+00> : vector<16x16x4xf32>
    %37 = tpu.matmul %34, %36, %cst_53 {dimension_numbers = #tpu.dot_dimension_numbers<[2], [0], [0, 1], [1], [0, 0, 0, 1, 1, 1], [], []>} : vector<16x16x4xbf16>, vector<4x4xbf16>, vector<16x16x4xf32> -> vector<16x16x4xf32>
    %38 = arith.addf %33, %37 : vector<16x16x4xf32>
    %39 = vector.extract_strided_slice %12 {offsets = [1, 2, 0], sizes = [16, 16, 4], strides = [1, 1, 1]} : vector<18x18x4xbf16> to vector<16x16x4xbf16>
    %c1_54 = arith.constant 1 : index
    %c2_55 = arith.constant 2 : index
    %c0_56 = arith.constant 0 : index
    %c0_57 = arith.constant 0 : index
    %40 = vector.load %arg2[%c1_54, %c2_55, %c0_56, %c0_57] : memref<3x3x4x4xbf16, #tpu.memory_space<vmem>>, vector<1x1x4x4xbf16>
    %41 = vector.shape_cast %40 : vector<1x1x4x4xbf16> to vector<4x4xbf16>
    %cst_58 = arith.constant dense<0.000000e+00> : vector<16x16x4xf32>
    %42 = tpu.matmul %39, %41, %cst_58 {dimension_numbers = #tpu.dot_dimension_numbers<[2], [0], [0, 1], [1], [0, 0, 0, 1, 1, 1], [], []>} : vector<16x16x4xbf16>, vector<4x4xbf16>, vector<16x16x4xf32> -> vector<16x16x4xf32>
    %43 = arith.addf %38, %42 : vector<16x16x4xf32>
    %44 = vector.extract_strided_slice %12 {offsets = [2, 0, 0], sizes = [16, 16, 4], strides = [1, 1, 1]} : vector<18x18x4xbf16> to vector<16x16x4xbf16>
    %c2_59 = arith.constant 2 : index
    %c0_60 = arith.constant 0 : index
    %c0_61 = arith.constant 0 : index
    %c0_62 = arith.constant 0 : index
    %45 = vector.load %arg2[%c2_59, %c0_60, %c0_61, %c0_62] : memref<3x3x4x4xbf16, #tpu.memory_space<vmem>>, vector<1x1x4x4xbf16>
    %46 = vector.shape_cast %45 : vector<1x1x4x4xbf16> to vector<4x4xbf16>
    %cst_63 = arith.constant dense<0.000000e+00> : vector<16x16x4xf32>
    %47 = tpu.matmul %44, %46, %cst_63 {dimension_numbers = #tpu.dot_dimension_numbers<[2], [0], [0, 1], [1], [0, 0, 0, 1, 1, 1], [], []>} : vector<16x16x4xbf16>, vector<4x4xbf16>, vector<16x16x4xf32> -> vector<16x16x4xf32>
    %48 = arith.addf %43, %47 : vector<16x16x4xf32>
    %49 = vector.extract_strided_slice %12 {offsets = [2, 1, 0], sizes = [16, 16, 4], strides = [1, 1, 1]} : vector<18x18x4xbf16> to vector<16x16x4xbf16>
    %c2_64 = arith.constant 2 : index
    %c1_65 = arith.constant 1 : index
    %c0_66 = arith.constant 0 : index
    %c0_67 = arith.constant 0 : index
    %50 = vector.load %arg2[%c2_64, %c1_65, %c0_66, %c0_67] : memref<3x3x4x4xbf16, #tpu.memory_space<vmem>>, vector<1x1x4x4xbf16>
    %51 = vector.shape_cast %50 : vector<1x1x4x4xbf16> to vector<4x4xbf16>
    %cst_68 = arith.constant dense<0.000000e+00> : vector<16x16x4xf32>
    %52 = tpu.matmul %49, %51, %cst_68 {dimension_numbers = #tpu.dot_dimension_numbers<[2], [0], [0, 1], [1], [0, 0, 0, 1, 1, 1], [], []>} : vector<16x16x4xbf16>, vector<4x4xbf16>, vector<16x16x4xf32> -> vector<16x16x4xf32>
    %53 = arith.addf %48, %52 : vector<16x16x4xf32>
    %54 = vector.extract_strided_slice %12 {offsets = [2, 2, 0], sizes = [16, 16, 4], strides = [1, 1, 1]} : vector<18x18x4xbf16> to vector<16x16x4xbf16>
    %c2_69 = arith.constant 2 : index
    %c2_70 = arith.constant 2 : index
    %c0_71 = arith.constant 0 : index
    %c0_72 = arith.constant 0 : index
    %55 = vector.load %arg2[%c2_69, %c2_70, %c0_71, %c0_72] : memref<3x3x4x4xbf16, #tpu.memory_space<vmem>>, vector<1x1x4x4xbf16>
    %56 = vector.shape_cast %55 : vector<1x1x4x4xbf16> to vector<4x4xbf16>
    %cst_73 = arith.constant dense<0.000000e+00> : vector<16x16x4xf32>
    %57 = tpu.matmul %54, %56, %cst_73 {dimension_numbers = #tpu.dot_dimension_numbers<[2], [0], [0, 1], [1], [0, 0, 0, 1, 1, 1], [], []>} : vector<16x16x4xbf16>, vector<4x4xbf16>, vector<16x16x4xf32> -> vector<16x16x4xf32>
    %58 = arith.addf %53, %57 : vector<16x16x4xf32>
    %cst_74 = arith.constant 0.000000e+00 : f32
    %59 = vector.broadcast %cst_74 : f32 to vector<16x16x4xf32>
    %60 = arith.maximumf %58, %59 : vector<16x16x4xf32>
    %61 = arith.truncf %60 : vector<16x16x4xf32> to vector<16x16x4xbf16>
    %c1_75 = arith.constant 1 : index
    %c1_76 = arith.constant 1 : index
    %c0_77 = arith.constant 0 : index
    %62 = vector.load %arg6[%c1_75, %c1_76, %c0_77] : memref<18x18x4xbf16, #tpu.memory_space<vmem>>, vector<16x16x4xbf16>
    tpu.vector_store %arg6[%c1_75, %c1_76, %c0_77], %61 {strides = array<i32>} : memref<18x18x4xbf16, #tpu.memory_space<vmem>>, vector<16x16x4xbf16>,
    %c1_78 = arith.constant 1 : index
    %c2_79 = arith.constant 2 : index
    %c0_80 = arith.constant 0 : index
    %63 = vector.load %arg6[%c1_78, %c2_79, %c0_80] : memref<18x18x4xbf16, #tpu.memory_space<vmem>>, vector<16x1x4xbf16>
    %c1_81 = arith.constant 1 : index
    %c0_82 = arith.constant 0 : index
    %c0_83 = arith.constant 0 : index
    %64 = vector.load %arg6[%c1_81, %c0_82, %c0_83] : memref<18x18x4xbf16, #tpu.memory_space<vmem>>, vector<16x1x4xbf16>
    tpu.vector_store %arg6[%c1_81, %c0_82, %c0_83], %63 {strides = array<i32>} : memref<18x18x4xbf16, #tpu.memory_space<vmem>>, vector<16x1x4xbf16>,
    %c1_84 = arith.constant 1 : index
    %c15_85 = arith.constant 15 : index
    %c0_86 = arith.constant 0 : index
    %65 = vector.load %arg6[%c1_84, %c15_85, %c0_86] : memref<18x18x4xbf16, #tpu.memory_space<vmem>>, vector<16x1x4xbf16>
    %c1_87 = arith.constant 1 : index
    %c17_88 = arith.constant 17 : index
    %c0_89 = arith.constant 0 : index
    %66 = vector.load %arg6[%c1_87, %c17_88, %c0_89] : memref<18x18x4xbf16, #tpu.memory_space<vmem>>, vector<16x1x4xbf16>
    tpu.vector_store %arg6[%c1_87, %c17_88, %c0_89], %65 {strides = array<i32>} : memref<18x18x4xbf16, #tpu.memory_space<vmem>>, vector<16x1x4xbf16>,
    %c2_90 = arith.constant 2 : index
    %c0_91 = arith.constant 0 : index
    %c0_92 = arith.constant 0 : index
    %67 = vector.load %arg6[%c2_90, %c0_91, %c0_92] : memref<18x18x4xbf16, #tpu.memory_space<vmem>>, vector<1x18x4xbf16>
    %c0_93 = arith.constant 0 : index
    %c0_94 = arith.constant 0 : index
    %c0_95 = arith.constant 0 : index
    %68 = vector.load %arg6[%c0_93, %c0_94, %c0_95] : memref<18x18x4xbf16, #tpu.memory_space<vmem>>, vector<1x18x4xbf16>
    tpu.vector_store %arg6[%c0_93, %c0_94, %c0_95], %67 {strides = array<i32>} : memref<18x18x4xbf16, #tpu.memory_space<vmem>>, vector<1x18x4xbf16>,
    %c15_96 = arith.constant 15 : index
    %c0_97 = arith.constant 0 : index
    %c0_98 = arith.constant 0 : index
    %69 = vector.load %arg6[%c15_96, %c0_97, %c0_98] : memref<18x18x4xbf16, #tpu.memory_space<vmem>>, vector<1x18x4xbf16>
    %c17_99 = arith.constant 17 : index
    %c0_100 = arith.constant 0 : index
    %c0_101 = arith.constant 0 : index
    %70 = vector.load %arg6[%c17_99, %c0_100, %c0_101] : memref<18x18x4xbf16, #tpu.memory_space<vmem>>, vector<1x18x4xbf16>
    tpu.vector_store %arg6[%c17_99, %c0_100, %c0_101], %69 {strides = array<i32>} : memref<18x18x4xbf16, #tpu.memory_space<vmem>>, vector<1x18x4xbf16>,
    %c0_102 = arith.constant 0 : index
    %c0_103 = arith.constant 0 : index
    %c0_104 = arith.constant 0 : index
    %71 = vector.load %arg6[%c0_102, %c0_103, %c0_104] : memref<18x18x4xbf16, #tpu.memory_space<vmem>>, vector<18x18x4xbf16>
    %cst_105 = arith.constant 0.000000e+00 : f32
    %72 = vector.broadcast %cst_105 : f32 to vector<16x16x4xf32>
    %73 = vector.extract_strided_slice %71 {offsets = [0, 0, 0], sizes = [16, 16, 4], strides = [1, 1, 1]} : vector<18x18x4xbf16> to vector<16x16x4xbf16>
    %c0_106 = arith.constant 0 : index
    %c0_107 = arith.constant 0 : index
    %c0_108 = arith.constant 0 : index
    %c0_109 = arith.constant 0 : index
    %74 = vector.load %arg3[%c0_106, %c0_107, %c0_108, %c0_109] : memref<3x3x4x4xbf16, #tpu.memory_space<vmem>>, vector<1x1x4x4xbf16>
    %75 = vector.shape_cast %74 : vector<1x1x4x4xbf16> to vector<4x4xbf16>
    %cst_110 = arith.constant dense<0.000000e+00> : vector<16x16x4xf32>
    %76 = tpu.matmul %73, %75, %cst_110 {dimension_numbers = #tpu.dot_dimension_numbers<[2], [0], [0, 1], [1], [0, 0, 0, 1, 1, 1], [], []>} : vector<16x16x4xbf16>, vector<4x4xbf16>, vector<16x16x4xf32> -> vector<16x16x4xf32>
    %77 = arith.addf %72, %76 : vector<16x16x4xf32>
    %78 = vector.extract_strided_slice %71 {offsets = [0, 1, 0], sizes = [16, 16, 4], strides = [1, 1, 1]} : vector<18x18x4xbf16> to vector<16x16x4xbf16>
    %c0_111 = arith.constant 0 : index
    %c1_112 = arith.constant 1 : index
    %c0_113 = arith.constant 0 : index
    %c0_114 = arith.constant 0 : index
    %79 = vector.load %arg3[%c0_111, %c1_112, %c0_113, %c0_114] : memref<3x3x4x4xbf16, #tpu.memory_space<vmem>>, vector<1x1x4x4xbf16>
    %80 = vector.shape_cast %79 : vector<1x1x4x4xbf16> to vector<4x4xbf16>
    %cst_115 = arith.constant dense<0.000000e+00> : vector<16x16x4xf32>
    %81 = tpu.matmul %78, %80, %cst_115 {dimension_numbers = #tpu.dot_dimension_numbers<[2], [0], [0, 1], [1], [0, 0, 0, 1, 1, 1], [], []>} : vector<16x16x4xbf16>, vector<4x4xbf16>, vector<16x16x4xf32> -> vector<16x16x4xf32>
    %82 = arith.addf %77, %81 : vector<16x16x4xf32>
    %83 = vector.extract_strided_slice %71 {offsets = [0, 2, 0], sizes = [16, 16, 4], strides = [1, 1, 1]} : vector<18x18x4xbf16> to vector<16x16x4xbf16>
    %c0_116 = arith.constant 0 : index
    %c2_117 = arith.constant 2 : index
    %c0_118 = arith.constant 0 : index
    %c0_119 = arith.constant 0 : index
    %84 = vector.load %arg3[%c0_116, %c2_117, %c0_118, %c0_119] : memref<3x3x4x4xbf16, #tpu.memory_space<vmem>>, vector<1x1x4x4xbf16>
    %85 = vector.shape_cast %84 : vector<1x1x4x4xbf16> to vector<4x4xbf16>
    %cst_120 = arith.constant dense<0.000000e+00> : vector<16x16x4xf32>
    %86 = tpu.matmul %83, %85, %cst_120 {dimension_numbers = #tpu.dot_dimension_numbers<[2], [0], [0, 1], [1], [0, 0, 0, 1, 1, 1], [], []>} : vector<16x16x4xbf16>, vector<4x4xbf16>, vector<16x16x4xf32> -> vector<16x16x4xf32>
    %87 = arith.addf %82, %86 : vector<16x16x4xf32>
    %88 = vector.extract_strided_slice %71 {offsets = [1, 0, 0], sizes = [16, 16, 4], strides = [1, 1, 1]} : vector<18x18x4xbf16> to vector<16x16x4xbf16>
    %c1_121 = arith.constant 1 : index
    %c0_122 = arith.constant 0 : index
    %c0_123 = arith.constant 0 : index
    %c0_124 = arith.constant 0 : index
    %89 = vector.load %arg3[%c1_121, %c0_122, %c0_123, %c0_124] : memref<3x3x4x4xbf16, #tpu.memory_space<vmem>>, vector<1x1x4x4xbf16>
    %90 = vector.shape_cast %89 : vector<1x1x4x4xbf16> to vector<4x4xbf16>
    %cst_125 = arith.constant dense<0.000000e+00> : vector<16x16x4xf32>
    %91 = tpu.matmul %88, %90, %cst_125 {dimension_numbers = #tpu.dot_dimension_numbers<[2], [0], [0, 1], [1], [0, 0, 0, 1, 1, 1], [], []>} : vector<16x16x4xbf16>, vector<4x4xbf16>, vector<16x16x4xf32> -> vector<16x16x4xf32>
    %92 = arith.addf %87, %91 : vector<16x16x4xf32>
    %93 = vector.extract_strided_slice %71 {offsets = [1, 1, 0], sizes = [16, 16, 4], strides = [1, 1, 1]} : vector<18x18x4xbf16> to vector<16x16x4xbf16>
    %c1_126 = arith.constant 1 : index
    %c1_127 = arith.constant 1 : index
    %c0_128 = arith.constant 0 : index
    %c0_129 = arith.constant 0 : index
    %94 = vector.load %arg3[%c1_126, %c1_127, %c0_128, %c0_129] : memref<3x3x4x4xbf16, #tpu.memory_space<vmem>>, vector<1x1x4x4xbf16>
    %95 = vector.shape_cast %94 : vector<1x1x4x4xbf16> to vector<4x4xbf16>
    %cst_130 = arith.constant dense<0.000000e+00> : vector<16x16x4xf32>
    %96 = tpu.matmul %93, %95, %cst_130 {dimension_numbers = #tpu.dot_dimension_numbers<[2], [0], [0, 1], [1], [0, 0, 0, 1, 1, 1], [], []>} : vector<16x16x4xbf16>, vector<4x4xbf16>, vector<16x16x4xf32> -> vector<16x16x4xf32>
    %97 = arith.addf %92, %96 : vector<16x16x4xf32>
    %98 = vector.extract_strided_slice %71 {offsets = [1, 2, 0], sizes = [16, 16, 4], strides = [1, 1, 1]} : vector<18x18x4xbf16> to vector<16x16x4xbf16>
    %c1_131 = arith.constant 1 : index
    %c2_132 = arith.constant 2 : index
    %c0_133 = arith.constant 0 : index
    %c0_134 = arith.constant 0 : index
    %99 = vector.load %arg3[%c1_131, %c2_132, %c0_133, %c0_134] : memref<3x3x4x4xbf16, #tpu.memory_space<vmem>>, vector<1x1x4x4xbf16>
    %100 = vector.shape_cast %99 : vector<1x1x4x4xbf16> to vector<4x4xbf16>
    %cst_135 = arith.constant dense<0.000000e+00> : vector<16x16x4xf32>
    %101 = tpu.matmul %98, %100, %cst_135 {dimension_numbers = #tpu.dot_dimension_numbers<[2], [0], [0, 1], [1], [0, 0, 0, 1, 1, 1], [], []>} : vector<16x16x4xbf16>, vector<4x4xbf16>, vector<16x16x4xf32> -> vector<16x16x4xf32>
    %102 = arith.addf %97, %101 : vector<16x16x4xf32>
    %103 = vector.extract_strided_slice %71 {offsets = [2, 0, 0], sizes = [16, 16, 4], strides = [1, 1, 1]} : vector<18x18x4xbf16> to vector<16x16x4xbf16>
    %c2_136 = arith.constant 2 : index
    %c0_137 = arith.constant 0 : index
    %c0_138 = arith.constant 0 : index
    %c0_139 = arith.constant 0 : index
    %104 = vector.load %arg3[%c2_136, %c0_137, %c0_138, %c0_139] : memref<3x3x4x4xbf16, #tpu.memory_space<vmem>>, vector<1x1x4x4xbf16>
    %105 = vector.shape_cast %104 : vector<1x1x4x4xbf16> to vector<4x4xbf16>
    %cst_140 = arith.constant dense<0.000000e+00> : vector<16x16x4xf32>
    %106 = tpu.matmul %103, %105, %cst_140 {dimension_numbers = #tpu.dot_dimension_numbers<[2], [0], [0, 1], [1], [0, 0, 0, 1, 1, 1], [], []>} : vector<16x16x4xbf16>, vector<4x4xbf16>, vector<16x16x4xf32> -> vector<16x16x4xf32>
    %107 = arith.addf %102, %106 : vector<16x16x4xf32>
    %108 = vector.extract_strided_slice %71 {offsets = [2, 1, 0], sizes = [16, 16, 4], strides = [1, 1, 1]} : vector<18x18x4xbf16> to vector<16x16x4xbf16>
    %c2_141 = arith.constant 2 : index
    %c1_142 = arith.constant 1 : index
    %c0_143 = arith.constant 0 : index
    %c0_144 = arith.constant 0 : index
    %109 = vector.load %arg3[%c2_141, %c1_142, %c0_143, %c0_144] : memref<3x3x4x4xbf16, #tpu.memory_space<vmem>>, vector<1x1x4x4xbf16>
    %110 = vector.shape_cast %109 : vector<1x1x4x4xbf16> to vector<4x4xbf16>
    %cst_145 = arith.constant dense<0.000000e+00> : vector<16x16x4xf32>
    %111 = tpu.matmul %108, %110, %cst_145 {dimension_numbers = #tpu.dot_dimension_numbers<[2], [0], [0, 1], [1], [0, 0, 0, 1, 1, 1], [], []>} : vector<16x16x4xbf16>, vector<4x4xbf16>, vector<16x16x4xf32> -> vector<16x16x4xf32>
    %112 = arith.addf %107, %111 : vector<16x16x4xf32>
    %113 = vector.extract_strided_slice %71 {offsets = [2, 2, 0], sizes = [16, 16, 4], strides = [1, 1, 1]} : vector<18x18x4xbf16> to vector<16x16x4xbf16>
    %c2_146 = arith.constant 2 : index
    %c2_147 = arith.constant 2 : index
    %c0_148 = arith.constant 0 : index
    %c0_149 = arith.constant 0 : index
    %114 = vector.load %arg3[%c2_146, %c2_147, %c0_148, %c0_149] : memref<3x3x4x4xbf16, #tpu.memory_space<vmem>>, vector<1x1x4x4xbf16>
    %115 = vector.shape_cast %114 : vector<1x1x4x4xbf16> to vector<4x4xbf16>
    %cst_150 = arith.constant dense<0.000000e+00> : vector<16x16x4xf32>
    %116 = tpu.matmul %113, %115, %cst_150 {dimension_numbers = #tpu.dot_dimension_numbers<[2], [0], [0, 1], [1], [0, 0, 0, 1, 1, 1], [], []>} : vector<16x16x4xbf16>, vector<4x4xbf16>, vector<16x16x4xf32> -> vector<16x16x4xf32>
    %117 = arith.addf %112, %116 : vector<16x16x4xf32>
    %c0_151 = arith.constant 0 : index
    %c0_152 = arith.constant 0 : index
    %c0_153 = arith.constant 0 : index
    %c0_154 = arith.constant 0 : index
    %118 = vector.load %arg1[%c0_151, %c0_152, %c0_153, %c0_154] : memref<1x16x16x4xf32, #tpu.memory_space<vmem>>, vector<1x16x16x4xf32>
    %119 = vector.shape_cast %118 : vector<1x16x16x4xf32> to vector<16x16x4xf32>
    %120 = arith.addf %119, %117 : vector<16x16x4xf32>
    %c0_155 = arith.constant 0 : index
    %c0_156 = arith.constant 0 : index
    %c0_157 = arith.constant 0 : index
    %c0_158 = arith.constant 0 : index
    %121 = vector.load %arg4[%c0_155, %c0_156, %c0_157, %c0_158] : memref<1x16x16x4xf32, #tpu.memory_space<vmem>>, vector<1x16x16x4xf32>
    %122 = vector.shape_cast %121 : vector<1x16x16x4xf32> to vector<16x16x4xf32>
    %123 = vector.shape_cast %120 : vector<16x16x4xf32> to vector<1x16x16x4xf32>
    tpu.vector_store %arg4[%c0_155, %c0_156, %c0_157, %c0_158], %123 {strides = array<i32>} : memref<1x16x16x4xf32, #tpu.memory_space<vmem>>, vector<1x16x16x4xf32>,
    return
  }
  func.func @transform_0(%arg0: i32) -> (i32, i32, i32, i32) {
    %c0_i32 = arith.constant 0 : i32
    %c0_i32_0 = arith.constant 0 : i32
    %c0_i32_1 = arith.constant 0 : i32
    %c0_i32_2 = arith.constant 0 : i32
    return %arg0, %c0_i32, %c0_i32_0, %c0_i32_1 : i32, i32, i32, i32
  }
  func.func @transform_1(%arg0: i32) -> (i32, i32, i32, i32) {
    %c0_i32 = arith.constant 0 : i32
    %c0_i32_0 = arith.constant 0 : i32
    %c0_i32_1 = arith.constant 0 : i32
    %c0_i32_2 = arith.constant 0 : i32
    %c0_i32_3 = arith.constant 0 : i32
    return %c0_i32, %c0_i32_0, %c0_i32_1, %c0_i32_2 : i32, i32, i32, i32
  }
  func.func @transform_2(%arg0: i32) -> (i32, i32, i32, i32) {
    %c0_i32 = arith.constant 0 : i32
    %c0_i32_0 = arith.constant 0 : i32
    %c0_i32_1 = arith.constant 0 : i32
    %c0_i32_2 = arith.constant 0 : i32
    %c0_i32_3 = arith.constant 0 : i32
    return %c0_i32, %c0_i32_0, %c0_i32_1, %c0_i32_2 : i32, i32, i32, i32
  }
  func.func @transform_3(%arg0: i32) -> (i32, i32, i32, i32) {
    %c0_i32 = arith.constant 0 : i32
    %c0_i32_0 = arith.constant 0 : i32
    %c0_i32_1 = arith.constant 0 : i32
    %c0_i32_2 = arith.constant 0 : i32
    return %arg0, %c0_i32, %c0_i32_0, %c0_i32_1 : i32, i32, i32, i32
  }
}

</mosaic_0001>

<llo_original>
// kernel: resnet_block_remove_in.1
$region0: #{resnet_block_remove_in.1}
  #allocation0 [shape = 'u32[]', space=smem, size = 0x4, offset = 0x4, fixed_abs, tag = 'smem constant byte address 0x4 - core index']
  #allocation1 [shape = 'u32[144,128]{1,0:T(1,128)}', space=vmem, size = 0x12000, scoped, tag = 'internal scratch']
  #allocation2 [shape = 'bf16[18,18,4]{2,1,0:T(8,128)(2,1)}', space=vmem, size = 0x1b000, scoped, tag = 'scratch operand']
  #allocation3 [shape = 'bf16[18,18,4]{2,1,0:T(8,128)(2,1)}', space=vmem, size = 0x1b000, scoped, tag = 'scratch operand']
  %s0 = inlined_call_operand.vmem [shape: f32[2,16,16,4], index: 0, kind: input, shape index: {}]
  %s1 = inlined_call_operand.vmem [shape: bf16[3,3,4,4], index: 1, kind: input, shape index: {}]
  %s2 = inlined_call_operand.vmem [shape: bf16[3,3,4,4], index: 2, kind: input, shape index: {}]
  %s3 = inlined_call_operand.vmem [shape: f32[2,16,16,4], index: 3, kind: output, shape index: {}]
  %s4 = sld [smem:[#allocation0]]
  $region45: #{resnet_block_remove_in.1} parent=0
    _
  %s6 = ssub.s32 1, %s4
  %s7 = scalar_select 0, %s6, %s4
  loop: start=0, step=1, limit=4
  $region2: #{resnet_block_remove_in.1} parent=0 // loop_pre_header
    _
  $region3: #{resnet_block_remove_in.1} parent=0 // loop_header
    %s9 = sphi 0, %s13
    %p10 = scmp.ge.s32.totalorder %s9, 4
    %s19 = sphi 0, %s21
    %s22 = sphi 0, %s19
    %s23 = sphi 0, %s22
    %s39 = sphi 0, %s23
    %s43 = sphi 0, %s43
    %s45 = sphi 0, %s43
    %s46 = sphi 0, %s45
    %s60 = sphi 0, %s46
    %s64 = sphi 0, %s64
    %s66 = sphi 0, %s64
    %s67 = sphi 0, %s66
    %s81 = sphi 0, %s67
    %s87 = sphi 0, %s89
    %s90 = sphi 0, %s87
    %s91 = sphi 0, %s90
    %s107 = sphi 0, %s91
  $region4: #{resnet_block_remove_in.1} parent=0 // loop_header_branch
    %12 = sbr.rel (%p10) target = $region8
  $region5: #{resnet_block_remove_in.1} parent=0 // loop_body
    %s14 = ssub.s32 %s9, 1
    %s15 = ssub.s32 %s9, 2
    %s16 = sadd.s32 %s9, 1
    %s17 = ssub.s32 %s9, %s16
    %p18 = scmp.eq.s32.totalorder %s17, 0
    %s20 = sadd.s32 %s19, 1
    %s21 = scalar_select %p18, %s19, %s20
    %p24 = pneg %p18
    %p25 = scmp.eq.s32.totalorder %s9, 1
    %p26 = por %p24, %p25
    %p27 = scmp.ne.s32.totalorder %s19, %s22
    %p28 = scmp.eq.s32.totalorder %s9, 0
    %p29 = por %p27, %p28
    %p30 = scmp.ne.s32.totalorder %s19, %s22
    %p31 = scmp.eq.s32.totalorder %s14, 1
    %p32 = por %p30, %p31
    %p33 = scmp.ne.s32.totalorder %s22, %s23
    %p34 = scmp.eq.s32.totalorder %s14, 0
    %p35 = por %p33, %p34
    %p36 = scmp.ne.s32.totalorder %s22, %s23
    %p37 = scmp.eq.s32.totalorder %s15, 1
    %p38 = por %p36, %p37
    %p40 = scmp.ne.s32.totalorder %s23, %s39
    %p41 = scmp.eq.s32.totalorder %s15, 0
    %p42 = por %p40, %p41
    %s44 = sadd.s32 %s43, 1
    %p47 = scmp.eq.s32.totalorder %s9, 1
    %p48 = scmp.ne.s32.totalorder %s43, %s45
    %p49 = scmp.eq.s32.totalorder %s9, 0
    %p50 = por %p48, %p49
    %p51 = scmp.ne.s32.totalorder %s43, %s45
    %p52 = scmp.eq.s32.totalorder %s14, 1
    %p53 = por %p51, %p52
    %p54 = scmp.ne.s32.totalorder %s45, %s46
    %p55 = scmp.eq.s32.totalorder %s14, 0
    %p56 = por %p54, %p55
    %p57 = scmp.ne.s32.totalorder %s45, %s46
    %p58 = scmp.eq.s32.totalorder %s15, 1
    %p59 = por %p57, %p58
    %p61 = scmp.ne.s32.totalorder %s46, %s60
    %p62 = scmp.eq.s32.totalorder %s15, 0
    %p63 = por %p61, %p62
    %s65 = sadd.s32 %s64, 1
    %p68 = scmp.eq.s32.totalorder %s9, 1
    %p69 = scmp.ne.s32.totalorder %s64, %s66
    %p70 = scmp.eq.s32.totalorder %s9, 0
    %p71 = por %p69, %p70
    %p72 = scmp.ne.s32.totalorder %s64, %s66
    %p73 = scmp.eq.s32.totalorder %s14, 1
    %p74 = por %p72, %p73
    %p75 = scmp.ne.s32.totalorder %s66, %s67
    %p76 = scmp.eq.s32.totalorder %s14, 0
    %p77 = por %p75, %p76
    %p78 = scmp.ne.s32.totalorder %s66, %s67
    %p79 = scmp.eq.s32.totalorder %s15, 1
    %p80 = por %p78, %p79
    %p82 = scmp.ne.s32.totalorder %s67, %s81
    %p83 = scmp.eq.s32.totalorder %s15, 0
    %p84 = por %p82, %p83
    %s85 = ssub.s32 %s9, %s16
    %p86 = scmp.eq.s32.totalorder %s85, 0
    %s88 = sadd.s32 %s87, 1
    %s89 = scalar_select %p86, %s87, %s88
    %p92 = pneg %p86
    %p93 = scmp.eq.s32.totalorder %s9, 1
    %p94 = por %p92, %p93
    %p95 = scmp.ne.s32.totalorder %s87, %s90
    %p96 = scmp.eq.s32.totalorder %s9, 0
    %p97 = por %p95, %p96
    %p98 = scmp.ne.s32.totalorder %s87, %s90
    %p99 = scmp.eq.s32.totalorder %s14, 1
    %p100 = por %p98, %p99
    %p101 = scmp.ne.s32.totalorder %s90, %s91
    %p102 = scmp.eq.s32.totalorder %s14, 0
    %p103 = por %p101, %p102
    %p104 = scmp.ne.s32.totalorder %s90, %s91
    %p105 = scmp.eq.s32.totalorder %s15, 1
    %p106 = por %p104, %p105
    %p108 = scmp.ne.s32.totalorder %s91, %s107
    %p109 = scmp.eq.s32.totalorder %s15, 0
    %p110 = por %p108, %p109
    %p111 = scmp.le.s32.totalorder 1, %s9
    %p112 = scmp.lt.s32.totalorder %s9, 3
    %p113 = pnand %p111, %p112
    %p114 = pneg %p113
    // Predicated region
    $region9: #{resnet_block_remove_in.1} parent=5 // pred_check
      _
    $region10: #{resnet_block_remove_in.1} parent=5 // pred_check_branch
      %116 = sbr.rel (%p113) target = $region12
    $region11: #{resnet_block_remove_in.1} parent=5 // pred_region
      %s117 = ssub.s32 %s9, 1
      // Predicated region
      $region13: #{resnet_block_remove_in.1} parent=11 // pred_check
        %p118 = pneg %p56
      $region14: #{resnet_block_remove_in.1} parent=11 // pred_check_branch
        %120 = sbr.rel (%p118) target = $region16
      $region15: #{resnet_block_remove_in.1} parent=11 // pred_region
        _
      $region16: #{resnet_block_remove_in.1} parent=11 // pred_fallthru
        _
      // Predicated region
      $region17: #{resnet_block_remove_in.1} parent=11 // pred_check
        %p121 = pneg %p77
      $region18: #{resnet_block_remove_in.1} parent=11 // pred_check_branch
        %123 = sbr.rel (%p121) target = $region20
      $region19: #{resnet_block_remove_in.1} parent=11 // pred_region
        _
      $region20: #{resnet_block_remove_in.1} parent=11 // pred_fallthru
        _
    $region12: #{resnet_block_remove_in.1} parent=5 // pred_fallthru
      _
    %p124 = scmp.lt.s32.totalorder %s9, 2
    // Predicated region
    $region21: #{resnet_block_remove_in.1} parent=5 // pred_check
      %p125 = pneg %p124
    $region22: #{resnet_block_remove_in.1} parent=5 // pred_check_branch
      %127 = sbr.rel (%p125) target = $region24
    $region23: #{resnet_block_remove_in.1} parent=5 // pred_region
      // Predicated region
      $region25: #{resnet_block_remove_in.1} parent=23 // pred_check
        %p128 = pneg %p29
      $region26: #{resnet_block_remove_in.1} parent=23 // pred_check_branch
        %130 = sbr.rel (%p128) target = $region28
      $region27: #{resnet_block_remove_in.1} parent=23 // pred_region
        %p131 = scmp.lt.s32.totalorder %s9, 1
        %s132 = scalar_select %p131, %s9, 1
        %s133 = smul.addr %s132, 32
        %s134 = smul.addr %s133, 8
        %s135 = scalar_lea.vmem %s0, %s134
      $region28: #{resnet_block_remove_in.1} parent=23 // pred_fallthru
        _
    $region24: #{resnet_block_remove_in.1} parent=5 // pred_fallthru
      _
    %p136 = scmp.le.s32.totalorder 1, %s9
    %p137 = scmp.lt.s32.totalorder %s9, 3
    %p138 = pnand %p136, %p137
    %p139 = pneg %p138
    // Predicated region
    $region29: #{resnet_block_remove_in.1} parent=5 // pred_check
      _
    $region30: #{resnet_block_remove_in.1} parent=5 // pred_check_branch
      %141 = sbr.rel (%p138) target = $region32
    $region31: #{resnet_block_remove_in.1} parent=5 // pred_region
      %s142 = ssub.s32 %s9, 1
      %p143 = scmp.lt.s32.totalorder %s14, 1
      %s144 = scalar_select %p143, %s14, 1
      %s145 = smul.addr %s144, 32
      %s146 = smul.addr %s145, 8
      %s147 = scalar_lea.vmem %s0, %s146
      %p148 = pneg %p35
      %p149 = pneg %p32
      %p150 = pneg %p56
      %p151 = pneg %p53
      %p152 = pneg %p77
      %p153 = pneg %p74
      %p154 = pneg %p103
      %p155 = pneg %p100
      %p156 = scmp.lt.s32.totalorder %s14, 1
      %s157 = scalar_select %p156, %s14, 1
      %s158 = smul.addr %s157, 32
      %s159 = smul.addr %s158, 8
      %s160 = scalar_lea.vmem %s3, %s159
      %p161 = scmp.lt.s32.totalorder %s14, 1
      %s162 = scalar_select %p161, %s14, 1
      %s163 = smul.addr %s162, 32
      %s164 = smul.addr %s163, 8
      %s165 = scalar_lea.vmem %s0, %s164
      %p166 = scmp.lt.s32.totalorder %s14, 1
      %s167 = scalar_select %p166, %s14, 1
      %s168 = smul.addr %s167, 32
      %s169 = smul.addr %s168, 8
      %s170 = scalar_lea.vmem %s3, %s169
      %v172 = vld [vmem:[%s165] sm:$0xff]
      %v173 = vld [vmem:[%s165 + $0x8] sm:$0xff]
      %v174 = vld [vmem:[%s165 + $0x10] sm:$0xff]
      %v175 = vld [vmem:[%s165 + $0x18] sm:$0xff]
      %v176 = vld [vmem:[%s165 + $0x20] sm:$0xff]
      %v177 = vld [vmem:[%s165 + $0x28] sm:$0xff]
      %v178 = vld [vmem:[%s165 + $0x30] sm:$0xff]
      %v179 = vld [vmem:[%s165 + $0x38] sm:$0xff]
      %v180 = vld [vmem:[%s165 + $0x40] sm:$0xff]
      %v181 = vld [vmem:[%s165 + $0x48] sm:$0xff]
      %v182 = vld [vmem:[%s165 + $0x50] sm:$0xff]
      %v183 = vld [vmem:[%s165 + $0x58] sm:$0xff]
      %v184 = vld [vmem:[%s165 + $0x60] sm:$0xff]
      %v185 = vld [vmem:[%s165 + $0x68] sm:$0xff]
      %v186 = vld [vmem:[%s165 + $0x70] sm:$0xff]
      %v187 = vld [vmem:[%s165 + $0x78] sm:$0xff]
      %v188 = vld [vmem:[%s165 + $0x80] sm:$0xff]
      %v189 = vld [vmem:[%s165 + $0x88] sm:$0xff]
      %v190 = vld [vmem:[%s165 + $0x90] sm:$0xff]
      %v191 = vld [vmem:[%s165 + $0x98] sm:$0xff]
      %v192 = vld [vmem:[%s165 + $0xa0] sm:$0xff]
      %v193 = vld [vmem:[%s165 + $0xa8] sm:$0xff]
      %v194 = vld [vmem:[%s165 + $0xb0] sm:$0xff]
      %v195 = vld [vmem:[%s165 + $0xb8] sm:$0xff]
      %v196 = vld [vmem:[%s165 + $0xc0] sm:$0xff]
      %v197 = vld [vmem:[%s165 + $0xc8] sm:$0xff]
      %v198 = vld [vmem:[%s165 + $0xd0] sm:$0xff]
      %v199 = vld [vmem:[%s165 + $0xd8] sm:$0xff]
      %v200 = vld [vmem:[%s165 + $0xe0] sm:$0xff]
      %v201 = vld [vmem:[%s165 + $0xe8] sm:$0xff]
      %v202 = vld [vmem:[%s165 + $0xf0] sm:$0xff]
      %v203 = vld [vmem:[%s165 + $0xf8] sm:$0xff]
      %v204 = vpack.c.bf16 %v173, %v172
      %v205 = vpack.c.bf16 %v175, %v174
      %v206 = vpack.c.bf16 %v177, %v176
      %v207 = vpack.c.bf16 %v179, %v178
      %v208 = vpack.c.bf16 %v181, %v180
      %v209 = vpack.c.bf16 %v183, %v182
      %v210 = vpack.c.bf16 %v185, %v184
      %v211 = vpack.c.bf16 %v187, %v186
      %v212 = vpack.c.bf16 %v189, %v188
      %v213 = vpack.c.bf16 %v191, %v190
      %v214 = vpack.c.bf16 %v193, %v192
      %v215 = vpack.c.bf16 %v195, %v194
      %v216 = vpack.c.bf16 %v197, %v196
      %v217 = vpack.c.bf16 %v199, %v198
      %v218 = vpack.c.bf16 %v201, %v200
      %v219 = vpack.c.bf16 %v203, %v202
      %v236 = vunpack.c.l.b16 %v204
      %v237 = vunpack.c.h.b16 %v204
      %v238 = vunpack.c.l.b16 %v205
      %v239 = vunpack.c.h.b16 %v205
      %v240 = vunpack.c.l.b16 %v206
      %v241 = vunpack.c.h.b16 %v206
      %v242 = vunpack.c.l.b16 %v207
      %v243 = vunpack.c.h.b16 %v207
      %v244 = vunpack.c.l.b16 %v208
      %v245 = vunpack.c.h.b16 %v208
      %v246 = vunpack.c.l.b16 %v209
      %v247 = vunpack.c.h.b16 %v209
      %v248 = vunpack.c.l.b16 %v210
      %v249 = vunpack.c.h.b16 %v210
      %v250 = vunpack.c.l.b16 %v211
      %v251 = vunpack.c.h.b16 %v211
      %v252 = vunpack.c.l.b16 %v212
      %v253 = vunpack.c.h.b16 %v212
      %v254 = vunpack.c.l.b16 %v213
      %v255 = vunpack.c.h.b16 %v213
      %v256 = vunpack.c.l.b16 %v214
      %v257 = vunpack.c.h.b16 %v214
      %v258 = vunpack.c.l.b16 %v215
      %v259 = vunpack.c.h.b16 %v215
      %v260 = vunpack.c.l.b16 %v216
      %v261 = vunpack.c.h.b16 %v216
      %v262 = vunpack.c.l.b16 %v217
      %v263 = vunpack.c.h.b16 %v217
      %v264 = vunpack.c.l.b16 %v218
      %v265 = vunpack.c.h.b16 %v218
      %v266 = vunpack.c.l.b16 %v219
      %v267 = vunpack.c.h.b16 %v219
      %v268 = vpack.c.b16 %v236, %v236
      %v269 = vpack.c.b16 %v237, %v237
      %v270 = vpack.c.b16 %v238, %v238
      %v271 = vpack.c.b16 %v239, %v239
      %v272 = vpack.c.b16 %v240, %v240
      %v273 = vpack.c.b16 %v241, %v241
      %v274 = vpack.c.b16 %v242, %v242
      %v275 = vpack.c.b16 %v243, %v243
      %v276 = vpack.c.b16 %v244, %v244
      %v277 = vpack.c.b16 %v245, %v245
      %v278 = vpack.c.b16 %v246, %v246
      %v279 = vpack.c.b16 %v247, %v247
      %v280 = vpack.c.b16 %v248, %v248
      %v281 = vpack.c.b16 %v249, %v249
      %v282 = vpack.c.b16 %v250, %v250
      %v283 = vpack.c.b16 %v251, %v251
      %v284 = vpack.c.b16 %v252, %v252
      %v285 = vpack.c.b16 %v253, %v253
      %v286 = vpack.c.b16 %v254, %v254
      %v287 = vpack.c.b16 %v255, %v255
      %v288 = vpack.c.b16 %v256, %v256
      %v289 = vpack.c.b16 %v257, %v257
      %v290 = vpack.c.b16 %v258, %v258
      %v291 = vpack.c.b16 %v259, %v259
      %v292 = vpack.c.b16 %v260, %v260
      %v293 = vpack.c.b16 %v261, %v261
      %v294 = vpack.c.b16 %v262, %v262
      %v295 = vpack.c.b16 %v263, %v263
      %v296 = vpack.c.b16 %v264, %v264
      %v297 = vpack.c.b16 %v265, %v265
      %v298 = vpack.c.b16 %v266, %v266
      %v299 = vpack.c.b16 %v267, %v267
      %vm300 = vsmask.f32 256
      %vm301 = vsmask.f32 4368
      %vm302 = vmor %vm300, %vm301
      %v304 = vshrl.u32 %v268, 16
      %v306 = vrot.slane %v304, 7
      %v307 = vshll.u32 %v268, 16
      %v309 = vor.u32 %v306, %v307
      %v310 = vrot.slane %v306, 4
      %v312 = vshrl.u32 %v269, 16
      %v314 = vrot.slane %v312, 7
      %v315 = vshll.u32 %v269, 16
      %v317 = vor.u32 %v314, %v315
      %v318 = vsel %vm302, %v310, %v317
      %v319 = vrot.slane %v314, 4
      %v321 = vshrl.u32 %v270, 16
      %v323 = vrot.slane %v321, 7
      %v324 = vshll.u32 %v270, 16
      %v326 = vor.u32 %v323, %v324
      %v327 = vrot.slane %v323, 4
      %v329 = vshrl.u32 %v271, 16
      %v331 = vrot.slane %v329, 7
      %v332 = vshll.u32 %v271, 16
      %v334 = vor.u32 %v331, %v332
      %v335 = vsel %vm302, %v327, %v334
      %v336 = vrot.slane %v331, 4
      %v338 = vshrl.u32 %v272, 16
      %v340 = vrot.slane %v338, 7
      %v341 = vshll.u32 %v272, 16
      %v343 = vor.u32 %v340, %v341
      %v344 = vrot.slane %v340, 4
      %v346 = vshrl.u32 %v273, 16
      %v348 = vrot.slane %v346, 7
      %v349 = vshll.u32 %v273, 16
      %v351 = vor.u32 %v348, %v349
      %v352 = vsel %vm302, %v344, %v351
      %v353 = vrot.slane %v348, 4
      %v355 = vshrl.u32 %v274, 16
      %v357 = vrot.slane %v355, 7
      %v358 = vshll.u32 %v274, 16
      %v360 = vor.u32 %v357, %v358
      %v361 = vrot.slane %v357, 4
      %v363 = vshrl.u32 %v275, 16
      %v365 = vrot.slane %v363, 7
      %v366 = vshll.u32 %v275, 16
      %v368 = vor.u32 %v365, %v366
      %v369 = vsel %vm302, %v361, %v368
      %v370 = vrot.slane %v365, 4
      %v372 = vshrl.u32 %v276, 16
      %v374 = vrot.slane %v372, 7
      %v375 = vshll.u32 %v276, 16
      %v377 = vor.u32 %v374, %v375
      %v378 = vrot.slane %v374, 4
      %v380 = vshrl.u32 %v277, 16
      %v382 = vrot.slane %v380, 7
      %v383 = vshll.u32 %v277, 16
      %v385 = vor.u32 %v382, %v383
      %v386 = vsel %vm302, %v378, %v385
      %v387 = vrot.slane %v382, 4
      %v389 = vshrl.u32 %v278, 16
      %v391 = vrot.slane %v389, 7
      %v392 = vshll.u32 %v278, 16
      %v394 = vor.u32 %v391, %v392
      %v395 = vrot.slane %v391, 4
      %v397 = vshrl.u32 %v279, 16
      %v399 = vrot.slane %v397, 7
      %v400 = vshll.u32 %v279, 16
      %v402 = vor.u32 %v399, %v400
      %v403 = vsel %vm302, %v395, %v402
      %v404 = vrot.slane %v399, 4
      %v406 = vshrl.u32 %v280, 16
      %v408 = vrot.slane %v406, 7
      %v409 = vshll.u32 %v280, 16
      %v411 = vor.u32 %v408, %v409
      %v412 = vrot.slane %v408, 4
      %v414 = vshrl.u32 %v281, 16
      %v416 = vrot.slane %v414, 7
      %v417 = vshll.u32 %v281, 16
      %v419 = vor.u32 %v416, %v417
      %v420 = vsel %vm302, %v412, %v419
      %v421 = vrot.slane %v416, 4
      %v423 = vshrl.u32 %v282, 16
      %v425 = vrot.slane %v423, 7
      %v426 = vshll.u32 %v282, 16
      %v428 = vor.u32 %v425, %v426
      %v429 = vrot.slane %v425, 4
      %v431 = vshrl.u32 %v283, 16
      %v433 = vrot.slane %v431, 7
      %v434 = vshll.u32 %v283, 16
      %v436 = vor.u32 %v433, %v434
      %v437 = vsel %vm302, %v429, %v436
      %v438 = vrot.slane %v433, 4
      %v440 = vshrl.u32 %v284, 16
      %v442 = vrot.slane %v440, 7
      %v443 = vshll.u32 %v284, 16
      %v445 = vor.u32 %v442, %v443
      %v446 = vrot.slane %v442, 4
      %v448 = vshrl.u32 %v285, 16
      %v450 = vrot.slane %v448, 7
      %v451 = vshll.u32 %v285, 16
      %v453 = vor.u32 %v450, %v451
      %v454 = vsel %vm302, %v446, %v453
      %v455 = vrot.slane %v450, 4
      %v457 = vshrl.u32 %v286, 16
      %v459 = vrot.slane %v457, 7
      %v460 = vshll.u32 %v286, 16
      %v462 = vor.u32 %v459, %v460
      %v463 = vrot.slane %v459, 4
      %v465 = vshrl.u32 %v287, 16
      %v467 = vrot.slane %v465, 7
      %v468 = vshll.u32 %v287, 16
      %v470 = vor.u32 %v467, %v468
      %v471 = vsel %vm302, %v463, %v470
      %v472 = vrot.slane %v467, 4
      %v474 = vshrl.u32 %v288, 16
      %v476 = vrot.slane %v474, 7
      %v477 = vshll.u32 %v288, 16
      %v479 = vor.u32 %v476, %v477
      %v480 = vrot.slane %v476, 4
      %v482 = vshrl.u32 %v289, 16
      %v484 = vrot.slane %v482, 7
      %v485 = vshll.u32 %v289, 16
      %v487 = vor.u32 %v484, %v485
      %v488 = vsel %vm302, %v480, %v487
      %v489 = vrot.slane %v484, 4
      %v491 = vshrl.u32 %v290, 16
      %v493 = vrot.slane %v491, 7
      %v494 = vshll.u32 %v290, 16
      %v496 = vor.u32 %v493, %v494
      %v497 = vrot.slane %v493, 4
      %v499 = vshrl.u32 %v291, 16
      %v501 = vrot.slane %v499, 7
      %v502 = vshll.u32 %v291, 16
      %v504 = vor.u32 %v501, %v502
      %v505 = vsel %vm302, %v497, %v504
      %v506 = vrot.slane %v501, 4
      %v508 = vshrl.u32 %v292, 16
      %v510 = vrot.slane %v508, 7
      %v511 = vshll.u32 %v292, 16
      %v513 = vor.u32 %v510, %v511
      %v514 = vrot.slane %v510, 4
      %v516 = vshrl.u32 %v293, 16
      %v518 = vrot.slane %v516, 7
      %v519 = vshll.u32 %v293, 16
      %v521 = vor.u32 %v518, %v519
      %v522 = vsel %vm302, %v514, %v521
      %v523 = vrot.slane %v518, 4
      %v525 = vshrl.u32 %v294, 16
      %v527 = vrot.slane %v525, 7
      %v528 = vshll.u32 %v294, 16
      %v530 = vor.u32 %v527, %v528
      %v531 = vrot.slane %v527, 4
      %v533 = vshrl.u32 %v295, 16
      %v535 = vrot.slane %v533, 7
      %v536 = vshll.u32 %v295, 16
      %v538 = vor.u32 %v535, %v536
      %v539 = vsel %vm302, %v531, %v538
      %v540 = vrot.slane %v535, 4
      %v542 = vshrl.u32 %v296, 16
      %v544 = vrot.slane %v542, 7
      %v545 = vshll.u32 %v296, 16
      %v547 = vor.u32 %v544, %v545
      %v548 = vrot.slane %v544, 4
      %v550 = vshrl.u32 %v297, 16
      %v552 = vrot.slane %v550, 7
      %v553 = vshll.u32 %v297, 16
      %v555 = vor.u32 %v552, %v553
      %v556 = vsel %vm302, %v548, %v555
      %v557 = vrot.slane %v552, 4
      %v559 = vshrl.u32 %v298, 16
      %v561 = vrot.slane %v559, 7
      %v562 = vshll.u32 %v298, 16
      %v564 = vor.u32 %v561, %v562
      %v565 = vrot.slane %v561, 4
      %v567 = vshrl.u32 %v299, 16
      %v569 = vrot.slane %v567, 7
      %v570 = vshll.u32 %v299, 16
      %v572 = vor.u32 %v569, %v570
      %v573 = vsel %vm302, %v565, %v572
      %v574 = vrot.slane %v569, 4
      %s623 = scalar_lea.vmem [#allocation2], 12
      %vm624 = vcmask 27648
      %vm625 = vsmask.f32 7938
      %vm626 = vmand %vm624, %vm625
      %v627 = vld [vmem:[%s623] sm:$0xf]
      %v628 = vsel %vm626, %v309, %v627
      %629 = vst [vmem:[%s623] sm:$0xf] %v628
      %vm630 = vcmask 27648
      %631 = vst.msk [vmem:[%s623 + $0x4] sm:$0xf] %vm630, %v318
      %vm632 = vcmask 24576
      %vm633 = vmand %vm632, %vm300
      %v634 = vld [vmem:[%s623 + $0x8] sm:$0x1]
      %v635 = vsel %vm633, %v319, %v634
      %636 = vst [vmem:[%s623 + $0x8] sm:$0x1] %v635
      %v637 = vld [vmem:[%s623 + $0xc] sm:$0xf]
      %v638 = vsel %vm626, %v326, %v637
      %639 = vst [vmem:[%s623 + $0xc] sm:$0xf] %v638
      %640 = vst.msk [vmem:[%s623 + $0x10] sm:$0xf] %vm630, %v335
      %v641 = vld [vmem:[%s623 + $0x14] sm:$0x1]
      %v642 = vsel %vm633, %v336, %v641
      %643 = vst [vmem:[%s623 + $0x14] sm:$0x1] %v642
      %v644 = vld [vmem:[%s623 + $0x18] sm:$0xf]
      %v645 = vsel %vm626, %v343, %v644
      %646 = vst [vmem:[%s623 + $0x18] sm:$0xf] %v645
      %647 = vst.msk [vmem:[%s623 + $0x1c] sm:$0xf] %vm630, %v352
      %v648 = vld [vmem:[%s623 + $0x20] sm:$0x1]
      %v649 = vsel %vm633, %v353, %v648
      %650 = vst [vmem:[%s623 + $0x20] sm:$0x1] %v649
      %v651 = vld [vmem:[%s623 + $0x24] sm:$0xf]
      %v652 = vsel %vm626, %v360, %v651
      %653 = vst [vmem:[%s623 + $0x24] sm:$0xf] %v652
      %654 = vst.msk [vmem:[%s623 + $0x28] sm:$0xf] %vm630, %v369
      %v655 = vld [vmem:[%s623 + $0x2c] sm:$0x1]
      %v656 = vsel %vm633, %v370, %v655
      %657 = vst [vmem:[%s623 + $0x2c] sm:$0x1] %v656
      %v658 = vld [vmem:[%s623 + $0x30] sm:$0xf]
      %v659 = vsel %vm626, %v377, %v658
      %660 = vst [vmem:[%s623 + $0x30] sm:$0xf] %v659
      %661 = vst.msk [vmem:[%s623 + $0x34] sm:$0xf] %vm630, %v386
      %v662 = vld [vmem:[%s623 + $0x38] sm:$0x1]
      %v663 = vsel %vm633, %v387, %v662
      %664 = vst [vmem:[%s623 + $0x38] sm:$0x1] %v663
      %v665 = vld [vmem:[%s623 + $0x3c] sm:$0xf]
      %v666 = vsel %vm626, %v394, %v665
      %667 = vst [vmem:[%s623 + $0x3c] sm:$0xf] %v666
      %668 = vst.msk [vmem:[%s623 + $0x40] sm:$0xf] %vm630, %v403
      %v669 = vld [vmem:[%s623 + $0x44] sm:$0x1]
      %v670 = vsel %vm633, %v404, %v669
      %671 = vst [vmem:[%s623 + $0x44] sm:$0x1] %v670
      %v672 = vld [vmem:[%s623 + $0x48] sm:$0xf]
      %v673 = vsel %vm626, %v411, %v672
      %674 = vst [vmem:[%s623 + $0x48] sm:$0xf] %v673
      %675 = vst.msk [vmem:[%s623 + $0x4c] sm:$0xf] %vm630, %v420
      %v676 = vld [vmem:[%s623 + $0x50] sm:$0x1]
      %v677 = vsel %vm633, %v421, %v676
      %678 = vst [vmem:[%s623 + $0x50] sm:$0x1] %v677
      %v679 = vld [vmem:[%s623 + $0x54] sm:$0xf]
      %v680 = vsel %vm626, %v428, %v679
      %681 = vst [vmem:[%s623 + $0x54] sm:$0xf] %v680
      %682 = vst.msk [vmem:[%s623 + $0x58] sm:$0xf] %vm630, %v437
      %v683 = vld [vmem:[%s623 + $0x5c] sm:$0x1]
      %v684 = vsel %vm633, %v438, %v683
      %685 = vst [vmem:[%s623 + $0x5c] sm:$0x1] %v684
      %v686 = vld [vmem:[%s623 + $0x60] sm:$0xf]
      %v687 = vsel %vm626, %v445, %v686
      %688 = vst [vmem:[%s623 + $0x60] sm:$0xf] %v687
      %689 = vst.msk [vmem:[%s623 + $0x64] sm:$0xf] %vm630, %v454
      %v690 = vld [vmem:[%s623 + $0x68] sm:$0x1]
      %v691 = vsel %vm633, %v455, %v690
      %692 = vst [vmem:[%s623 + $0x68] sm:$0x1] %v691
      %v693 = vld [vmem:[%s623 + $0x6c] sm:$0xf]
      %v694 = vsel %vm626, %v462, %v693
      %695 = vst [vmem:[%s623 + $0x6c] sm:$0xf] %v694
      %696 = vst.msk [vmem:[%s623 + $0x70] sm:$0xf] %vm630, %v471
      %v697 = vld [vmem:[%s623 + $0x74] sm:$0x1]
      %v698 = vsel %vm633, %v472, %v697
      %699 = vst [vmem:[%s623 + $0x74] sm:$0x1] %v698
      %v700 = vld [vmem:[%s623 + $0x78] sm:$0xf]
      %v701 = vsel %vm626, %v479, %v700
      %702 = vst [vmem:[%s623 + $0x78] sm:$0xf] %v701
      %703 = vst.msk [vmem:[%s623 + $0x7c] sm:$0xf] %vm630, %v488
      %v704 = vld [vmem:[%s623 + $0x80] sm:$0x1]
      %v705 = vsel %vm633, %v489, %v704
      %706 = vst [vmem:[%s623 + $0x80] sm:$0x1] %v705
      %v707 = vld [vmem:[%s623 + $0x84] sm:$0xf]
      %v708 = vsel %vm626, %v496, %v707
      %709 = vst [vmem:[%s623 + $0x84] sm:$0xf] %v708
      %710 = vst.msk [vmem:[%s623 + $0x88] sm:$0xf] %vm630, %v505
      %v711 = vld [vmem:[%s623 + $0x8c] sm:$0x1]
      %v712 = vsel %vm633, %v506, %v711
      %713 = vst [vmem:[%s623 + $0x8c] sm:$0x1] %v712
      %v714 = vld [vmem:[%s623 + $0x90] sm:$0xf]
      %v715 = vsel %vm626, %v513, %v714
      %716 = vst [vmem:[%s623 + $0x90] sm:$0xf] %v715
      %717 = vst.msk [vmem:[%s623 + $0x94] sm:$0xf] %vm630, %v522
      %v718 = vld [vmem:[%s623 + $0x98] sm:$0x1]
      %v719 = vsel %vm633, %v523, %v718
      %720 = vst [vmem:[%s623 + $0x98] sm:$0x1] %v719
      %v721 = vld [vmem:[%s623 + $0x9c] sm:$0xf]
      %v722 = vsel %vm626, %v530, %v721
      %723 = vst [vmem:[%s623 + $0x9c] sm:$0xf] %v722
      %724 = vst.msk [vmem:[%s623 + $0xa0] sm:$0xf] %vm630, %v539
      %v725 = vld [vmem:[%s623 + $0xa4] sm:$0x1]
      %v726 = vsel %vm633, %v540, %v725
      %727 = vst [vmem:[%s623 + $0xa4] sm:$0x1] %v726
      %v728 = vld [vmem:[%s623 + $0xa8] sm:$0xf]
      %v729 = vsel %vm626, %v547, %v728
      %730 = vst [vmem:[%s623 + $0xa8] sm:$0xf] %v729
      %731 = vst.msk [vmem:[%s623 + $0xac] sm:$0xf] %vm630, %v556
      %v732 = vld [vmem:[%s623 + $0xb0] sm:$0x1]
      %v733 = vsel %vm633, %v557, %v732
      %734 = vst [vmem:[%s623 + $0xb0] sm:$0x1] %v733
      %v735 = vld [vmem:[%s623 + $0xb4] sm:$0xf]
      %v736 = vsel %vm626, %v564, %v735
      %737 = vst [vmem:[%s623 + $0xb4] sm:$0xf] %v736
      %738 = vst.msk [vmem:[%s623 + $0xb8] sm:$0xf] %vm630, %v573
      %v739 = vld [vmem:[%s623 + $0xbc] sm:$0x1]
      %v740 = vsel %vm633, %v574, %v739
      %741 = vst [vmem:[%s623 + $0xbc] sm:$0x1] %v740
      %v742 = vld [vmem:[%s623] sm:$0x2]
      %v743 = vld [vmem:[%s623 + $0xc] sm:$0x2]
      %v744 = vld [vmem:[%s623 + $0x18] sm:$0x2]
      %v745 = vld [vmem:[%s623 + $0x24] sm:$0x2]
      %v746 = vld [vmem:[%s623 + $0x30] sm:$0x2]
      %v747 = vld [vmem:[%s623 + $0x3c] sm:$0x2]
      %v748 = vld [vmem:[%s623 + $0x48] sm:$0x2]
      %v749 = vld [vmem:[%s623 + $0x54] sm:$0x2]
      %v750 = vld [vmem:[%s623 + $0x60] sm:$0x2]
      %v751 = vld [vmem:[%s623 + $0x6c] sm:$0x2]
      %v752 = vld [vmem:[%s623 + $0x78] sm:$0x2]
      %v753 = vld [vmem:[%s623 + $0x84] sm:$0x2]
      %v754 = vld [vmem:[%s623 + $0x90] sm:$0x2]
      %v755 = vld [vmem:[%s623 + $0x9c] sm:$0x2]
      %v756 = vld [vmem:[%s623 + $0xa8] sm:$0x2]
      %v757 = vld [vmem:[%s623 + $0xb4] sm:$0x2]
      %v774 = vrot.slane %v742, 5
      %v775 = vrot.slane %v774, 4
      %v776 = vrot.slane %v743, 5
      %v777 = vrot.slane %v776, 4
      %v778 = vrot.slane %v744, 5
      %v779 = vrot.slane %v778, 4
      %v780 = vrot.slane %v745, 5
      %v781 = vrot.slane %v780, 4
      %v782 = vrot.slane %v746, 5
      %v783 = vrot.slane %v782, 4
      %v784 = vrot.slane %v747, 5
      %v785 = vrot.slane %v784, 4
      %v786 = vrot.slane %v748, 5
      %v787 = vrot.slane %v786, 4
      %v788 = vrot.slane %v749, 5
      %v789 = vrot.slane %v788, 4
      %v790 = vrot.slane %v750, 5
      %v791 = vrot.slane %v790, 4
      %v792 = vrot.slane %v751, 5
      %v793 = vrot.slane %v792, 4
      %v794 = vrot.slane %v752, 5
      %v795 = vrot.slane %v794, 4
      %v796 = vrot.slane %v753, 5
      %v797 = vrot.slane %v796, 4
      %v798 = vrot.slane %v754, 5
      %v799 = vrot.slane %v798, 4
      %v800 = vrot.slane %v755, 5
      %v801 = vrot.slane %v800, 4
      %v802 = vrot.slane %v756, 5
      %v803 = vrot.slane %v802, 4
      %v804 = vrot.slane %v757, 5
      %v805 = vrot.slane %v804, 4
      %v822 = vld [vmem:[%s623] sm:$0x1]
      %v823 = vsel %vm633, %v775, %v822
      %824 = vst [vmem:[%s623] sm:$0x1] %v823
      %v825 = vld [vmem:[%s623 + $0xc] sm:$0x1]
      %v826 = vsel %vm633, %v777, %v825
      %827 = vst [vmem:[%s623 + $0xc] sm:$0x1] %v826
      %v828 = vld [vmem:[%s623 + $0x18] sm:$0x1]
      %v829 = vsel %vm633, %v779, %v828
      %830 = vst [vmem:[%s623 + $0x18] sm:$0x1] %v829
      %v831 = vld [vmem:[%s623 + $0x24] sm:$0x1]
      %v832 = vsel %vm633, %v781, %v831
      %833 = vst [vmem:[%s623 + $0x24] sm:$0x1] %v832
      %v834 = vld [vmem:[%s623 + $0x30] sm:$0x1]
      %v835 = vsel %vm633, %v783, %v834
      %836 = vst [vmem:[%s623 + $0x30] sm:$0x1] %v835
      %v837 = vld [vmem:[%s623 + $0x3c] sm:$0x1]
      %v838 = vsel %vm633, %v785, %v837
      %839 = vst [vmem:[%s623 + $0x3c] sm:$0x1] %v838
      %v840 = vld [vmem:[%s623 + $0x48] sm:$0x1]
      %v841 = vsel %vm633, %v787, %v840
      %842 = vst [vmem:[%s623 + $0x48] sm:$0x1] %v841
      %v843 = vld [vmem:[%s623 + $0x54] sm:$0x1]
      %v844 = vsel %vm633, %v789, %v843
      %845 = vst [vmem:[%s623 + $0x54] sm:$0x1] %v844
      %v846 = vld [vmem:[%s623 + $0x60] sm:$0x1]
      %v847 = vsel %vm633, %v791, %v846
      %848 = vst [vmem:[%s623 + $0x60] sm:$0x1] %v847
      %v849 = vld [vmem:[%s623 + $0x6c] sm:$0x1]
      %v850 = vsel %vm633, %v793, %v849
      %851 = vst [vmem:[%s623 + $0x6c] sm:$0x1] %v850
      %v852 = vld [vmem:[%s623 + $0x78] sm:$0x1]
      %v853 = vsel %vm633, %v795, %v852
      %854 = vst [vmem:[%s623 + $0x78] sm:$0x1] %v853
      %v855 = vld [vmem:[%s623 + $0x84] sm:$0x1]
      %v856 = vsel %vm633, %v797, %v855
      %857 = vst [vmem:[%s623 + $0x84] sm:$0x1] %v856
      %v858 = vld [vmem:[%s623 + $0x90] sm:$0x1]
      %v859 = vsel %vm633, %v799, %v858
      %860 = vst [vmem:[%s623 + $0x90] sm:$0x1] %v859
      %v861 = vld [vmem:[%s623 + $0x9c] sm:$0x1]
      %v862 = vsel %vm633, %v801, %v861
      %863 = vst [vmem:[%s623 + $0x9c] sm:$0x1] %v862
      %v864 = vld [vmem:[%s623 + $0xa8] sm:$0x1]
      %v865 = vsel %vm633, %v803, %v864
      %866 = vst [vmem:[%s623 + $0xa8] sm:$0x1] %v865
      %v867 = vld [vmem:[%s623 + $0xb4] sm:$0x1]
      %v868 = vsel %vm633, %v805, %v867
      %869 = vst [vmem:[%s623 + $0xb4] sm:$0x1] %v868
      %v870 = vld [vmem:[%s623 + $0x4] sm:$0x8]
      %v871 = vld [vmem:[%s623 + $0x10] sm:$0x8]
      %v872 = vld [vmem:[%s623 + $0x1c] sm:$0x8]
      %v873 = vld [vmem:[%s623 + $0x28] sm:$0x8]
      %v874 = vld [vmem:[%s623 + $0x34] sm:$0x8]
      %v875 = vld [vmem:[%s623 + $0x40] sm:$0x8]
      %v876 = vld [vmem:[%s623 + $0x4c] sm:$0x8]
      %v877 = vld [vmem:[%s623 + $0x58] sm:$0x8]
      %v878 = vld [vmem:[%s623 + $0x64] sm:$0x8]
      %v879 = vld [vmem:[%s623 + $0x70] sm:$0x8]
      %v880 = vld [vmem:[%s623 + $0x7c] sm:$0x8]
      %v881 = vld [vmem:[%s623 + $0x88] sm:$0x8]
      %v882 = vld [vmem:[%s623 + $0x94] sm:$0x8]
      %v883 = vld [vmem:[%s623 + $0xa0] sm:$0x8]
      %v884 = vld [vmem:[%s623 + $0xac] sm:$0x8]
      %v885 = vld [vmem:[%s623 + $0xb8] sm:$0x8]
      %v902 = vrot.slane %v870, 7
      %v903 = vrot.slane %v902, 4
      %v904 = vrot.slane %v871, 7
      %v905 = vrot.slane %v904, 4
      %v906 = vrot.slane %v872, 7
      %v907 = vrot.slane %v906, 4
      %v908 = vrot.slane %v873, 7
      %v909 = vrot.slane %v908, 4
      %v910 = vrot.slane %v874, 7
      %v911 = vrot.slane %v910, 4
      %v912 = vrot.slane %v875, 7
      %v913 = vrot.slane %v912, 4
      %v914 = vrot.slane %v876, 7
      %v915 = vrot.slane %v914, 4
      %v916 = vrot.slane %v877, 7
      %v917 = vrot.slane %v916, 4
      %v918 = vrot.slane %v878, 7
      %v919 = vrot.slane %v918, 4
      %v920 = vrot.slane %v879, 7
      %v921 = vrot.slane %v920, 4
      %v922 = vrot.slane %v880, 7
      %v923 = vrot.slane %v922, 4
      %v924 = vrot.slane %v881, 7
      %v925 = vrot.slane %v924, 4
      %v926 = vrot.slane %v882, 7
      %v927 = vrot.slane %v926, 4
      %v928 = vrot.slane %v883, 7
      %v929 = vrot.slane %v928, 4
      %v930 = vrot.slane %v884, 7
      %v931 = vrot.slane %v930, 4
      %v932 = vrot.slane %v885, 7
      %v933 = vrot.slane %v932, 4
      %vm950 = vmand %vm632, %vm625
      %v951 = vld [vmem:[%s623 + $0x8] sm:$0x1]
      %v952 = vsel %vm950, %v903, %v951
      %953 = vst [vmem:[%s623 + $0x8] sm:$0x1] %v952
      %v954 = vld [vmem:[%s623 + $0x14] sm:$0x1]
      %v955 = vsel %vm950, %v905, %v954
      %956 = vst [vmem:[%s623 + $0x14] sm:$0x1] %v955
      %v957 = vld [vmem:[%s623 + $0x20] sm:$0x1]
      %v958 = vsel %vm950, %v907, %v957
      %959 = vst [vmem:[%s623 + $0x20] sm:$0x1] %v958
      %v960 = vld [vmem:[%s623 + $0x2c] sm:$0x1]
      %v961 = vsel %vm950, %v909, %v960
      %962 = vst [vmem:[%s623 + $0x2c] sm:$0x1] %v961
      %v963 = vld [vmem:[%s623 + $0x38] sm:$0x1]
      %v964 = vsel %vm950, %v911, %v963
      %965 = vst [vmem:[%s623 + $0x38] sm:$0x1] %v964
      %v966 = vld [vmem:[%s623 + $0x44] sm:$0x1]
      %v967 = vsel %vm950, %v913, %v966
      %968 = vst [vmem:[%s623 + $0x44] sm:$0x1] %v967
      %v969 = vld [vmem:[%s623 + $0x50] sm:$0x1]
      %v970 = vsel %vm950, %v915, %v969
      %971 = vst [vmem:[%s623 + $0x50] sm:$0x1] %v970
      %v972 = vld [vmem:[%s623 + $0x5c] sm:$0x1]
      %v973 = vsel %vm950, %v917, %v972
      %974 = vst [vmem:[%s623 + $0x5c] sm:$0x1] %v973
      %v975 = vld [vmem:[%s623 + $0x68] sm:$0x1]
      %v976 = vsel %vm950, %v919, %v975
      %977 = vst [vmem:[%s623 + $0x68] sm:$0x1] %v976
      %v978 = vld [vmem:[%s623 + $0x74] sm:$0x1]
      %v979 = vsel %vm950, %v921, %v978
      %980 = vst [vmem:[%s623 + $0x74] sm:$0x1] %v979
      %v981 = vld [vmem:[%s623 + $0x80] sm:$0x1]
      %v982 = vsel %vm950, %v923, %v981
      %983 = vst [vmem:[%s623 + $0x80] sm:$0x1] %v982
      %v984 = vld [vmem:[%s623 + $0x8c] sm:$0x1]
      %v985 = vsel %vm950, %v925, %v984
      %986 = vst [vmem:[%s623 + $0x8c] sm:$0x1] %v985
      %v987 = vld [vmem:[%s623 + $0x98] sm:$0x1]
      %v988 = vsel %vm950, %v927, %v987
      %989 = vst [vmem:[%s623 + $0x98] sm:$0x1] %v988
      %v990 = vld [vmem:[%s623 + $0xa4] sm:$0x1]
      %v991 = vsel %vm950, %v929, %v990
      %992 = vst [vmem:[%s623 + $0xa4] sm:$0x1] %v991
      %v993 = vld [vmem:[%s623 + $0xb0] sm:$0x1]
      %v994 = vsel %vm950, %v931, %v993
      %995 = vst [vmem:[%s623 + $0xb0] sm:$0x1] %v994
      %v996 = vld [vmem:[%s623 + $0xbc] sm:$0x1]
      %v997 = vsel %vm950, %v933, %v996
      %998 = vst [vmem:[%s623 + $0xbc] sm:$0x1] %v997
      %s999 = scalar_lea.vmem [#allocation2], 24
      %v1000 = vld [vmem:[%s999] sm:$0xf]
      %v1001 = vld [vmem:[%s999 + $0x4] sm:$0xf]
      %v1002 = vld [vmem:[%s999 + $0x8] sm:$0x1]
      %1003 = vst.msk [vmem:[#allocation2] sm:$0xf] %vm630, %v1000
      %1004 = vst.msk [vmem:[#allocation2 + $0x4] sm:$0xf] %vm630, %v1001
      %vm1005 = vcmask 24576
      %1006 = vst.msk [vmem:[#allocation2 + $0x8] sm:$0x1] %vm1005, %v1002
      %s1007 = scalar_lea.vmem [#allocation2], 180
      %v1008 = vld [vmem:[%s1007] sm:$0xf]
      %v1009 = vld [vmem:[%s1007 + $0x4] sm:$0xf]
      %v1010 = vld [vmem:[%s1007 + $0x8] sm:$0x1]
      %s1011 = scalar_lea.vmem [#allocation2], 204
      %1012 = vst.msk [vmem:[%s1011] sm:$0xf] %vm630, %v1008
      %1013 = vst.msk [vmem:[%s1011 + $0x4] sm:$0xf] %vm630, %v1009
      %1014 = vst.msk [vmem:[%s1011 + $0x8] sm:$0x1] %vm1005, %v1010
      %v1015 = vld [vmem:[#allocation2] sm:$0xf]
      %v1016 = vld [vmem:[#allocation2 + $0x4] sm:$0xf]
      %v1017 = vld [vmem:[#allocation2 + $0x8] sm:$0x1]
      %v1018 = vld [vmem:[#allocation2 + $0xc] sm:$0xf]
      %v1019 = vld [vmem:[#allocation2 + $0x10] sm:$0xf]
      %v1020 = vld [vmem:[#allocation2 + $0x14] sm:$0x1]
      %v1021 = vld [vmem:[#allocation2 + $0x18] sm:$0xf]
      %v1022 = vld [vmem:[#allocation2 + $0x1c] sm:$0xf]
      %v1023 = vld [vmem:[#allocation2 + $0x20] sm:$0x1]
      %v1024 = vld [vmem:[#allocation2 + $0x24] sm:$0xf]
      %v1025 = vld [vmem:[#allocation2 + $0x28] sm:$0xf]
      %v1026 = vld [vmem:[#allocation2 + $0x2c] sm:$0x1]
      %v1027 = vld [vmem:[#allocation2 + $0x30] sm:$0xf]
      %v1028 = vld [vmem:[#allocation2 + $0x34] sm:$0xf]
      %v1029 = vld [vmem:[#allocation2 + $0x38] sm:$0x1]
      %v1030 = vld [vmem:[#allocation2 + $0x3c] sm:$0xf]
      %v1031 = vld [vmem:[#allocation2 + $0x40] sm:$0xf]
      %v1032 = vld [vmem:[#allocation2 + $0x44] sm:$0x1]
      %v1033 = vld [vmem:[#allocation2 + $0x48] sm:$0xf]
      %v1034 = vld [vmem:[#allocation2 + $0x4c] sm:$0xf]
      %v1035 = vld [vmem:[#allocation2 + $0x50] sm:$0x1]
      %v1036 = vld [vmem:[#allocation2 + $0x54] sm:$0xf]
      %v1037 = vld [vmem:[#allocation2 + $0x58] sm:$0xf]
      %v1038 = vld [vmem:[#allocation2 + $0x5c] sm:$0x1]
      %v1039 = vld [vmem:[#allocation2 + $0x60] sm:$0xf]
      %v1040 = vld [vmem:[#allocation2 + $0x64] sm:$0xf]
      %v1041 = vld [vmem:[#allocation2 + $0x68] sm:$0x1]
      %v1042 = vld [vmem:[#allocation2 + $0x6c] sm:$0xf]
      %v1043 = vld [vmem:[#allocation2 + $0x70] sm:$0xf]
      %v1044 = vld [vmem:[#allocation2 + $0x74] sm:$0x1]
      %v1045 = vld [vmem:[#allocation2 + $0x78] sm:$0xf]
      %v1046 = vld [vmem:[#allocation2 + $0x7c] sm:$0xf]
      %v1047 = vld [vmem:[#allocation2 + $0x80] sm:$0x1]
      %v1048 = vld [vmem:[#allocation2 + $0x84] sm:$0xf]
      %v1049 = vld [vmem:[#allocation2 + $0x88] sm:$0xf]
      %v1050 = vld [vmem:[#allocation2 + $0x8c] sm:$0x1]
      %v1051 = vld [vmem:[#allocation2 + $0x90] sm:$0xf]
      %v1052 = vld [vmem:[#allocation2 + $0x94] sm:$0xf]
      %v1053 = vld [vmem:[#allocation2 + $0x98] sm:$0x1]
      %v1054 = vld [vmem:[#allocation2 + $0x9c] sm:$0xf]
      %v1055 = vld [vmem:[#allocation2 + $0xa0] sm:$0xf]
      %v1056 = vld [vmem:[#allocation2 + $0xa4] sm:$0x1]
      %v1057 = vld [vmem:[#allocation2 + $0xa8] sm:$0xf]
      %v1058 = vld [vmem:[#allocation2 + $0xac] sm:$0xf]
      %v1059 = vld [vmem:[#allocation2 + $0xb0] sm:$0x1]
      %v1060 = vld [vmem:[#allocation2 + $0xb4] sm:$0xf]
      %v1061 = vld [vmem:[#allocation2 + $0xb8] sm:$0xf]
      %v1062 = vld [vmem:[#allocation2 + $0xbc] sm:$0x1]
      %v1063 = vld [vmem:[#allocation2 + $0xc0] sm:$0xf]
      %v1064 = vld [vmem:[#allocation2 + $0xc4] sm:$0xf]
      %v1065 = vld [vmem:[#allocation2 + $0xc8] sm:$0x1]
      %v1066 = vld [vmem:[#allocation2 + $0xcc] sm:$0xf]
      %v1067 = vld [vmem:[#allocation2 + $0xd0] sm:$0xf]
      %v1068 = vld [vmem:[#allocation2 + $0xd4] sm:$0x1]
      %v1069 = vld [vmem:[%s1] sm:$0x3]
      %s1070 = scalar_lea.vmem %s1, 2
      %v1071 = vld [vmem:[%s1070] sm:$0x3]
      %vm1072 = vsmask.f32 3328
      %vm1073 = vsmask.f32 7440
      %vm1074 = vmor %vm1072, %vm1073
      %v1076 = vshrl.u32 %v1015, 16
      %v1078 = vrot.slane %v1076, 4
      %v1079 = vshll.u32 %v1015, 16
      %v1081 = vrot.slane %v1079, 5
      %v1082 = vor.u32 %v1078, %v1081
      %v1083 = vrot.slane %v1082, 4
      %v1085 = vshll.u32 %v1016, 16
      %v1087 = vrot.slane %v1085, 5
      %v1088 = vsel %vm1074, %v1083, %v1087
      %v1089 = vshrl.u32 %v1016, 16
      %v1091 = vrot.slane %v1089, 4
      %v1092 = vor.u32 %v1091, %v1087
      %v1093 = vrot.slane %v1092, 4
      %v1095 = vshll.u32 %v1017, 16
      %v1097 = vrot.slane %v1095, 5
      %v1098 = vsel %vm1074, %v1093, %v1097
      %v1100 = vshrl.u32 %v1018, 16
      %v1102 = vrot.slane %v1100, 4
      %v1103 = vshll.u32 %v1018, 16
      %v1105 = vrot.slane %v1103, 5
      %v1106 = vor.u32 %v1102, %v1105
      %v1107 = vrot.slane %v1106, 4
      %v1109 = vshll.u32 %v1019, 16
      %v1111 = vrot.slane %v1109, 5
      %v1112 = vsel %vm1074, %v1107, %v1111
      %v1113 = vshrl.u32 %v1019, 16
      %v1115 = vrot.slane %v1113, 4
      %v1116 = vor.u32 %v1115, %v1111
      %v1117 = vrot.slane %v1116, 4
      %v1119 = vshll.u32 %v1020, 16
      %v1121 = vrot.slane %v1119, 5
      %v1122 = vsel %vm1074, %v1117, %v1121
      %v1124 = vshrl.u32 %v1021, 16
      %v1126 = vrot.slane %v1124, 4
      %v1127 = vshll.u32 %v1021, 16
      %v1129 = vrot.slane %v1127, 5
      %v1130 = vor.u32 %v1126, %v1129
      %v1131 = vrot.slane %v1130, 4
      %v1133 = vshll.u32 %v1022, 16
      %v1135 = vrot.slane %v1133, 5
      %v1136 = vsel %vm1074, %v1131, %v1135
      %v1137 = vshrl.u32 %v1022, 16
      %v1139 = vrot.slane %v1137, 4
      %v1140 = vor.u32 %v1139, %v1135
      %v1141 = vrot.slane %v1140, 4
      %v1143 = vshll.u32 %v1023, 16
      %v1145 = vrot.slane %v1143, 5
      %v1146 = vsel %vm1074, %v1141, %v1145
      %v1148 = vshrl.u32 %v1024, 16
      %v1150 = vrot.slane %v1148, 4
      %v1151 = vshll.u32 %v1024, 16
      %v1153 = vrot.slane %v1151, 5
      %v1154 = vor.u32 %v1150, %v1153
      %v1155 = vrot.slane %v1154, 4
      %v1157 = vshll.u32 %v1025, 16
      %v1159 = vrot.slane %v1157, 5
      %v1160 = vsel %vm1074, %v1155, %v1159
      %v1161 = vshrl.u32 %v1025, 16
      %v1163 = vrot.slane %v1161, 4
      %v1164 = vor.u32 %v1163, %v1159
      %v1165 = vrot.slane %v1164, 4
      %v1167 = vshll.u32 %v1026, 16
      %v1169 = vrot.slane %v1167, 5
      %v1170 = vsel %vm1074, %v1165, %v1169
      %v1172 = vshrl.u32 %v1027, 16
      %v1174 = vrot.slane %v1172, 4
      %v1175 = vshll.u32 %v1027, 16
      %v1177 = vrot.slane %v1175, 5
      %v1178 = vor.u32 %v1174, %v1177
      %v1179 = vrot.slane %v1178, 4
      %v1181 = vshll.u32 %v1028, 16
      %v1183 = vrot.slane %v1181, 5
      %v1184 = vsel %vm1074, %v1179, %v1183
      %v1185 = vshrl.u32 %v1028, 16
      %v1187 = vrot.slane %v1185, 4
      %v1188 = vor.u32 %v1187, %v1183
      %v1189 = vrot.slane %v1188, 4
      %v1191 = vshll.u32 %v1029, 16
      %v1193 = vrot.slane %v1191, 5
      %v1194 = vsel %vm1074, %v1189, %v1193
      %v1196 = vshrl.u32 %v1030, 16
      %v1198 = vrot.slane %v1196, 4
      %v1199 = vshll.u32 %v1030, 16
      %v1201 = vrot.slane %v1199, 5
      %v1202 = vor.u32 %v1198, %v1201
      %v1203 = vrot.slane %v1202, 4
      %v1205 = vshll.u32 %v1031, 16
      %v1207 = vrot.slane %v1205, 5
      %v1208 = vsel %vm1074, %v1203, %v1207
      %v1209 = vshrl.u32 %v1031, 16
      %v1211 = vrot.slane %v1209, 4
      %v1212 = vor.u32 %v1211, %v1207
      %v1213 = vrot.slane %v1212, 4
      %v1215 = vshll.u32 %v1032, 16
      %v1217 = vrot.slane %v1215, 5
      %v1218 = vsel %vm1074, %v1213, %v1217
      %v1220 = vshrl.u32 %v1033, 16
      %v1222 = vrot.slane %v1220, 4
      %v1223 = vshll.u32 %v1033, 16
      %v1225 = vrot.slane %v1223, 5
      %v1226 = vor.u32 %v1222, %v1225
      %v1227 = vrot.slane %v1226, 4
      %v1229 = vshll.u32 %v1034, 16
      %v1231 = vrot.slane %v1229, 5
      %v1232 = vsel %vm1074, %v1227, %v1231
      %v1233 = vshrl.u32 %v1034, 16
      %v1235 = vrot.slane %v1233, 4
      %v1236 = vor.u32 %v1235, %v1231
      %v1237 = vrot.slane %v1236, 4
      %v1239 = vshll.u32 %v1035, 16
      %v1241 = vrot.slane %v1239, 5
      %v1242 = vsel %vm1074, %v1237, %v1241
      %v1244 = vshrl.u32 %v1036, 16
      %v1246 = vrot.slane %v1244, 4
      %v1247 = vshll.u32 %v1036, 16
      %v1249 = vrot.slane %v1247, 5
      %v1250 = vor.u32 %v1246, %v1249
      %v1251 = vrot.slane %v1250, 4
      %v1253 = vshll.u32 %v1037, 16
      %v1255 = vrot.slane %v1253, 5
      %v1256 = vsel %vm1074, %v1251, %v1255
      %v1257 = vshrl.u32 %v1037, 16
      %v1259 = vrot.slane %v1257, 4
      %v1260 = vor.u32 %v1259, %v1255
      %v1261 = vrot.slane %v1260, 4
      %v1263 = vshll.u32 %v1038, 16
      %v1265 = vrot.slane %v1263, 5
      %v1266 = vsel %vm1074, %v1261, %v1265
      %v1268 = vshrl.u32 %v1039, 16
      %v1270 = vrot.slane %v1268, 4
      %v1271 = vshll.u32 %v1039, 16
      %v1273 = vrot.slane %v1271, 5
      %v1274 = vor.u32 %v1270, %v1273
      %v1275 = vrot.slane %v1274, 4
      %v1277 = vshll.u32 %v1040, 16
      %v1279 = vrot.slane %v1277, 5
      %v1280 = vsel %vm1074, %v1275, %v1279
      %v1281 = vshrl.u32 %v1040, 16
      %v1283 = vrot.slane %v1281, 4
      %v1284 = vor.u32 %v1283, %v1279
      %v1285 = vrot.slane %v1284, 4
      %v1287 = vshll.u32 %v1041, 16
      %v1289 = vrot.slane %v1287, 5
      %v1290 = vsel %vm1074, %v1285, %v1289
      %v1292 = vshrl.u32 %v1042, 16
      %v1294 = vrot.slane %v1292, 4
      %v1295 = vshll.u32 %v1042, 16
      %v1297 = vrot.slane %v1295, 5
      %v1298 = vor.u32 %v1294, %v1297
      %v1299 = vrot.slane %v1298, 4
      %v1301 = vshll.u32 %v1043, 16
      %v1303 = vrot.slane %v1301, 5
      %v1304 = vsel %vm1074, %v1299, %v1303
      %v1305 = vshrl.u32 %v1043, 16
      %v1307 = vrot.slane %v1305, 4
      %v1308 = vor.u32 %v1307, %v1303
      %v1309 = vrot.slane %v1308, 4
      %v1311 = vshll.u32 %v1044, 16
      %v1313 = vrot.slane %v1311, 5
      %v1314 = vsel %vm1074, %v1309, %v1313
      %v1316 = vshrl.u32 %v1045, 16
      %v1318 = vrot.slane %v1316, 4
      %v1319 = vshll.u32 %v1045, 16
      %v1321 = vrot.slane %v1319, 5
      %v1322 = vor.u32 %v1318, %v1321
      %v1323 = vrot.slane %v1322, 4
      %v1325 = vshll.u32 %v1046, 16
      %v1327 = vrot.slane %v1325, 5
      %v1328 = vsel %vm1074, %v1323, %v1327
      %v1329 = vshrl.u32 %v1046, 16
      %v1331 = vrot.slane %v1329, 4
      %v1332 = vor.u32 %v1331, %v1327
      %v1333 = vrot.slane %v1332, 4
      %v1335 = vshll.u32 %v1047, 16
      %v1337 = vrot.slane %v1335, 5
      %v1338 = vsel %vm1074, %v1333, %v1337
      %v1340 = vshrl.u32 %v1048, 16
      %v1342 = vrot.slane %v1340, 4
      %v1343 = vshll.u32 %v1048, 16
      %v1345 = vrot.slane %v1343, 5
      %v1346 = vor.u32 %v1342, %v1345
      %v1347 = vrot.slane %v1346, 4
      %v1349 = vshll.u32 %v1049, 16
      %v1351 = vrot.slane %v1349, 5
      %v1352 = vsel %vm1074, %v1347, %v1351
      %v1353 = vshrl.u32 %v1049, 16
      %v1355 = vrot.slane %v1353, 4
      %v1356 = vor.u32 %v1355, %v1351
      %v1357 = vrot.slane %v1356, 4
      %v1359 = vshll.u32 %v1050, 16
      %v1361 = vrot.slane %v1359, 5
      %v1362 = vsel %vm1074, %v1357, %v1361
      %v1364 = vshrl.u32 %v1051, 16
      %v1366 = vrot.slane %v1364, 4
      %v1367 = vshll.u32 %v1051, 16
      %v1369 = vrot.slane %v1367, 5
      %v1370 = vor.u32 %v1366, %v1369
      %v1371 = vrot.slane %v1370, 4
      %v1373 = vshll.u32 %v1052, 16
      %v1375 = vrot.slane %v1373, 5
      %v1376 = vsel %vm1074, %v1371, %v1375
      %v1377 = vshrl.u32 %v1052, 16
      %v1379 = vrot.slane %v1377, 4
      %v1380 = vor.u32 %v1379, %v1375
      %v1381 = vrot.slane %v1380, 4
      %v1383 = vshll.u32 %v1053, 16
      %v1385 = vrot.slane %v1383, 5
      %v1386 = vsel %vm1074, %v1381, %v1385
      %v1388 = vshrl.u32 %v1054, 16
      %v1390 = vrot.slane %v1388, 4
      %v1391 = vshll.u32 %v1054, 16
      %v1393 = vrot.slane %v1391, 5
      %v1394 = vor.u32 %v1390, %v1393
      %v1395 = vrot.slane %v1394, 4
      %v1397 = vshll.u32 %v1055, 16
      %v1399 = vrot.slane %v1397, 5
      %v1400 = vsel %vm1074, %v1395, %v1399
      %v1401 = vshrl.u32 %v1055, 16
      %v1403 = vrot.slane %v1401, 4
      %v1404 = vor.u32 %v1403, %v1399
      %v1405 = vrot.slane %v1404, 4
      %v1407 = vshll.u32 %v1056, 16
      %v1409 = vrot.slane %v1407, 5
      %v1410 = vsel %vm1074, %v1405, %v1409
      %v1412 = vshrl.u32 %v1057, 16
      %v1414 = vrot.slane %v1412, 4
      %v1415 = vshll.u32 %v1057, 16
      %v1417 = vrot.slane %v1415, 5
      %v1418 = vor.u32 %v1414, %v1417
      %v1419 = vrot.slane %v1418, 4
      %v1421 = vshll.u32 %v1058, 16
      %v1423 = vrot.slane %v1421, 5
      %v1424 = vsel %vm1074, %v1419, %v1423
      %v1425 = vshrl.u32 %v1058, 16
      %v1427 = vrot.slane %v1425, 4
      %v1428 = vor.u32 %v1427, %v1423
      %v1429 = vrot.slane %v1428, 4
      %v1431 = vshll.u32 %v1059, 16
      %v1433 = vrot.slane %v1431, 5
      %v1434 = vsel %vm1074, %v1429, %v1433
      %v1436 = vshrl.u32 %v1060, 16
      %v1438 = vrot.slane %v1436, 4
      %v1439 = vshll.u32 %v1060, 16
      %v1441 = vrot.slane %v1439, 5
      %v1442 = vor.u32 %v1438, %v1441
      %v1443 = vrot.slane %v1442, 4
      %v1445 = vshll.u32 %v1061, 16
      %v1447 = vrot.slane %v1445, 5
      %v1448 = vsel %vm1074, %v1443, %v1447
      %v1449 = vshrl.u32 %v1061, 16
      %v1451 = vrot.slane %v1449, 4
      %v1452 = vor.u32 %v1451, %v1447
      %v1453 = vrot.slane %v1452, 4
      %v1455 = vshll.u32 %v1062, 16
      %v1457 = vrot.slane %v1455, 5
      %v1458 = vsel %vm1074, %v1453, %v1457
      %v1459 = vunpack.c.l.b16 %v1088
      %v1460 = vunpack.c.l.b16 %v1098
      %v1461 = vunpack.c.l.b16 %v1112
      %v1462 = vunpack.c.l.b16 %v1122
      %v1463 = vunpack.c.l.b16 %v1136
      %v1464 = vunpack.c.l.b16 %v1146
      %v1465 = vunpack.c.l.b16 %v1160
      %v1466 = vunpack.c.l.b16 %v1170
      %v1467 = vunpack.c.l.b16 %v1184
      %v1468 = vunpack.c.l.b16 %v1194
      %v1469 = vunpack.c.l.b16 %v1208
      %v1470 = vunpack.c.l.b16 %v1218
      %v1471 = vunpack.c.l.b16 %v1232
      %v1472 = vunpack.c.l.b16 %v1242
      %v1473 = vunpack.c.l.b16 %v1256
      %v1474 = vunpack.c.l.b16 %v1266
      %v1475 = vunpack.c.l.b16 %v1280
      %v1476 = vunpack.c.l.b16 %v1290
      %v1477 = vunpack.c.l.b16 %v1304
      %v1478 = vunpack.c.l.b16 %v1314
      %v1479 = vunpack.c.l.b16 %v1328
      %v1480 = vunpack.c.l.b16 %v1338
      %v1481 = vunpack.c.l.b16 %v1352
      %v1482 = vunpack.c.l.b16 %v1362
      %v1483 = vunpack.c.l.b16 %v1376
      %v1484 = vunpack.c.l.b16 %v1386
      %v1485 = vunpack.c.l.b16 %v1400
      %v1486 = vunpack.c.l.b16 %v1410
      %v1487 = vunpack.c.l.b16 %v1424
      %v1488 = vunpack.c.l.b16 %v1434
      %v1489 = vunpack.c.l.b16 %v1448
      %v1490 = vunpack.c.l.b16 %v1458
      %v1491 = vpack.c.b16 %v1460, %v1459
      %v1492 = vpack.c.b16 %v1462, %v1461
      %v1493 = vpack.c.b16 %v1464, %v1463
      %v1494 = vpack.c.b16 %v1466, %v1465
      %v1495 = vpack.c.b16 %v1468, %v1467
      %v1496 = vpack.c.b16 %v1470, %v1469
      %v1497 = vpack.c.b16 %v1472, %v1471
      %v1498 = vpack.c.b16 %v1474, %v1473
      %v1499 = vpack.c.b16 %v1476, %v1475
      %v1500 = vpack.c.b16 %v1478, %v1477
      %v1501 = vpack.c.b16 %v1480, %v1479
      %v1502 = vpack.c.b16 %v1482, %v1481
      %v1503 = vpack.c.b16 %v1484, %v1483
      %v1504 = vpack.c.b16 %v1486, %v1485
      %v1505 = vpack.c.b16 %v1488, %v1487
      %v1506 = vpack.c.b16 %v1490, %v1489
      %vm1507 = vcmask 31744
      %v1509 = vsel %vm1507, %v1491, 0
      %v1512 = vsel %vm1507, %v1492, 0
      %v1515 = vsel %vm1507, %v1493, 0
      %v1518 = vsel %vm1507, %v1494, 0
      %v1521 = vsel %vm1507, %v1495, 0
      %v1524 = vsel %vm1507, %v1496, 0
      %v1527 = vsel %vm1507, %v1497, 0
      %v1530 = vsel %vm1507, %v1498, 0
      %v1533 = vsel %vm1507, %v1499, 0
      %v1536 = vsel %vm1507, %v1500, 0
      %v1539 = vsel %vm1507, %v1501, 0
      %v1542 = vsel %vm1507, %v1502, 0
      %v1545 = vsel %vm1507, %v1503, 0
      %v1548 = vsel %vm1507, %v1504, 0
      %v1551 = vsel %vm1507, %v1505, 0
      %v1554 = vsel %vm1507, %v1506, 0
      %vm1556 = vcmask 1041408
      %v1558 = vsel %vm1556, %v1071, 0
      %1560 = vmatprep.subr.bf16.mxu0 0
      %1561 = vmatpush1.bf16.msra.mxu0 0
      %1562 = vmatprep.subr.bf16.mxu0 0
      %1563 = vmatpush1.bf16.msra.mxu0 0
      %1564 = vmatprep.subr.bf16.mxu0 0
      %1565 = vmatpush1.bf16.msra.mxu0 0
      %1566 = vmatprep.subr.bf16.mxu0 0
      %1567 = vmatpush1.bf16.msra.mxu0 0
      %1568 = vmatprep.subr.bf16.mxu0 0
      %1569 = vmatpush1.bf16.msra.mxu0 0
      %1570 = vmatprep.subr.bf16.mxu0 0
      %1571 = vmatpush1.bf16.msra.mxu0 0
      %1572 = vmatprep.subr.bf16.mxu0 0
      %1573 = vmatpush1.bf16.msra.mxu0 0
      %1574 = vmatprep.subr.bf16.mxu0 0
      %1575 = vmatpush1.bf16.msra.mxu0 %v1558
      %1576 = vmatprep.subr.bf16.mxu0 0
      %1577 = vmatpush2.bf16.msra.mxu0 0
      %1578 = vmatprep.subr.bf16.mxu0 0
      %1579 = vmatpush2.bf16.msra.mxu0 0
      %1580 = vmatprep.subr.bf16.mxu0 0
      %1581 = vmatpush2.bf16.msra.mxu0 0
      %1582 = vmatprep.subr.bf16.mxu0 0
      %1583 = vmatpush2.bf16.msra.mxu0 0
      %1584 = vmatprep.subr.bf16.mxu0 0
      %1585 = vmatpush2.bf16.msra.mxu0 0
      %1586 = vmatprep.subr.bf16.mxu0 0
      %1587 = vmatpush2.bf16.msra.mxu0 0
      %1588 = vmatprep.subr.bf16.mxu0 0
      %1589 = vmatpush2.bf16.msra.mxu0 0
      %1590 = vmatprep.subr.bf16.mxu0 0
      %1591 = vmatpush2.bf16.msra.mxu0 0
      %1592 = vmatprep.mubr.bf16.mxu0 0
      %1593 = vmatmul.mubr.bf16.gmra.mxu0 %v1509
      %v1594 = vpop.f32.mrf.mxu0
      %v1595 = vadd.f32 0.0, %v1594
      %v1596 = vpop.f32.mrf.mxu0
      %v1597 = vpop.f32.mrf.mxu0
      %v1598 = vadd.f32 0.0, %v1597
      %v1599 = vpop.f32.mrf.mxu0
      %1600 = vmatprep.mubr.bf16.mxu0 0
      %1601 = vmatmul.mubr.bf16.gmra.mxu0 %v1512
      %v1602 = vpop.f32.mrf.mxu0
      %v1603 = vadd.f32 0.0, %v1602
      %v1604 = vpop.f32.mrf.mxu0
      %v1605 = vpop.f32.mrf.mxu0
      %v1606 = vadd.f32 0.0, %v1605
      %v1607 = vpop.f32.mrf.mxu0
      %1608 = vmatprep.mubr.bf16.mxu0 0
      %1609 = vmatmul.mubr.bf16.gmra.mxu0 %v1515
      %v1610 = vpop.f32.mrf.mxu0
      %v1611 = vadd.f32 0.0, %v1610
      %v1612 = vpop.f32.mrf.mxu0
      %v1613 = vpop.f32.mrf.mxu0
      %v1614 = vadd.f32 0.0, %v1613
      %v1615 = vpop.f32.mrf.mxu0
      %1616 = vmatprep.mubr.bf16.mxu0 0
      %1617 = vmatmul.mubr.bf16.gmra.mxu0 %v1518
      %v1618 = vpop.f32.mrf.mxu0
      %v1619 = vadd.f32 0.0, %v1618
      %v1620 = vpop.f32.mrf.mxu0
      %v1621 = vpop.f32.mrf.mxu0
      %v1622 = vadd.f32 0.0, %v1621
      %v1623 = vpop.f32.mrf.mxu0
      %1624 = vmatprep.mubr.bf16.mxu0 0
      %1625 = vmatmul.mubr.bf16.gmra.mxu0 %v1521
      %v1626 = vpop.f32.mrf.mxu0
      %v1627 = vadd.f32 0.0, %v1626
      %v1628 = vpop.f32.mrf.mxu0
      %v1629 = vpop.f32.mrf.mxu0
      %v1630 = vadd.f32 0.0, %v1629
      %v1631 = vpop.f32.mrf.mxu0
      %1632 = vmatprep.mubr.bf16.mxu0 0
      %1633 = vmatmul.mubr.bf16.gmra.mxu0 %v1524
      %v1634 = vpop.f32.mrf.mxu0
      %v1635 = vadd.f32 0.0, %v1634
      %v1636 = vpop.f32.mrf.mxu0
      %v1637 = vpop.f32.mrf.mxu0
      %v1638 = vadd.f32 0.0, %v1637
      %v1639 = vpop.f32.mrf.mxu0
      %1640 = vmatprep.mubr.bf16.mxu0 0
      %1641 = vmatmul.mubr.bf16.gmra.mxu0 %v1527
      %v1642 = vpop.f32.mrf.mxu0
      %v1643 = vadd.f32 0.0, %v1642
      %v1644 = vpop.f32.mrf.mxu0
      %v1645 = vpop.f32.mrf.mxu0
      %v1646 = vadd.f32 0.0, %v1645
      %v1647 = vpop.f32.mrf.mxu0
      %1648 = vmatprep.mubr.bf16.mxu0 0
      %1649 = vmatmul.mubr.bf16.gmra.mxu0 %v1530
      %v1650 = vpop.f32.mrf.mxu0
      %v1651 = vadd.f32 0.0, %v1650
      %v1652 = vpop.f32.mrf.mxu0
      %v1653 = vpop.f32.mrf.mxu0
      %v1654 = vadd.f32 0.0, %v1653
      %v1655 = vpop.f32.mrf.mxu0
      %1656 = vmatprep.mubr.bf16.mxu0 0
      %1657 = vmatmul.mubr.bf16.gmra.mxu0 %v1533
      %v1658 = vpop.f32.mrf.mxu0
      %v1659 = vadd.f32 0.0, %v1658
      %v1660 = vpop.f32.mrf.mxu0
      %v1661 = vpop.f32.mrf.mxu0
      %v1662 = vadd.f32 0.0, %v1661
      %v1663 = vpop.f32.mrf.mxu0
      %1664 = vmatprep.mubr.bf16.mxu0 0
      %1665 = vmatmul.mubr.bf16.gmra.mxu0 %v1536
      %v1666 = vpop.f32.mrf.mxu0
      %v1667 = vadd.f32 0.0, %v1666
      %v1668 = vpop.f32.mrf.mxu0
      %v1669 = vpop.f32.mrf.mxu0
      %v1670 = vadd.f32 0.0, %v1669
      %v1671 = vpop.f32.mrf.mxu0
      %1672 = vmatprep.mubr.bf16.mxu0 0
      %1673 = vmatmul.mubr.bf16.gmra.mxu0 %v1539
      %v1674 = vpop.f32.mrf.mxu0
      %v1675 = vadd.f32 0.0, %v1674
      %v1676 = vpop.f32.mrf.mxu0
      %v1677 = vpop.f32.mrf.mxu0
      %v1678 = vadd.f32 0.0, %v1677
      %v1679 = vpop.f32.mrf.mxu0
      %1680 = vmatprep.mubr.bf16.mxu0 0
      %1681 = vmatmul.mubr.bf16.gmra.mxu0 %v1542
      %v1682 = vpop.f32.mrf.mxu0
      %v1683 = vadd.f32 0.0, %v1682
      %v1684 = vpop.f32.mrf.mxu0
      %v1685 = vpop.f32.mrf.mxu0
      %v1686 = vadd.f32 0.0, %v1685
      %v1687 = vpop.f32.mrf.mxu0
      %1688 = vmatprep.mubr.bf16.mxu0 0
      %1689 = vmatmul.mubr.bf16.gmra.mxu0 %v1545
      %v1690 = vpop.f32.mrf.mxu0
      %v1691 = vadd.f32 0.0, %v1690
      %v1692 = vpop.f32.mrf.mxu0
      %v1693 = vpop.f32.mrf.mxu0
      %v1694 = vadd.f32 0.0, %v1693
      %v1695 = vpop.f32.mrf.mxu0
      %1696 = vmatprep.mubr.bf16.mxu0 0
      %1697 = vmatmul.mubr.bf16.gmra.mxu0 %v1548
      %v1698 = vpop.f32.mrf.mxu0
      %v1699 = vadd.f32 0.0, %v1698
      %v1700 = vpop.f32.mrf.mxu0
      %v1701 = vpop.f32.mrf.mxu0
      %v1702 = vadd.f32 0.0, %v1701
      %v1703 = vpop.f32.mrf.mxu0
      %1704 = vmatprep.mubr.bf16.mxu0 0
      %1705 = vmatmul.mubr.bf16.gmra.mxu0 %v1551
      %v1706 = vpop.f32.mrf.mxu0
      %v1707 = vadd.f32 0.0, %v1706
      %v1708 = vpop.f32.mrf.mxu0
      %v1709 = vpop.f32.mrf.mxu0
      %v1710 = vadd.f32 0.0, %v1709
      %v1711 = vpop.f32.mrf.mxu0
      %1712 = vmatprep.mubr.bf16.mxu0 0
      %1713 = vmatmul.mubr.bf16.gmra.mxu0 %v1554
      %v1714 = vpop.f32.mrf.mxu0
      %v1715 = vadd.f32 0.0, %v1714
      %v1716 = vpop.f32.mrf.mxu0
      %v1717 = vpop.f32.mrf.mxu0
      %v1718 = vadd.f32 0.0, %v1717
      %v1719 = vpop.f32.mrf.mxu0
      %1720 = vdwg.mxu0
      %v1753 = vunpack.c.l.b16 %v1015
      %v1754 = vunpack.c.l.b16 %v1016
      %v1755 = vunpack.c.l.b16 %v1018
      %v1756 = vunpack.c.l.b16 %v1019
      %v1757 = vunpack.c.l.b16 %v1021
      %v1758 = vunpack.c.l.b16 %v1022
      %v1759 = vunpack.c.l.b16 %v1024
      %v1760 = vunpack.c.l.b16 %v1025
      %v1761 = vunpack.c.l.b16 %v1027
      %v1762 = vunpack.c.l.b16 %v1028
      %v1763 = vunpack.c.l.b16 %v1030
      %v1764 = vunpack.c.l.b16 %v1031
      %v1765 = vunpack.c.l.b16 %v1033
      %v1766 = vunpack.c.l.b16 %v1034
      %v1767 = vunpack.c.l.b16 %v1036
      %v1768 = vunpack.c.l.b16 %v1037
      %v1769 = vunpack.c.l.b16 %v1039
      %v1770 = vunpack.c.l.b16 %v1040
      %v1771 = vunpack.c.l.b16 %v1042
      %v1772 = vunpack.c.l.b16 %v1043
      %v1773 = vunpack.c.l.b16 %v1045
      %v1774 = vunpack.c.l.b16 %v1046
      %v1775 = vunpack.c.l.b16 %v1048
      %v1776 = vunpack.c.l.b16 %v1049
      %v1777 = vunpack.c.l.b16 %v1051
      %v1778 = vunpack.c.l.b16 %v1052
      %v1779 = vunpack.c.l.b16 %v1054
      %v1780 = vunpack.c.l.b16 %v1055
      %v1781 = vunpack.c.l.b16 %v1057
      %v1782 = vunpack.c.l.b16 %v1058
      %v1783 = vunpack.c.l.b16 %v1060
      %v1784 = vunpack.c.l.b16 %v1061
      %v1785 = vpack.c.b16 %v1754, %v1753
      %v1786 = vpack.c.b16 %v1756, %v1755
      %v1787 = vpack.c.b16 %v1758, %v1757
      %v1788 = vpack.c.b16 %v1760, %v1759
      %v1789 = vpack.c.b16 %v1762, %v1761
      %v1790 = vpack.c.b16 %v1764, %v1763
      %v1791 = vpack.c.b16 %v1766, %v1765
      %v1792 = vpack.c.b16 %v1768, %v1767
      %v1793 = vpack.c.b16 %v1770, %v1769
      %v1794 = vpack.c.b16 %v1772, %v1771
      %v1795 = vpack.c.b16 %v1774, %v1773
      %v1796 = vpack.c.b16 %v1776, %v1775
      %v1797 = vpack.c.b16 %v1778, %v1777
      %v1798 = vpack.c.b16 %v1780, %v1779
      %v1799 = vpack.c.b16 %v1782, %v1781
      %v1800 = vpack.c.b16 %v1784, %v1783
      %v1802 = vsel %vm1507, %v1785, 0
      %v1805 = vsel %vm1507, %v1786, 0
      %v1808 = vsel %vm1507, %v1787, 0
      %v1811 = vsel %vm1507, %v1788, 0
      %v1814 = vsel %vm1507, %v1789, 0
      %v1817 = vsel %vm1507, %v1790, 0
      %v1820 = vsel %vm1507, %v1791, 0
      %v1823 = vsel %vm1507, %v1792, 0
      %v1826 = vsel %vm1507, %v1793, 0
      %v1829 = vsel %vm1507, %v1794, 0
      %v1832 = vsel %vm1507, %v1795, 0
      %v1835 = vsel %vm1507, %v1796, 0
      %v1838 = vsel %vm1507, %v1797, 0
      %v1841 = vsel %vm1507, %v1798, 0
      %v1844 = vsel %vm1507, %v1799, 0
      %v1847 = vsel %vm1507, %v1800, 0
      %v1850 = vsel %vm1556, %v1069, 0
      %1852 = vmatprep.subr.bf16.mxu0 0
      %1853 = vmatpush1.bf16.msra.mxu0 0
      %1854 = vmatprep.subr.bf16.mxu0 0
      %1855 = vmatpush1.bf16.msra.mxu0 0
      %1856 = vmatprep.subr.bf16.mxu0 0
      %1857 = vmatpush1.bf16.msra.mxu0 0
      %1858 = vmatprep.subr.bf16.mxu0 0
      %1859 = vmatpush1.bf16.msra.mxu0 0
      %1860 = vmatprep.subr.bf16.mxu0 0
      %1861 = vmatpush1.bf16.msra.mxu0 0
      %1862 = vmatprep.subr.bf16.mxu0 0
      %1863 = vmatpush1.bf16.msra.mxu0 0
      %1864 = vmatprep.subr.bf16.mxu0 0
      %1865 = vmatpush1.bf16.msra.mxu0 0
      %1866 = vmatprep.subr.bf16.mxu0 0
      %1867 = vmatpush1.bf16.msra.mxu0 %v1850
      %1868 = vmatprep.subr.bf16.mxu0 0
      %1869 = vmatpush2.bf16.msra.mxu0 0
      %1870 = vmatprep.subr.bf16.mxu0 0
      %1871 = vmatpush2.bf16.msra.mxu0 0
      %1872 = vmatprep.subr.bf16.mxu0 0
      %1873 = vmatpush2.bf16.msra.mxu0 0
      %1874 = vmatprep.subr.bf16.mxu0 0
      %1875 = vmatpush2.bf16.msra.mxu0 0
      %1876 = vmatprep.subr.bf16.mxu0 0
      %1877 = vmatpush2.bf16.msra.mxu0 0
      %1878 = vmatprep.subr.bf16.mxu0 0
      %1879 = vmatpush2.bf16.msra.mxu0 0
      %1880 = vmatprep.subr.bf16.mxu0 0
      %1881 = vmatpush2.bf16.msra.mxu0 0
      %1882 = vmatprep.subr.bf16.mxu0 0
      %1883 = vmatpush2.bf16.msra.mxu0 0
      %1884 = vmatprep.mubr.bf16.mxu0 0
      %1885 = vmatmul.mubr.bf16.gmra.mxu0 %v1802
      %v1886 = vpop.f32.mrf.mxu0
      %v1887 = vadd.f32 %v1595, %v1886
      %v1888 = vpop.f32.mrf.mxu0
      %v1889 = vpop.f32.mrf.mxu0
      %v1890 = vadd.f32 %v1598, %v1889
      %v1891 = vpop.f32.mrf.mxu0
      %1892 = vmatprep.mubr.bf16.mxu0 0
      %1893 = vmatmul.mubr.bf16.gmra.mxu0 %v1805
      %v1894 = vpop.f32.mrf.mxu0
      %v1895 = vadd.f32 %v1603, %v1894
      %v1896 = vpop.f32.mrf.mxu0
      %v1897 = vpop.f32.mrf.mxu0
      %v1898 = vadd.f32 %v1606, %v1897
      %v1899 = vpop.f32.mrf.mxu0
      %1900 = vmatprep.mubr.bf16.mxu0 0
      %1901 = vmatmul.mubr.bf16.gmra.mxu0 %v1808
      %v1902 = vpop.f32.mrf.mxu0
      %v1903 = vadd.f32 %v1611, %v1902
      %v1904 = vpop.f32.mrf.mxu0
      %v1905 = vpop.f32.mrf.mxu0
      %v1906 = vadd.f32 %v1614, %v1905
      %v1907 = vpop.f32.mrf.mxu0
      %1908 = vmatprep.mubr.bf16.mxu0 0
      %1909 = vmatmul.mubr.bf16.gmra.mxu0 %v1811
      %v1910 = vpop.f32.mrf.mxu0
      %v1911 = vadd.f32 %v1619, %v1910
      %v1912 = vpop.f32.mrf.mxu0
      %v1913 = vpop.f32.mrf.mxu0
      %v1914 = vadd.f32 %v1622, %v1913
      %v1915 = vpop.f32.mrf.mxu0
      %1916 = vmatprep.mubr.bf16.mxu0 0
      %1917 = vmatmul.mubr.bf16.gmra.mxu0 %v1814
      %v1918 = vpop.f32.mrf.mxu0
      %v1919 = vadd.f32 %v1627, %v1918
      %v1920 = vpop.f32.mrf.mxu0
      %v1921 = vpop.f32.mrf.mxu0
      %v1922 = vadd.f32 %v1630, %v1921
      %v1923 = vpop.f32.mrf.mxu0
      %1924 = vmatprep.mubr.bf16.mxu0 0
      %1925 = vmatmul.mubr.bf16.gmra.mxu0 %v1817
      %v1926 = vpop.f32.mrf.mxu0
      %v1927 = vadd.f32 %v1635, %v1926
      %v1928 = vpop.f32.mrf.mxu0
      %v1929 = vpop.f32.mrf.mxu0
      %v1930 = vadd.f32 %v1638, %v1929
      %v1931 = vpop.f32.mrf.mxu0
      %1932 = vmatprep.mubr.bf16.mxu0 0
      %1933 = vmatmul.mubr.bf16.gmra.mxu0 %v1820
      %v1934 = vpop.f32.mrf.mxu0
      %v1935 = vadd.f32 %v1643, %v1934
      %v1936 = vpop.f32.mrf.mxu0
      %v1937 = vpop.f32.mrf.mxu0
      %v1938 = vadd.f32 %v1646, %v1937
      %v1939 = vpop.f32.mrf.mxu0
      %1940 = vmatprep.mubr.bf16.mxu0 0
      %1941 = vmatmul.mubr.bf16.gmra.mxu0 %v1823
      %v1942 = vpop.f32.mrf.mxu0
      %v1943 = vadd.f32 %v1651, %v1942
      %v1944 = vpop.f32.mrf.mxu0
      %v1945 = vpop.f32.mrf.mxu0
      %v1946 = vadd.f32 %v1654, %v1945
      %v1947 = vpop.f32.mrf.mxu0
      %1948 = vmatprep.mubr.bf16.mxu0 0
      %1949 = vmatmul.mubr.bf16.gmra.mxu0 %v1826
      %v1950 = vpop.f32.mrf.mxu0
      %v1951 = vadd.f32 %v1659, %v1950
      %v1952 = vpop.f32.mrf.mxu0
      %v1953 = vpop.f32.mrf.mxu0
      %v1954 = vadd.f32 %v1662, %v1953
      %v1955 = vpop.f32.mrf.mxu0
      %1956 = vmatprep.mubr.bf16.mxu0 0
      %1957 = vmatmul.mubr.bf16.gmra.mxu0 %v1829
      %v1958 = vpop.f32.mrf.mxu0
      %v1959 = vadd.f32 %v1667, %v1958
      %v1960 = vpop.f32.mrf.mxu0
      %v1961 = vpop.f32.mrf.mxu0
      %v1962 = vadd.f32 %v1670, %v1961
      %v1963 = vpop.f32.mrf.mxu0
      %1964 = vmatprep.mubr.bf16.mxu0 0
      %1965 = vmatmul.mubr.bf16.gmra.mxu0 %v1832
      %v1966 = vpop.f32.mrf.mxu0
      %v1967 = vadd.f32 %v1675, %v1966
      %v1968 = vpop.f32.mrf.mxu0
      %v1969 = vpop.f32.mrf.mxu0
      %v1970 = vadd.f32 %v1678, %v1969
      %v1971 = vpop.f32.mrf.mxu0
      %1972 = vmatprep.mubr.bf16.mxu0 0
      %1973 = vmatmul.mubr.bf16.gmra.mxu0 %v1835
      %v1974 = vpop.f32.mrf.mxu0
      %v1975 = vadd.f32 %v1683, %v1974
      %v1976 = vpop.f32.mrf.mxu0
      %v1977 = vpop.f32.mrf.mxu0
      %v1978 = vadd.f32 %v1686, %v1977
      %v1979 = vpop.f32.mrf.mxu0
      %1980 = vmatprep.mubr.bf16.mxu0 0
      %1981 = vmatmul.mubr.bf16.gmra.mxu0 %v1838
      %v1982 = vpop.f32.mrf.mxu0
      %v1983 = vadd.f32 %v1691, %v1982
      %v1984 = vpop.f32.mrf.mxu0
      %v1985 = vpop.f32.mrf.mxu0
      %v1986 = vadd.f32 %v1694, %v1985
      %v1987 = vpop.f32.mrf.mxu0
      %1988 = vmatprep.mubr.bf16.mxu0 0
      %1989 = vmatmul.mubr.bf16.gmra.mxu0 %v1841
      %v1990 = vpop.f32.mrf.mxu0
      %v1991 = vadd.f32 %v1699, %v1990
      %v1992 = vpop.f32.mrf.mxu0
      %v1993 = vpop.f32.mrf.mxu0
      %v1994 = vadd.f32 %v1702, %v1993
      %v1995 = vpop.f32.mrf.mxu0
      %1996 = vmatprep.mubr.bf16.mxu0 0
      %1997 = vmatmul.mubr.bf16.gmra.mxu0 %v1844
      %v1998 = vpop.f32.mrf.mxu0
      %v1999 = vadd.f32 %v1707, %v1998
      %v2000 = vpop.f32.mrf.mxu0
      %v2001 = vpop.f32.mrf.mxu0
      %v2002 = vadd.f32 %v1710, %v2001
      %v2003 = vpop.f32.mrf.mxu0
      %2004 = vmatprep.mubr.bf16.mxu0 0
      %2005 = vmatmul.mubr.bf16.gmra.mxu0 %v1847
      %v2006 = vpop.f32.mrf.mxu0
      %v2007 = vadd.f32 %v1715, %v2006
      %v2008 = vpop.f32.mrf.mxu0
      %v2009 = vpop.f32.mrf.mxu0
      %v2010 = vadd.f32 %v1718, %v2009
      %v2011 = vpop.f32.mrf.mxu0
      %2012 = vdwg.mxu0
      %s2013 = scalar_lea.vmem %s1, 4
      %v2014 = vld [vmem:[%s2013] sm:$0x3]
      %vm2031 = vcmask 1042432
      %vm2032 = vcmask 1046532
      %vm2033 = vmor %vm2031, %vm2032
      %v2034 = vrot.slane %v1015, 5
      %v2035 = vrot.slane %v2034, 4
      %v2036 = vrot.slane %v1016, 5
      %v2037 = vsel %vm2033, %v2035, %v2036
      %v2038 = vrot.slane %v2036, 4
      %v2039 = vrot.slane %v1017, 5
      %v2040 = vsel %vm2033, %v2038, %v2039
      %v2041 = vrot.slane %v1018, 5
      %v2042 = vrot.slane %v2041, 4
      %v2043 = vrot.slane %v1019, 5
      %v2044 = vsel %vm2033, %v2042, %v2043
      %v2045 = vrot.slane %v2043, 4
      %v2046 = vrot.slane %v1020, 5
      %v2047 = vsel %vm2033, %v2045, %v2046
      %v2048 = vrot.slane %v1021, 5
      %v2049 = vrot.slane %v2048, 4
      %v2050 = vrot.slane %v1022, 5
      %v2051 = vsel %vm2033, %v2049, %v2050
      %v2052 = vrot.slane %v2050, 4
      %v2053 = vrot.slane %v1023, 5
      %v2054 = vsel %vm2033, %v2052, %v2053
      %v2055 = vrot.slane %v1024, 5
      %v2056 = vrot.slane %v2055, 4
      %v2057 = vrot.slane %v1025, 5
      %v2058 = vsel %vm2033, %v2056, %v2057
      %v2059 = vrot.slane %v2057, 4
      %v2060 = vrot.slane %v1026, 5
      %v2061 = vsel %vm2033, %v2059, %v2060
      %v2062 = vrot.slane %v1027, 5
      %v2063 = vrot.slane %v2062, 4
      %v2064 = vrot.slane %v1028, 5
      %v2065 = vsel %vm2033, %v2063, %v2064
      %v2066 = vrot.slane %v2064, 4
      %v2067 = vrot.slane %v1029, 5
      %v2068 = vsel %vm2033, %v2066, %v2067
      %v2069 = vrot.slane %v1030, 5
      %v2070 = vrot.slane %v2069, 4
      %v2071 = vrot.slane %v1031, 5
      %v2072 = vsel %vm2033, %v2070, %v2071
      %v2073 = vrot.slane %v2071, 4
      %v2074 = vrot.slane %v1032, 5
      %v2075 = vsel %vm2033, %v2073, %v2074
      %v2076 = vrot.slane %v1033, 5
      %v2077 = vrot.slane %v2076, 4
      %v2078 = vrot.slane %v1034, 5
      %v2079 = vsel %vm2033, %v2077, %v2078
      %v2080 = vrot.slane %v2078, 4
      %v2081 = vrot.slane %v1035, 5
      %v2082 = vsel %vm2033, %v2080, %v2081
      %v2083 = vrot.slane %v1036, 5
      %v2084 = vrot.slane %v2083, 4
      %v2085 = vrot.slane %v1037, 5
      %v2086 = vsel %vm2033, %v2084, %v2085
      %v2087 = vrot.slane %v2085, 4
      %v2088 = vrot.slane %v1038, 5
      %v2089 = vsel %vm2033, %v2087, %v2088
      %v2090 = vrot.slane %v1039, 5
      %v2091 = vrot.slane %v2090, 4
      %v2092 = vrot.slane %v1040, 5
      %v2093 = vsel %vm2033, %v2091, %v2092
      %v2094 = vrot.slane %v2092, 4
      %v2095 = vrot.slane %v1041, 5
      %v2096 = vsel %vm2033, %v2094, %v2095
      %v2097 = vrot.slane %v1042, 5
      %v2098 = vrot.slane %v2097, 4
      %v2099 = vrot.slane %v1043, 5
      %v2100 = vsel %vm2033, %v2098, %v2099
      %v2101 = vrot.slane %v2099, 4
      %v2102 = vrot.slane %v1044, 5
      %v2103 = vsel %vm2033, %v2101, %v2102
      %v2104 = vrot.slane %v1045, 5
      %v2105 = vrot.slane %v2104, 4
      %v2106 = vrot.slane %v1046, 5
      %v2107 = vsel %vm2033, %v2105, %v2106
      %v2108 = vrot.slane %v2106, 4
      %v2109 = vrot.slane %v1047, 5
      %v2110 = vsel %vm2033, %v2108, %v2109
      %v2111 = vrot.slane %v1048, 5
      %v2112 = vrot.slane %v2111, 4
      %v2113 = vrot.slane %v1049, 5
      %v2114 = vsel %vm2033, %v2112, %v2113
      %v2115 = vrot.slane %v2113, 4
      %v2116 = vrot.slane %v1050, 5
      %v2117 = vsel %vm2033, %v2115, %v2116
      %v2118 = vrot.slane %v1051, 5
      %v2119 = vrot.slane %v2118, 4
      %v2120 = vrot.slane %v1052, 5
      %v2121 = vsel %vm2033, %v2119, %v2120
      %v2122 = vrot.slane %v2120, 4
      %v2123 = vrot.slane %v1053, 5
      %v2124 = vsel %vm2033, %v2122, %v2123
      %v2125 = vrot.slane %v1054, 5
      %v2126 = vrot.slane %v2125, 4
      %v2127 = vrot.slane %v1055, 5
      %v2128 = vsel %vm2033, %v2126, %v2127
      %v2129 = vrot.slane %v2127, 4
      %v2130 = vrot.slane %v1056, 5
      %v2131 = vsel %vm2033, %v2129, %v2130
      %v2132 = vrot.slane %v1057, 5
      %v2133 = vrot.slane %v2132, 4
      %v2134 = vrot.slane %v1058, 5
      %v2135 = vsel %vm2033, %v2133, %v2134
      %v2136 = vrot.slane %v2134, 4
      %v2137 = vrot.slane %v1059, 5
      %v2138 = vsel %vm2033, %v2136, %v2137
      %v2139 = vrot.slane %v1060, 5
      %v2140 = vrot.slane %v2139, 4
      %v2141 = vrot.slane %v1061, 5
      %v2142 = vsel %vm2033, %v2140, %v2141
      %v2143 = vrot.slane %v2141, 4
      %v2144 = vrot.slane %v1062, 5
      %v2145 = vsel %vm2033, %v2143, %v2144
      %v2146 = vunpack.c.l.b16 %v2037
      %v2147 = vunpack.c.l.b16 %v2040
      %v2148 = vunpack.c.l.b16 %v2044
      %v2149 = vunpack.c.l.b16 %v2047
      %v2150 = vunpack.c.l.b16 %v2051
      %v2151 = vunpack.c.l.b16 %v2054
      %v2152 = vunpack.c.l.b16 %v2058
      %v2153 = vunpack.c.l.b16 %v2061
      %v2154 = vunpack.c.l.b16 %v2065
      %v2155 = vunpack.c.l.b16 %v2068
      %v2156 = vunpack.c.l.b16 %v2072
      %v2157 = vunpack.c.l.b16 %v2075
      %v2158 = vunpack.c.l.b16 %v2079
      %v2159 = vunpack.c.l.b16 %v2082
      %v2160 = vunpack.c.l.b16 %v2086
      %v2161 = vunpack.c.l.b16 %v2089
      %v2162 = vunpack.c.l.b16 %v2093
      %v2163 = vunpack.c.l.b16 %v2096
      %v2164 = vunpack.c.l.b16 %v2100
      %v2165 = vunpack.c.l.b16 %v2103
      %v2166 = vunpack.c.l.b16 %v2107
      %v2167 = vunpack.c.l.b16 %v2110
      %v2168 = vunpack.c.l.b16 %v2114
      %v2169 = vunpack.c.l.b16 %v2117
      %v2170 = vunpack.c.l.b16 %v2121
      %v2171 = vunpack.c.l.b16 %v2124
      %v2172 = vunpack.c.l.b16 %v2128
      %v2173 = vunpack.c.l.b16 %v2131
      %v2174 = vunpack.c.l.b16 %v2135
      %v2175 = vunpack.c.l.b16 %v2138
      %v2176 = vunpack.c.l.b16 %v2142
      %v2177 = vunpack.c.l.b16 %v2145
      %v2178 = vpack.c.b16 %v2147, %v2146
      %v2179 = vpack.c.b16 %v2149, %v2148
      %v2180 = vpack.c.b16 %v2151, %v2150
      %v2181 = vpack.c.b16 %v2153, %v2152
      %v2182 = vpack.c.b16 %v2155, %v2154
      %v2183 = vpack.c.b16 %v2157, %v2156
      %v2184 = vpack.c.b16 %v2159, %v2158
      %v2185 = vpack.c.b16 %v2161, %v2160
      %v2186 = vpack.c.b16 %v2163, %v2162
      %v2187 = vpack.c.b16 %v2165, %v2164
      %v2188 = vpack.c.b16 %v2167, %v2166
      %v2189 = vpack.c.b16 %v2169, %v2168
      %v2190 = vpack.c.b16 %v2171, %v2170
      %v2191 = vpack.c.b16 %v2173, %v2172
      %v2192 = vpack.c.b16 %v2175, %v2174
      %v2193 = vpack.c.b16 %v2177, %v2176
      %v2195 = vsel %vm1507, %v2178, 0
      %v2198 = vsel %vm1507, %v2179, 0
      %v2201 = vsel %vm1507, %v2180, 0
      %v2204 = vsel %vm1507, %v2181, 0
      %v2207 = vsel %vm1507, %v2182, 0
      %v2210 = vsel %vm1507, %v2183, 0
      %v2213 = vsel %vm1507, %v2184, 0
      %v2216 = vsel %vm1507, %v2185, 0
      %v2219 = vsel %vm1507, %v2186, 0
      %v2222 = vsel %vm1507, %v2187, 0
      %v2225 = vsel %vm1507, %v2188, 0
      %v2228 = vsel %vm1507, %v2189, 0
      %v2231 = vsel %vm1507, %v2190, 0
      %v2234 = vsel %vm1507, %v2191, 0
      %v2237 = vsel %vm1507, %v2192, 0
      %v2240 = vsel %vm1507, %v2193, 0
      %v2243 = vsel %vm1556, %v2014, 0
      %2245 = vmatprep.subr.bf16.mxu0 0
      %2246 = vmatpush1.bf16.msra.mxu0 0
      %2247 = vmatprep.subr.bf16.mxu0 0
      %2248 = vmatpush1.bf16.msra.mxu0 0
      %2249 = vmatprep.subr.bf16.mxu0 0
      %2250 = vmatpush1.bf16.msra.mxu0 0
      %2251 = vmatprep.subr.bf16.mxu0 0
      %2252 = vmatpush1.bf16.msra.mxu0 0
      %2253 = vmatprep.subr.bf16.mxu0 0
      %2254 = vmatpush1.bf16.msra.mxu0 0
      %2255 = vmatprep.subr.bf16.mxu0 0
      %2256 = vmatpush1.bf16.msra.mxu0 0
      %2257 = vmatprep.subr.bf16.mxu0 0
      %2258 = vmatpush1.bf16.msra.mxu0 0
      %2259 = vmatprep.subr.bf16.mxu0 0
      %2260 = vmatpush1.bf16.msra.mxu0 %v2243
      %2261 = vmatprep.subr.bf16.mxu0 0
      %2262 = vmatpush2.bf16.msra.mxu0 0
      %2263 = vmatprep.subr.bf16.mxu0 0
      %2264 = vmatpush2.bf16.msra.mxu0 0
      %2265 = vmatprep.subr.bf16.mxu0 0
      %2266 = vmatpush2.bf16.msra.mxu0 0
      %2267 = vmatprep.subr.bf16.mxu0 0
      %2268 = vmatpush2.bf16.msra.mxu0 0
      %2269 = vmatprep.subr.bf16.mxu0 0
      %2270 = vmatpush2.bf16.msra.mxu0 0
      %2271 = vmatprep.subr.bf16.mxu0 0
      %2272 = vmatpush2.bf16.msra.mxu0 0
      %2273 = vmatprep.subr.bf16.mxu0 0
      %2274 = vmatpush2.bf16.msra.mxu0 0
      %2275 = vmatprep.subr.bf16.mxu0 0
      %2276 = vmatpush2.bf16.msra.mxu0 0
      %2277 = vmatprep.mubr.bf16.mxu0 0
      %2278 = vmatmul.mubr.bf16.gmra.mxu0 %v2195
      %v2279 = vpop.f32.mrf.mxu0
      %v2280 = vadd.f32 0.0, %v2279
      %v2281 = vpop.f32.mrf.mxu0
      %v2282 = vpop.f32.mrf.mxu0
      %v2283 = vadd.f32 0.0, %v2282
      %v2284 = vpop.f32.mrf.mxu0
      %2285 = vmatprep.mubr.bf16.mxu0 0
      %2286 = vmatmul.mubr.bf16.gmra.mxu0 %v2198
      %v2287 = vpop.f32.mrf.mxu0
      %v2288 = vadd.f32 0.0, %v2287
      %v2289 = vpop.f32.mrf.mxu0
      %v2290 = vpop.f32.mrf.mxu0
      %v2291 = vadd.f32 0.0, %v2290
      %v2292 = vpop.f32.mrf.mxu0
      %2293 = vmatprep.mubr.bf16.mxu0 0
      %2294 = vmatmul.mubr.bf16.gmra.mxu0 %v2201
      %v2295 = vpop.f32.mrf.mxu0
      %v2296 = vadd.f32 0.0, %v2295
      %v2297 = vpop.f32.mrf.mxu0
      %v2298 = vpop.f32.mrf.mxu0
      %v2299 = vadd.f32 0.0, %v2298
      %v2300 = vpop.f32.mrf.mxu0
      %2301 = vmatprep.mubr.bf16.mxu0 0
      %2302 = vmatmul.mubr.bf16.gmra.mxu0 %v2204
      %v2303 = vpop.f32.mrf.mxu0
      %v2304 = vadd.f32 0.0, %v2303
      %v2305 = vpop.f32.mrf.mxu0
      %v2306 = vpop.f32.mrf.mxu0
      %v2307 = vadd.f32 0.0, %v2306
      %v2308 = vpop.f32.mrf.mxu0
      %2309 = vmatprep.mubr.bf16.mxu0 0
      %2310 = vmatmul.mubr.bf16.gmra.mxu0 %v2207
      %v2311 = vpop.f32.mrf.mxu0
      %v2312 = vadd.f32 0.0, %v2311
      %v2313 = vpop.f32.mrf.mxu0
      %v2314 = vpop.f32.mrf.mxu0
      %v2315 = vadd.f32 0.0, %v2314
      %v2316 = vpop.f32.mrf.mxu0
      %2317 = vmatprep.mubr.bf16.mxu0 0
      %2318 = vmatmul.mubr.bf16.gmra.mxu0 %v2210
      %v2319 = vpop.f32.mrf.mxu0
      %v2320 = vadd.f32 0.0, %v2319
      %v2321 = vpop.f32.mrf.mxu0
      %v2322 = vpop.f32.mrf.mxu0
      %v2323 = vadd.f32 0.0, %v2322
      %v2324 = vpop.f32.mrf.mxu0
      %2325 = vmatprep.mubr.bf16.mxu0 0
      %2326 = vmatmul.mubr.bf16.gmra.mxu0 %v2213
      %v2327 = vpop.f32.mrf.mxu0
      %v2328 = vadd.f32 0.0, %v2327
      %v2329 = vpop.f32.mrf.mxu0
      %v2330 = vpop.f32.mrf.mxu0
      %v2331 = vadd.f32 0.0, %v2330
      %v2332 = vpop.f32.mrf.mxu0
      %2333 = vmatprep.mubr.bf16.mxu0 0
      %2334 = vmatmul.mubr.bf16.gmra.mxu0 %v2216
      %v2335 = vpop.f32.mrf.mxu0
      %v2336 = vadd.f32 0.0, %v2335
      %v2337 = vpop.f32.mrf.mxu0
      %v2338 = vpop.f32.mrf.mxu0
      %v2339 = vadd.f32 0.0, %v2338
      %v2340 = vpop.f32.mrf.mxu0
      %2341 = vmatprep.mubr.bf16.mxu0 0
      %2342 = vmatmul.mubr.bf16.gmra.mxu0 %v2219
      %v2343 = vpop.f32.mrf.mxu0
      %v2344 = vadd.f32 0.0, %v2343
      %v2345 = vpop.f32.mrf.mxu0
      %v2346 = vpop.f32.mrf.mxu0
      %v2347 = vadd.f32 0.0, %v2346
      %v2348 = vpop.f32.mrf.mxu0
      %2349 = vmatprep.mubr.bf16.mxu0 0
      %2350 = vmatmul.mubr.bf16.gmra.mxu0 %v2222
      %v2351 = vpop.f32.mrf.mxu0
      %v2352 = vadd.f32 0.0, %v2351
      %v2353 = vpop.f32.mrf.mxu0
      %v2354 = vpop.f32.mrf.mxu0
      %v2355 = vadd.f32 0.0, %v2354
      %v2356 = vpop.f32.mrf.mxu0
      %2357 = vmatprep.mubr.bf16.mxu0 0
      %2358 = vmatmul.mubr.bf16.gmra.mxu0 %v2225
      %v2359 = vpop.f32.mrf.mxu0
      %v2360 = vadd.f32 0.0, %v2359
      %v2361 = vpop.f32.mrf.mxu0
      %v2362 = vpop.f32.mrf.mxu0
      %v2363 = vadd.f32 0.0, %v2362
      %v2364 = vpop.f32.mrf.mxu0
      %2365 = vmatprep.mubr.bf16.mxu0 0
      %2366 = vmatmul.mubr.bf16.gmra.mxu0 %v2228
      %v2367 = vpop.f32.mrf.mxu0
      %v2368 = vadd.f32 0.0, %v2367
      %v2369 = vpop.f32.mrf.mxu0
      %v2370 = vpop.f32.mrf.mxu0
      %v2371 = vadd.f32 0.0, %v2370
      %v2372 = vpop.f32.mrf.mxu0
      %2373 = vmatprep.mubr.bf16.mxu0 0
      %2374 = vmatmul.mubr.bf16.gmra.mxu0 %v2231
      %v2375 = vpop.f32.mrf.mxu0
      %v2376 = vadd.f32 0.0, %v2375
      %v2377 = vpop.f32.mrf.mxu0
      %v2378 = vpop.f32.mrf.mxu0
      %v2379 = vadd.f32 0.0, %v2378
      %v2380 = vpop.f32.mrf.mxu0
      %2381 = vmatprep.mubr.bf16.mxu0 0
      %2382 = vmatmul.mubr.bf16.gmra.mxu0 %v2234
      %v2383 = vpop.f32.mrf.mxu0
      %v2384 = vadd.f32 0.0, %v2383
      %v2385 = vpop.f32.mrf.mxu0
      %v2386 = vpop.f32.mrf.mxu0
      %v2387 = vadd.f32 0.0, %v2386
      %v2388 = vpop.f32.mrf.mxu0
      %2389 = vmatprep.mubr.bf16.mxu0 0
      %2390 = vmatmul.mubr.bf16.gmra.mxu0 %v2237
      %v2391 = vpop.f32.mrf.mxu0
      %v2392 = vadd.f32 0.0, %v2391
      %v2393 = vpop.f32.mrf.mxu0
      %v2394 = vpop.f32.mrf.mxu0
      %v2395 = vadd.f32 0.0, %v2394
      %v2396 = vpop.f32.mrf.mxu0
      %2397 = vmatprep.mubr.bf16.mxu0 0
      %2398 = vmatmul.mubr.bf16.gmra.mxu0 %v2240
      %v2399 = vpop.f32.mrf.mxu0
      %v2400 = vadd.f32 0.0, %v2399
      %v2401 = vpop.f32.mrf.mxu0
      %v2402 = vpop.f32.mrf.mxu0
      %v2403 = vadd.f32 0.0, %v2402
      %v2404 = vpop.f32.mrf.mxu0
      %2405 = vdwg.mxu0
      %v2406 = vadd.f32 %v1887, %v2280
      %v2407 = vadd.f32 %v1890, %v2283
      %v2408 = vadd.f32 %v1895, %v2288
      %v2409 = vadd.f32 %v1898, %v2291
      %v2410 = vadd.f32 %v1903, %v2296
      %v2411 = vadd.f32 %v1906, %v2299
      %v2412 = vadd.f32 %v1911, %v2304
      %v2413 = vadd.f32 %v1914, %v2307
      %v2414 = vadd.f32 %v1919, %v2312
      %v2415 = vadd.f32 %v1922, %v2315
      %v2416 = vadd.f32 %v1927, %v2320
      %v2417 = vadd.f32 %v1930, %v2323
      %v2418 = vadd.f32 %v1935, %v2328
      %v2419 = vadd.f32 %v1938, %v2331
      %v2420 = vadd.f32 %v1943, %v2336
      %v2421 = vadd.f32 %v1946, %v2339
      %v2422 = vadd.f32 %v1951, %v2344
      %v2423 = vadd.f32 %v1954, %v2347
      %v2424 = vadd.f32 %v1959, %v2352
      %v2425 = vadd.f32 %v1962, %v2355
      %v2426 = vadd.f32 %v1967, %v2360
      %v2427 = vadd.f32 %v1970, %v2363
      %v2428 = vadd.f32 %v1975, %v2368
      %v2429 = vadd.f32 %v1978, %v2371
      %v2430 = vadd.f32 %v1983, %v2376
      %v2431 = vadd.f32 %v1986, %v2379
      %v2432 = vadd.f32 %v1991, %v2384
      %v2433 = vadd.f32 %v1994, %v2387
      %v2434 = vadd.f32 %v1999, %v2392
      %v2435 = vadd.f32 %v2002, %v2395
      %v2436 = vadd.f32 %v2007, %v2400
      %v2437 = vadd.f32 %v2010, %v2403
      %s2438 = scalar_lea.vmem %s1, 6
      %v2439 = vld [vmem:[%s2438] sm:$0x3]
      %v2442 = vunpack.c.l.b16 %v1063
      %v2443 = vunpack.c.l.b16 %v1064
      %v2444 = vpack.c.b16 %v2443, %v2442
      %v2446 = vsel %vm1507, %v2444, 0
      %v2449 = vsel %vm1556, %v2439, 0
      %2451 = vmatprep.subr.bf16.mxu0 0
      %2452 = vmatpush1.bf16.msra.mxu0 0
      %2453 = vmatprep.subr.bf16.mxu0 0
      %2454 = vmatpush1.bf16.msra.mxu0 0
      %2455 = vmatprep.subr.bf16.mxu0 0
      %2456 = vmatpush1.bf16.msra.mxu0 0
      %2457 = vmatprep.subr.bf16.mxu0 0
      %2458 = vmatpush1.bf16.msra.mxu0 0
      %2459 = vmatprep.subr.bf16.mxu0 0
      %2460 = vmatpush1.bf16.msra.mxu0 0
      %2461 = vmatprep.subr.bf16.mxu0 0
      %2462 = vmatpush1.bf16.msra.mxu0 0
      %2463 = vmatprep.subr.bf16.mxu0 0
      %2464 = vmatpush1.bf16.msra.mxu0 0
      %2465 = vmatprep.subr.bf16.mxu0 0
      %2466 = vmatpush1.bf16.msra.mxu0 %v2449
      %2467 = vmatprep.subr.bf16.mxu0 0
      %2468 = vmatpush2.bf16.msra.mxu0 0
      %2469 = vmatprep.subr.bf16.mxu0 0
      %2470 = vmatpush2.bf16.msra.mxu0 0
      %2471 = vmatprep.subr.bf16.mxu0 0
      %2472 = vmatpush2.bf16.msra.mxu0 0
      %2473 = vmatprep.subr.bf16.mxu0 0
      %2474 = vmatpush2.bf16.msra.mxu0 0
      %2475 = vmatprep.subr.bf16.mxu0 0
      %2476 = vmatpush2.bf16.msra.mxu0 0
      %2477 = vmatprep.subr.bf16.mxu0 0
      %2478 = vmatpush2.bf16.msra.mxu0 0
      %2479 = vmatprep.subr.bf16.mxu0 0
      %2480 = vmatpush2.bf16.msra.mxu0 0
      %2481 = vmatprep.subr.bf16.mxu0 0
      %2482 = vmatpush2.bf16.msra.mxu0 0
      %2483 = vmatprep.mubr.bf16.mxu0 0
      %2484 = vmatmul.mubr.bf16.gmra.mxu0 %v1805
      %v2485 = vpop.f32.mrf.mxu0
      %v2486 = vadd.f32 0.0, %v2485
      %v2487 = vpop.f32.mrf.mxu0
      %v2488 = vpop.f32.mrf.mxu0
      %v2489 = vadd.f32 0.0, %v2488
      %v2490 = vpop.f32.mrf.mxu0
      %2491 = vmatprep.mubr.bf16.mxu0 0
      %2492 = vmatmul.mubr.bf16.gmra.mxu0 %v1808
      %v2493 = vpop.f32.mrf.mxu0
      %v2494 = vadd.f32 0.0, %v2493
      %v2495 = vpop.f32.mrf.mxu0
      %v2496 = vpop.f32.mrf.mxu0
      %v2497 = vadd.f32 0.0, %v2496
      %v2498 = vpop.f32.mrf.mxu0
      %2499 = vmatprep.mubr.bf16.mxu0 0
      %2500 = vmatmul.mubr.bf16.gmra.mxu0 %v1811
      %v2501 = vpop.f32.mrf.mxu0
      %v2502 = vadd.f32 0.0, %v2501
      %v2503 = vpop.f32.mrf.mxu0
      %v2504 = vpop.f32.mrf.mxu0
      %v2505 = vadd.f32 0.0, %v2504
      %v2506 = vpop.f32.mrf.mxu0
      %2507 = vmatprep.mubr.bf16.mxu0 0
      %2508 = vmatmul.mubr.bf16.gmra.mxu0 %v1814
      %v2509 = vpop.f32.mrf.mxu0
      %v2510 = vadd.f32 0.0, %v2509
      %v2511 = vpop.f32.mrf.mxu0
      %v2512 = vpop.f32.mrf.mxu0
      %v2513 = vadd.f32 0.0, %v2512
      %v2514 = vpop.f32.mrf.mxu0
      %2515 = vmatprep.mubr.bf16.mxu0 0
      %2516 = vmatmul.mubr.bf16.gmra.mxu0 %v1817
      %v2517 = vpop.f32.mrf.mxu0
      %v2518 = vadd.f32 0.0, %v2517
      %v2519 = vpop.f32.mrf.mxu0
      %v2520 = vpop.f32.mrf.mxu0
      %v2521 = vadd.f32 0.0, %v2520
      %v2522 = vpop.f32.mrf.mxu0
      %2523 = vmatprep.mubr.bf16.mxu0 0
      %2524 = vmatmul.mubr.bf16.gmra.mxu0 %v1820
      %v2525 = vpop.f32.mrf.mxu0
      %v2526 = vadd.f32 0.0, %v2525
      %v2527 = vpop.f32.mrf.mxu0
      %v2528 = vpop.f32.mrf.mxu0
      %v2529 = vadd.f32 0.0, %v2528
      %v2530 = vpop.f32.mrf.mxu0
      %2531 = vmatprep.mubr.bf16.mxu0 0
      %2532 = vmatmul.mubr.bf16.gmra.mxu0 %v1823
      %v2533 = vpop.f32.mrf.mxu0
      %v2534 = vadd.f32 0.0, %v2533
      %v2535 = vpop.f32.mrf.mxu0
      %v2536 = vpop.f32.mrf.mxu0
      %v2537 = vadd.f32 0.0, %v2536
      %v2538 = vpop.f32.mrf.mxu0
      %2539 = vmatprep.mubr.bf16.mxu0 0
      %2540 = vmatmul.mubr.bf16.gmra.mxu0 %v1826
      %v2541 = vpop.f32.mrf.mxu0
      %v2542 = vadd.f32 0.0, %v2541
      %v2543 = vpop.f32.mrf.mxu0
      %v2544 = vpop.f32.mrf.mxu0
      %v2545 = vadd.f32 0.0, %v2544
      %v2546 = vpop.f32.mrf.mxu0
      %2547 = vmatprep.mubr.bf16.mxu0 0
      %2548 = vmatmul.mubr.bf16.gmra.mxu0 %v1829
      %v2549 = vpop.f32.mrf.mxu0
      %v2550 = vadd.f32 0.0, %v2549
      %v2551 = vpop.f32.mrf.mxu0
      %v2552 = vpop.f32.mrf.mxu0
      %v2553 = vadd.f32 0.0, %v2552
      %v2554 = vpop.f32.mrf.mxu0
      %2555 = vmatprep.mubr.bf16.mxu0 0
      %2556 = vmatmul.mubr.bf16.gmra.mxu0 %v1832
      %v2557 = vpop.f32.mrf.mxu0
      %v2558 = vadd.f32 0.0, %v2557
      %v2559 = vpop.f32.mrf.mxu0
      %v2560 = vpop.f32.mrf.mxu0
      %v2561 = vadd.f32 0.0, %v2560
      %v2562 = vpop.f32.mrf.mxu0
      %2563 = vmatprep.mubr.bf16.mxu0 0
      %2564 = vmatmul.mubr.bf16.gmra.mxu0 %v1835
      %v2565 = vpop.f32.mrf.mxu0
      %v2566 = vadd.f32 0.0, %v2565
      %v2567 = vpop.f32.mrf.mxu0
      %v2568 = vpop.f32.mrf.mxu0
      %v2569 = vadd.f32 0.0, %v2568
      %v2570 = vpop.f32.mrf.mxu0
      %2571 = vmatprep.mubr.bf16.mxu0 0
      %2572 = vmatmul.mubr.bf16.gmra.mxu0 %v1838
      %v2573 = vpop.f32.mrf.mxu0
      %v2574 = vadd.f32 0.0, %v2573
      %v2575 = vpop.f32.mrf.mxu0
      %v2576 = vpop.f32.mrf.mxu0
      %v2577 = vadd.f32 0.0, %v2576
      %v2578 = vpop.f32.mrf.mxu0
      %2579 = vmatprep.mubr.bf16.mxu0 0
      %2580 = vmatmul.mubr.bf16.gmra.mxu0 %v1841
      %v2581 = vpop.f32.mrf.mxu0
      %v2582 = vadd.f32 0.0, %v2581
      %v2583 = vpop.f32.mrf.mxu0
      %v2584 = vpop.f32.mrf.mxu0
      %v2585 = vadd.f32 0.0, %v2584
      %v2586 = vpop.f32.mrf.mxu0
      %2587 = vmatprep.mubr.bf16.mxu0 0
      %2588 = vmatmul.mubr.bf16.gmra.mxu0 %v1844
      %v2589 = vpop.f32.mrf.mxu0
      %v2590 = vadd.f32 0.0, %v2589
      %v2591 = vpop.f32.mrf.mxu0
      %v2592 = vpop.f32.mrf.mxu0
      %v2593 = vadd.f32 0.0, %v2592
      %v2594 = vpop.f32.mrf.mxu0
      %2595 = vmatprep.mubr.bf16.mxu0 0
      %2596 = vmatmul.mubr.bf16.gmra.mxu0 %v1847
      %v2597 = vpop.f32.mrf.mxu0
      %v2598 = vadd.f32 0.0, %v2597
      %v2599 = vpop.f32.mrf.mxu0
      %v2600 = vpop.f32.mrf.mxu0
      %v2601 = vadd.f32 0.0, %v2600
      %v2602 = vpop.f32.mrf.mxu0
      %2603 = vmatprep.mubr.bf16.mxu0 0
      %2604 = vmatmul.mubr.bf16.gmra.mxu0 %v2446
      %v2605 = vpop.f32.mrf.mxu0
      %v2606 = vadd.f32 0.0, %v2605
      %v2607 = vpop.f32.mrf.mxu0
      %v2608 = vpop.f32.mrf.mxu0
      %v2609 = vadd.f32 0.0, %v2608
      %v2610 = vpop.f32.mrf.mxu0
      %2611 = vdwg.mxu0
      %v2612 = vadd.f32 %v2406, %v2486
      %v2613 = vadd.f32 %v2407, %v2489
      %v2614 = vadd.f32 %v2408, %v2494
      %v2615 = vadd.f32 %v2409, %v2497
      %v2616 = vadd.f32 %v2410, %v2502
      %v2617 = vadd.f32 %v2411, %v2505
      %v2618 = vadd.f32 %v2412, %v2510
      %v2619 = vadd.f32 %v2413, %v2513
      %v2620 = vadd.f32 %v2414, %v2518
      %v2621 = vadd.f32 %v2415, %v2521
      %v2622 = vadd.f32 %v2416, %v2526
      %v2623 = vadd.f32 %v2417, %v2529
      %v2624 = vadd.f32 %v2418, %v2534
      %v2625 = vadd.f32 %v2419, %v2537
      %v2626 = vadd.f32 %v2420, %v2542
      %v2627 = vadd.f32 %v2421, %v2545
      %v2628 = vadd.f32 %v2422, %v2550
      %v2629 = vadd.f32 %v2423, %v2553
      %v2630 = vadd.f32 %v2424, %v2558
      %v2631 = vadd.f32 %v2425, %v2561
      %v2632 = vadd.f32 %v2426, %v2566
      %v2633 = vadd.f32 %v2427, %v2569
      %v2634 = vadd.f32 %v2428, %v2574
      %v2635 = vadd.f32 %v2429, %v2577
      %v2636 = vadd.f32 %v2430, %v2582
      %v2637 = vadd.f32 %v2431, %v2585
      %v2638 = vadd.f32 %v2432, %v2590
      %v2639 = vadd.f32 %v2433, %v2593
      %v2640 = vadd.f32 %v2434, %v2598
      %v2641 = vadd.f32 %v2435, %v2601
      %v2642 = vadd.f32 %v2436, %v2606
      %v2643 = vadd.f32 %v2437, %v2609
      %s2644 = scalar_lea.vmem %s1, 8
      %v2645 = vld [vmem:[%s2644] sm:$0x3]
      %v2647 = vshrl.u32 %v1063, 16
      %v2649 = vrot.slane %v2647, 4
      %v2650 = vshll.u32 %v1063, 16
      %v2652 = vrot.slane %v2650, 5
      %v2653 = vor.u32 %v2649, %v2652
      %v2654 = vrot.slane %v2653, 4
      %v2656 = vshll.u32 %v1064, 16
      %v2658 = vrot.slane %v2656, 5
      %v2659 = vsel %vm1074, %v2654, %v2658
      %v2660 = vshrl.u32 %v1064, 16
      %v2662 = vrot.slane %v2660, 4
      %v2663 = vor.u32 %v2662, %v2658
      %v2664 = vrot.slane %v2663, 4
      %v2666 = vshll.u32 %v1065, 16
      %v2668 = vrot.slane %v2666, 5
      %v2669 = vsel %vm1074, %v2664, %v2668
      %v2670 = vunpack.c.l.b16 %v2659
      %v2671 = vunpack.c.l.b16 %v2669
      %v2672 = vpack.c.b16 %v2671, %v2670
      %v2674 = vsel %vm1507, %v2672, 0
      %v2677 = vsel %vm1556, %v2645, 0
      %2679 = vmatprep.subr.bf16.mxu0 0
      %2680 = vmatpush1.bf16.msra.mxu0 0
      %2681 = vmatprep.subr.bf16.mxu0 0
      %2682 = vmatpush1.bf16.msra.mxu0 0
      %2683 = vmatprep.subr.bf16.mxu0 0
      %2684 = vmatpush1.bf16.msra.mxu0 0
      %2685 = vmatprep.subr.bf16.mxu0 0
      %2686 = vmatpush1.bf16.msra.mxu0 0
      %2687 = vmatprep.subr.bf16.mxu0 0
      %2688 = vmatpush1.bf16.msra.mxu0 0
      %2689 = vmatprep.subr.bf16.mxu0 0
      %2690 = vmatpush1.bf16.msra.mxu0 0
      %2691 = vmatprep.subr.bf16.mxu0 0
      %2692 = vmatpush1.bf16.msra.mxu0 0
      %2693 = vmatprep.subr.bf16.mxu0 0
      %2694 = vmatpush1.bf16.msra.mxu0 %v2677
      %2695 = vmatprep.subr.bf16.mxu0 0
      %2696 = vmatpush2.bf16.msra.mxu0 0
      %2697 = vmatprep.subr.bf16.mxu0 0
      %2698 = vmatpush2.bf16.msra.mxu0 0
      %2699 = vmatprep.subr.bf16.mxu0 0
      %2700 = vmatpush2.bf16.msra.mxu0 0
      %2701 = vmatprep.subr.bf16.mxu0 0
      %2702 = vmatpush2.bf16.msra.mxu0 0
      %2703 = vmatprep.subr.bf16.mxu0 0
      %2704 = vmatpush2.bf16.msra.mxu0 0
      %2705 = vmatprep.subr.bf16.mxu0 0
      %2706 = vmatpush2.bf16.msra.mxu0 0
      %2707 = vmatprep.subr.bf16.mxu0 0
      %2708 = vmatpush2.bf16.msra.mxu0 0
      %2709 = vmatprep.subr.bf16.mxu0 0
      %2710 = vmatpush2.bf16.msra.mxu0 0
      %2711 = vmatprep.mubr.bf16.mxu0 0
      %2712 = vmatmul.mubr.bf16.gmra.mxu0 %v1512
      %v2713 = vpop.f32.mrf.mxu0
      %v2714 = vadd.f32 0.0, %v2713
      %v2715 = vpop.f32.mrf.mxu0
      %v2716 = vpop.f32.mrf.mxu0
      %v2717 = vadd.f32 0.0, %v2716
      %v2718 = vpop.f32.mrf.mxu0
      %2719 = vmatprep.mubr.bf16.mxu0 0
      %2720 = vmatmul.mubr.bf16.gmra.mxu0 %v1515
      %v2721 = vpop.f32.mrf.mxu0
      %v2722 = vadd.f32 0.0, %v2721
      %v2723 = vpop.f32.mrf.mxu0
      %v2724 = vpop.f32.mrf.mxu0
      %v2725 = vadd.f32 0.0, %v2724
      %v2726 = vpop.f32.mrf.mxu0
      %2727 = vmatprep.mubr.bf16.mxu0 0
      %2728 = vmatmul.mubr.bf16.gmra.mxu0 %v1518
      %v2729 = vpop.f32.mrf.mxu0
      %v2730 = vadd.f32 0.0, %v2729
      %v2731 = vpop.f32.mrf.mxu0
      %v2732 = vpop.f32.mrf.mxu0
      %v2733 = vadd.f32 0.0, %v2732
      %v2734 = vpop.f32.mrf.mxu0
      %2735 = vmatprep.mubr.bf16.mxu0 0
      %2736 = vmatmul.mubr.bf16.gmra.mxu0 %v1521
      %v2737 = vpop.f32.mrf.mxu0
      %v2738 = vadd.f32 0.0, %v2737
      %v2739 = vpop.f32.mrf.mxu0
      %v2740 = vpop.f32.mrf.mxu0
      %v2741 = vadd.f32 0.0, %v2740
      %v2742 = vpop.f32.mrf.mxu0
      %2743 = vmatprep.mubr.bf16.mxu0 0
      %2744 = vmatmul.mubr.bf16.gmra.mxu0 %v1524
      %v2745 = vpop.f32.mrf.mxu0
      %v2746 = vadd.f32 0.0, %v2745
      %v2747 = vpop.f32.mrf.mxu0
      %v2748 = vpop.f32.mrf.mxu0
      %v2749 = vadd.f32 0.0, %v2748
      %v2750 = vpop.f32.mrf.mxu0
      %2751 = vmatprep.mubr.bf16.mxu0 0
      %2752 = vmatmul.mubr.bf16.gmra.mxu0 %v1527
      %v2753 = vpop.f32.mrf.mxu0
      %v2754 = vadd.f32 0.0, %v2753
      %v2755 = vpop.f32.mrf.mxu0
      %v2756 = vpop.f32.mrf.mxu0
      %v2757 = vadd.f32 0.0, %v2756
      %v2758 = vpop.f32.mrf.mxu0
      %2759 = vmatprep.mubr.bf16.mxu0 0
      %2760 = vmatmul.mubr.bf16.gmra.mxu0 %v1530
      %v2761 = vpop.f32.mrf.mxu0
      %v2762 = vadd.f32 0.0, %v2761
      %v2763 = vpop.f32.mrf.mxu0
      %v2764 = vpop.f32.mrf.mxu0
      %v2765 = vadd.f32 0.0, %v2764
      %v2766 = vpop.f32.mrf.mxu0
      %2767 = vmatprep.mubr.bf16.mxu0 0
      %2768 = vmatmul.mubr.bf16.gmra.mxu0 %v1533
      %v2769 = vpop.f32.mrf.mxu0
      %v2770 = vadd.f32 0.0, %v2769
      %v2771 = vpop.f32.mrf.mxu0
      %v2772 = vpop.f32.mrf.mxu0
      %v2773 = vadd.f32 0.0, %v2772
      %v2774 = vpop.f32.mrf.mxu0
      %2775 = vmatprep.mubr.bf16.mxu0 0
      %2776 = vmatmul.mubr.bf16.gmra.mxu0 %v1536
      %v2777 = vpop.f32.mrf.mxu0
      %v2778 = vadd.f32 0.0, %v2777
      %v2779 = vpop.f32.mrf.mxu0
      %v2780 = vpop.f32.mrf.mxu0
      %v2781 = vadd.f32 0.0, %v2780
      %v2782 = vpop.f32.mrf.mxu0
      %2783 = vmatprep.mubr.bf16.mxu0 0
      %2784 = vmatmul.mubr.bf16.gmra.mxu0 %v1539
      %v2785 = vpop.f32.mrf.mxu0
      %v2786 = vadd.f32 0.0, %v2785
      %v2787 = vpop.f32.mrf.mxu0
      %v2788 = vpop.f32.mrf.mxu0
      %v2789 = vadd.f32 0.0, %v2788
      %v2790 = vpop.f32.mrf.mxu0
      %2791 = vmatprep.mubr.bf16.mxu0 0
      %2792 = vmatmul.mubr.bf16.gmra.mxu0 %v1542
      %v2793 = vpop.f32.mrf.mxu0
      %v2794 = vadd.f32 0.0, %v2793
      %v2795 = vpop.f32.mrf.mxu0
      %v2796 = vpop.f32.mrf.mxu0
      %v2797 = vadd.f32 0.0, %v2796
      %v2798 = vpop.f32.mrf.mxu0
      %2799 = vmatprep.mubr.bf16.mxu0 0
      %2800 = vmatmul.mubr.bf16.gmra.mxu0 %v1545
      %v2801 = vpop.f32.mrf.mxu0
      %v2802 = vadd.f32 0.0, %v2801
      %v2803 = vpop.f32.mrf.mxu0
      %v2804 = vpop.f32.mrf.mxu0
      %v2805 = vadd.f32 0.0, %v2804
      %v2806 = vpop.f32.mrf.mxu0
      %2807 = vmatprep.mubr.bf16.mxu0 0
      %2808 = vmatmul.mubr.bf16.gmra.mxu0 %v1548
      %v2809 = vpop.f32.mrf.mxu0
      %v2810 = vadd.f32 0.0, %v2809
      %v2811 = vpop.f32.mrf.mxu0
      %v2812 = vpop.f32.mrf.mxu0
      %v2813 = vadd.f32 0.0, %v2812
      %v2814 = vpop.f32.mrf.mxu0
      %2815 = vmatprep.mubr.bf16.mxu0 0
      %2816 = vmatmul.mubr.bf16.gmra.mxu0 %v1551
      %v2817 = vpop.f32.mrf.mxu0
      %v2818 = vadd.f32 0.0, %v2817
      %v2819 = vpop.f32.mrf.mxu0
      %v2820 = vpop.f32.mrf.mxu0
      %v2821 = vadd.f32 0.0, %v2820
      %v2822 = vpop.f32.mrf.mxu0
      %2823 = vmatprep.mubr.bf16.mxu0 0
      %2824 = vmatmul.mubr.bf16.gmra.mxu0 %v1554
      %v2825 = vpop.f32.mrf.mxu0
      %v2826 = vadd.f32 0.0, %v2825
      %v2827 = vpop.f32.mrf.mxu0
      %v2828 = vpop.f32.mrf.mxu0
      %v2829 = vadd.f32 0.0, %v2828
      %v2830 = vpop.f32.mrf.mxu0
      %2831 = vmatprep.mubr.bf16.mxu0 0
      %2832 = vmatmul.mubr.bf16.gmra.mxu0 %v2674
      %v2833 = vpop.f32.mrf.mxu0
      %v2834 = vadd.f32 0.0, %v2833
      %v2835 = vpop.f32.mrf.mxu0
      %v2836 = vpop.f32.mrf.mxu0
      %v2837 = vadd.f32 0.0, %v2836
      %v2838 = vpop.f32.mrf.mxu0
      %2839 = vdwg.mxu0
      %v2840 = vadd.f32 %v2612, %v2714
      %v2841 = vadd.f32 %v2613, %v2717
      %v2842 = vadd.f32 %v2614, %v2722
      %v2843 = vadd.f32 %v2615, %v2725
      %v2844 = vadd.f32 %v2616, %v2730
      %v2845 = vadd.f32 %v2617, %v2733
      %v2846 = vadd.f32 %v2618, %v2738
      %v2847 = vadd.f32 %v2619, %v2741
      %v2848 = vadd.f32 %v2620, %v2746
      %v2849 = vadd.f32 %v2621, %v2749
      %v2850 = vadd.f32 %v2622, %v2754
      %v2851 = vadd.f32 %v2623, %v2757
      %v2852 = vadd.f32 %v2624, %v2762
      %v2853 = vadd.f32 %v2625, %v2765
      %v2854 = vadd.f32 %v2626, %v2770
      %v2855 = vadd.f32 %v2627, %v2773
      %v2856 = vadd.f32 %v2628, %v2778
      %v2857 = vadd.f32 %v2629, %v2781
      %v2858 = vadd.f32 %v2630, %v2786
      %v2859 = vadd.f32 %v2631, %v2789
      %v2860 = vadd.f32 %v2632, %v2794
      %v2861 = vadd.f32 %v2633, %v2797
      %v2862 = vadd.f32 %v2634, %v2802
      %v2863 = vadd.f32 %v2635, %v2805
      %v2864 = vadd.f32 %v2636, %v2810
      %v2865 = vadd.f32 %v2637, %v2813
      %v2866 = vadd.f32 %v2638, %v2818
      %v2867 = vadd.f32 %v2639, %v2821
      %v2868 = vadd.f32 %v2640, %v2826
      %v2869 = vadd.f32 %v2641, %v2829
      %v2870 = vadd.f32 %v2642, %v2834
      %v2871 = vadd.f32 %v2643, %v2837
      %s2872 = scalar_lea.vmem %s1, 10
      %v2873 = vld [vmem:[%s2872] sm:$0x3]
      %v2875 = vrot.slane %v1063, 5
      %v2876 = vrot.slane %v2875, 4
      %v2877 = vrot.slane %v1064, 5
      %v2878 = vsel %vm2033, %v2876, %v2877
      %v2879 = vrot.slane %v2877, 4
      %v2880 = vrot.slane %v1065, 5
      %v2881 = vsel %vm2033, %v2879, %v2880
      %v2882 = vunpack.c.l.b16 %v2878
      %v2883 = vunpack.c.l.b16 %v2881
      %v2884 = vpack.c.b16 %v2883, %v2882
      %v2886 = vsel %vm1507, %v2884, 0
      %v2889 = vsel %vm1556, %v2873, 0
      %2891 = vmatprep.subr.bf16.mxu0 0
      %2892 = vmatpush1.bf16.msra.mxu0 0
      %2893 = vmatprep.subr.bf16.mxu0 0
      %2894 = vmatpush1.bf16.msra.mxu0 0
      %2895 = vmatprep.subr.bf16.mxu0 0
      %2896 = vmatpush1.bf16.msra.mxu0 0
      %2897 = vmatprep.subr.bf16.mxu0 0
      %2898 = vmatpush1.bf16.msra.mxu0 0
      %2899 = vmatprep.subr.bf16.mxu0 0
      %2900 = vmatpush1.bf16.msra.mxu0 0
      %2901 = vmatprep.subr.bf16.mxu0 0
      %2902 = vmatpush1.bf16.msra.mxu0 0
      %2903 = vmatprep.subr.bf16.mxu0 0
      %2904 = vmatpush1.bf16.msra.mxu0 0
      %2905 = vmatprep.subr.bf16.mxu0 0
      %2906 = vmatpush1.bf16.msra.mxu0 %v2889
      %2907 = vmatprep.subr.bf16.mxu0 0
      %2908 = vmatpush2.bf16.msra.mxu0 0
      %2909 = vmatprep.subr.bf16.mxu0 0
      %2910 = vmatpush2.bf16.msra.mxu0 0
      %2911 = vmatprep.subr.bf16.mxu0 0
      %2912 = vmatpush2.bf16.msra.mxu0 0
      %2913 = vmatprep.subr.bf16.mxu0 0
      %2914 = vmatpush2.bf16.msra.mxu0 0
      %2915 = vmatprep.subr.bf16.mxu0 0
      %2916 = vmatpush2.bf16.msra.mxu0 0
      %2917 = vmatprep.subr.bf16.mxu0 0
      %2918 = vmatpush2.bf16.msra.mxu0 0
      %2919 = vmatprep.subr.bf16.mxu0 0
      %2920 = vmatpush2.bf16.msra.mxu0 0
      %2921 = vmatprep.subr.bf16.mxu0 0
      %2922 = vmatpush2.bf16.msra.mxu0 0
      %2923 = vmatprep.mubr.bf16.mxu0 0
      %2924 = vmatmul.mubr.bf16.gmra.mxu0 %v2198
      %v2925 = vpop.f32.mrf.mxu0
      %v2926 = vadd.f32 0.0, %v2925
      %v2927 = vpop.f32.mrf.mxu0
      %v2928 = vpop.f32.mrf.mxu0
      %v2929 = vadd.f32 0.0, %v2928
      %v2930 = vpop.f32.mrf.mxu0
      %2931 = vmatprep.mubr.bf16.mxu0 0
      %2932 = vmatmul.mubr.bf16.gmra.mxu0 %v2201
      %v2933 = vpop.f32.mrf.mxu0
      %v2934 = vadd.f32 0.0, %v2933
      %v2935 = vpop.f32.mrf.mxu0
      %v2936 = vpop.f32.mrf.mxu0
      %v2937 = vadd.f32 0.0, %v2936
      %v2938 = vpop.f32.mrf.mxu0
      %2939 = vmatprep.mubr.bf16.mxu0 0
      %2940 = vmatmul.mubr.bf16.gmra.mxu0 %v2204
      %v2941 = vpop.f32.mrf.mxu0
      %v2942 = vadd.f32 0.0, %v2941
      %v2943 = vpop.f32.mrf.mxu0
      %v2944 = vpop.f32.mrf.mxu0
      %v2945 = vadd.f32 0.0, %v2944
      %v2946 = vpop.f32.mrf.mxu0
      %2947 = vmatprep.mubr.bf16.mxu0 0
      %2948 = vmatmul.mubr.bf16.gmra.mxu0 %v2207
      %v2949 = vpop.f32.mrf.mxu0
      %v2950 = vadd.f32 0.0, %v2949
      %v2951 = vpop.f32.mrf.mxu0
      %v2952 = vpop.f32.mrf.mxu0
      %v2953 = vadd.f32 0.0, %v2952
      %v2954 = vpop.f32.mrf.mxu0
      %2955 = vmatprep.mubr.bf16.mxu0 0
      %2956 = vmatmul.mubr.bf16.gmra.mxu0 %v2210
      %v2957 = vpop.f32.mrf.mxu0
      %v2958 = vadd.f32 0.0, %v2957
      %v2959 = vpop.f32.mrf.mxu0
      %v2960 = vpop.f32.mrf.mxu0
      %v2961 = vadd.f32 0.0, %v2960
      %v2962 = vpop.f32.mrf.mxu0
      %2963 = vmatprep.mubr.bf16.mxu0 0
      %2964 = vmatmul.mubr.bf16.gmra.mxu0 %v2213
      %v2965 = vpop.f32.mrf.mxu0
      %v2966 = vadd.f32 0.0, %v2965
      %v2967 = vpop.f32.mrf.mxu0
      %v2968 = vpop.f32.mrf.mxu0
      %v2969 = vadd.f32 0.0, %v2968
      %v2970 = vpop.f32.mrf.mxu0
      %2971 = vmatprep.mubr.bf16.mxu0 0
      %2972 = vmatmul.mubr.bf16.gmra.mxu0 %v2216
      %v2973 = vpop.f32.mrf.mxu0
      %v2974 = vadd.f32 0.0, %v2973
      %v2975 = vpop.f32.mrf.mxu0
      %v2976 = vpop.f32.mrf.mxu0
      %v2977 = vadd.f32 0.0, %v2976
      %v2978 = vpop.f32.mrf.mxu0
      %2979 = vmatprep.mubr.bf16.mxu0 0
      %2980 = vmatmul.mubr.bf16.gmra.mxu0 %v2219
      %v2981 = vpop.f32.mrf.mxu0
      %v2982 = vadd.f32 0.0, %v2981
      %v2983 = vpop.f32.mrf.mxu0
      %v2984 = vpop.f32.mrf.mxu0
      %v2985 = vadd.f32 0.0, %v2984
      %v2986 = vpop.f32.mrf.mxu0
      %2987 = vmatprep.mubr.bf16.mxu0 0
      %2988 = vmatmul.mubr.bf16.gmra.mxu0 %v2222
      %v2989 = vpop.f32.mrf.mxu0
      %v2990 = vadd.f32 0.0, %v2989
      %v2991 = vpop.f32.mrf.mxu0
      %v2992 = vpop.f32.mrf.mxu0
      %v2993 = vadd.f32 0.0, %v2992
      %v2994 = vpop.f32.mrf.mxu0
      %2995 = vmatprep.mubr.bf16.mxu0 0
      %2996 = vmatmul.mubr.bf16.gmra.mxu0 %v2225
      %v2997 = vpop.f32.mrf.mxu0
      %v2998 = vadd.f32 0.0, %v2997
      %v2999 = vpop.f32.mrf.mxu0
      %v3000 = vpop.f32.mrf.mxu0
      %v3001 = vadd.f32 0.0, %v3000
      %v3002 = vpop.f32.mrf.mxu0
      %3003 = vmatprep.mubr.bf16.mxu0 0
      %3004 = vmatmul.mubr.bf16.gmra.mxu0 %v2228
      %v3005 = vpop.f32.mrf.mxu0
      %v3006 = vadd.f32 0.0, %v3005
      %v3007 = vpop.f32.mrf.mxu0
      %v3008 = vpop.f32.mrf.mxu0
      %v3009 = vadd.f32 0.0, %v3008
      %v3010 = vpop.f32.mrf.mxu0
      %3011 = vmatprep.mubr.bf16.mxu0 0
      %3012 = vmatmul.mubr.bf16.gmra.mxu0 %v2231
      %v3013 = vpop.f32.mrf.mxu0
      %v3014 = vadd.f32 0.0, %v3013
      %v3015 = vpop.f32.mrf.mxu0
      %v3016 = vpop.f32.mrf.mxu0
      %v3017 = vadd.f32 0.0, %v3016
      %v3018 = vpop.f32.mrf.mxu0
      %3019 = vmatprep.mubr.bf16.mxu0 0
      %3020 = vmatmul.mubr.bf16.gmra.mxu0 %v2234
      %v3021 = vpop.f32.mrf.mxu0
      %v3022 = vadd.f32 0.0, %v3021
      %v3023 = vpop.f32.mrf.mxu0
      %v3024 = vpop.f32.mrf.mxu0
      %v3025 = vadd.f32 0.0, %v3024
      %v3026 = vpop.f32.mrf.mxu0
      %3027 = vmatprep.mubr.bf16.mxu0 0
      %3028 = vmatmul.mubr.bf16.gmra.mxu0 %v2237
      %v3029 = vpop.f32.mrf.mxu0
      %v3030 = vadd.f32 0.0, %v3029
      %v3031 = vpop.f32.mrf.mxu0
      %v3032 = vpop.f32.mrf.mxu0
      %v3033 = vadd.f32 0.0, %v3032
      %v3034 = vpop.f32.mrf.mxu0
      %3035 = vmatprep.mubr.bf16.mxu0 0
      %3036 = vmatmul.mubr.bf16.gmra.mxu0 %v2240
      %v3037 = vpop.f32.mrf.mxu0
      %v3038 = vadd.f32 0.0, %v3037
      %v3039 = vpop.f32.mrf.mxu0
      %v3040 = vpop.f32.mrf.mxu0
      %v3041 = vadd.f32 0.0, %v3040
      %v3042 = vpop.f32.mrf.mxu0
      %3043 = vmatprep.mubr.bf16.mxu0 0
      %3044 = vmatmul.mubr.bf16.gmra.mxu0 %v2886
      %v3045 = vpop.f32.mrf.mxu0
      %v3046 = vadd.f32 0.0, %v3045
      %v3047 = vpop.f32.mrf.mxu0
      %v3048 = vpop.f32.mrf.mxu0
      %v3049 = vadd.f32 0.0, %v3048
      %v3050 = vpop.f32.mrf.mxu0
      %3051 = vdwg.mxu0
      %v3052 = vadd.f32 %v2840, %v2926
      %v3053 = vadd.f32 %v2841, %v2929
      %v3054 = vadd.f32 %v2842, %v2934
      %v3055 = vadd.f32 %v2843, %v2937
      %v3056 = vadd.f32 %v2844, %v2942
      %v3057 = vadd.f32 %v2845, %v2945
      %v3058 = vadd.f32 %v2846, %v2950
      %v3059 = vadd.f32 %v2847, %v2953
      %v3060 = vadd.f32 %v2848, %v2958
      %v3061 = vadd.f32 %v2849, %v2961
      %v3062 = vadd.f32 %v2850, %v2966
      %v3063 = vadd.f32 %v2851, %v2969
      %v3064 = vadd.f32 %v2852, %v2974
      %v3065 = vadd.f32 %v2853, %v2977
      %v3066 = vadd.f32 %v2854, %v2982
      %v3067 = vadd.f32 %v2855, %v2985
      %v3068 = vadd.f32 %v2856, %v2990
      %v3069 = vadd.f32 %v2857, %v2993
      %v3070 = vadd.f32 %v2858, %v2998
      %v3071 = vadd.f32 %v2859, %v3001
      %v3072 = vadd.f32 %v2860, %v3006
      %v3073 = vadd.f32 %v2861, %v3009
      %v3074 = vadd.f32 %v2862, %v3014
      %v3075 = vadd.f32 %v2863, %v3017
      %v3076 = vadd.f32 %v2864, %v3022
      %v3077 = vadd.f32 %v2865, %v3025
      %v3078 = vadd.f32 %v2866, %v3030
      %v3079 = vadd.f32 %v2867, %v3033
      %v3080 = vadd.f32 %v2868, %v3038
      %v3081 = vadd.f32 %v2869, %v3041
      %v3082 = vadd.f32 %v2870, %v3046
      %v3083 = vadd.f32 %v2871, %v3049
      %s3084 = scalar_lea.vmem %s1, 12
      %v3085 = vld [vmem:[%s3084] sm:$0x3]
      %v3088 = vunpack.c.l.b16 %v1066
      %v3089 = vunpack.c.l.b16 %v1067
      %v3090 = vpack.c.b16 %v3089, %v3088
      %v3092 = vsel %vm1507, %v3090, 0
      %v3095 = vsel %vm1556, %v3085, 0
      %3097 = vmatprep.subr.bf16.mxu0 0
      %3098 = vmatpush1.bf16.msra.mxu0 0
      %3099 = vmatprep.subr.bf16.mxu0 0
      %3100 = vmatpush1.bf16.msra.mxu0 0
      %3101 = vmatprep.subr.bf16.mxu0 0
      %3102 = vmatpush1.bf16.msra.mxu0 0
      %3103 = vmatprep.subr.bf16.mxu0 0
      %3104 = vmatpush1.bf16.msra.mxu0 0
      %3105 = vmatprep.subr.bf16.mxu0 0
      %3106 = vmatpush1.bf16.msra.mxu0 0
      %3107 = vmatprep.subr.bf16.mxu0 0
      %3108 = vmatpush1.bf16.msra.mxu0 0
      %3109 = vmatprep.subr.bf16.mxu0 0
      %3110 = vmatpush1.bf16.msra.mxu0 0
      %3111 = vmatprep.subr.bf16.mxu0 0
      %3112 = vmatpush1.bf16.msra.mxu0 %v3095
      %3113 = vmatprep.subr.bf16.mxu0 0
      %3114 = vmatpush2.bf16.msra.mxu0 0
      %3115 = vmatprep.subr.bf16.mxu0 0
      %3116 = vmatpush2.bf16.msra.mxu0 0
      %3117 = vmatprep.subr.bf16.mxu0 0
      %3118 = vmatpush2.bf16.msra.mxu0 0
      %3119 = vmatprep.subr.bf16.mxu0 0
      %3120 = vmatpush2.bf16.msra.mxu0 0
      %3121 = vmatprep.subr.bf16.mxu0 0
      %3122 = vmatpush2.bf16.msra.mxu0 0
      %3123 = vmatprep.subr.bf16.mxu0 0
      %3124 = vmatpush2.bf16.msra.mxu0 0
      %3125 = vmatprep.subr.bf16.mxu0 0
      %3126 = vmatpush2.bf16.msra.mxu0 0
      %3127 = vmatprep.subr.bf16.mxu0 0
      %3128 = vmatpush2.bf16.msra.mxu0 0
      %3129 = vmatprep.mubr.bf16.mxu0 0
      %3130 = vmatmul.mubr.bf16.gmra.mxu0 %v1808
      %v3131 = vpop.f32.mrf.mxu0
      %v3132 = vadd.f32 0.0, %v3131
      %v3133 = vpop.f32.mrf.mxu0
      %v3134 = vpop.f32.mrf.mxu0
      %v3135 = vadd.f32 0.0, %v3134
      %v3136 = vpop.f32.mrf.mxu0
      %3137 = vmatprep.mubr.bf16.mxu0 0
      %3138 = vmatmul.mubr.bf16.gmra.mxu0 %v1811
      %v3139 = vpop.f32.mrf.mxu0
      %v3140 = vadd.f32 0.0, %v3139
      %v3141 = vpop.f32.mrf.mxu0
      %v3142 = vpop.f32.mrf.mxu0
      %v3143 = vadd.f32 0.0, %v3142
      %v3144 = vpop.f32.mrf.mxu0
      %3145 = vmatprep.mubr.bf16.mxu0 0
      %3146 = vmatmul.mubr.bf16.gmra.mxu0 %v1814
      %v3147 = vpop.f32.mrf.mxu0
      %v3148 = vadd.f32 0.0, %v3147
      %v3149 = vpop.f32.mrf.mxu0
      %v3150 = vpop.f32.mrf.mxu0
      %v3151 = vadd.f32 0.0, %v3150
      %v3152 = vpop.f32.mrf.mxu0
      %3153 = vmatprep.mubr.bf16.mxu0 0
      %3154 = vmatmul.mubr.bf16.gmra.mxu0 %v1817
      %v3155 = vpop.f32.mrf.mxu0
      %v3156 = vadd.f32 0.0, %v3155
      %v3157 = vpop.f32.mrf.mxu0
      %v3158 = vpop.f32.mrf.mxu0
      %v3159 = vadd.f32 0.0, %v3158
      %v3160 = vpop.f32.mrf.mxu0
      %3161 = vmatprep.mubr.bf16.mxu0 0
      %3162 = vmatmul.mubr.bf16.gmra.mxu0 %v1820
      %v3163 = vpop.f32.mrf.mxu0
      %v3164 = vadd.f32 0.0, %v3163
      %v3165 = vpop.f32.mrf.mxu0
      %v3166 = vpop.f32.mrf.mxu0
      %v3167 = vadd.f32 0.0, %v3166
      %v3168 = vpop.f32.mrf.mxu0
      %3169 = vmatprep.mubr.bf16.mxu0 0
      %3170 = vmatmul.mubr.bf16.gmra.mxu0 %v1823
      %v3171 = vpop.f32.mrf.mxu0
      %v3172 = vadd.f32 0.0, %v3171
      %v3173 = vpop.f32.mrf.mxu0
      %v3174 = vpop.f32.mrf.mxu0
      %v3175 = vadd.f32 0.0, %v3174
      %v3176 = vpop.f32.mrf.mxu0
      %3177 = vmatprep.mubr.bf16.mxu0 0
      %3178 = vmatmul.mubr.bf16.gmra.mxu0 %v1826
      %v3179 = vpop.f32.mrf.mxu0
      %v3180 = vadd.f32 0.0, %v3179
      %v3181 = vpop.f32.mrf.mxu0
      %v3182 = vpop.f32.mrf.mxu0
      %v3183 = vadd.f32 0.0, %v3182
      %v3184 = vpop.f32.mrf.mxu0
      %3185 = vmatprep.mubr.bf16.mxu0 0
      %3186 = vmatmul.mubr.bf16.gmra.mxu0 %v1829
      %v3187 = vpop.f32.mrf.mxu0
      %v3188 = vadd.f32 0.0, %v3187
      %v3189 = vpop.f32.mrf.mxu0
      %v3190 = vpop.f32.mrf.mxu0
      %v3191 = vadd.f32 0.0, %v3190
      %v3192 = vpop.f32.mrf.mxu0
      %3193 = vmatprep.mubr.bf16.mxu0 0
      %3194 = vmatmul.mubr.bf16.gmra.mxu0 %v1832
      %v3195 = vpop.f32.mrf.mxu0
      %v3196 = vadd.f32 0.0, %v3195
      %v3197 = vpop.f32.mrf.mxu0
      %v3198 = vpop.f32.mrf.mxu0
      %v3199 = vadd.f32 0.0, %v3198
      %v3200 = vpop.f32.mrf.mxu0
      %3201 = vmatprep.mubr.bf16.mxu0 0
      %3202 = vmatmul.mubr.bf16.gmra.mxu0 %v1835
      %v3203 = vpop.f32.mrf.mxu0
      %v3204 = vadd.f32 0.0, %v3203
      %v3205 = vpop.f32.mrf.mxu0
      %v3206 = vpop.f32.mrf.mxu0
      %v3207 = vadd.f32 0.0, %v3206
      %v3208 = vpop.f32.mrf.mxu0
      %3209 = vmatprep.mubr.bf16.mxu0 0
      %3210 = vmatmul.mubr.bf16.gmra.mxu0 %v1838
      %v3211 = vpop.f32.mrf.mxu0
      %v3212 = vadd.f32 0.0, %v3211
      %v3213 = vpop.f32.mrf.mxu0
      %v3214 = vpop.f32.mrf.mxu0
      %v3215 = vadd.f32 0.0, %v3214
      %v3216 = vpop.f32.mrf.mxu0
      %3217 = vmatprep.mubr.bf16.mxu0 0
      %3218 = vmatmul.mubr.bf16.gmra.mxu0 %v1841
      %v3219 = vpop.f32.mrf.mxu0
      %v3220 = vadd.f32 0.0, %v3219
      %v3221 = vpop.f32.mrf.mxu0
      %v3222 = vpop.f32.mrf.mxu0
      %v3223 = vadd.f32 0.0, %v3222
      %v3224 = vpop.f32.mrf.mxu0
      %3225 = vmatprep.mubr.bf16.mxu0 0
      %3226 = vmatmul.mubr.bf16.gmra.mxu0 %v1844
      %v3227 = vpop.f32.mrf.mxu0
      %v3228 = vadd.f32 0.0, %v3227
      %v3229 = vpop.f32.mrf.mxu0
      %v3230 = vpop.f32.mrf.mxu0
      %v3231 = vadd.f32 0.0, %v3230
      %v3232 = vpop.f32.mrf.mxu0
      %3233 = vmatprep.mubr.bf16.mxu0 0
      %3234 = vmatmul.mubr.bf16.gmra.mxu0 %v1847
      %v3235 = vpop.f32.mrf.mxu0
      %v3236 = vadd.f32 0.0, %v3235
      %v3237 = vpop.f32.mrf.mxu0
      %v3238 = vpop.f32.mrf.mxu0
      %v3239 = vadd.f32 0.0, %v3238
      %v3240 = vpop.f32.mrf.mxu0
      %3241 = vmatprep.mubr.bf16.mxu0 0
      %3242 = vmatmul.mubr.bf16.gmra.mxu0 %v2446
      %v3243 = vpop.f32.mrf.mxu0
      %v3244 = vadd.f32 0.0, %v3243
      %v3245 = vpop.f32.mrf.mxu0
      %v3246 = vpop.f32.mrf.mxu0
      %v3247 = vadd.f32 0.0, %v3246
      %v3248 = vpop.f32.mrf.mxu0
      %3249 = vmatprep.mubr.bf16.mxu0 0
      %3250 = vmatmul.mubr.bf16.gmra.mxu0 %v3092
      %v3251 = vpop.f32.mrf.mxu0
      %v3252 = vadd.f32 0.0, %v3251
      %v3253 = vpop.f32.mrf.mxu0
      %v3254 = vpop.f32.mrf.mxu0
      %v3255 = vadd.f32 0.0, %v3254
      %v3256 = vpop.f32.mrf.mxu0
      %3257 = vdwg.mxu0
      %v3258 = vadd.f32 %v3052, %v3132
      %v3259 = vadd.f32 %v3053, %v3135
      %v3260 = vadd.f32 %v3054, %v3140
      %v3261 = vadd.f32 %v3055, %v3143
      %v3262 = vadd.f32 %v3056, %v3148
      %v3263 = vadd.f32 %v3057, %v3151
      %v3264 = vadd.f32 %v3058, %v3156
      %v3265 = vadd.f32 %v3059, %v3159
      %v3266 = vadd.f32 %v3060, %v3164
      %v3267 = vadd.f32 %v3061, %v3167
      %v3268 = vadd.f32 %v3062, %v3172
      %v3269 = vadd.f32 %v3063, %v3175
      %v3270 = vadd.f32 %v3064, %v3180
      %v3271 = vadd.f32 %v3065, %v3183
      %v3272 = vadd.f32 %v3066, %v3188
      %v3273 = vadd.f32 %v3067, %v3191
      %v3274 = vadd.f32 %v3068, %v3196
      %v3275 = vadd.f32 %v3069, %v3199
      %v3276 = vadd.f32 %v3070, %v3204
      %v3277 = vadd.f32 %v3071, %v3207
      %v3278 = vadd.f32 %v3072, %v3212
      %v3279 = vadd.f32 %v3073, %v3215
      %v3280 = vadd.f32 %v3074, %v3220
      %v3281 = vadd.f32 %v3075, %v3223
      %v3282 = vadd.f32 %v3076, %v3228
      %v3283 = vadd.f32 %v3077, %v3231
      %v3284 = vadd.f32 %v3078, %v3236
      %v3285 = vadd.f32 %v3079, %v3239
      %v3286 = vadd.f32 %v3080, %v3244
      %v3287 = vadd.f32 %v3081, %v3247
      %v3288 = vadd.f32 %v3082, %v3252
      %v3289 = vadd.f32 %v3083, %v3255
      %s3290 = scalar_lea.vmem %s1, 14
      %v3291 = vld [vmem:[%s3290] sm:$0x3]
      %v3293 = vshrl.u32 %v1066, 16
      %v3295 = vrot.slane %v3293, 4
      %v3296 = vshll.u32 %v1066, 16
      %v3298 = vrot.slane %v3296, 5
      %v3299 = vor.u32 %v3295, %v3298
      %v3300 = vrot.slane %v3299, 4
      %v3302 = vshll.u32 %v1067, 16
      %v3304 = vrot.slane %v3302, 5
      %v3305 = vsel %vm1074, %v3300, %v3304
      %v3306 = vshrl.u32 %v1067, 16
      %v3308 = vrot.slane %v3306, 4
      %v3309 = vor.u32 %v3308, %v3304
      %v3310 = vrot.slane %v3309, 4
      %v3312 = vshll.u32 %v1068, 16
      %v3314 = vrot.slane %v3312, 5
      %v3315 = vsel %vm1074, %v3310, %v3314
      %v3316 = vunpack.c.l.b16 %v3305
      %v3317 = vunpack.c.l.b16 %v3315
      %v3318 = vpack.c.b16 %v3317, %v3316
      %v3320 = vsel %vm1507, %v3318, 0
      %v3323 = vsel %vm1556, %v3291, 0
      %3325 = vmatprep.subr.bf16.mxu0 0
      %3326 = vmatpush1.bf16.msra.mxu0 0
      %3327 = vmatprep.subr.bf16.mxu0 0
      %3328 = vmatpush1.bf16.msra.mxu0 0
      %3329 = vmatprep.subr.bf16.mxu0 0
      %3330 = vmatpush1.bf16.msra.mxu0 0
      %3331 = vmatprep.subr.bf16.mxu0 0
      %3332 = vmatpush1.bf16.msra.mxu0 0
      %3333 = vmatprep.subr.bf16.mxu0 0
      %3334 = vmatpush1.bf16.msra.mxu0 0
      %3335 = vmatprep.subr.bf16.mxu0 0
      %3336 = vmatpush1.bf16.msra.mxu0 0
      %3337 = vmatprep.subr.bf16.mxu0 0
      %3338 = vmatpush1.bf16.msra.mxu0 0
      %3339 = vmatprep.subr.bf16.mxu0 0
      %3340 = vmatpush1.bf16.msra.mxu0 %v3323
      %3341 = vmatprep.subr.bf16.mxu0 0
      %3342 = vmatpush2.bf16.msra.mxu0 0
      %3343 = vmatprep.subr.bf16.mxu0 0
      %3344 = vmatpush2.bf16.msra.mxu0 0
      %3345 = vmatprep.subr.bf16.mxu0 0
      %3346 = vmatpush2.bf16.msra.mxu0 0
      %3347 = vmatprep.subr.bf16.mxu0 0
      %3348 = vmatpush2.bf16.msra.mxu0 0
      %3349 = vmatprep.subr.bf16.mxu0 0
      %3350 = vmatpush2.bf16.msra.mxu0 0
      %3351 = vmatprep.subr.bf16.mxu0 0
      %3352 = vmatpush2.bf16.msra.mxu0 0
      %3353 = vmatprep.subr.bf16.mxu0 0
      %3354 = vmatpush2.bf16.msra.mxu0 0
      %3355 = vmatprep.subr.bf16.mxu0 0
      %3356 = vmatpush2.bf16.msra.mxu0 0
      %3357 = vmatprep.mubr.bf16.mxu0 0
      %3358 = vmatmul.mubr.bf16.gmra.mxu0 %v1515
      %v3359 = vpop.f32.mrf.mxu0
      %v3360 = vadd.f32 0.0, %v3359
      %v3361 = vpop.f32.mrf.mxu0
      %v3362 = vpop.f32.mrf.mxu0
      %v3363 = vadd.f32 0.0, %v3362
      %v3364 = vpop.f32.mrf.mxu0
      %3365 = vmatprep.mubr.bf16.mxu0 0
      %3366 = vmatmul.mubr.bf16.gmra.mxu0 %v1518
      %v3367 = vpop.f32.mrf.mxu0
      %v3368 = vadd.f32 0.0, %v3367
      %v3369 = vpop.f32.mrf.mxu0
      %v3370 = vpop.f32.mrf.mxu0
      %v3371 = vadd.f32 0.0, %v3370
      %v3372 = vpop.f32.mrf.mxu0
      %3373 = vmatprep.mubr.bf16.mxu0 0
      %3374 = vmatmul.mubr.bf16.gmra.mxu0 %v1521
      %v3375 = vpop.f32.mrf.mxu0
      %v3376 = vadd.f32 0.0, %v3375
      %v3377 = vpop.f32.mrf.mxu0
      %v3378 = vpop.f32.mrf.mxu0
      %v3379 = vadd.f32 0.0, %v3378
      %v3380 = vpop.f32.mrf.mxu0
      %3381 = vmatprep.mubr.bf16.mxu0 0
      %3382 = vmatmul.mubr.bf16.gmra.mxu0 %v1524
      %v3383 = vpop.f32.mrf.mxu0
      %v3384 = vadd.f32 0.0, %v3383
      %v3385 = vpop.f32.mrf.mxu0
      %v3386 = vpop.f32.mrf.mxu0
      %v3387 = vadd.f32 0.0, %v3386
      %v3388 = vpop.f32.mrf.mxu0
      %3389 = vmatprep.mubr.bf16.mxu0 0
      %3390 = vmatmul.mubr.bf16.gmra.mxu0 %v1527
      %v3391 = vpop.f32.mrf.mxu0
      %v3392 = vadd.f32 0.0, %v3391
      %v3393 = vpop.f32.mrf.mxu0
      %v3394 = vpop.f32.mrf.mxu0
      %v3395 = vadd.f32 0.0, %v3394
      %v3396 = vpop.f32.mrf.mxu0
      %3397 = vmatprep.mubr.bf16.mxu0 0
      %3398 = vmatmul.mubr.bf16.gmra.mxu0 %v1530
      %v3399 = vpop.f32.mrf.mxu0
      %v3400 = vadd.f32 0.0, %v3399
      %v3401 = vpop.f32.mrf.mxu0
      %v3402 = vpop.f32.mrf.mxu0
      %v3403 = vadd.f32 0.0, %v3402
      %v3404 = vpop.f32.mrf.mxu0
      %3405 = vmatprep.mubr.bf16.mxu0 0
      %3406 = vmatmul.mubr.bf16.gmra.mxu0 %v1533
      %v3407 = vpop.f32.mrf.mxu0
      %v3408 = vadd.f32 0.0, %v3407
      %v3409 = vpop.f32.mrf.mxu0
      %v3410 = vpop.f32.mrf.mxu0
      %v3411 = vadd.f32 0.0, %v3410
      %v3412 = vpop.f32.mrf.mxu0
      %3413 = vmatprep.mubr.bf16.mxu0 0
      %3414 = vmatmul.mubr.bf16.gmra.mxu0 %v1536
      %v3415 = vpop.f32.mrf.mxu0
      %v3416 = vadd.f32 0.0, %v3415
      %v3417 = vpop.f32.mrf.mxu0
      %v3418 = vpop.f32.mrf.mxu0
      %v3419 = vadd.f32 0.0, %v3418
      %v3420 = vpop.f32.mrf.mxu0
      %3421 = vmatprep.mubr.bf16.mxu0 0
      %3422 = vmatmul.mubr.bf16.gmra.mxu0 %v1539
      %v3423 = vpop.f32.mrf.mxu0
      %v3424 = vadd.f32 0.0, %v3423
      %v3425 = vpop.f32.mrf.mxu0
      %v3426 = vpop.f32.mrf.mxu0
      %v3427 = vadd.f32 0.0, %v3426
      %v3428 = vpop.f32.mrf.mxu0
      %3429 = vmatprep.mubr.bf16.mxu0 0
      %3430 = vmatmul.mubr.bf16.gmra.mxu0 %v1542
      %v3431 = vpop.f32.mrf.mxu0
      %v3432 = vadd.f32 0.0, %v3431
      %v3433 = vpop.f32.mrf.mxu0
      %v3434 = vpop.f32.mrf.mxu0
      %v3435 = vadd.f32 0.0, %v3434
      %v3436 = vpop.f32.mrf.mxu0
      %3437 = vmatprep.mubr.bf16.mxu0 0
      %3438 = vmatmul.mubr.bf16.gmra.mxu0 %v1545
      %v3439 = vpop.f32.mrf.mxu0
      %v3440 = vadd.f32 0.0, %v3439
      %v3441 = vpop.f32.mrf.mxu0
      %v3442 = vpop.f32.mrf.mxu0
      %v3443 = vadd.f32 0.0, %v3442
      %v3444 = vpop.f32.mrf.mxu0
      %3445 = vmatprep.mubr.bf16.mxu0 0
      %3446 = vmatmul.mubr.bf16.gmra.mxu0 %v1548
      %v3447 = vpop.f32.mrf.mxu0
      %v3448 = vadd.f32 0.0, %v3447
      %v3449 = vpop.f32.mrf.mxu0
      %v3450 = vpop.f32.mrf.mxu0
      %v3451 = vadd.f32 0.0, %v3450
      %v3452 = vpop.f32.mrf.mxu0
      %3453 = vmatprep.mubr.bf16.mxu0 0
      %3454 = vmatmul.mubr.bf16.gmra.mxu0 %v1551
      %v3455 = vpop.f32.mrf.mxu0
      %v3456 = vadd.f32 0.0, %v3455
      %v3457 = vpop.f32.mrf.mxu0
      %v3458 = vpop.f32.mrf.mxu0
      %v3459 = vadd.f32 0.0, %v3458
      %v3460 = vpop.f32.mrf.mxu0
      %3461 = vmatprep.mubr.bf16.mxu0 0
      %3462 = vmatmul.mubr.bf16.gmra.mxu0 %v1554
      %v3463 = vpop.f32.mrf.mxu0
      %v3464 = vadd.f32 0.0, %v3463
      %v3465 = vpop.f32.mrf.mxu0
      %v3466 = vpop.f32.mrf.mxu0
      %v3467 = vadd.f32 0.0, %v3466
      %v3468 = vpop.f32.mrf.mxu0
      %3469 = vmatprep.mubr.bf16.mxu0 0
      %3470 = vmatmul.mubr.bf16.gmra.mxu0 %v2674
      %v3471 = vpop.f32.mrf.mxu0
      %v3472 = vadd.f32 0.0, %v3471
      %v3473 = vpop.f32.mrf.mxu0
      %v3474 = vpop.f32.mrf.mxu0
      %v3475 = vadd.f32 0.0, %v3474
      %v3476 = vpop.f32.mrf.mxu0
      %3477 = vmatprep.mubr.bf16.mxu0 0
      %3478 = vmatmul.mubr.bf16.gmra.mxu0 %v3320
      %v3479 = vpop.f32.mrf.mxu0
      %v3480 = vadd.f32 0.0, %v3479
      %v3481 = vpop.f32.mrf.mxu0
      %v3482 = vpop.f32.mrf.mxu0
      %v3483 = vadd.f32 0.0, %v3482
      %v3484 = vpop.f32.mrf.mxu0
      %3485 = vdwg.mxu0
      %v3486 = vadd.f32 %v3258, %v3360
      %v3487 = vadd.f32 %v3259, %v3363
      %v3488 = vadd.f32 %v3260, %v3368
      %v3489 = vadd.f32 %v3261, %v3371
      %v3490 = vadd.f32 %v3262, %v3376
      %v3491 = vadd.f32 %v3263, %v3379
      %v3492 = vadd.f32 %v3264, %v3384
      %v3493 = vadd.f32 %v3265, %v3387
      %v3494 = vadd.f32 %v3266, %v3392
      %v3495 = vadd.f32 %v3267, %v3395
      %v3496 = vadd.f32 %v3268, %v3400
      %v3497 = vadd.f32 %v3269, %v3403
      %v3498 = vadd.f32 %v3270, %v3408
      %v3499 = vadd.f32 %v3271, %v3411
      %v3500 = vadd.f32 %v3272, %v3416
      %v3501 = vadd.f32 %v3273, %v3419
      %v3502 = vadd.f32 %v3274, %v3424
      %v3503 = vadd.f32 %v3275, %v3427
      %v3504 = vadd.f32 %v3276, %v3432
      %v3505 = vadd.f32 %v3277, %v3435
      %v3506 = vadd.f32 %v3278, %v3440
      %v3507 = vadd.f32 %v3279, %v3443
      %v3508 = vadd.f32 %v3280, %v3448
      %v3509 = vadd.f32 %v3281, %v3451
      %v3510 = vadd.f32 %v3282, %v3456
      %v3511 = vadd.f32 %v3283, %v3459
      %v3512 = vadd.f32 %v3284, %v3464
      %v3513 = vadd.f32 %v3285, %v3467
      %v3514 = vadd.f32 %v3286, %v3472
      %v3515 = vadd.f32 %v3287, %v3475
      %v3516 = vadd.f32 %v3288, %v3480
      %v3517 = vadd.f32 %v3289, %v3483
      %s3518 = scalar_lea.vmem %s1, 16
      %v3519 = vld [vmem:[%s3518] sm:$0x3]
      %v3521 = vrot.slane %v1066, 5
      %v3522 = vrot.slane %v3521, 4
      %v3523 = vrot.slane %v1067, 5
      %v3524 = vsel %vm2033, %v3522, %v3523
      %v3525 = vrot.slane %v3523, 4
      %v3526 = vrot.slane %v1068, 5
      %v3527 = vsel %vm2033, %v3525, %v3526
      %v3528 = vunpack.c.l.b16 %v3524
      %v3529 = vunpack.c.l.b16 %v3527
      %v3530 = vpack.c.b16 %v3529, %v3528
      %v3532 = vsel %vm1507, %v3530, 0
      %v3535 = vsel %vm1556, %v3519, 0
      %3537 = vmatprep.subr.bf16.mxu0 0
      %3538 = vmatpush1.bf16.msra.mxu0 0
      %3539 = vmatprep.subr.bf16.mxu0 0
      %3540 = vmatpush1.bf16.msra.mxu0 0
      %3541 = vmatprep.subr.bf16.mxu0 0
      %3542 = vmatpush1.bf16.msra.mxu0 0
      %3543 = vmatprep.subr.bf16.mxu0 0
      %3544 = vmatpush1.bf16.msra.mxu0 0
      %3545 = vmatprep.subr.bf16.mxu0 0
      %3546 = vmatpush1.bf16.msra.mxu0 0
      %3547 = vmatprep.subr.bf16.mxu0 0
      %3548 = vmatpush1.bf16.msra.mxu0 0
      %3549 = vmatprep.subr.bf16.mxu0 0
      %3550 = vmatpush1.bf16.msra.mxu0 0
      %3551 = vmatprep.subr.bf16.mxu0 0
      %3552 = vmatpush1.bf16.msra.mxu0 %v3535
      %3553 = vmatprep.subr.bf16.mxu0 0
      %3554 = vmatpush2.bf16.msra.mxu0 0
      %3555 = vmatprep.subr.bf16.mxu0 0
      %3556 = vmatpush2.bf16.msra.mxu0 0
      %3557 = vmatprep.subr.bf16.mxu0 0
      %3558 = vmatpush2.bf16.msra.mxu0 0
      %3559 = vmatprep.subr.bf16.mxu0 0
      %3560 = vmatpush2.bf16.msra.mxu0 0
      %3561 = vmatprep.subr.bf16.mxu0 0
      %3562 = vmatpush2.bf16.msra.mxu0 0
      %3563 = vmatprep.subr.bf16.mxu0 0
      %3564 = vmatpush2.bf16.msra.mxu0 0
      %3565 = vmatprep.subr.bf16.mxu0 0
      %3566 = vmatpush2.bf16.msra.mxu0 0
      %3567 = vmatprep.subr.bf16.mxu0 0
      %3568 = vmatpush2.bf16.msra.mxu0 0
      %3569 = vmatprep.mubr.bf16.mxu0 0
      %3570 = vmatmul.mubr.bf16.gmra.mxu0 %v2201
      %v3571 = vpop.f32.mrf.mxu0
      %v3572 = vadd.f32 0.0, %v3571
      %v3573 = vpop.f32.mrf.mxu0
      %v3574 = vpop.f32.mrf.mxu0
      %v3575 = vadd.f32 0.0, %v3574
      %v3576 = vpop.f32.mrf.mxu0
      %3577 = vmatprep.mubr.bf16.mxu0 0
      %3578 = vmatmul.mubr.bf16.gmra.mxu0 %v2204
      %v3579 = vpop.f32.mrf.mxu0
      %v3580 = vadd.f32 0.0, %v3579
      %v3581 = vpop.f32.mrf.mxu0
      %v3582 = vpop.f32.mrf.mxu0
      %v3583 = vadd.f32 0.0, %v3582
      %v3584 = vpop.f32.mrf.mxu0
      %3585 = vmatprep.mubr.bf16.mxu0 0
      %3586 = vmatmul.mubr.bf16.gmra.mxu0 %v2207
      %v3587 = vpop.f32.mrf.mxu0
      %v3588 = vadd.f32 0.0, %v3587
      %v3589 = vpop.f32.mrf.mxu0
      %v3590 = vpop.f32.mrf.mxu0
      %v3591 = vadd.f32 0.0, %v3590
      %v3592 = vpop.f32.mrf.mxu0
      %3593 = vmatprep.mubr.bf16.mxu0 0
      %3594 = vmatmul.mubr.bf16.gmra.mxu0 %v2210
      %v3595 = vpop.f32.mrf.mxu0
      %v3596 = vadd.f32 0.0, %v3595
      %v3597 = vpop.f32.mrf.mxu0
      %v3598 = vpop.f32.mrf.mxu0
      %v3599 = vadd.f32 0.0, %v3598
      %v3600 = vpop.f32.mrf.mxu0
      %3601 = vmatprep.mubr.bf16.mxu0 0
      %3602 = vmatmul.mubr.bf16.gmra.mxu0 %v2213
      %v3603 = vpop.f32.mrf.mxu0
      %v3604 = vadd.f32 0.0, %v3603
      %v3605 = vpop.f32.mrf.mxu0
      %v3606 = vpop.f32.mrf.mxu0
      %v3607 = vadd.f32 0.0, %v3606
      %v3608 = vpop.f32.mrf.mxu0
      %3609 = vmatprep.mubr.bf16.mxu0 0
      %3610 = vmatmul.mubr.bf16.gmra.mxu0 %v2216
      %v3611 = vpop.f32.mrf.mxu0
      %v3612 = vadd.f32 0.0, %v3611
      %v3613 = vpop.f32.mrf.mxu0
      %v3614 = vpop.f32.mrf.mxu0
      %v3615 = vadd.f32 0.0, %v3614
      %v3616 = vpop.f32.mrf.mxu0
      %3617 = vmatprep.mubr.bf16.mxu0 0
      %3618 = vmatmul.mubr.bf16.gmra.mxu0 %v2219
      %v3619 = vpop.f32.mrf.mxu0
      %v3620 = vadd.f32 0.0, %v3619
      %v3621 = vpop.f32.mrf.mxu0
      %v3622 = vpop.f32.mrf.mxu0
      %v3623 = vadd.f32 0.0, %v3622
      %v3624 = vpop.f32.mrf.mxu0
      %3625 = vmatprep.mubr.bf16.mxu0 0
      %3626 = vmatmul.mubr.bf16.gmra.mxu0 %v2222
      %v3627 = vpop.f32.mrf.mxu0
      %v3628 = vadd.f32 0.0, %v3627
      %v3629 = vpop.f32.mrf.mxu0
      %v3630 = vpop.f32.mrf.mxu0
      %v3631 = vadd.f32 0.0, %v3630
      %v3632 = vpop.f32.mrf.mxu0
      %3633 = vmatprep.mubr.bf16.mxu0 0
      %3634 = vmatmul.mubr.bf16.gmra.mxu0 %v2225
      %v3635 = vpop.f32.mrf.mxu0
      %v3636 = vadd.f32 0.0, %v3635
      %v3637 = vpop.f32.mrf.mxu0
      %v3638 = vpop.f32.mrf.mxu0
      %v3639 = vadd.f32 0.0, %v3638
      %v3640 = vpop.f32.mrf.mxu0
      %3641 = vmatprep.mubr.bf16.mxu0 0
      %3642 = vmatmul.mubr.bf16.gmra.mxu0 %v2228
      %v3643 = vpop.f32.mrf.mxu0
      %v3644 = vadd.f32 0.0, %v3643
      %v3645 = vpop.f32.mrf.mxu0
      %v3646 = vpop.f32.mrf.mxu0
      %v3647 = vadd.f32 0.0, %v3646
      %v3648 = vpop.f32.mrf.mxu0
      %3649 = vmatprep.mubr.bf16.mxu0 0
      %3650 = vmatmul.mubr.bf16.gmra.mxu0 %v2231
      %v3651 = vpop.f32.mrf.mxu0
      %v3652 = vadd.f32 0.0, %v3651
      %v3653 = vpop.f32.mrf.mxu0
      %v3654 = vpop.f32.mrf.mxu0
      %v3655 = vadd.f32 0.0, %v3654
      %v3656 = vpop.f32.mrf.mxu0
      %3657 = vmatprep.mubr.bf16.mxu0 0
      %3658 = vmatmul.mubr.bf16.gmra.mxu0 %v2234
      %v3659 = vpop.f32.mrf.mxu0
      %v3660 = vadd.f32 0.0, %v3659
      %v3661 = vpop.f32.mrf.mxu0
      %v3662 = vpop.f32.mrf.mxu0
      %v3663 = vadd.f32 0.0, %v3662
      %v3664 = vpop.f32.mrf.mxu0
      %3665 = vmatprep.mubr.bf16.mxu0 0
      %3666 = vmatmul.mubr.bf16.gmra.mxu0 %v2237
      %v3667 = vpop.f32.mrf.mxu0
      %v3668 = vadd.f32 0.0, %v3667
      %v3669 = vpop.f32.mrf.mxu0
      %v3670 = vpop.f32.mrf.mxu0
      %v3671 = vadd.f32 0.0, %v3670
      %v3672 = vpop.f32.mrf.mxu0
      %3673 = vmatprep.mubr.bf16.mxu0 0
      %3674 = vmatmul.mubr.bf16.gmra.mxu0 %v2240
      %v3675 = vpop.f32.mrf.mxu0
      %v3676 = vadd.f32 0.0, %v3675
      %v3677 = vpop.f32.mrf.mxu0
      %v3678 = vpop.f32.mrf.mxu0
      %v3679 = vadd.f32 0.0, %v3678
      %v3680 = vpop.f32.mrf.mxu0
      %3681 = vmatprep.mubr.bf16.mxu0 0
      %3682 = vmatmul.mubr.bf16.gmra.mxu0 %v2886
      %v3683 = vpop.f32.mrf.mxu0
      %v3684 = vadd.f32 0.0, %v3683
      %v3685 = vpop.f32.mrf.mxu0
      %v3686 = vpop.f32.mrf.mxu0
      %v3687 = vadd.f32 0.0, %v3686
      %v3688 = vpop.f32.mrf.mxu0
      %3689 = vmatprep.mubr.bf16.mxu0 0
      %3690 = vmatmul.mubr.bf16.gmra.mxu0 %v3532
      %v3691 = vpop.f32.mrf.mxu0
      %v3692 = vadd.f32 0.0, %v3691
      %v3693 = vpop.f32.mrf.mxu0
      %v3694 = vpop.f32.mrf.mxu0
      %v3695 = vadd.f32 0.0, %v3694
      %v3696 = vpop.f32.mrf.mxu0
      %3697 = vdwg.mxu0
      %v3698 = vadd.f32 %v3486, %v3572
      %v3699 = vadd.f32 %v3487, %v3575
      %v3700 = vadd.f32 %v3488, %v3580
      %v3701 = vadd.f32 %v3489, %v3583
      %v3702 = vadd.f32 %v3490, %v3588
      %v3703 = vadd.f32 %v3491, %v3591
      %v3704 = vadd.f32 %v3492, %v3596
      %v3705 = vadd.f32 %v3493, %v3599
      %v3706 = vadd.f32 %v3494, %v3604
      %v3707 = vadd.f32 %v3495, %v3607
      %v3708 = vadd.f32 %v3496, %v3612
      %v3709 = vadd.f32 %v3497, %v3615
      %v3710 = vadd.f32 %v3498, %v3620
      %v3711 = vadd.f32 %v3499, %v3623
      %v3712 = vadd.f32 %v3500, %v3628
      %v3713 = vadd.f32 %v3501, %v3631
      %v3714 = vadd.f32 %v3502, %v3636
      %v3715 = vadd.f32 %v3503, %v3639
      %v3716 = vadd.f32 %v3504, %v3644
      %v3717 = vadd.f32 %v3505, %v3647
      %v3718 = vadd.f32 %v3506, %v3652
      %v3719 = vadd.f32 %v3507, %v3655
      %v3720 = vadd.f32 %v3508, %v3660
      %v3721 = vadd.f32 %v3509, %v3663
      %v3722 = vadd.f32 %v3510, %v3668
      %v3723 = vadd.f32 %v3511, %v3671
      %v3724 = vadd.f32 %v3512, %v3676
      %v3725 = vadd.f32 %v3513, %v3679
      %v3726 = vadd.f32 %v3514, %v3684
      %v3727 = vadd.f32 %v3515, %v3687
      %v3728 = vadd.f32 %v3516, %v3692
      %v3729 = vadd.f32 %v3517, %v3695
      %v3730 = vmax.f32 %v3698, 0.0
      %v3731 = vmax.f32 %v3699, 0.0
      %v3732 = vmax.f32 %v3700, 0.0
      %v3733 = vmax.f32 %v3701, 0.0
      %v3734 = vmax.f32 %v3702, 0.0
      %v3735 = vmax.f32 %v3703, 0.0
      %v3736 = vmax.f32 %v3704, 0.0
      %v3737 = vmax.f32 %v3705, 0.0
      %v3738 = vmax.f32 %v3706, 0.0
      %v3739 = vmax.f32 %v3707, 0.0
      %v3740 = vmax.f32 %v3708, 0.0
      %v3741 = vmax.f32 %v3709, 0.0
      %v3742 = vmax.f32 %v3710, 0.0
      %v3743 = vmax.f32 %v3711, 0.0
      %v3744 = vmax.f32 %v3712, 0.0
      %v3745 = vmax.f32 %v3713, 0.0
      %v3746 = vmax.f32 %v3714, 0.0
      %v3747 = vmax.f32 %v3715, 0.0
      %v3748 = vmax.f32 %v3716, 0.0
      %v3749 = vmax.f32 %v3717, 0.0
      %v3750 = vmax.f32 %v3718, 0.0
      %v3751 = vmax.f32 %v3719, 0.0
      %v3752 = vmax.f32 %v3720, 0.0
      %v3753 = vmax.f32 %v3721, 0.0
      %v3754 = vmax.f32 %v3722, 0.0
      %v3755 = vmax.f32 %v3723, 0.0
      %v3756 = vmax.f32 %v3724, 0.0
      %v3757 = vmax.f32 %v3725, 0.0
      %v3758 = vmax.f32 %v3726, 0.0
      %v3759 = vmax.f32 %v3727, 0.0
      %v3760 = vmax.f32 %v3728, 0.0
      %v3761 = vmax.f32 %v3729, 0.0
      %v3762 = vpack.c.bf16 %v3731, %v3730
      %v3763 = vpack.c.bf16 %v3733, %v3732
      %v3764 = vpack.c.bf16 %v3735, %v3734
      %v3765 = vpack.c.bf16 %v3737, %v3736
      %v3766 = vpack.c.bf16 %v3739, %v3738
      %v3767 = vpack.c.bf16 %v3741, %v3740
      %v3768 = vpack.c.bf16 %v3743, %v3742
      %v3769 = vpack.c.bf16 %v3745, %v3744
      %v3770 = vpack.c.bf16 %v3747, %v3746
      %v3771 = vpack.c.bf16 %v3749, %v3748
      %v3772 = vpack.c.bf16 %v3751, %v3750
      %v3773 = vpack.c.bf16 %v3753, %v3752
      %v3774 = vpack.c.bf16 %v3755, %v3754
      %v3775 = vpack.c.bf16 %v3757, %v3756
      %v3776 = vpack.c.bf16 %v3759, %v3758
      %v3777 = vpack.c.bf16 %v3761, %v3760
      %v3794 = vunpack.c.l.b16 %v3762
      %v3795 = vunpack.c.h.b16 %v3762
      %v3796 = vunpack.c.l.b16 %v3763
      %v3797 = vunpack.c.h.b16 %v3763
      %v3798 = vunpack.c.l.b16 %v3764
      %v3799 = vunpack.c.h.b16 %v3764
      %v3800 = vunpack.c.l.b16 %v3765
      %v3801 = vunpack.c.h.b16 %v3765
      %v3802 = vunpack.c.l.b16 %v3766
      %v3803 = vunpack.c.h.b16 %v3766
      %v3804 = vunpack.c.l.b16 %v3767
      %v3805 = vunpack.c.h.b16 %v3767
      %v3806 = vunpack.c.l.b16 %v3768
      %v3807 = vunpack.c.h.b16 %v3768
      %v3808 = vunpack.c.l.b16 %v3769
      %v3809 = vunpack.c.h.b16 %v3769
      %v3810 = vunpack.c.l.b16 %v3770
      %v3811 = vunpack.c.h.b16 %v3770
      %v3812 = vunpack.c.l.b16 %v3771
      %v3813 = vunpack.c.h.b16 %v3771
      %v3814 = vunpack.c.l.b16 %v3772
      %v3815 = vunpack.c.h.b16 %v3772
      %v3816 = vunpack.c.l.b16 %v3773
      %v3817 = vunpack.c.h.b16 %v3773
      %v3818 = vunpack.c.l.b16 %v3774
      %v3819 = vunpack.c.h.b16 %v3774
      %v3820 = vunpack.c.l.b16 %v3775
      %v3821 = vunpack.c.h.b16 %v3775
      %v3822 = vunpack.c.l.b16 %v3776
      %v3823 = vunpack.c.h.b16 %v3776
      %v3824 = vunpack.c.l.b16 %v3777
      %v3825 = vunpack.c.h.b16 %v3777
      %v3826 = vpack.c.b16 %v3794, %v3794
      %v3827 = vpack.c.b16 %v3795, %v3795
      %v3828 = vpack.c.b16 %v3796, %v3796
      %v3829 = vpack.c.b16 %v3797, %v3797
      %v3830 = vpack.c.b16 %v3798, %v3798
      %v3831 = vpack.c.b16 %v3799, %v3799
      %v3832 = vpack.c.b16 %v3800, %v3800
      %v3833 = vpack.c.b16 %v3801, %v3801
      %v3834 = vpack.c.b16 %v3802, %v3802
      %v3835 = vpack.c.b16 %v3803, %v3803
      %v3836 = vpack.c.b16 %v3804, %v3804
      %v3837 = vpack.c.b16 %v3805, %v3805
      %v3838 = vpack.c.b16 %v3806, %v3806
      %v3839 = vpack.c.b16 %v3807, %v3807
      %v3840 = vpack.c.b16 %v3808, %v3808
      %v3841 = vpack.c.b16 %v3809, %v3809
      %v3842 = vpack.c.b16 %v3810, %v3810
      %v3843 = vpack.c.b16 %v3811, %v3811
      %v3844 = vpack.c.b16 %v3812, %v3812
      %v3845 = vpack.c.b16 %v3813, %v3813
      %v3846 = vpack.c.b16 %v3814, %v3814
      %v3847 = vpack.c.b16 %v3815, %v3815
      %v3848 = vpack.c.b16 %v3816, %v3816
      %v3849 = vpack.c.b16 %v3817, %v3817
      %v3850 = vpack.c.b16 %v3818, %v3818
      %v3851 = vpack.c.b16 %v3819, %v3819
      %v3852 = vpack.c.b16 %v3820, %v3820
      %v3853 = vpack.c.b16 %v3821, %v3821
      %v3854 = vpack.c.b16 %v3822, %v3822
      %v3855 = vpack.c.b16 %v3823, %v3823
      %v3856 = vpack.c.b16 %v3824, %v3824
      %v3857 = vpack.c.b16 %v3825, %v3825
      %v3859 = vshrl.u32 %v3826, 16
      %v3861 = vrot.slane %v3859, 7
      %v3862 = vshll.u32 %v3826, 16
      %v3864 = vor.u32 %v3861, %v3862
      %v3865 = vrot.slane %v3861, 4
      %v3867 = vshrl.u32 %v3827, 16
      %v3869 = vrot.slane %v3867, 7
      %v3870 = vshll.u32 %v3827, 16
      %v3872 = vor.u32 %v3869, %v3870
      %v3873 = vsel %vm302, %v3865, %v3872
      %v3874 = vrot.slane %v3869, 4
      %v3876 = vshrl.u32 %v3828, 16
      %v3878 = vrot.slane %v3876, 7
      %v3879 = vshll.u32 %v3828, 16
      %v3881 = vor.u32 %v3878, %v3879
      %v3882 = vrot.slane %v3878, 4
      %v3884 = vshrl.u32 %v3829, 16
      %v3886 = vrot.slane %v3884, 7
      %v3887 = vshll.u32 %v3829, 16
      %v3889 = vor.u32 %v3886, %v3887
      %v3890 = vsel %vm302, %v3882, %v3889
      %v3891 = vrot.slane %v3886, 4
      %v3893 = vshrl.u32 %v3830, 16
      %v3895 = vrot.slane %v3893, 7
      %v3896 = vshll.u32 %v3830, 16
      %v3898 = vor.u32 %v3895, %v3896
      %v3899 = vrot.slane %v3895, 4
      %v3901 = vshrl.u32 %v3831, 16
      %v3903 = vrot.slane %v3901, 7
      %v3904 = vshll.u32 %v3831, 16
      %v3906 = vor.u32 %v3903, %v3904
      %v3907 = vsel %vm302, %v3899, %v3906
      %v3908 = vrot.slane %v3903, 4
      %v3910 = vshrl.u32 %v3832, 16
      %v3912 = vrot.slane %v3910, 7
      %v3913 = vshll.u32 %v3832, 16
      %v3915 = vor.u32 %v3912, %v3913
      %v3916 = vrot.slane %v3912, 4
      %v3918 = vshrl.u32 %v3833, 16
      %v3920 = vrot.slane %v3918, 7
      %v3921 = vshll.u32 %v3833, 16
      %v3923 = vor.u32 %v3920, %v3921
      %v3924 = vsel %vm302, %v3916, %v3923
      %v3925 = vrot.slane %v3920, 4
      %v3927 = vshrl.u32 %v3834, 16
      %v3929 = vrot.slane %v3927, 7
      %v3930 = vshll.u32 %v3834, 16
      %v3932 = vor.u32 %v3929, %v3930
      %v3933 = vrot.slane %v3929, 4
      %v3935 = vshrl.u32 %v3835, 16
      %v3937 = vrot.slane %v3935, 7
      %v3938 = vshll.u32 %v3835, 16
      %v3940 = vor.u32 %v3937, %v3938
      %v3941 = vsel %vm302, %v3933, %v3940
      %v3942 = vrot.slane %v3937, 4
      %v3944 = vshrl.u32 %v3836, 16
      %v3946 = vrot.slane %v3944, 7
      %v3947 = vshll.u32 %v3836, 16
      %v3949 = vor.u32 %v3946, %v3947
      %v3950 = vrot.slane %v3946, 4
      %v3952 = vshrl.u32 %v3837, 16
      %v3954 = vrot.slane %v3952, 7
      %v3955 = vshll.u32 %v3837, 16
      %v3957 = vor.u32 %v3954, %v3955
      %v3958 = vsel %vm302, %v3950, %v3957
      %v3959 = vrot.slane %v3954, 4
      %v3961 = vshrl.u32 %v3838, 16
      %v3963 = vrot.slane %v3961, 7
      %v3964 = vshll.u32 %v3838, 16
      %v3966 = vor.u32 %v3963, %v3964
      %v3967 = vrot.slane %v3963, 4
      %v3969 = vshrl.u32 %v3839, 16
      %v3971 = vrot.slane %v3969, 7
      %v3972 = vshll.u32 %v3839, 16
      %v3974 = vor.u32 %v3971, %v3972
      %v3975 = vsel %vm302, %v3967, %v3974
      %v3976 = vrot.slane %v3971, 4
      %v3978 = vshrl.u32 %v3840, 16
      %v3980 = vrot.slane %v3978, 7
      %v3981 = vshll.u32 %v3840, 16
      %v3983 = vor.u32 %v3980, %v3981
      %v3984 = vrot.slane %v3980, 4
      %v3986 = vshrl.u32 %v3841, 16
      %v3988 = vrot.slane %v3986, 7
      %v3989 = vshll.u32 %v3841, 16
      %v3991 = vor.u32 %v3988, %v3989
      %v3992 = vsel %vm302, %v3984, %v3991
      %v3993 = vrot.slane %v3988, 4
      %v3995 = vshrl.u32 %v3842, 16
      %v3997 = vrot.slane %v3995, 7
      %v3998 = vshll.u32 %v3842, 16
      %v4000 = vor.u32 %v3997, %v3998
      %v4001 = vrot.slane %v3997, 4
      %v4003 = vshrl.u32 %v3843, 16
      %v4005 = vrot.slane %v4003, 7
      %v4006 = vshll.u32 %v3843, 16
      %v4008 = vor.u32 %v4005, %v4006
      %v4009 = vsel %vm302, %v4001, %v4008
      %v4010 = vrot.slane %v4005, 4
      %v4012 = vshrl.u32 %v3844, 16
      %v4014 = vrot.slane %v4012, 7
      %v4015 = vshll.u32 %v3844, 16
      %v4017 = vor.u32 %v4014, %v4015
      %v4018 = vrot.slane %v4014, 4
      %v4020 = vshrl.u32 %v3845, 16
      %v4022 = vrot.slane %v4020, 7
      %v4023 = vshll.u32 %v3845, 16
      %v4025 = vor.u32 %v4022, %v4023
      %v4026 = vsel %vm302, %v4018, %v4025
      %v4027 = vrot.slane %v4022, 4
      %v4029 = vshrl.u32 %v3846, 16
      %v4031 = vrot.slane %v4029, 7
      %v4032 = vshll.u32 %v3846, 16
      %v4034 = vor.u32 %v4031, %v4032
      %v4035 = vrot.slane %v4031, 4
      %v4037 = vshrl.u32 %v3847, 16
      %v4039 = vrot.slane %v4037, 7
      %v4040 = vshll.u32 %v3847, 16
      %v4042 = vor.u32 %v4039, %v4040
      %v4043 = vsel %vm302, %v4035, %v4042
      %v4044 = vrot.slane %v4039, 4
      %v4046 = vshrl.u32 %v3848, 16
      %v4048 = vrot.slane %v4046, 7
      %v4049 = vshll.u32 %v3848, 16
      %v4051 = vor.u32 %v4048, %v4049
      %v4052 = vrot.slane %v4048, 4
      %v4054 = vshrl.u32 %v3849, 16
      %v4056 = vrot.slane %v4054, 7
      %v4057 = vshll.u32 %v3849, 16
      %v4059 = vor.u32 %v4056, %v4057
      %v4060 = vsel %vm302, %v4052, %v4059
      %v4061 = vrot.slane %v4056, 4
      %v4063 = vshrl.u32 %v3850, 16
      %v4065 = vrot.slane %v4063, 7
      %v4066 = vshll.u32 %v3850, 16
      %v4068 = vor.u32 %v4065, %v4066
      %v4069 = vrot.slane %v4065, 4
      %v4071 = vshrl.u32 %v3851, 16
      %v4073 = vrot.slane %v4071, 7
      %v4074 = vshll.u32 %v3851, 16
      %v4076 = vor.u32 %v4073, %v4074
      %v4077 = vsel %vm302, %v4069, %v4076
      %v4078 = vrot.slane %v4073, 4
      %v4080 = vshrl.u32 %v3852, 16
      %v4082 = vrot.slane %v4080, 7
      %v4083 = vshll.u32 %v3852, 16
      %v4085 = vor.u32 %v4082, %v4083
      %v4086 = vrot.slane %v4082, 4
      %v4088 = vshrl.u32 %v3853, 16
      %v4090 = vrot.slane %v4088, 7
      %v4091 = vshll.u32 %v3853, 16
      %v4093 = vor.u32 %v4090, %v4091
      %v4094 = vsel %vm302, %v4086, %v4093
      %v4095 = vrot.slane %v4090, 4
      %v4097 = vshrl.u32 %v3854, 16
      %v4099 = vrot.slane %v4097, 7
      %v4100 = vshll.u32 %v3854, 16
      %v4102 = vor.u32 %v4099, %v4100
      %v4103 = vrot.slane %v4099, 4
      %v4105 = vshrl.u32 %v3855, 16
      %v4107 = vrot.slane %v4105, 7
      %v4108 = vshll.u32 %v3855, 16
      %v4110 = vor.u32 %v4107, %v4108
      %v4111 = vsel %vm302, %v4103, %v4110
      %v4112 = vrot.slane %v4107, 4
      %v4114 = vshrl.u32 %v3856, 16
      %v4116 = vrot.slane %v4114, 7
      %v4117 = vshll.u32 %v3856, 16
      %v4119 = vor.u32 %v4116, %v4117
      %v4120 = vrot.slane %v4116, 4
      %v4122 = vshrl.u32 %v3857, 16
      %v4124 = vrot.slane %v4122, 7
      %v4125 = vshll.u32 %v3857, 16
      %v4127 = vor.u32 %v4124, %v4125
      %v4128 = vsel %vm302, %v4120, %v4127
      %v4129 = vrot.slane %v4124, 4
      %s4178 = scalar_lea.vmem [#allocation3], 12
      %v4179 = vld [vmem:[%s4178] sm:$0xf]
      %v4180 = vsel %vm626, %v3864, %v4179
      %4181 = vst [vmem:[%s4178] sm:$0xf] %v4180
      %4182 = vst.msk [vmem:[%s4178 + $0x4] sm:$0xf] %vm630, %v3873
      %v4183 = vld [vmem:[%s4178 + $0x8] sm:$0x1]
      %v4184 = vsel %vm633, %v3874, %v4183
      %4185 = vst [vmem:[%s4178 + $0x8] sm:$0x1] %v4184
      %v4186 = vld [vmem:[%s4178 + $0xc] sm:$0xf]
      %v4187 = vsel %vm626, %v3881, %v4186
      %4188 = vst [vmem:[%s4178 + $0xc] sm:$0xf] %v4187
      %4189 = vst.msk [vmem:[%s4178 + $0x10] sm:$0xf] %vm630, %v3890
      %v4190 = vld [vmem:[%s4178 + $0x14] sm:$0x1]
      %v4191 = vsel %vm633, %v3891, %v4190
      %4192 = vst [vmem:[%s4178 + $0x14] sm:$0x1] %v4191
      %v4193 = vld [vmem:[%s4178 + $0x18] sm:$0xf]
      %v4194 = vsel %vm626, %v3898, %v4193
      %4195 = vst [vmem:[%s4178 + $0x18] sm:$0xf] %v4194
      %4196 = vst.msk [vmem:[%s4178 + $0x1c] sm:$0xf] %vm630, %v3907
      %v4197 = vld [vmem:[%s4178 + $0x20] sm:$0x1]
      %v4198 = vsel %vm633, %v3908, %v4197
      %4199 = vst [vmem:[%s4178 + $0x20] sm:$0x1] %v4198
      %v4200 = vld [vmem:[%s4178 + $0x24] sm:$0xf]
      %v4201 = vsel %vm626, %v3915, %v4200
      %4202 = vst [vmem:[%s4178 + $0x24] sm:$0xf] %v4201
      %4203 = vst.msk [vmem:[%s4178 + $0x28] sm:$0xf] %vm630, %v3924
      %v4204 = vld [vmem:[%s4178 + $0x2c] sm:$0x1]
      %v4205 = vsel %vm633, %v3925, %v4204
      %4206 = vst [vmem:[%s4178 + $0x2c] sm:$0x1] %v4205
      %v4207 = vld [vmem:[%s4178 + $0x30] sm:$0xf]
      %v4208 = vsel %vm626, %v3932, %v4207
      %4209 = vst [vmem:[%s4178 + $0x30] sm:$0xf] %v4208
      %4210 = vst.msk [vmem:[%s4178 + $0x34] sm:$0xf] %vm630, %v3941
      %v4211 = vld [vmem:[%s4178 + $0x38] sm:$0x1]
      %v4212 = vsel %vm633, %v3942, %v4211
      %4213 = vst [vmem:[%s4178 + $0x38] sm:$0x1] %v4212
      %v4214 = vld [vmem:[%s4178 + $0x3c] sm:$0xf]
      %v4215 = vsel %vm626, %v3949, %v4214
      %4216 = vst [vmem:[%s4178 + $0x3c] sm:$0xf] %v4215
      %4217 = vst.msk [vmem:[%s4178 + $0x40] sm:$0xf] %vm630, %v3958
      %v4218 = vld [vmem:[%s4178 + $0x44] sm:$0x1]
      %v4219 = vsel %vm633, %v3959, %v4218
      %4220 = vst [vmem:[%s4178 + $0x44] sm:$0x1] %v4219
      %v4221 = vld [vmem:[%s4178 + $0x48] sm:$0xf]
      %v4222 = vsel %vm626, %v3966, %v4221
      %4223 = vst [vmem:[%s4178 + $0x48] sm:$0xf] %v4222
      %4224 = vst.msk [vmem:[%s4178 + $0x4c] sm:$0xf] %vm630, %v3975
      %v4225 = vld [vmem:[%s4178 + $0x50] sm:$0x1]
      %v4226 = vsel %vm633, %v3976, %v4225
      %4227 = vst [vmem:[%s4178 + $0x50] sm:$0x1] %v4226
      %v4228 = vld [vmem:[%s4178 + $0x54] sm:$0xf]
      %v4229 = vsel %vm626, %v3983, %v4228
      %4230 = vst [vmem:[%s4178 + $0x54] sm:$0xf] %v4229
      %4231 = vst.msk [vmem:[%s4178 + $0x58] sm:$0xf] %vm630, %v3992
      %v4232 = vld [vmem:[%s4178 + $0x5c] sm:$0x1]
      %v4233 = vsel %vm633, %v3993, %v4232
      %4234 = vst [vmem:[%s4178 + $0x5c] sm:$0x1] %v4233
      %v4235 = vld [vmem:[%s4178 + $0x60] sm:$0xf]
      %v4236 = vsel %vm626, %v4000, %v4235
      %4237 = vst [vmem:[%s4178 + $0x60] sm:$0xf] %v4236
      %4238 = vst.msk [vmem:[%s4178 + $0x64] sm:$0xf] %vm630, %v4009
      %v4239 = vld [vmem:[%s4178 + $0x68] sm:$0x1]
      %v4240 = vsel %vm633, %v4010, %v4239
      %4241 = vst [vmem:[%s4178 + $0x68] sm:$0x1] %v4240
      %v4242 = vld [vmem:[%s4178 + $0x6c] sm:$0xf]
      %v4243 = vsel %vm626, %v4017, %v4242
      %4244 = vst [vmem:[%s4178 + $0x6c] sm:$0xf] %v4243
      %4245 = vst.msk [vmem:[%s4178 + $0x70] sm:$0xf] %vm630, %v4026
      %v4246 = vld [vmem:[%s4178 + $0x74] sm:$0x1]
      %v4247 = vsel %vm633, %v4027, %v4246
      %4248 = vst [vmem:[%s4178 + $0x74] sm:$0x1] %v4247
      %v4249 = vld [vmem:[%s4178 + $0x78] sm:$0xf]
      %v4250 = vsel %vm626, %v4034, %v4249
      %4251 = vst [vmem:[%s4178 + $0x78] sm:$0xf] %v4250
      %4252 = vst.msk [vmem:[%s4178 + $0x7c] sm:$0xf] %vm630, %v4043
      %v4253 = vld [vmem:[%s4178 + $0x80] sm:$0x1]
      %v4254 = vsel %vm633, %v4044, %v4253
      %4255 = vst [vmem:[%s4178 + $0x80] sm:$0x1] %v4254
      %v4256 = vld [vmem:[%s4178 + $0x84] sm:$0xf]
      %v4257 = vsel %vm626, %v4051, %v4256
      %4258 = vst [vmem:[%s4178 + $0x84] sm:$0xf] %v4257
      %4259 = vst.msk [vmem:[%s4178 + $0x88] sm:$0xf] %vm630, %v4060
      %v4260 = vld [vmem:[%s4178 + $0x8c] sm:$0x1]
      %v4261 = vsel %vm633, %v4061, %v4260
      %4262 = vst [vmem:[%s4178 + $0x8c] sm:$0x1] %v4261
      %v4263 = vld [vmem:[%s4178 + $0x90] sm:$0xf]
      %v4264 = vsel %vm626, %v4068, %v4263
      %4265 = vst [vmem:[%s4178 + $0x90] sm:$0xf] %v4264
      %4266 = vst.msk [vmem:[%s4178 + $0x94] sm:$0xf] %vm630, %v4077
      %v4267 = vld [vmem:[%s4178 + $0x98] sm:$0x1]
      %v4268 = vsel %vm633, %v4078, %v4267
      %4269 = vst [vmem:[%s4178 + $0x98] sm:$0x1] %v4268
      %v4270 = vld [vmem:[%s4178 + $0x9c] sm:$0xf]
      %v4271 = vsel %vm626, %v4085, %v4270
      %4272 = vst [vmem:[%s4178 + $0x9c] sm:$0xf] %v4271
      %4273 = vst.msk [vmem:[%s4178 + $0xa0] sm:$0xf] %vm630, %v4094
      %v4274 = vld [vmem:[%s4178 + $0xa4] sm:$0x1]
      %v4275 = vsel %vm633, %v4095, %v4274
      %4276 = vst [vmem:[%s4178 + $0xa4] sm:$0x1] %v4275
      %v4277 = vld [vmem:[%s4178 + $0xa8] sm:$0xf]
      %v4278 = vsel %vm626, %v4102, %v4277
      %4279 = vst [vmem:[%s4178 + $0xa8] sm:$0xf] %v4278
      %4280 = vst.msk [vmem:[%s4178 + $0xac] sm:$0xf] %vm630, %v4111
      %v4281 = vld [vmem:[%s4178 + $0xb0] sm:$0x1]
      %v4282 = vsel %vm633, %v4112, %v4281
      %4283 = vst [vmem:[%s4178 + $0xb0] sm:$0x1] %v4282
      %v4284 = vld [vmem:[%s4178 + $0xb4] sm:$0xf]
      %v4285 = vsel %vm626, %v4119, %v4284
      %4286 = vst [vmem:[%s4178 + $0xb4] sm:$0xf] %v4285
      %4287 = vst.msk [vmem:[%s4178 + $0xb8] sm:$0xf] %vm630, %v4128
      %v4288 = vld [vmem:[%s4178 + $0xbc] sm:$0x1]
      %v4289 = vsel %vm633, %v4129, %v4288
      %4290 = vst [vmem:[%s4178 + $0xbc] sm:$0x1] %v4289
      %v4291 = vld [vmem:[%s4178] sm:$0x2]
      %v4292 = vld [vmem:[%s4178 + $0xc] sm:$0x2]
      %v4293 = vld [vmem:[%s4178 + $0x18] sm:$0x2]
      %v4294 = vld [vmem:[%s4178 + $0x24] sm:$0x2]
      %v4295 = vld [vmem:[%s4178 + $0x30] sm:$0x2]
      %v4296 = vld [vmem:[%s4178 + $0x3c] sm:$0x2]
      %v4297 = vld [vmem:[%s4178 + $0x48] sm:$0x2]
      %v4298 = vld [vmem:[%s4178 + $0x54] sm:$0x2]
      %v4299 = vld [vmem:[%s4178 + $0x60] sm:$0x2]
      %v4300 = vld [vmem:[%s4178 + $0x6c] sm:$0x2]
      %v4301 = vld [vmem:[%s4178 + $0x78] sm:$0x2]
      %v4302 = vld [vmem:[%s4178 + $0x84] sm:$0x2]
      %v4303 = vld [vmem:[%s4178 + $0x90] sm:$0x2]
      %v4304 = vld [vmem:[%s4178 + $0x9c] sm:$0x2]
      %v4305 = vld [vmem:[%s4178 + $0xa8] sm:$0x2]
      %v4306 = vld [vmem:[%s4178 + $0xb4] sm:$0x2]
      %v4323 = vrot.slane %v4291, 5
      %v4324 = vrot.slane %v4323, 4
      %v4325 = vrot.slane %v4292, 5
      %v4326 = vrot.slane %v4325, 4
      %v4327 = vrot.slane %v4293, 5
      %v4328 = vrot.slane %v4327, 4
      %v4329 = vrot.slane %v4294, 5
      %v4330 = vrot.slane %v4329, 4
      %v4331 = vrot.slane %v4295, 5
      %v4332 = vrot.slane %v4331, 4
      %v4333 = vrot.slane %v4296, 5
      %v4334 = vrot.slane %v4333, 4
      %v4335 = vrot.slane %v4297, 5
      %v4336 = vrot.slane %v4335, 4
      %v4337 = vrot.slane %v4298, 5
      %v4338 = vrot.slane %v4337, 4
      %v4339 = vrot.slane %v4299, 5
      %v4340 = vrot.slane %v4339, 4
      %v4341 = vrot.slane %v4300, 5
      %v4342 = vrot.slane %v4341, 4
      %v4343 = vrot.slane %v4301, 5
      %v4344 = vrot.slane %v4343, 4
      %v4345 = vrot.slane %v4302, 5
      %v4346 = vrot.slane %v4345, 4
      %v4347 = vrot.slane %v4303, 5
      %v4348 = vrot.slane %v4347, 4
      %v4349 = vrot.slane %v4304, 5
      %v4350 = vrot.slane %v4349, 4
      %v4351 = vrot.slane %v4305, 5
      %v4352 = vrot.slane %v4351, 4
      %v4353 = vrot.slane %v4306, 5
      %v4354 = vrot.slane %v4353, 4
      %v4371 = vld [vmem:[%s4178] sm:$0x1]
      %v4372 = vsel %vm633, %v4324, %v4371
      %4373 = vst [vmem:[%s4178] sm:$0x1] %v4372
      %v4374 = vld [vmem:[%s4178 + $0xc] sm:$0x1]
      %v4375 = vsel %vm633, %v4326, %v4374
      %4376 = vst [vmem:[%s4178 + $0xc] sm:$0x1] %v4375
      %v4377 = vld [vmem:[%s4178 + $0x18] sm:$0x1]
      %v4378 = vsel %vm633, %v4328, %v4377
      %4379 = vst [vmem:[%s4178 + $0x18] sm:$0x1] %v4378
      %v4380 = vld [vmem:[%s4178 + $0x24] sm:$0x1]
      %v4381 = vsel %vm633, %v4330, %v4380
      %4382 = vst [vmem:[%s4178 + $0x24] sm:$0x1] %v4381
      %v4383 = vld [vmem:[%s4178 + $0x30] sm:$0x1]
      %v4384 = vsel %vm633, %v4332, %v4383
      %4385 = vst [vmem:[%s4178 + $0x30] sm:$0x1] %v4384
      %v4386 = vld [vmem:[%s4178 + $0x3c] sm:$0x1]
      %v4387 = vsel %vm633, %v4334, %v4386
      %4388 = vst [vmem:[%s4178 + $0x3c] sm:$0x1] %v4387
      %v4389 = vld [vmem:[%s4178 + $0x48] sm:$0x1]
      %v4390 = vsel %vm633, %v4336, %v4389
      %4391 = vst [vmem:[%s4178 + $0x48] sm:$0x1] %v4390
      %v4392 = vld [vmem:[%s4178 + $0x54] sm:$0x1]
      %v4393 = vsel %vm633, %v4338, %v4392
      %4394 = vst [vmem:[%s4178 + $0x54] sm:$0x1] %v4393
      %v4395 = vld [vmem:[%s4178 + $0x60] sm:$0x1]
      %v4396 = vsel %vm633, %v4340, %v4395
      %4397 = vst [vmem:[%s4178 + $0x60] sm:$0x1] %v4396
      %v4398 = vld [vmem:[%s4178 + $0x6c] sm:$0x1]
      %v4399 = vsel %vm633, %v4342, %v4398
      %4400 = vst [vmem:[%s4178 + $0x6c] sm:$0x1] %v4399
      %v4401 = vld [vmem:[%s4178 + $0x78] sm:$0x1]
      %v4402 = vsel %vm633, %v4344, %v4401
      %4403 = vst [vmem:[%s4178 + $0x78] sm:$0x1] %v4402
      %v4404 = vld [vmem:[%s4178 + $0x84] sm:$0x1]
      %v4405 = vsel %vm633, %v4346, %v4404
      %4406 = vst [vmem:[%s4178 + $0x84] sm:$0x1] %v4405
      %v4407 = vld [vmem:[%s4178 + $0x90] sm:$0x1]
      %v4408 = vsel %vm633, %v4348, %v4407
      %4409 = vst [vmem:[%s4178 + $0x90] sm:$0x1] %v4408
      %v4410 = vld [vmem:[%s4178 + $0x9c] sm:$0x1]
      %v4411 = vsel %vm633, %v4350, %v4410
      %4412 = vst [vmem:[%s4178 + $0x9c] sm:$0x1] %v4411
      %v4413 = vld [vmem:[%s4178 + $0xa8] sm:$0x1]
      %v4414 = vsel %vm633, %v4352, %v4413
      %4415 = vst [vmem:[%s4178 + $0xa8] sm:$0x1] %v4414
      %v4416 = vld [vmem:[%s4178 + $0xb4] sm:$0x1]
      %v4417 = vsel %vm633, %v4354, %v4416
      %4418 = vst [vmem:[%s4178 + $0xb4] sm:$0x1] %v4417
      %v4419 = vld [vmem:[%s4178 + $0x4] sm:$0x8]
      %v4420 = vld [vmem:[%s4178 + $0x10] sm:$0x8]
      %v4421 = vld [vmem:[%s4178 + $0x1c] sm:$0x8]
      %v4422 = vld [vmem:[%s4178 + $0x28] sm:$0x8]
      %v4423 = vld [vmem:[%s4178 + $0x34] sm:$0x8]
      %v4424 = vld [vmem:[%s4178 + $0x40] sm:$0x8]
      %v4425 = vld [vmem:[%s4178 + $0x4c] sm:$0x8]
      %v4426 = vld [vmem:[%s4178 + $0x58] sm:$0x8]
      %v4427 = vld [vmem:[%s4178 + $0x64] sm:$0x8]
      %v4428 = vld [vmem:[%s4178 + $0x70] sm:$0x8]
      %v4429 = vld [vmem:[%s4178 + $0x7c] sm:$0x8]
      %v4430 = vld [vmem:[%s4178 + $0x88] sm:$0x8]
      %v4431 = vld [vmem:[%s4178 + $0x94] sm:$0x8]
      %v4432 = vld [vmem:[%s4178 + $0xa0] sm:$0x8]
      %v4433 = vld [vmem:[%s4178 + $0xac] sm:$0x8]
      %v4434 = vld [vmem:[%s4178 + $0xb8] sm:$0x8]
      %v4451 = vrot.slane %v4419, 7
      %v4452 = vrot.slane %v4451, 4
      %v4453 = vrot.slane %v4420, 7
      %v4454 = vrot.slane %v4453, 4
      %v4455 = vrot.slane %v4421, 7
      %v4456 = vrot.slane %v4455, 4
      %v4457 = vrot.slane %v4422, 7
      %v4458 = vrot.slane %v4457, 4
      %v4459 = vrot.slane %v4423, 7
      %v4460 = vrot.slane %v4459, 4
      %v4461 = vrot.slane %v4424, 7
      %v4462 = vrot.slane %v4461, 4
      %v4463 = vrot.slane %v4425, 7
      %v4464 = vrot.slane %v4463, 4
      %v4465 = vrot.slane %v4426, 7
      %v4466 = vrot.slane %v4465, 4
      %v4467 = vrot.slane %v4427, 7
      %v4468 = vrot.slane %v4467, 4
      %v4469 = vrot.slane %v4428, 7
      %v4470 = vrot.slane %v4469, 4
      %v4471 = vrot.slane %v4429, 7
      %v4472 = vrot.slane %v4471, 4
      %v4473 = vrot.slane %v4430, 7
      %v4474 = vrot.slane %v4473, 4
      %v4475 = vrot.slane %v4431, 7
      %v4476 = vrot.slane %v4475, 4
      %v4477 = vrot.slane %v4432, 7
      %v4478 = vrot.slane %v4477, 4
      %v4479 = vrot.slane %v4433, 7
      %v4480 = vrot.slane %v4479, 4
      %v4481 = vrot.slane %v4434, 7
      %v4482 = vrot.slane %v4481, 4
      %v4499 = vld [vmem:[%s4178 + $0x8] sm:$0x1]
      %v4500 = vsel %vm950, %v4452, %v4499
      %4501 = vst [vmem:[%s4178 + $0x8] sm:$0x1] %v4500
      %v4502 = vld [vmem:[%s4178 + $0x14] sm:$0x1]
      %v4503 = vsel %vm950, %v4454, %v4502
      %4504 = vst [vmem:[%s4178 + $0x14] sm:$0x1] %v4503
      %v4505 = vld [vmem:[%s4178 + $0x20] sm:$0x1]
      %v4506 = vsel %vm950, %v4456, %v4505
      %4507 = vst [vmem:[%s4178 + $0x20] sm:$0x1] %v4506
      %v4508 = vld [vmem:[%s4178 + $0x2c] sm:$0x1]
      %v4509 = vsel %vm950, %v4458, %v4508
      %4510 = vst [vmem:[%s4178 + $0x2c] sm:$0x1] %v4509
      %v4511 = vld [vmem:[%s4178 + $0x38] sm:$0x1]
      %v4512 = vsel %vm950, %v4460, %v4511
      %4513 = vst [vmem:[%s4178 + $0x38] sm:$0x1] %v4512
      %v4514 = vld [vmem:[%s4178 + $0x44] sm:$0x1]
      %v4515 = vsel %vm950, %v4462, %v4514
      %4516 = vst [vmem:[%s4178 + $0x44] sm:$0x1] %v4515
      %v4517 = vld [vmem:[%s4178 + $0x50] sm:$0x1]
      %v4518 = vsel %vm950, %v4464, %v4517
      %4519 = vst [vmem:[%s4178 + $0x50] sm:$0x1] %v4518
      %v4520 = vld [vmem:[%s4178 + $0x5c] sm:$0x1]
      %v4521 = vsel %vm950, %v4466, %v4520
      %4522 = vst [vmem:[%s4178 + $0x5c] sm:$0x1] %v4521
      %v4523 = vld [vmem:[%s4178 + $0x68] sm:$0x1]
      %v4524 = vsel %vm950, %v4468, %v4523
      %4525 = vst [vmem:[%s4178 + $0x68] sm:$0x1] %v4524
      %v4526 = vld [vmem:[%s4178 + $0x74] sm:$0x1]
      %v4527 = vsel %vm950, %v4470, %v4526
      %4528 = vst [vmem:[%s4178 + $0x74] sm:$0x1] %v4527
      %v4529 = vld [vmem:[%s4178 + $0x80] sm:$0x1]
      %v4530 = vsel %vm950, %v4472, %v4529
      %4531 = vst [vmem:[%s4178 + $0x80] sm:$0x1] %v4530
      %v4532 = vld [vmem:[%s4178 + $0x8c] sm:$0x1]
      %v4533 = vsel %vm950, %v4474, %v4532
      %4534 = vst [vmem:[%s4178 + $0x8c] sm:$0x1] %v4533
      %v4535 = vld [vmem:[%s4178 + $0x98] sm:$0x1]
      %v4536 = vsel %vm950, %v4476, %v4535
      %4537 = vst [vmem:[%s4178 + $0x98] sm:$0x1] %v4536
      %v4538 = vld [vmem:[%s4178 + $0xa4] sm:$0x1]
      %v4539 = vsel %vm950, %v4478, %v4538
      %4540 = vst [vmem:[%s4178 + $0xa4] sm:$0x1] %v4539
      %v4541 = vld [vmem:[%s4178 + $0xb0] sm:$0x1]
      %v4542 = vsel %vm950, %v4480, %v4541
      %4543 = vst [vmem:[%s4178 + $0xb0] sm:$0x1] %v4542
      %v4544 = vld [vmem:[%s4178 + $0xbc] sm:$0x1]
      %v4545 = vsel %vm950, %v4482, %v4544
      %4546 = vst [vmem:[%s4178 + $0xbc] sm:$0x1] %v4545
      %s4547 = scalar_lea.vmem [#allocation3], 24
      %v4548 = vld [vmem:[%s4547] sm:$0xf]
      %v4549 = vld [vmem:[%s4547 + $0x4] sm:$0xf]
      %v4550 = vld [vmem:[%s4547 + $0x8] sm:$0x1]
      %4551 = vst.msk [vmem:[#allocation3] sm:$0xf] %vm630, %v4548
      %4552 = vst.msk [vmem:[#allocation3 + $0x4] sm:$0xf] %vm630, %v4549
      %4553 = vst.msk [vmem:[#allocation3 + $0x8] sm:$0x1] %vm1005, %v4550
      %s4554 = scalar_lea.vmem [#allocation3], 180
      %v4555 = vld [vmem:[%s4554] sm:$0xf]
      %v4556 = vld [vmem:[%s4554 + $0x4] sm:$0xf]
      %v4557 = vld [vmem:[%s4554 + $0x8] sm:$0x1]
      %s4558 = scalar_lea.vmem [#allocation3], 204
      %4559 = vst.msk [vmem:[%s4558] sm:$0xf] %vm630, %v4555
      %4560 = vst.msk [vmem:[%s4558 + $0x4] sm:$0xf] %vm630, %v4556
      %4561 = vst.msk [vmem:[%s4558 + $0x8] sm:$0x1] %vm1005, %v4557
      %v4562 = vld [vmem:[#allocation3] sm:$0xf]
      %v4563 = vld [vmem:[#allocation3 + $0x4] sm:$0xf]
      %v4564 = vld [vmem:[#allocation3 + $0x8] sm:$0x1]
      %v4565 = vld [vmem:[#allocation3 + $0xc] sm:$0xf]
      %v4566 = vld [vmem:[#allocation3 + $0x10] sm:$0xf]
      %v4567 = vld [vmem:[#allocation3 + $0x14] sm:$0x1]
      %v4568 = vld [vmem:[#allocation3 + $0x18] sm:$0xf]
      %v4569 = vld [vmem:[#allocation3 + $0x1c] sm:$0xf]
      %v4570 = vld [vmem:[#allocation3 + $0x20] sm:$0x1]
      %v4571 = vld [vmem:[#allocation3 + $0x24] sm:$0xf]
      %v4572 = vld [vmem:[#allocation3 + $0x28] sm:$0xf]
      %v4573 = vld [vmem:[#allocation3 + $0x2c] sm:$0x1]
      %v4574 = vld [vmem:[#allocation3 + $0x30] sm:$0xf]
      %v4575 = vld [vmem:[#allocation3 + $0x34] sm:$0xf]
      %v4576 = vld [vmem:[#allocation3 + $0x38] sm:$0x1]
      %v4577 = vld [vmem:[#allocation3 + $0x3c] sm:$0xf]
      %v4578 = vld [vmem:[#allocation3 + $0x40] sm:$0xf]
      %v4579 = vld [vmem:[#allocation3 + $0x44] sm:$0x1]
      %v4580 = vld [vmem:[#allocation3 + $0x48] sm:$0xf]
      %v4581 = vld [vmem:[#allocation3 + $0x4c] sm:$0xf]
      %v4582 = vld [vmem:[#allocation3 + $0x50] sm:$0x1]
      %v4583 = vld [vmem:[#allocation3 + $0x54] sm:$0xf]
      %v4584 = vld [vmem:[#allocation3 + $0x58] sm:$0xf]
      %v4585 = vld [vmem:[#allocation3 + $0x5c] sm:$0x1]
      %v4586 = vld [vmem:[#allocation3 + $0x60] sm:$0xf]
      %v4587 = vld [vmem:[#allocation3 + $0x64] sm:$0xf]
      %v4588 = vld [vmem:[#allocation3 + $0x68] sm:$0x1]
      %v4589 = vld [vmem:[#allocation3 + $0x6c] sm:$0xf]
      %v4590 = vld [vmem:[#allocation3 + $0x70] sm:$0xf]
      %v4591 = vld [vmem:[#allocation3 + $0x74] sm:$0x1]
      %v4592 = vld [vmem:[#allocation3 + $0x78] sm:$0xf]
      %v4593 = vld [vmem:[#allocation3 + $0x7c] sm:$0xf]
      %v4594 = vld [vmem:[#allocation3 + $0x80] sm:$0x1]
      %v4595 = vld [vmem:[#allocation3 + $0x84] sm:$0xf]
      %v4596 = vld [vmem:[#allocation3 + $0x88] sm:$0xf]
      %v4597 = vld [vmem:[#allocation3 + $0x8c] sm:$0x1]
      %v4598 = vld [vmem:[#allocation3 + $0x90] sm:$0xf]
      %v4599 = vld [vmem:[#allocation3 + $0x94] sm:$0xf]
      %v4600 = vld [vmem:[#allocation3 + $0x98] sm:$0x1]
      %v4601 = vld [vmem:[#allocation3 + $0x9c] sm:$0xf]
      %v4602 = vld [vmem:[#allocation3 + $0xa0] sm:$0xf]
      %v4603 = vld [vmem:[#allocation3 + $0xa4] sm:$0x1]
      %v4604 = vld [vmem:[#allocation3 + $0xa8] sm:$0xf]
      %v4605 = vld [vmem:[#allocation3 + $0xac] sm:$0xf]
      %v4606 = vld [vmem:[#allocation3 + $0xb0] sm:$0x1]
      %v4607 = vld [vmem:[#allocation3 + $0xb4] sm:$0xf]
      %v4608 = vld [vmem:[#allocation3 + $0xb8] sm:$0xf]
      %v4609 = vld [vmem:[#allocation3 + $0xbc] sm:$0x1]
      %v4610 = vld [vmem:[#allocation3 + $0xc0] sm:$0xf]
      %v4611 = vld [vmem:[#allocation3 + $0xc4] sm:$0xf]
      %v4612 = vld [vmem:[#allocation3 + $0xc8] sm:$0x1]
      %v4613 = vld [vmem:[#allocation3 + $0xcc] sm:$0xf]
      %v4614 = vld [vmem:[#allocation3 + $0xd0] sm:$0xf]
      %v4615 = vld [vmem:[#allocation3 + $0xd4] sm:$0x1]
      %v4616 = vld [vmem:[%s2] sm:$0x3]
      %s4617 = scalar_lea.vmem %s2, 2
      %v4618 = vld [vmem:[%s4617] sm:$0x3]
      %v4620 = vshrl.u32 %v4562, 16
      %v4622 = vrot.slane %v4620, 4
      %v4623 = vshll.u32 %v4562, 16
      %v4625 = vrot.slane %v4623, 5
      %v4626 = vor.u32 %v4622, %v4625
      %v4627 = vrot.slane %v4626, 4
      %v4629 = vshll.u32 %v4563, 16
      %v4631 = vrot.slane %v4629, 5
      %v4632 = vsel %vm1074, %v4627, %v4631
      %v4633 = vshrl.u32 %v4563, 16
      %v4635 = vrot.slane %v4633, 4
      %v4636 = vor.u32 %v4635, %v4631
      %v4637 = vrot.slane %v4636, 4
      %v4639 = vshll.u32 %v4564, 16
      %v4641 = vrot.slane %v4639, 5
      %v4642 = vsel %vm1074, %v4637, %v4641
      %v4644 = vshrl.u32 %v4565, 16
      %v4646 = vrot.slane %v4644, 4
      %v4647 = vshll.u32 %v4565, 16
      %v4649 = vrot.slane %v4647, 5
      %v4650 = vor.u32 %v4646, %v4649
      %v4651 = vrot.slane %v4650, 4
      %v4653 = vshll.u32 %v4566, 16
      %v4655 = vrot.slane %v4653, 5
      %v4656 = vsel %vm1074, %v4651, %v4655
      %v4657 = vshrl.u32 %v4566, 16
      %v4659 = vrot.slane %v4657, 4
      %v4660 = vor.u32 %v4659, %v4655
      %v4661 = vrot.slane %v4660, 4
      %v4663 = vshll.u32 %v4567, 16
      %v4665 = vrot.slane %v4663, 5
      %v4666 = vsel %vm1074, %v4661, %v4665
      %v4668 = vshrl.u32 %v4568, 16
      %v4670 = vrot.slane %v4668, 4
      %v4671 = vshll.u32 %v4568, 16
      %v4673 = vrot.slane %v4671, 5
      %v4674 = vor.u32 %v4670, %v4673
      %v4675 = vrot.slane %v4674, 4
      %v4677 = vshll.u32 %v4569, 16
      %v4679 = vrot.slane %v4677, 5
      %v4680 = vsel %vm1074, %v4675, %v4679
      %v4681 = vshrl.u32 %v4569, 16
      %v4683 = vrot.slane %v4681, 4
      %v4684 = vor.u32 %v4683, %v4679
      %v4685 = vrot.slane %v4684, 4
      %v4687 = vshll.u32 %v4570, 16
      %v4689 = vrot.slane %v4687, 5
      %v4690 = vsel %vm1074, %v4685, %v4689
      %v4692 = vshrl.u32 %v4571, 16
      %v4694 = vrot.slane %v4692, 4
      %v4695 = vshll.u32 %v4571, 16
      %v4697 = vrot.slane %v4695, 5
      %v4698 = vor.u32 %v4694, %v4697
      %v4699 = vrot.slane %v4698, 4
      %v4701 = vshll.u32 %v4572, 16
      %v4703 = vrot.slane %v4701, 5
      %v4704 = vsel %vm1074, %v4699, %v4703
      %v4705 = vshrl.u32 %v4572, 16
      %v4707 = vrot.slane %v4705, 4
      %v4708 = vor.u32 %v4707, %v4703
      %v4709 = vrot.slane %v4708, 4
      %v4711 = vshll.u32 %v4573, 16
      %v4713 = vrot.slane %v4711, 5
      %v4714 = vsel %vm1074, %v4709, %v4713
      %v4716 = vshrl.u32 %v4574, 16
      %v4718 = vrot.slane %v4716, 4
      %v4719 = vshll.u32 %v4574, 16
      %v4721 = vrot.slane %v4719, 5
      %v4722 = vor.u32 %v4718, %v4721
      %v4723 = vrot.slane %v4722, 4
      %v4725 = vshll.u32 %v4575, 16
      %v4727 = vrot.slane %v4725, 5
      %v4728 = vsel %vm1074, %v4723, %v4727
      %v4729 = vshrl.u32 %v4575, 16
      %v4731 = vrot.slane %v4729, 4
      %v4732 = vor.u32 %v4731, %v4727
      %v4733 = vrot.slane %v4732, 4
      %v4735 = vshll.u32 %v4576, 16
      %v4737 = vrot.slane %v4735, 5
      %v4738 = vsel %vm1074, %v4733, %v4737
      %v4740 = vshrl.u32 %v4577, 16
      %v4742 = vrot.slane %v4740, 4
      %v4743 = vshll.u32 %v4577, 16
      %v4745 = vrot.slane %v4743, 5
      %v4746 = vor.u32 %v4742, %v4745
      %v4747 = vrot.slane %v4746, 4
      %v4749 = vshll.u32 %v4578, 16
      %v4751 = vrot.slane %v4749, 5
      %v4752 = vsel %vm1074, %v4747, %v4751
      %v4753 = vshrl.u32 %v4578, 16
      %v4755 = vrot.slane %v4753, 4
      %v4756 = vor.u32 %v4755, %v4751
      %v4757 = vrot.slane %v4756, 4
      %v4759 = vshll.u32 %v4579, 16
      %v4761 = vrot.slane %v4759, 5
      %v4762 = vsel %vm1074, %v4757, %v4761
      %v4764 = vshrl.u32 %v4580, 16
      %v4766 = vrot.slane %v4764, 4
      %v4767 = vshll.u32 %v4580, 16
      %v4769 = vrot.slane %v4767, 5
      %v4770 = vor.u32 %v4766, %v4769
      %v4771 = vrot.slane %v4770, 4
      %v4773 = vshll.u32 %v4581, 16
      %v4775 = vrot.slane %v4773, 5
      %v4776 = vsel %vm1074, %v4771, %v4775
      %v4777 = vshrl.u32 %v4581, 16
      %v4779 = vrot.slane %v4777, 4
      %v4780 = vor.u32 %v4779, %v4775
      %v4781 = vrot.slane %v4780, 4
      %v4783 = vshll.u32 %v4582, 16
      %v4785 = vrot.slane %v4783, 5
      %v4786 = vsel %vm1074, %v4781, %v4785
      %v4788 = vshrl.u32 %v4583, 16
      %v4790 = vrot.slane %v4788, 4
      %v4791 = vshll.u32 %v4583, 16
      %v4793 = vrot.slane %v4791, 5
      %v4794 = vor.u32 %v4790, %v4793
      %v4795 = vrot.slane %v4794, 4
      %v4797 = vshll.u32 %v4584, 16
      %v4799 = vrot.slane %v4797, 5
      %v4800 = vsel %vm1074, %v4795, %v4799
      %v4801 = vshrl.u32 %v4584, 16
      %v4803 = vrot.slane %v4801, 4
      %v4804 = vor.u32 %v4803, %v4799
      %v4805 = vrot.slane %v4804, 4
      %v4807 = vshll.u32 %v4585, 16
      %v4809 = vrot.slane %v4807, 5
      %v4810 = vsel %vm1074, %v4805, %v4809
      %v4812 = vshrl.u32 %v4586, 16
      %v4814 = vrot.slane %v4812, 4
      %v4815 = vshll.u32 %v4586, 16
      %v4817 = vrot.slane %v4815, 5
      %v4818 = vor.u32 %v4814, %v4817
      %v4819 = vrot.slane %v4818, 4
      %v4821 = vshll.u32 %v4587, 16
      %v4823 = vrot.slane %v4821, 5
      %v4824 = vsel %vm1074, %v4819, %v4823
      %v4825 = vshrl.u32 %v4587, 16
      %v4827 = vrot.slane %v4825, 4
      %v4828 = vor.u32 %v4827, %v4823
      %v4829 = vrot.slane %v4828, 4
      %v4831 = vshll.u32 %v4588, 16
      %v4833 = vrot.slane %v4831, 5
      %v4834 = vsel %vm1074, %v4829, %v4833
      %v4836 = vshrl.u32 %v4589, 16
      %v4838 = vrot.slane %v4836, 4
      %v4839 = vshll.u32 %v4589, 16
      %v4841 = vrot.slane %v4839, 5
      %v4842 = vor.u32 %v4838, %v4841
      %v4843 = vrot.slane %v4842, 4
      %v4845 = vshll.u32 %v4590, 16
      %v4847 = vrot.slane %v4845, 5
      %v4848 = vsel %vm1074, %v4843, %v4847
      %v4849 = vshrl.u32 %v4590, 16
      %v4851 = vrot.slane %v4849, 4
      %v4852 = vor.u32 %v4851, %v4847
      %v4853 = vrot.slane %v4852, 4
      %v4855 = vshll.u32 %v4591, 16
      %v4857 = vrot.slane %v4855, 5
      %v4858 = vsel %vm1074, %v4853, %v4857
      %v4860 = vshrl.u32 %v4592, 16
      %v4862 = vrot.slane %v4860, 4
      %v4863 = vshll.u32 %v4592, 16
      %v4865 = vrot.slane %v4863, 5
      %v4866 = vor.u32 %v4862, %v4865
      %v4867 = vrot.slane %v4866, 4
      %v4869 = vshll.u32 %v4593, 16
      %v4871 = vrot.slane %v4869, 5
      %v4872 = vsel %vm1074, %v4867, %v4871
      %v4873 = vshrl.u32 %v4593, 16
      %v4875 = vrot.slane %v4873, 4
      %v4876 = vor.u32 %v4875, %v4871
      %v4877 = vrot.slane %v4876, 4
      %v4879 = vshll.u32 %v4594, 16
      %v4881 = vrot.slane %v4879, 5
      %v4882 = vsel %vm1074, %v4877, %v4881
      %v4884 = vshrl.u32 %v4595, 16
      %v4886 = vrot.slane %v4884, 4
      %v4887 = vshll.u32 %v4595, 16
      %v4889 = vrot.slane %v4887, 5
      %v4890 = vor.u32 %v4886, %v4889
      %v4891 = vrot.slane %v4890, 4
      %v4893 = vshll.u32 %v4596, 16
      %v4895 = vrot.slane %v4893, 5
      %v4896 = vsel %vm1074, %v4891, %v4895
      %v4897 = vshrl.u32 %v4596, 16
      %v4899 = vrot.slane %v4897, 4
      %v4900 = vor.u32 %v4899, %v4895
      %v4901 = vrot.slane %v4900, 4
      %v4903 = vshll.u32 %v4597, 16
      %v4905 = vrot.slane %v4903, 5
      %v4906 = vsel %vm1074, %v4901, %v4905
      %v4908 = vshrl.u32 %v4598, 16
      %v4910 = vrot.slane %v4908, 4
      %v4911 = vshll.u32 %v4598, 16
      %v4913 = vrot.slane %v4911, 5
      %v4914 = vor.u32 %v4910, %v4913
      %v4915 = vrot.slane %v4914, 4
      %v4917 = vshll.u32 %v4599, 16
      %v4919 = vrot.slane %v4917, 5
      %v4920 = vsel %vm1074, %v4915, %v4919
      %v4921 = vshrl.u32 %v4599, 16
      %v4923 = vrot.slane %v4921, 4
      %v4924 = vor.u32 %v4923, %v4919
      %v4925 = vrot.slane %v4924, 4
      %v4927 = vshll.u32 %v4600, 16
      %v4929 = vrot.slane %v4927, 5
      %v4930 = vsel %vm1074, %v4925, %v4929
      %v4932 = vshrl.u32 %v4601, 16
      %v4934 = vrot.slane %v4932, 4
      %v4935 = vshll.u32 %v4601, 16
      %v4937 = vrot.slane %v4935, 5
      %v4938 = vor.u32 %v4934, %v4937
      %v4939 = vrot.slane %v4938, 4
      %v4941 = vshll.u32 %v4602, 16
      %v4943 = vrot.slane %v4941, 5
      %v4944 = vsel %vm1074, %v4939, %v4943
      %v4945 = vshrl.u32 %v4602, 16
      %v4947 = vrot.slane %v4945, 4
      %v4948 = vor.u32 %v4947, %v4943
      %v4949 = vrot.slane %v4948, 4
      %v4951 = vshll.u32 %v4603, 16
      %v4953 = vrot.slane %v4951, 5
      %v4954 = vsel %vm1074, %v4949, %v4953
      %v4956 = vshrl.u32 %v4604, 16
      %v4958 = vrot.slane %v4956, 4
      %v4959 = vshll.u32 %v4604, 16
      %v4961 = vrot.slane %v4959, 5
      %v4962 = vor.u32 %v4958, %v4961
      %v4963 = vrot.slane %v4962, 4
      %v4965 = vshll.u32 %v4605, 16
      %v4967 = vrot.slane %v4965, 5
      %v4968 = vsel %vm1074, %v4963, %v4967
      %v4969 = vshrl.u32 %v4605, 16
      %v4971 = vrot.slane %v4969, 4
      %v4972 = vor.u32 %v4971, %v4967
      %v4973 = vrot.slane %v4972, 4
      %v4975 = vshll.u32 %v4606, 16
      %v4977 = vrot.slane %v4975, 5
      %v4978 = vsel %vm1074, %v4973, %v4977
      %v4980 = vshrl.u32 %v4607, 16
      %v4982 = vrot.slane %v4980, 4
      %v4983 = vshll.u32 %v4607, 16
      %v4985 = vrot.slane %v4983, 5
      %v4986 = vor.u32 %v4982, %v4985
      %v4987 = vrot.slane %v4986, 4
      %v4989 = vshll.u32 %v4608, 16
      %v4991 = vrot.slane %v4989, 5
      %v4992 = vsel %vm1074, %v4987, %v4991
      %v4993 = vshrl.u32 %v4608, 16
      %v4995 = vrot.slane %v4993, 4
      %v4996 = vor.u32 %v4995, %v4991
      %v4997 = vrot.slane %v4996, 4
      %v4999 = vshll.u32 %v4609, 16
      %v5001 = vrot.slane %v4999, 5
      %v5002 = vsel %vm1074, %v4997, %v5001
      %v5003 = vunpack.c.l.b16 %v4632
      %v5004 = vunpack.c.l.b16 %v4642
      %v5005 = vunpack.c.l.b16 %v4656
      %v5006 = vunpack.c.l.b16 %v4666
      %v5007 = vunpack.c.l.b16 %v4680
      %v5008 = vunpack.c.l.b16 %v4690
      %v5009 = vunpack.c.l.b16 %v4704
      %v5010 = vunpack.c.l.b16 %v4714
      %v5011 = vunpack.c.l.b16 %v4728
      %v5012 = vunpack.c.l.b16 %v4738
      %v5013 = vunpack.c.l.b16 %v4752
      %v5014 = vunpack.c.l.b16 %v4762
      %v5015 = vunpack.c.l.b16 %v4776
      %v5016 = vunpack.c.l.b16 %v4786
      %v5017 = vunpack.c.l.b16 %v4800
      %v5018 = vunpack.c.l.b16 %v4810
      %v5019 = vunpack.c.l.b16 %v4824
      %v5020 = vunpack.c.l.b16 %v4834
      %v5021 = vunpack.c.l.b16 %v4848
      %v5022 = vunpack.c.l.b16 %v4858
      %v5023 = vunpack.c.l.b16 %v4872
      %v5024 = vunpack.c.l.b16 %v4882
      %v5025 = vunpack.c.l.b16 %v4896
      %v5026 = vunpack.c.l.b16 %v4906
      %v5027 = vunpack.c.l.b16 %v4920
      %v5028 = vunpack.c.l.b16 %v4930
      %v5029 = vunpack.c.l.b16 %v4944
      %v5030 = vunpack.c.l.b16 %v4954
      %v5031 = vunpack.c.l.b16 %v4968
      %v5032 = vunpack.c.l.b16 %v4978
      %v5033 = vunpack.c.l.b16 %v4992
      %v5034 = vunpack.c.l.b16 %v5002
      %v5035 = vpack.c.b16 %v5004, %v5003
      %v5036 = vpack.c.b16 %v5006, %v5005
      %v5037 = vpack.c.b16 %v5008, %v5007
      %v5038 = vpack.c.b16 %v5010, %v5009
      %v5039 = vpack.c.b16 %v5012, %v5011
      %v5040 = vpack.c.b16 %v5014, %v5013
      %v5041 = vpack.c.b16 %v5016, %v5015
      %v5042 = vpack.c.b16 %v5018, %v5017
      %v5043 = vpack.c.b16 %v5020, %v5019
      %v5044 = vpack.c.b16 %v5022, %v5021
      %v5045 = vpack.c.b16 %v5024, %v5023
      %v5046 = vpack.c.b16 %v5026, %v5025
      %v5047 = vpack.c.b16 %v5028, %v5027
      %v5048 = vpack.c.b16 %v5030, %v5029
      %v5049 = vpack.c.b16 %v5032, %v5031
      %v5050 = vpack.c.b16 %v5034, %v5033
      %v5052 = vsel %vm1507, %v5035, 0
      %v5055 = vsel %vm1507, %v5036, 0
      %v5058 = vsel %vm1507, %v5037, 0
      %v5061 = vsel %vm1507, %v5038, 0
      %v5064 = vsel %vm1507, %v5039, 0
      %v5067 = vsel %vm1507, %v5040, 0
      %v5070 = vsel %vm1507, %v5041, 0
      %v5073 = vsel %vm1507, %v5042, 0
      %v5076 = vsel %vm1507, %v5043, 0
      %v5079 = vsel %vm1507, %v5044, 0
      %v5082 = vsel %vm1507, %v5045, 0
      %v5085 = vsel %vm1507, %v5046, 0
      %v5088 = vsel %vm1507, %v5047, 0
      %v5091 = vsel %vm1507, %v5048, 0
      %v5094 = vsel %vm1507, %v5049, 0
      %v5097 = vsel %vm1507, %v5050, 0
      %v5100 = vsel %vm1556, %v4618, 0
      %5102 = vmatprep.subr.bf16.mxu0 0
      %5103 = vmatpush1.bf16.msra.mxu0 0
      %5104 = vmatprep.subr.bf16.mxu0 0
      %5105 = vmatpush1.bf16.msra.mxu0 0
      %5106 = vmatprep.subr.bf16.mxu0 0
      %5107 = vmatpush1.bf16.msra.mxu0 0
      %5108 = vmatprep.subr.bf16.mxu0 0
      %5109 = vmatpush1.bf16.msra.mxu0 0
      %5110 = vmatprep.subr.bf16.mxu0 0
      %5111 = vmatpush1.bf16.msra.mxu0 0
      %5112 = vmatprep.subr.bf16.mxu0 0
      %5113 = vmatpush1.bf16.msra.mxu0 0
      %5114 = vmatprep.subr.bf16.mxu0 0
      %5115 = vmatpush1.bf16.msra.mxu0 0
      %5116 = vmatprep.subr.bf16.mxu0 0
      %5117 = vmatpush1.bf16.msra.mxu0 %v5100
      %5118 = vmatprep.subr.bf16.mxu0 0
      %5119 = vmatpush2.bf16.msra.mxu0 0
      %5120 = vmatprep.subr.bf16.mxu0 0
      %5121 = vmatpush2.bf16.msra.mxu0 0
      %5122 = vmatprep.subr.bf16.mxu0 0
      %5123 = vmatpush2.bf16.msra.mxu0 0
      %5124 = vmatprep.subr.bf16.mxu0 0
      %5125 = vmatpush2.bf16.msra.mxu0 0
      %5126 = vmatprep.subr.bf16.mxu0 0
      %5127 = vmatpush2.bf16.msra.mxu0 0
      %5128 = vmatprep.subr.bf16.mxu0 0
      %5129 = vmatpush2.bf16.msra.mxu0 0
      %5130 = vmatprep.subr.bf16.mxu0 0
      %5131 = vmatpush2.bf16.msra.mxu0 0
      %5132 = vmatprep.subr.bf16.mxu0 0
      %5133 = vmatpush2.bf16.msra.mxu0 0
      %5134 = vmatprep.mubr.bf16.mxu0 0
      %5135 = vmatmul.mubr.bf16.gmra.mxu0 %v5052
      %v5136 = vpop.f32.mrf.mxu0
      %v5137 = vadd.f32 0.0, %v5136
      %v5138 = vpop.f32.mrf.mxu0
      %v5139 = vpop.f32.mrf.mxu0
      %v5140 = vadd.f32 0.0, %v5139
      %v5141 = vpop.f32.mrf.mxu0
      %5142 = vmatprep.mubr.bf16.mxu0 0
      %5143 = vmatmul.mubr.bf16.gmra.mxu0 %v5055
      %v5144 = vpop.f32.mrf.mxu0
      %v5145 = vadd.f32 0.0, %v5144
      %v5146 = vpop.f32.mrf.mxu0
      %v5147 = vpop.f32.mrf.mxu0
      %v5148 = vadd.f32 0.0, %v5147
      %v5149 = vpop.f32.mrf.mxu0
      %5150 = vmatprep.mubr.bf16.mxu0 0
      %5151 = vmatmul.mubr.bf16.gmra.mxu0 %v5058
      %v5152 = vpop.f32.mrf.mxu0
      %v5153 = vadd.f32 0.0, %v5152
      %v5154 = vpop.f32.mrf.mxu0
      %v5155 = vpop.f32.mrf.mxu0
      %v5156 = vadd.f32 0.0, %v5155
      %v5157 = vpop.f32.mrf.mxu0
      %5158 = vmatprep.mubr.bf16.mxu0 0
      %5159 = vmatmul.mubr.bf16.gmra.mxu0 %v5061
      %v5160 = vpop.f32.mrf.mxu0
      %v5161 = vadd.f32 0.0, %v5160
      %v5162 = vpop.f32.mrf.mxu0
      %v5163 = vpop.f32.mrf.mxu0
      %v5164 = vadd.f32 0.0, %v5163
      %v5165 = vpop.f32.mrf.mxu0
      %5166 = vmatprep.mubr.bf16.mxu0 0
      %5167 = vmatmul.mubr.bf16.gmra.mxu0 %v5064
      %v5168 = vpop.f32.mrf.mxu0
      %v5169 = vadd.f32 0.0, %v5168
      %v5170 = vpop.f32.mrf.mxu0
      %v5171 = vpop.f32.mrf.mxu0
      %v5172 = vadd.f32 0.0, %v5171
      %v5173 = vpop.f32.mrf.mxu0
      %5174 = vmatprep.mubr.bf16.mxu0 0
      %5175 = vmatmul.mubr.bf16.gmra.mxu0 %v5067
      %v5176 = vpop.f32.mrf.mxu0
      %v5177 = vadd.f32 0.0, %v5176
      %v5178 = vpop.f32.mrf.mxu0
      %v5179 = vpop.f32.mrf.mxu0
      %v5180 = vadd.f32 0.0, %v5179
      %v5181 = vpop.f32.mrf.mxu0
      %5182 = vmatprep.mubr.bf16.mxu0 0
      %5183 = vmatmul.mubr.bf16.gmra.mxu0 %v5070
      %v5184 = vpop.f32.mrf.mxu0
      %v5185 = vadd.f32 0.0, %v5184
      %v5186 = vpop.f32.mrf.mxu0
      %v5187 = vpop.f32.mrf.mxu0
      %v5188 = vadd.f32 0.0, %v5187
      %v5189 = vpop.f32.mrf.mxu0
      %5190 = vmatprep.mubr.bf16.mxu0 0
      %5191 = vmatmul.mubr.bf16.gmra.mxu0 %v5073
      %v5192 = vpop.f32.mrf.mxu0
      %v5193 = vadd.f32 0.0, %v5192
      %v5194 = vpop.f32.mrf.mxu0
      %v5195 = vpop.f32.mrf.mxu0
      %v5196 = vadd.f32 0.0, %v5195
      %v5197 = vpop.f32.mrf.mxu0
      %5198 = vmatprep.mubr.bf16.mxu0 0
      %5199 = vmatmul.mubr.bf16.gmra.mxu0 %v5076
      %v5200 = vpop.f32.mrf.mxu0
      %v5201 = vadd.f32 0.0, %v5200
      %v5202 = vpop.f32.mrf.mxu0
      %v5203 = vpop.f32.mrf.mxu0
      %v5204 = vadd.f32 0.0, %v5203
      %v5205 = vpop.f32.mrf.mxu0
      %5206 = vmatprep.mubr.bf16.mxu0 0
      %5207 = vmatmul.mubr.bf16.gmra.mxu0 %v5079
      %v5208 = vpop.f32.mrf.mxu0
      %v5209 = vadd.f32 0.0, %v5208
      %v5210 = vpop.f32.mrf.mxu0
      %v5211 = vpop.f32.mrf.mxu0
      %v5212 = vadd.f32 0.0, %v5211
      %v5213 = vpop.f32.mrf.mxu0
      %5214 = vmatprep.mubr.bf16.mxu0 0
      %5215 = vmatmul.mubr.bf16.gmra.mxu0 %v5082
      %v5216 = vpop.f32.mrf.mxu0
      %v5217 = vadd.f32 0.0, %v5216
      %v5218 = vpop.f32.mrf.mxu0
      %v5219 = vpop.f32.mrf.mxu0
      %v5220 = vadd.f32 0.0, %v5219
      %v5221 = vpop.f32.mrf.mxu0
      %5222 = vmatprep.mubr.bf16.mxu0 0
      %5223 = vmatmul.mubr.bf16.gmra.mxu0 %v5085
      %v5224 = vpop.f32.mrf.mxu0
      %v5225 = vadd.f32 0.0, %v5224
      %v5226 = vpop.f32.mrf.mxu0
      %v5227 = vpop.f32.mrf.mxu0
      %v5228 = vadd.f32 0.0, %v5227
      %v5229 = vpop.f32.mrf.mxu0
      %5230 = vmatprep.mubr.bf16.mxu0 0
      %5231 = vmatmul.mubr.bf16.gmra.mxu0 %v5088
      %v5232 = vpop.f32.mrf.mxu0
      %v5233 = vadd.f32 0.0, %v5232
      %v5234 = vpop.f32.mrf.mxu0
      %v5235 = vpop.f32.mrf.mxu0
      %v5236 = vadd.f32 0.0, %v5235
      %v5237 = vpop.f32.mrf.mxu0
      %5238 = vmatprep.mubr.bf16.mxu0 0
      %5239 = vmatmul.mubr.bf16.gmra.mxu0 %v5091
      %v5240 = vpop.f32.mrf.mxu0
      %v5241 = vadd.f32 0.0, %v5240
      %v5242 = vpop.f32.mrf.mxu0
      %v5243 = vpop.f32.mrf.mxu0
      %v5244 = vadd.f32 0.0, %v5243
      %v5245 = vpop.f32.mrf.mxu0
      %5246 = vmatprep.mubr.bf16.mxu0 0
      %5247 = vmatmul.mubr.bf16.gmra.mxu0 %v5094
      %v5248 = vpop.f32.mrf.mxu0
      %v5249 = vadd.f32 0.0, %v5248
      %v5250 = vpop.f32.mrf.mxu0
      %v5251 = vpop.f32.mrf.mxu0
      %v5252 = vadd.f32 0.0, %v5251
      %v5253 = vpop.f32.mrf.mxu0
      %5254 = vmatprep.mubr.bf16.mxu0 0
      %5255 = vmatmul.mubr.bf16.gmra.mxu0 %v5097
      %v5256 = vpop.f32.mrf.mxu0
      %v5257 = vadd.f32 0.0, %v5256
      %v5258 = vpop.f32.mrf.mxu0
      %v5259 = vpop.f32.mrf.mxu0
      %v5260 = vadd.f32 0.0, %v5259
      %v5261 = vpop.f32.mrf.mxu0
      %5262 = vdwg.mxu0
      %v5295 = vunpack.c.l.b16 %v4562
      %v5296 = vunpack.c.l.b16 %v4563
      %v5297 = vunpack.c.l.b16 %v4565
      %v5298 = vunpack.c.l.b16 %v4566
      %v5299 = vunpack.c.l.b16 %v4568
      %v5300 = vunpack.c.l.b16 %v4569
      %v5301 = vunpack.c.l.b16 %v4571
      %v5302 = vunpack.c.l.b16 %v4572
      %v5303 = vunpack.c.l.b16 %v4574
      %v5304 = vunpack.c.l.b16 %v4575
      %v5305 = vunpack.c.l.b16 %v4577
      %v5306 = vunpack.c.l.b16 %v4578
      %v5307 = vunpack.c.l.b16 %v4580
      %v5308 = vunpack.c.l.b16 %v4581
      %v5309 = vunpack.c.l.b16 %v4583
      %v5310 = vunpack.c.l.b16 %v4584
      %v5311 = vunpack.c.l.b16 %v4586
      %v5312 = vunpack.c.l.b16 %v4587
      %v5313 = vunpack.c.l.b16 %v4589
      %v5314 = vunpack.c.l.b16 %v4590
      %v5315 = vunpack.c.l.b16 %v4592
      %v5316 = vunpack.c.l.b16 %v4593
      %v5317 = vunpack.c.l.b16 %v4595
      %v5318 = vunpack.c.l.b16 %v4596
      %v5319 = vunpack.c.l.b16 %v4598
      %v5320 = vunpack.c.l.b16 %v4599
      %v5321 = vunpack.c.l.b16 %v4601
      %v5322 = vunpack.c.l.b16 %v4602
      %v5323 = vunpack.c.l.b16 %v4604
      %v5324 = vunpack.c.l.b16 %v4605
      %v5325 = vunpack.c.l.b16 %v4607
      %v5326 = vunpack.c.l.b16 %v4608
      %v5327 = vpack.c.b16 %v5296, %v5295
      %v5328 = vpack.c.b16 %v5298, %v5297
      %v5329 = vpack.c.b16 %v5300, %v5299
      %v5330 = vpack.c.b16 %v5302, %v5301
      %v5331 = vpack.c.b16 %v5304, %v5303
      %v5332 = vpack.c.b16 %v5306, %v5305
      %v5333 = vpack.c.b16 %v5308, %v5307
      %v5334 = vpack.c.b16 %v5310, %v5309
      %v5335 = vpack.c.b16 %v5312, %v5311
      %v5336 = vpack.c.b16 %v5314, %v5313
      %v5337 = vpack.c.b16 %v5316, %v5315
      %v5338 = vpack.c.b16 %v5318, %v5317
      %v5339 = vpack.c.b16 %v5320, %v5319
      %v5340 = vpack.c.b16 %v5322, %v5321
      %v5341 = vpack.c.b16 %v5324, %v5323
      %v5342 = vpack.c.b16 %v5326, %v5325
      %v5344 = vsel %vm1507, %v5327, 0
      %v5347 = vsel %vm1507, %v5328, 0
      %v5350 = vsel %vm1507, %v5329, 0
      %v5353 = vsel %vm1507, %v5330, 0
      %v5356 = vsel %vm1507, %v5331, 0
      %v5359 = vsel %vm1507, %v5332, 0
      %v5362 = vsel %vm1507, %v5333, 0
      %v5365 = vsel %vm1507, %v5334, 0
      %v5368 = vsel %vm1507, %v5335, 0
      %v5371 = vsel %vm1507, %v5336, 0
      %v5374 = vsel %vm1507, %v5337, 0
      %v5377 = vsel %vm1507, %v5338, 0
      %v5380 = vsel %vm1507, %v5339, 0
      %v5383 = vsel %vm1507, %v5340, 0
      %v5386 = vsel %vm1507, %v5341, 0
      %v5389 = vsel %vm1507, %v5342, 0
      %v5392 = vsel %vm1556, %v4616, 0
      %5394 = vmatprep.subr.bf16.mxu0 0
      %5395 = vmatpush1.bf16.msra.mxu0 0
      %5396 = vmatprep.subr.bf16.mxu0 0
      %5397 = vmatpush1.bf16.msra.mxu0 0
      %5398 = vmatprep.subr.bf16.mxu0 0
      %5399 = vmatpush1.bf16.msra.mxu0 0
      %5400 = vmatprep.subr.bf16.mxu0 0
      %5401 = vmatpush1.bf16.msra.mxu0 0
      %5402 = vmatprep.subr.bf16.mxu0 0
      %5403 = vmatpush1.bf16.msra.mxu0 0
      %5404 = vmatprep.subr.bf16.mxu0 0
      %5405 = vmatpush1.bf16.msra.mxu0 0
      %5406 = vmatprep.subr.bf16.mxu0 0
      %5407 = vmatpush1.bf16.msra.mxu0 0
      %5408 = vmatprep.subr.bf16.mxu0 0
      %5409 = vmatpush1.bf16.msra.mxu0 %v5392
      %5410 = vmatprep.subr.bf16.mxu0 0
      %5411 = vmatpush2.bf16.msra.mxu0 0
      %5412 = vmatprep.subr.bf16.mxu0 0
      %5413 = vmatpush2.bf16.msra.mxu0 0
      %5414 = vmatprep.subr.bf16.mxu0 0
      %5415 = vmatpush2.bf16.msra.mxu0 0
      %5416 = vmatprep.subr.bf16.mxu0 0
      %5417 = vmatpush2.bf16.msra.mxu0 0
      %5418 = vmatprep.subr.bf16.mxu0 0
      %5419 = vmatpush2.bf16.msra.mxu0 0
      %5420 = vmatprep.subr.bf16.mxu0 0
      %5421 = vmatpush2.bf16.msra.mxu0 0
      %5422 = vmatprep.subr.bf16.mxu0 0
      %5423 = vmatpush2.bf16.msra.mxu0 0
      %5424 = vmatprep.subr.bf16.mxu0 0
      %5425 = vmatpush2.bf16.msra.mxu0 0
      %5426 = vmatprep.mubr.bf16.mxu0 0
      %5427 = vmatmul.mubr.bf16.gmra.mxu0 %v5344
      %v5428 = vpop.f32.mrf.mxu0
      %v5429 = vadd.f32 %v5137, %v5428
      %v5430 = vpop.f32.mrf.mxu0
      %v5431 = vpop.f32.mrf.mxu0
      %v5432 = vadd.f32 %v5140, %v5431
      %v5433 = vpop.f32.mrf.mxu0
      %5434 = vmatprep.mubr.bf16.mxu0 0
      %5435 = vmatmul.mubr.bf16.gmra.mxu0 %v5347
      %v5436 = vpop.f32.mrf.mxu0
      %v5437 = vadd.f32 %v5145, %v5436
      %v5438 = vpop.f32.mrf.mxu0
      %v5439 = vpop.f32.mrf.mxu0
      %v5440 = vadd.f32 %v5148, %v5439
      %v5441 = vpop.f32.mrf.mxu0
      %5442 = vmatprep.mubr.bf16.mxu0 0
      %5443 = vmatmul.mubr.bf16.gmra.mxu0 %v5350
      %v5444 = vpop.f32.mrf.mxu0
      %v5445 = vadd.f32 %v5153, %v5444
      %v5446 = vpop.f32.mrf.mxu0
      %v5447 = vpop.f32.mrf.mxu0
      %v5448 = vadd.f32 %v5156, %v5447
      %v5449 = vpop.f32.mrf.mxu0
      %5450 = vmatprep.mubr.bf16.mxu0 0
      %5451 = vmatmul.mubr.bf16.gmra.mxu0 %v5353
      %v5452 = vpop.f32.mrf.mxu0
      %v5453 = vadd.f32 %v5161, %v5452
      %v5454 = vpop.f32.mrf.mxu0
      %v5455 = vpop.f32.mrf.mxu0
      %v5456 = vadd.f32 %v5164, %v5455
      %v5457 = vpop.f32.mrf.mxu0
      %5458 = vmatprep.mubr.bf16.mxu0 0
      %5459 = vmatmul.mubr.bf16.gmra.mxu0 %v5356
      %v5460 = vpop.f32.mrf.mxu0
      %v5461 = vadd.f32 %v5169, %v5460
      %v5462 = vpop.f32.mrf.mxu0
      %v5463 = vpop.f32.mrf.mxu0
      %v5464 = vadd.f32 %v5172, %v5463
      %v5465 = vpop.f32.mrf.mxu0
      %5466 = vmatprep.mubr.bf16.mxu0 0
      %5467 = vmatmul.mubr.bf16.gmra.mxu0 %v5359
      %v5468 = vpop.f32.mrf.mxu0
      %v5469 = vadd.f32 %v5177, %v5468
      %v5470 = vpop.f32.mrf.mxu0
      %v5471 = vpop.f32.mrf.mxu0
      %v5472 = vadd.f32 %v5180, %v5471
      %v5473 = vpop.f32.mrf.mxu0
      %5474 = vmatprep.mubr.bf16.mxu0 0
      %5475 = vmatmul.mubr.bf16.gmra.mxu0 %v5362
      %v5476 = vpop.f32.mrf.mxu0
      %v5477 = vadd.f32 %v5185, %v5476
      %v5478 = vpop.f32.mrf.mxu0
      %v5479 = vpop.f32.mrf.mxu0
      %v5480 = vadd.f32 %v5188, %v5479
      %v5481 = vpop.f32.mrf.mxu0
      %5482 = vmatprep.mubr.bf16.mxu0 0
      %5483 = vmatmul.mubr.bf16.gmra.mxu0 %v5365
      %v5484 = vpop.f32.mrf.mxu0
      %v5485 = vadd.f32 %v5193, %v5484
      %v5486 = vpop.f32.mrf.mxu0
      %v5487 = vpop.f32.mrf.mxu0
      %v5488 = vadd.f32 %v5196, %v5487
      %v5489 = vpop.f32.mrf.mxu0
      %5490 = vmatprep.mubr.bf16.mxu0 0
      %5491 = vmatmul.mubr.bf16.gmra.mxu0 %v5368
      %v5492 = vpop.f32.mrf.mxu0
      %v5493 = vadd.f32 %v5201, %v5492
      %v5494 = vpop.f32.mrf.mxu0
      %v5495 = vpop.f32.mrf.mxu0
      %v5496 = vadd.f32 %v5204, %v5495
      %v5497 = vpop.f32.mrf.mxu0
      %5498 = vmatprep.mubr.bf16.mxu0 0
      %5499 = vmatmul.mubr.bf16.gmra.mxu0 %v5371
      %v5500 = vpop.f32.mrf.mxu0
      %v5501 = vadd.f32 %v5209, %v5500
      %v5502 = vpop.f32.mrf.mxu0
      %v5503 = vpop.f32.mrf.mxu0
      %v5504 = vadd.f32 %v5212, %v5503
      %v5505 = vpop.f32.mrf.mxu0
      %5506 = vmatprep.mubr.bf16.mxu0 0
      %5507 = vmatmul.mubr.bf16.gmra.mxu0 %v5374
      %v5508 = vpop.f32.mrf.mxu0
      %v5509 = vadd.f32 %v5217, %v5508
      %v5510 = vpop.f32.mrf.mxu0
      %v5511 = vpop.f32.mrf.mxu0
      %v5512 = vadd.f32 %v5220, %v5511
      %v5513 = vpop.f32.mrf.mxu0
      %5514 = vmatprep.mubr.bf16.mxu0 0
      %5515 = vmatmul.mubr.bf16.gmra.mxu0 %v5377
      %v5516 = vpop.f32.mrf.mxu0
      %v5517 = vadd.f32 %v5225, %v5516
      %v5518 = vpop.f32.mrf.mxu0
      %v5519 = vpop.f32.mrf.mxu0
      %v5520 = vadd.f32 %v5228, %v5519
      %v5521 = vpop.f32.mrf.mxu0
      %5522 = vmatprep.mubr.bf16.mxu0 0
      %5523 = vmatmul.mubr.bf16.gmra.mxu0 %v5380
      %v5524 = vpop.f32.mrf.mxu0
      %v5525 = vadd.f32 %v5233, %v5524
      %v5526 = vpop.f32.mrf.mxu0
      %v5527 = vpop.f32.mrf.mxu0
      %v5528 = vadd.f32 %v5236, %v5527
      %v5529 = vpop.f32.mrf.mxu0
      %5530 = vmatprep.mubr.bf16.mxu0 0
      %5531 = vmatmul.mubr.bf16.gmra.mxu0 %v5383
      %v5532 = vpop.f32.mrf.mxu0
      %v5533 = vadd.f32 %v5241, %v5532
      %v5534 = vpop.f32.mrf.mxu0
      %v5535 = vpop.f32.mrf.mxu0
      %v5536 = vadd.f32 %v5244, %v5535
      %v5537 = vpop.f32.mrf.mxu0
      %5538 = vmatprep.mubr.bf16.mxu0 0
      %5539 = vmatmul.mubr.bf16.gmra.mxu0 %v5386
      %v5540 = vpop.f32.mrf.mxu0
      %v5541 = vadd.f32 %v5249, %v5540
      %v5542 = vpop.f32.mrf.mxu0
      %v5543 = vpop.f32.mrf.mxu0
      %v5544 = vadd.f32 %v5252, %v5543
      %v5545 = vpop.f32.mrf.mxu0
      %5546 = vmatprep.mubr.bf16.mxu0 0
      %5547 = vmatmul.mubr.bf16.gmra.mxu0 %v5389
      %v5548 = vpop.f32.mrf.mxu0
      %v5549 = vadd.f32 %v5257, %v5548
      %v5550 = vpop.f32.mrf.mxu0
      %v5551 = vpop.f32.mrf.mxu0
      %v5552 = vadd.f32 %v5260, %v5551
      %v5553 = vpop.f32.mrf.mxu0
      %5554 = vdwg.mxu0
      %s5555 = scalar_lea.vmem %s2, 4
      %v5556 = vld [vmem:[%s5555] sm:$0x3]
      %v5573 = vrot.slane %v4562, 5
      %v5574 = vrot.slane %v5573, 4
      %v5575 = vrot.slane %v4563, 5
      %v5576 = vsel %vm2033, %v5574, %v5575
      %v5577 = vrot.slane %v5575, 4
      %v5578 = vrot.slane %v4564, 5
      %v5579 = vsel %vm2033, %v5577, %v5578
      %v5580 = vrot.slane %v4565, 5
      %v5581 = vrot.slane %v5580, 4
      %v5582 = vrot.slane %v4566, 5
      %v5583 = vsel %vm2033, %v5581, %v5582
      %v5584 = vrot.slane %v5582, 4
      %v5585 = vrot.slane %v4567, 5
      %v5586 = vsel %vm2033, %v5584, %v5585
      %v5587 = vrot.slane %v4568, 5
      %v5588 = vrot.slane %v5587, 4
      %v5589 = vrot.slane %v4569, 5
      %v5590 = vsel %vm2033, %v5588, %v5589
      %v5591 = vrot.slane %v5589, 4
      %v5592 = vrot.slane %v4570, 5
      %v5593 = vsel %vm2033, %v5591, %v5592
      %v5594 = vrot.slane %v4571, 5
      %v5595 = vrot.slane %v5594, 4
      %v5596 = vrot.slane %v4572, 5
      %v5597 = vsel %vm2033, %v5595, %v5596
      %v5598 = vrot.slane %v5596, 4
      %v5599 = vrot.slane %v4573, 5
      %v5600 = vsel %vm2033, %v5598, %v5599
      %v5601 = vrot.slane %v4574, 5
      %v5602 = vrot.slane %v5601, 4
      %v5603 = vrot.slane %v4575, 5
      %v5604 = vsel %vm2033, %v5602, %v5603
      %v5605 = vrot.slane %v5603, 4
      %v5606 = vrot.slane %v4576, 5
      %v5607 = vsel %vm2033, %v5605, %v5606
      %v5608 = vrot.slane %v4577, 5
      %v5609 = vrot.slane %v5608, 4
      %v5610 = vrot.slane %v4578, 5
      %v5611 = vsel %vm2033, %v5609, %v5610
      %v5612 = vrot.slane %v5610, 4
      %v5613 = vrot.slane %v4579, 5
      %v5614 = vsel %vm2033, %v5612, %v5613
      %v5615 = vrot.slane %v4580, 5
      %v5616 = vrot.slane %v5615, 4
      %v5617 = vrot.slane %v4581, 5
      %v5618 = vsel %vm2033, %v5616, %v5617
      %v5619 = vrot.slane %v5617, 4
      %v5620 = vrot.slane %v4582, 5
      %v5621 = vsel %vm2033, %v5619, %v5620
      %v5622 = vrot.slane %v4583, 5
      %v5623 = vrot.slane %v5622, 4
      %v5624 = vrot.slane %v4584, 5
      %v5625 = vsel %vm2033, %v5623, %v5624
      %v5626 = vrot.slane %v5624, 4
      %v5627 = vrot.slane %v4585, 5
      %v5628 = vsel %vm2033, %v5626, %v5627
      %v5629 = vrot.slane %v4586, 5
      %v5630 = vrot.slane %v5629, 4
      %v5631 = vrot.slane %v4587, 5
      %v5632 = vsel %vm2033, %v5630, %v5631
      %v5633 = vrot.slane %v5631, 4
      %v5634 = vrot.slane %v4588, 5
      %v5635 = vsel %vm2033, %v5633, %v5634
      %v5636 = vrot.slane %v4589, 5
      %v5637 = vrot.slane %v5636, 4
      %v5638 = vrot.slane %v4590, 5
      %v5639 = vsel %vm2033, %v5637, %v5638
      %v5640 = vrot.slane %v5638, 4
      %v5641 = vrot.slane %v4591, 5
      %v5642 = vsel %vm2033, %v5640, %v5641
      %v5643 = vrot.slane %v4592, 5
      %v5644 = vrot.slane %v5643, 4
      %v5645 = vrot.slane %v4593, 5
      %v5646 = vsel %vm2033, %v5644, %v5645
      %v5647 = vrot.slane %v5645, 4
      %v5648 = vrot.slane %v4594, 5
      %v5649 = vsel %vm2033, %v5647, %v5648
      %v5650 = vrot.slane %v4595, 5
      %v5651 = vrot.slane %v5650, 4
      %v5652 = vrot.slane %v4596, 5
      %v5653 = vsel %vm2033, %v5651, %v5652
      %v5654 = vrot.slane %v5652, 4
      %v5655 = vrot.slane %v4597, 5
      %v5656 = vsel %vm2033, %v5654, %v5655
      %v5657 = vrot.slane %v4598, 5
      %v5658 = vrot.slane %v5657, 4
      %v5659 = vrot.slane %v4599, 5
      %v5660 = vsel %vm2033, %v5658, %v5659
      %v5661 = vrot.slane %v5659, 4
      %v5662 = vrot.slane %v4600, 5
      %v5663 = vsel %vm2033, %v5661, %v5662
      %v5664 = vrot.slane %v4601, 5
      %v5665 = vrot.slane %v5664, 4
      %v5666 = vrot.slane %v4602, 5
      %v5667 = vsel %vm2033, %v5665, %v5666
      %v5668 = vrot.slane %v5666, 4
      %v5669 = vrot.slane %v4603, 5
      %v5670 = vsel %vm2033, %v5668, %v5669
      %v5671 = vrot.slane %v4604, 5
      %v5672 = vrot.slane %v5671, 4
      %v5673 = vrot.slane %v4605, 5
      %v5674 = vsel %vm2033, %v5672, %v5673
      %v5675 = vrot.slane %v5673, 4
      %v5676 = vrot.slane %v4606, 5
      %v5677 = vsel %vm2033, %v5675, %v5676
      %v5678 = vrot.slane %v4607, 5
      %v5679 = vrot.slane %v5678, 4
      %v5680 = vrot.slane %v4608, 5
      %v5681 = vsel %vm2033, %v5679, %v5680
      %v5682 = vrot.slane %v5680, 4
      %v5683 = vrot.slane %v4609, 5
      %v5684 = vsel %vm2033, %v5682, %v5683
      %v5685 = vunpack.c.l.b16 %v5576
      %v5686 = vunpack.c.l.b16 %v5579
      %v5687 = vunpack.c.l.b16 %v5583
      %v5688 = vunpack.c.l.b16 %v5586
      %v5689 = vunpack.c.l.b16 %v5590
      %v5690 = vunpack.c.l.b16 %v5593
      %v5691 = vunpack.c.l.b16 %v5597
      %v5692 = vunpack.c.l.b16 %v5600
      %v5693 = vunpack.c.l.b16 %v5604
      %v5694 = vunpack.c.l.b16 %v5607
      %v5695 = vunpack.c.l.b16 %v5611
      %v5696 = vunpack.c.l.b16 %v5614
      %v5697 = vunpack.c.l.b16 %v5618
      %v5698 = vunpack.c.l.b16 %v5621
      %v5699 = vunpack.c.l.b16 %v5625
      %v5700 = vunpack.c.l.b16 %v5628
      %v5701 = vunpack.c.l.b16 %v5632
      %v5702 = vunpack.c.l.b16 %v5635
      %v5703 = vunpack.c.l.b16 %v5639
      %v5704 = vunpack.c.l.b16 %v5642
      %v5705 = vunpack.c.l.b16 %v5646
      %v5706 = vunpack.c.l.b16 %v5649
      %v5707 = vunpack.c.l.b16 %v5653
      %v5708 = vunpack.c.l.b16 %v5656
      %v5709 = vunpack.c.l.b16 %v5660
      %v5710 = vunpack.c.l.b16 %v5663
      %v5711 = vunpack.c.l.b16 %v5667
      %v5712 = vunpack.c.l.b16 %v5670
      %v5713 = vunpack.c.l.b16 %v5674
      %v5714 = vunpack.c.l.b16 %v5677
      %v5715 = vunpack.c.l.b16 %v5681
      %v5716 = vunpack.c.l.b16 %v5684
      %v5717 = vpack.c.b16 %v5686, %v5685
      %v5718 = vpack.c.b16 %v5688, %v5687
      %v5719 = vpack.c.b16 %v5690, %v5689
      %v5720 = vpack.c.b16 %v5692, %v5691
      %v5721 = vpack.c.b16 %v5694, %v5693
      %v5722 = vpack.c.b16 %v5696, %v5695
      %v5723 = vpack.c.b16 %v5698, %v5697
      %v5724 = vpack.c.b16 %v5700, %v5699
      %v5725 = vpack.c.b16 %v5702, %v5701
      %v5726 = vpack.c.b16 %v5704, %v5703
      %v5727 = vpack.c.b16 %v5706, %v5705
      %v5728 = vpack.c.b16 %v5708, %v5707
      %v5729 = vpack.c.b16 %v5710, %v5709
      %v5730 = vpack.c.b16 %v5712, %v5711
      %v5731 = vpack.c.b16 %v5714, %v5713
      %v5732 = vpack.c.b16 %v5716, %v5715
      %v5734 = vsel %vm1507, %v5717, 0
      %v5737 = vsel %vm1507, %v5718, 0
      %v5740 = vsel %vm1507, %v5719, 0
      %v5743 = vsel %vm1507, %v5720, 0
      %v5746 = vsel %vm1507, %v5721, 0
      %v5749 = vsel %vm1507, %v5722, 0
      %v5752 = vsel %vm1507, %v5723, 0
      %v5755 = vsel %vm1507, %v5724, 0
      %v5758 = vsel %vm1507, %v5725, 0
      %v5761 = vsel %vm1507, %v5726, 0
      %v5764 = vsel %vm1507, %v5727, 0
      %v5767 = vsel %vm1507, %v5728, 0
      %v5770 = vsel %vm1507, %v5729, 0
      %v5773 = vsel %vm1507, %v5730, 0
      %v5776 = vsel %vm1507, %v5731, 0
      %v5779 = vsel %vm1507, %v5732, 0
      %v5782 = vsel %vm1556, %v5556, 0
      %5784 = vmatprep.subr.bf16.mxu0 0
      %5785 = vmatpush1.bf16.msra.mxu0 0
      %5786 = vmatprep.subr.bf16.mxu0 0
      %5787 = vmatpush1.bf16.msra.mxu0 0
      %5788 = vmatprep.subr.bf16.mxu0 0
      %5789 = vmatpush1.bf16.msra.mxu0 0
      %5790 = vmatprep.subr.bf16.mxu0 0
      %5791 = vmatpush1.bf16.msra.mxu0 0
      %5792 = vmatprep.subr.bf16.mxu0 0
      %5793 = vmatpush1.bf16.msra.mxu0 0
      %5794 = vmatprep.subr.bf16.mxu0 0
      %5795 = vmatpush1.bf16.msra.mxu0 0
      %5796 = vmatprep.subr.bf16.mxu0 0
      %5797 = vmatpush1.bf16.msra.mxu0 0
      %5798 = vmatprep.subr.bf16.mxu0 0
      %5799 = vmatpush1.bf16.msra.mxu0 %v5782
      %5800 = vmatprep.subr.bf16.mxu0 0
      %5801 = vmatpush2.bf16.msra.mxu0 0
      %5802 = vmatprep.subr.bf16.mxu0 0
      %5803 = vmatpush2.bf16.msra.mxu0 0
      %5804 = vmatprep.subr.bf16.mxu0 0
      %5805 = vmatpush2.bf16.msra.mxu0 0
      %5806 = vmatprep.subr.bf16.mxu0 0
      %5807 = vmatpush2.bf16.msra.mxu0 0
      %5808 = vmatprep.subr.bf16.mxu0 0
      %5809 = vmatpush2.bf16.msra.mxu0 0
      %5810 = vmatprep.subr.bf16.mxu0 0
      %5811 = vmatpush2.bf16.msra.mxu0 0
      %5812 = vmatprep.subr.bf16.mxu0 0
      %5813 = vmatpush2.bf16.msra.mxu0 0
      %5814 = vmatprep.subr.bf16.mxu0 0
      %5815 = vmatpush2.bf16.msra.mxu0 0
      %5816 = vmatprep.mubr.bf16.mxu0 0
      %5817 = vmatmul.mubr.bf16.gmra.mxu0 %v5734
      %v5818 = vpop.f32.mrf.mxu0
      %v5819 = vadd.f32 0.0, %v5818
      %v5820 = vpop.f32.mrf.mxu0
      %v5821 = vpop.f32.mrf.mxu0
      %v5822 = vadd.f32 0.0, %v5821
      %v5823 = vpop.f32.mrf.mxu0
      %5824 = vmatprep.mubr.bf16.mxu0 0
      %5825 = vmatmul.mubr.bf16.gmra.mxu0 %v5737
      %v5826 = vpop.f32.mrf.mxu0
      %v5827 = vadd.f32 0.0, %v5826
      %v5828 = vpop.f32.mrf.mxu0
      %v5829 = vpop.f32.mrf.mxu0
      %v5830 = vadd.f32 0.0, %v5829
      %v5831 = vpop.f32.mrf.mxu0
      %5832 = vmatprep.mubr.bf16.mxu0 0
      %5833 = vmatmul.mubr.bf16.gmra.mxu0 %v5740
      %v5834 = vpop.f32.mrf.mxu0
      %v5835 = vadd.f32 0.0, %v5834
      %v5836 = vpop.f32.mrf.mxu0
      %v5837 = vpop.f32.mrf.mxu0
      %v5838 = vadd.f32 0.0, %v5837
      %v5839 = vpop.f32.mrf.mxu0
      %5840 = vmatprep.mubr.bf16.mxu0 0
      %5841 = vmatmul.mubr.bf16.gmra.mxu0 %v5743
      %v5842 = vpop.f32.mrf.mxu0
      %v5843 = vadd.f32 0.0, %v5842
      %v5844 = vpop.f32.mrf.mxu0
      %v5845 = vpop.f32.mrf.mxu0
      %v5846 = vadd.f32 0.0, %v5845
      %v5847 = vpop.f32.mrf.mxu0
      %5848 = vmatprep.mubr.bf16.mxu0 0
      %5849 = vmatmul.mubr.bf16.gmra.mxu0 %v5746
      %v5850 = vpop.f32.mrf.mxu0
      %v5851 = vadd.f32 0.0, %v5850
      %v5852 = vpop.f32.mrf.mxu0
      %v5853 = vpop.f32.mrf.mxu0
      %v5854 = vadd.f32 0.0, %v5853
      %v5855 = vpop.f32.mrf.mxu0
      %5856 = vmatprep.mubr.bf16.mxu0 0
      %5857 = vmatmul.mubr.bf16.gmra.mxu0 %v5749
      %v5858 = vpop.f32.mrf.mxu0
      %v5859 = vadd.f32 0.0, %v5858
      %v5860 = vpop.f32.mrf.mxu0
      %v5861 = vpop.f32.mrf.mxu0
      %v5862 = vadd.f32 0.0, %v5861
      %v5863 = vpop.f32.mrf.mxu0
      %5864 = vmatprep.mubr.bf16.mxu0 0
      %5865 = vmatmul.mubr.bf16.gmra.mxu0 %v5752
      %v5866 = vpop.f32.mrf.mxu0
      %v5867 = vadd.f32 0.0, %v5866
      %v5868 = vpop.f32.mrf.mxu0
      %v5869 = vpop.f32.mrf.mxu0
      %v5870 = vadd.f32 0.0, %v5869
      %v5871 = vpop.f32.mrf.mxu0
      %5872 = vmatprep.mubr.bf16.mxu0 0
      %5873 = vmatmul.mubr.bf16.gmra.mxu0 %v5755
      %v5874 = vpop.f32.mrf.mxu0
      %v5875 = vadd.f32 0.0, %v5874
      %v5876 = vpop.f32.mrf.mxu0
      %v5877 = vpop.f32.mrf.mxu0
      %v5878 = vadd.f32 0.0, %v5877
      %v5879 = vpop.f32.mrf.mxu0
      %5880 = vmatprep.mubr.bf16.mxu0 0
      %5881 = vmatmul.mubr.bf16.gmra.mxu0 %v5758
      %v5882 = vpop.f32.mrf.mxu0
      %v5883 = vadd.f32 0.0, %v5882
      %v5884 = vpop.f32.mrf.mxu0
      %v5885 = vpop.f32.mrf.mxu0
      %v5886 = vadd.f32 0.0, %v5885
      %v5887 = vpop.f32.mrf.mxu0
      %5888 = vmatprep.mubr.bf16.mxu0 0
      %5889 = vmatmul.mubr.bf16.gmra.mxu0 %v5761
      %v5890 = vpop.f32.mrf.mxu0
      %v5891 = vadd.f32 0.0, %v5890
      %v5892 = vpop.f32.mrf.mxu0
      %v5893 = vpop.f32.mrf.mxu0
      %v5894 = vadd.f32 0.0, %v5893
      %v5895 = vpop.f32.mrf.mxu0
      %5896 = vmatprep.mubr.bf16.mxu0 0
      %5897 = vmatmul.mubr.bf16.gmra.mxu0 %v5764
      %v5898 = vpop.f32.mrf.mxu0
      %v5899 = vadd.f32 0.0, %v5898
      %v5900 = vpop.f32.mrf.mxu0
      %v5901 = vpop.f32.mrf.mxu0
      %v5902 = vadd.f32 0.0, %v5901
      %v5903 = vpop.f32.mrf.mxu0
      %5904 = vmatprep.mubr.bf16.mxu0 0
      %5905 = vmatmul.mubr.bf16.gmra.mxu0 %v5767
      %v5906 = vpop.f32.mrf.mxu0
      %v5907 = vadd.f32 0.0, %v5906
      %v5908 = vpop.f32.mrf.mxu0
      %v5909 = vpop.f32.mrf.mxu0
      %v5910 = vadd.f32 0.0, %v5909
      %v5911 = vpop.f32.mrf.mxu0
      %5912 = vmatprep.mubr.bf16.mxu0 0
      %5913 = vmatmul.mubr.bf16.gmra.mxu0 %v5770
      %v5914 = vpop.f32.mrf.mxu0
      %v5915 = vadd.f32 0.0, %v5914
      %v5916 = vpop.f32.mrf.mxu0
      %v5917 = vpop.f32.mrf.mxu0
      %v5918 = vadd.f32 0.0, %v5917
      %v5919 = vpop.f32.mrf.mxu0
      %5920 = vmatprep.mubr.bf16.mxu0 0
      %5921 = vmatmul.mubr.bf16.gmra.mxu0 %v5773
      %v5922 = vpop.f32.mrf.mxu0
      %v5923 = vadd.f32 0.0, %v5922
      %v5924 = vpop.f32.mrf.mxu0
      %v5925 = vpop.f32.mrf.mxu0
      %v5926 = vadd.f32 0.0, %v5925
      %v5927 = vpop.f32.mrf.mxu0
      %5928 = vmatprep.mubr.bf16.mxu0 0
      %5929 = vmatmul.mubr.bf16.gmra.mxu0 %v5776
      %v5930 = vpop.f32.mrf.mxu0
      %v5931 = vadd.f32 0.0, %v5930
      %v5932 = vpop.f32.mrf.mxu0
      %v5933 = vpop.f32.mrf.mxu0
      %v5934 = vadd.f32 0.0, %v5933
      %v5935 = vpop.f32.mrf.mxu0
      %5936 = vmatprep.mubr.bf16.mxu0 0
      %5937 = vmatmul.mubr.bf16.gmra.mxu0 %v5779
      %v5938 = vpop.f32.mrf.mxu0
      %v5939 = vadd.f32 0.0, %v5938
      %v5940 = vpop.f32.mrf.mxu0
      %v5941 = vpop.f32.mrf.mxu0
      %v5942 = vadd.f32 0.0, %v5941
      %v5943 = vpop.f32.mrf.mxu0
      %5944 = vdwg.mxu0
      %v5945 = vadd.f32 %v5429, %v5819
      %v5946 = vadd.f32 %v5432, %v5822
      %v5947 = vadd.f32 %v5437, %v5827
      %v5948 = vadd.f32 %v5440, %v5830
      %v5949 = vadd.f32 %v5445, %v5835
      %v5950 = vadd.f32 %v5448, %v5838
      %v5951 = vadd.f32 %v5453, %v5843
      %v5952 = vadd.f32 %v5456, %v5846
      %v5953 = vadd.f32 %v5461, %v5851
      %v5954 = vadd.f32 %v5464, %v5854
      %v5955 = vadd.f32 %v5469, %v5859
      %v5956 = vadd.f32 %v5472, %v5862
      %v5957 = vadd.f32 %v5477, %v5867
      %v5958 = vadd.f32 %v5480, %v5870
      %v5959 = vadd.f32 %v5485, %v5875
      %v5960 = vadd.f32 %v5488, %v5878
      %v5961 = vadd.f32 %v5493, %v5883
      %v5962 = vadd.f32 %v5496, %v5886
      %v5963 = vadd.f32 %v5501, %v5891
      %v5964 = vadd.f32 %v5504, %v5894
      %v5965 = vadd.f32 %v5509, %v5899
      %v5966 = vadd.f32 %v5512, %v5902
      %v5967 = vadd.f32 %v5517, %v5907
      %v5968 = vadd.f32 %v5520, %v5910
      %v5969 = vadd.f32 %v5525, %v5915
      %v5970 = vadd.f32 %v5528, %v5918
      %v5971 = vadd.f32 %v5533, %v5923
      %v5972 = vadd.f32 %v5536, %v5926
      %v5973 = vadd.f32 %v5541, %v5931
      %v5974 = vadd.f32 %v5544, %v5934
      %v5975 = vadd.f32 %v5549, %v5939
      %v5976 = vadd.f32 %v5552, %v5942
      %s5977 = scalar_lea.vmem %s2, 6
      %v5978 = vld [vmem:[%s5977] sm:$0x3]
      %v5981 = vunpack.c.l.b16 %v4610
      %v5982 = vunpack.c.l.b16 %v4611
      %v5983 = vpack.c.b16 %v5982, %v5981
      %v5985 = vsel %vm1507, %v5983, 0
      %v5988 = vsel %vm1556, %v5978, 0
      %5990 = vmatprep.subr.bf16.mxu0 0
      %5991 = vmatpush1.bf16.msra.mxu0 0
      %5992 = vmatprep.subr.bf16.mxu0 0
      %5993 = vmatpush1.bf16.msra.mxu0 0
      %5994 = vmatprep.subr.bf16.mxu0 0
      %5995 = vmatpush1.bf16.msra.mxu0 0
      %5996 = vmatprep.subr.bf16.mxu0 0
      %5997 = vmatpush1.bf16.msra.mxu0 0
      %5998 = vmatprep.subr.bf16.mxu0 0
      %5999 = vmatpush1.bf16.msra.mxu0 0
      %6000 = vmatprep.subr.bf16.mxu0 0
      %6001 = vmatpush1.bf16.msra.mxu0 0
      %6002 = vmatprep.subr.bf16.mxu0 0
      %6003 = vmatpush1.bf16.msra.mxu0 0
      %6004 = vmatprep.subr.bf16.mxu0 0
      %6005 = vmatpush1.bf16.msra.mxu0 %v5988
      %6006 = vmatprep.subr.bf16.mxu0 0
      %6007 = vmatpush2.bf16.msra.mxu0 0
      %6008 = vmatprep.subr.bf16.mxu0 0
      %6009 = vmatpush2.bf16.msra.mxu0 0
      %6010 = vmatprep.subr.bf16.mxu0 0
      %6011 = vmatpush2.bf16.msra.mxu0 0
      %6012 = vmatprep.subr.bf16.mxu0 0
      %6013 = vmatpush2.bf16.msra.mxu0 0
      %6014 = vmatprep.subr.bf16.mxu0 0
      %6015 = vmatpush2.bf16.msra.mxu0 0
      %6016 = vmatprep.subr.bf16.mxu0 0
      %6017 = vmatpush2.bf16.msra.mxu0 0
      %6018 = vmatprep.subr.bf16.mxu0 0
      %6019 = vmatpush2.bf16.msra.mxu0 0
      %6020 = vmatprep.subr.bf16.mxu0 0
      %6021 = vmatpush2.bf16.msra.mxu0 0
      %6022 = vmatprep.mubr.bf16.mxu0 0
      %6023 = vmatmul.mubr.bf16.gmra.mxu0 %v5347
      %v6024 = vpop.f32.mrf.mxu0
      %v6025 = vadd.f32 0.0, %v6024
      %v6026 = vpop.f32.mrf.mxu0
      %v6027 = vpop.f32.mrf.mxu0
      %v6028 = vadd.f32 0.0, %v6027
      %v6029 = vpop.f32.mrf.mxu0
      %6030 = vmatprep.mubr.bf16.mxu0 0
      %6031 = vmatmul.mubr.bf16.gmra.mxu0 %v5350
      %v6032 = vpop.f32.mrf.mxu0
      %v6033 = vadd.f32 0.0, %v6032
      %v6034 = vpop.f32.mrf.mxu0
      %v6035 = vpop.f32.mrf.mxu0
      %v6036 = vadd.f32 0.0, %v6035
      %v6037 = vpop.f32.mrf.mxu0
      %6038 = vmatprep.mubr.bf16.mxu0 0
      %6039 = vmatmul.mubr.bf16.gmra.mxu0 %v5353
      %v6040 = vpop.f32.mrf.mxu0
      %v6041 = vadd.f32 0.0, %v6040
      %v6042 = vpop.f32.mrf.mxu0
      %v6043 = vpop.f32.mrf.mxu0
      %v6044 = vadd.f32 0.0, %v6043
      %v6045 = vpop.f32.mrf.mxu0
      %6046 = vmatprep.mubr.bf16.mxu0 0
      %6047 = vmatmul.mubr.bf16.gmra.mxu0 %v5356
      %v6048 = vpop.f32.mrf.mxu0
      %v6049 = vadd.f32 0.0, %v6048
      %v6050 = vpop.f32.mrf.mxu0
      %v6051 = vpop.f32.mrf.mxu0
      %v6052 = vadd.f32 0.0, %v6051
      %v6053 = vpop.f32.mrf.mxu0
      %6054 = vmatprep.mubr.bf16.mxu0 0
      %6055 = vmatmul.mubr.bf16.gmra.mxu0 %v5359
      %v6056 = vpop.f32.mrf.mxu0
      %v6057 = vadd.f32 0.0, %v6056
      %v6058 = vpop.f32.mrf.mxu0
      %v6059 = vpop.f32.mrf.mxu0
      %v6060 = vadd.f32 0.0, %v6059
      %v6061 = vpop.f32.mrf.mxu0
      %6062 = vmatprep.mubr.bf16.mxu0 0
      %6063 = vmatmul.mubr.bf16.gmra.mxu0 %v5362
      %v6064 = vpop.f32.mrf.mxu0
      %v6065 = vadd.f32 0.0, %v6064
      %v6066 = vpop.f32.mrf.mxu0
      %v6067 = vpop.f32.mrf.mxu0
      %v6068 = vadd.f32 0.0, %v6067
      %v6069 = vpop.f32.mrf.mxu0
      %6070 = vmatprep.mubr.bf16.mxu0 0
      %6071 = vmatmul.mubr.bf16.gmra.mxu0 %v5365
      %v6072 = vpop.f32.mrf.mxu0
      %v6073 = vadd.f32 0.0, %v6072
      %v6074 = vpop.f32.mrf.mxu0
      %v6075 = vpop.f32.mrf.mxu0
      %v6076 = vadd.f32 0.0, %v6075
      %v6077 = vpop.f32.mrf.mxu0
      %6078 = vmatprep.mubr.bf16.mxu0 0
      %6079 = vmatmul.mubr.bf16.gmra.mxu0 %v5368
      %v6080 = vpop.f32.mrf.mxu0
      %v6081 = vadd.f32 0.0, %v6080
      %v6082 = vpop.f32.mrf.mxu0
      %v6083 = vpop.f32.mrf.mxu0
      %v6084 = vadd.f32 0.0, %v6083
      %v6085 = vpop.f32.mrf.mxu0
      %6086 = vmatprep.mubr.bf16.mxu0 0
      %6087 = vmatmul.mubr.bf16.gmra.mxu0 %v5371
      %v6088 = vpop.f32.mrf.mxu0
      %v6089 = vadd.f32 0.0, %v6088
      %v6090 = vpop.f32.mrf.mxu0
      %v6091 = vpop.f32.mrf.mxu0
      %v6092 = vadd.f32 0.0, %v6091
      %v6093 = vpop.f32.mrf.mxu0
      %6094 = vmatprep.mubr.bf16.mxu0 0
      %6095 = vmatmul.mubr.bf16.gmra.mxu0 %v5374
      %v6096 = vpop.f32.mrf.mxu0
      %v6097 = vadd.f32 0.0, %v6096
      %v6098 = vpop.f32.mrf.mxu0
      %v6099 = vpop.f32.mrf.mxu0
      %v6100 = vadd.f32 0.0, %v6099
      %v6101 = vpop.f32.mrf.mxu0
      %6102 = vmatprep.mubr.bf16.mxu0 0
      %6103 = vmatmul.mubr.bf16.gmra.mxu0 %v5377
      %v6104 = vpop.f32.mrf.mxu0
      %v6105 = vadd.f32 0.0, %v6104
      %v6106 = vpop.f32.mrf.mxu0
      %v6107 = vpop.f32.mrf.mxu0
      %v6108 = vadd.f32 0.0, %v6107
      %v6109 = vpop.f32.mrf.mxu0
      %6110 = vmatprep.mubr.bf16.mxu0 0
      %6111 = vmatmul.mubr.bf16.gmra.mxu0 %v5380
      %v6112 = vpop.f32.mrf.mxu0
      %v6113 = vadd.f32 0.0, %v6112
      %v6114 = vpop.f32.mrf.mxu0
      %v6115 = vpop.f32.mrf.mxu0
      %v6116 = vadd.f32 0.0, %v6115
      %v6117 = vpop.f32.mrf.mxu0
      %6118 = vmatprep.mubr.bf16.mxu0 0
      %6119 = vmatmul.mubr.bf16.gmra.mxu0 %v5383
      %v6120 = vpop.f32.mrf.mxu0
      %v6121 = vadd.f32 0.0, %v6120
      %v6122 = vpop.f32.mrf.mxu0
      %v6123 = vpop.f32.mrf.mxu0
      %v6124 = vadd.f32 0.0, %v6123
      %v6125 = vpop.f32.mrf.mxu0
      %6126 = vmatprep.mubr.bf16.mxu0 0
      %6127 = vmatmul.mubr.bf16.gmra.mxu0 %v5386
      %v6128 = vpop.f32.mrf.mxu0
      %v6129 = vadd.f32 0.0, %v6128
      %v6130 = vpop.f32.mrf.mxu0
      %v6131 = vpop.f32.mrf.mxu0
      %v6132 = vadd.f32 0.0, %v6131
      %v6133 = vpop.f32.mrf.mxu0
      %6134 = vmatprep.mubr.bf16.mxu0 0
      %6135 = vmatmul.mubr.bf16.gmra.mxu0 %v5389
      %v6136 = vpop.f32.mrf.mxu0
      %v6137 = vadd.f32 0.0, %v6136
      %v6138 = vpop.f32.mrf.mxu0
      %v6139 = vpop.f32.mrf.mxu0
      %v6140 = vadd.f32 0.0, %v6139
      %v6141 = vpop.f32.mrf.mxu0
      %6142 = vmatprep.mubr.bf16.mxu0 0
      %6143 = vmatmul.mubr.bf16.gmra.mxu0 %v5985
      %v6144 = vpop.f32.mrf.mxu0
      %v6145 = vadd.f32 0.0, %v6144
      %v6146 = vpop.f32.mrf.mxu0
      %v6147 = vpop.f32.mrf.mxu0
      %v6148 = vadd.f32 0.0, %v6147
      %v6149 = vpop.f32.mrf.mxu0
      %6150 = vdwg.mxu0
      %v6151 = vadd.f32 %v5945, %v6025
      %v6152 = vadd.f32 %v5946, %v6028
      %v6153 = vadd.f32 %v5947, %v6033
      %v6154 = vadd.f32 %v5948, %v6036
      %v6155 = vadd.f32 %v5949, %v6041
      %v6156 = vadd.f32 %v5950, %v6044
      %v6157 = vadd.f32 %v5951, %v6049
      %v6158 = vadd.f32 %v5952, %v6052
      %v6159 = vadd.f32 %v5953, %v6057
      %v6160 = vadd.f32 %v5954, %v6060
      %v6161 = vadd.f32 %v5955, %v6065
      %v6162 = vadd.f32 %v5956, %v6068
      %v6163 = vadd.f32 %v5957, %v6073
      %v6164 = vadd.f32 %v5958, %v6076
      %v6165 = vadd.f32 %v5959, %v6081
      %v6166 = vadd.f32 %v5960, %v6084
      %v6167 = vadd.f32 %v5961, %v6089
      %v6168 = vadd.f32 %v5962, %v6092
      %v6169 = vadd.f32 %v5963, %v6097
      %v6170 = vadd.f32 %v5964, %v6100
      %v6171 = vadd.f32 %v5965, %v6105
      %v6172 = vadd.f32 %v5966, %v6108
      %v6173 = vadd.f32 %v5967, %v6113
      %v6174 = vadd.f32 %v5968, %v6116
      %v6175 = vadd.f32 %v5969, %v6121
      %v6176 = vadd.f32 %v5970, %v6124
      %v6177 = vadd.f32 %v5971, %v6129
      %v6178 = vadd.f32 %v5972, %v6132
      %v6179 = vadd.f32 %v5973, %v6137
      %v6180 = vadd.f32 %v5974, %v6140
      %v6181 = vadd.f32 %v5975, %v6145
      %v6182 = vadd.f32 %v5976, %v6148
      %s6183 = scalar_lea.vmem %s2, 8
      %v6184 = vld [vmem:[%s6183] sm:$0x3]
      %v6186 = vshrl.u32 %v4610, 16
      %v6188 = vrot.slane %v6186, 4
      %v6189 = vshll.u32 %v4610, 16
      %v6191 = vrot.slane %v6189, 5
      %v6192 = vor.u32 %v6188, %v6191
      %v6193 = vrot.slane %v6192, 4
      %v6195 = vshll.u32 %v4611, 16
      %v6197 = vrot.slane %v6195, 5
      %v6198 = vsel %vm1074, %v6193, %v6197
      %v6199 = vshrl.u32 %v4611, 16
      %v6201 = vrot.slane %v6199, 4
      %v6202 = vor.u32 %v6201, %v6197
      %v6203 = vrot.slane %v6202, 4
      %v6205 = vshll.u32 %v4612, 16
      %v6207 = vrot.slane %v6205, 5
      %v6208 = vsel %vm1074, %v6203, %v6207
      %v6209 = vunpack.c.l.b16 %v6198
      %v6210 = vunpack.c.l.b16 %v6208
      %v6211 = vpack.c.b16 %v6210, %v6209
      %v6213 = vsel %vm1507, %v6211, 0
      %v6216 = vsel %vm1556, %v6184, 0
      %6218 = vmatprep.subr.bf16.mxu0 0
      %6219 = vmatpush1.bf16.msra.mxu0 0
      %6220 = vmatprep.subr.bf16.mxu0 0
      %6221 = vmatpush1.bf16.msra.mxu0 0
      %6222 = vmatprep.subr.bf16.mxu0 0
      %6223 = vmatpush1.bf16.msra.mxu0 0
      %6224 = vmatprep.subr.bf16.mxu0 0
      %6225 = vmatpush1.bf16.msra.mxu0 0
      %6226 = vmatprep.subr.bf16.mxu0 0
      %6227 = vmatpush1.bf16.msra.mxu0 0
      %6228 = vmatprep.subr.bf16.mxu0 0
      %6229 = vmatpush1.bf16.msra.mxu0 0
      %6230 = vmatprep.subr.bf16.mxu0 0
      %6231 = vmatpush1.bf16.msra.mxu0 0
      %6232 = vmatprep.subr.bf16.mxu0 0
      %6233 = vmatpush1.bf16.msra.mxu0 %v6216
      %6234 = vmatprep.subr.bf16.mxu0 0
      %6235 = vmatpush2.bf16.msra.mxu0 0
      %6236 = vmatprep.subr.bf16.mxu0 0
      %6237 = vmatpush2.bf16.msra.mxu0 0
      %6238 = vmatprep.subr.bf16.mxu0 0
      %6239 = vmatpush2.bf16.msra.mxu0 0
      %6240 = vmatprep.subr.bf16.mxu0 0
      %6241 = vmatpush2.bf16.msra.mxu0 0
      %6242 = vmatprep.subr.bf16.mxu0 0
      %6243 = vmatpush2.bf16.msra.mxu0 0
      %6244 = vmatprep.subr.bf16.mxu0 0
      %6245 = vmatpush2.bf16.msra.mxu0 0
      %6246 = vmatprep.subr.bf16.mxu0 0
      %6247 = vmatpush2.bf16.msra.mxu0 0
      %6248 = vmatprep.subr.bf16.mxu0 0
      %6249 = vmatpush2.bf16.msra.mxu0 0
      %6250 = vmatprep.mubr.bf16.mxu0 0
      %6251 = vmatmul.mubr.bf16.gmra.mxu0 %v5055
      %v6252 = vpop.f32.mrf.mxu0
      %v6253 = vadd.f32 0.0, %v6252
      %v6254 = vpop.f32.mrf.mxu0
      %v6255 = vpop.f32.mrf.mxu0
      %v6256 = vadd.f32 0.0, %v6255
      %v6257 = vpop.f32.mrf.mxu0
      %6258 = vmatprep.mubr.bf16.mxu0 0
      %6259 = vmatmul.mubr.bf16.gmra.mxu0 %v5058
      %v6260 = vpop.f32.mrf.mxu0
      %v6261 = vadd.f32 0.0, %v6260
      %v6262 = vpop.f32.mrf.mxu0
      %v6263 = vpop.f32.mrf.mxu0
      %v6264 = vadd.f32 0.0, %v6263
      %v6265 = vpop.f32.mrf.mxu0
      %6266 = vmatprep.mubr.bf16.mxu0 0
      %6267 = vmatmul.mubr.bf16.gmra.mxu0 %v5061
      %v6268 = vpop.f32.mrf.mxu0
      %v6269 = vadd.f32 0.0, %v6268
      %v6270 = vpop.f32.mrf.mxu0
      %v6271 = vpop.f32.mrf.mxu0
      %v6272 = vadd.f32 0.0, %v6271
      %v6273 = vpop.f32.mrf.mxu0
      %6274 = vmatprep.mubr.bf16.mxu0 0
      %6275 = vmatmul.mubr.bf16.gmra.mxu0 %v5064
      %v6276 = vpop.f32.mrf.mxu0
      %v6277 = vadd.f32 0.0, %v6276
      %v6278 = vpop.f32.mrf.mxu0
      %v6279 = vpop.f32.mrf.mxu0
      %v6280 = vadd.f32 0.0, %v6279
      %v6281 = vpop.f32.mrf.mxu0
      %6282 = vmatprep.mubr.bf16.mxu0 0
      %6283 = vmatmul.mubr.bf16.gmra.mxu0 %v5067
      %v6284 = vpop.f32.mrf.mxu0
      %v6285 = vadd.f32 0.0, %v6284
      %v6286 = vpop.f32.mrf.mxu0
      %v6287 = vpop.f32.mrf.mxu0
      %v6288 = vadd.f32 0.0, %v6287
      %v6289 = vpop.f32.mrf.mxu0
      %6290 = vmatprep.mubr.bf16.mxu0 0
      %6291 = vmatmul.mubr.bf16.gmra.mxu0 %v5070
      %v6292 = vpop.f32.mrf.mxu0
      %v6293 = vadd.f32 0.0, %v6292
      %v6294 = vpop.f32.mrf.mxu0
      %v6295 = vpop.f32.mrf.mxu0
      %v6296 = vadd.f32 0.0, %v6295
      %v6297 = vpop.f32.mrf.mxu0
      %6298 = vmatprep.mubr.bf16.mxu0 0
      %6299 = vmatmul.mubr.bf16.gmra.mxu0 %v5073
      %v6300 = vpop.f32.mrf.mxu0
      %v6301 = vadd.f32 0.0, %v6300
      %v6302 = vpop.f32.mrf.mxu0
      %v6303 = vpop.f32.mrf.mxu0
      %v6304 = vadd.f32 0.0, %v6303
      %v6305 = vpop.f32.mrf.mxu0
      %6306 = vmatprep.mubr.bf16.mxu0 0
      %6307 = vmatmul.mubr.bf16.gmra.mxu0 %v5076
      %v6308 = vpop.f32.mrf.mxu0
      %v6309 = vadd.f32 0.0, %v6308
      %v6310 = vpop.f32.mrf.mxu0
      %v6311 = vpop.f32.mrf.mxu0
      %v6312 = vadd.f32 0.0, %v6311
      %v6313 = vpop.f32.mrf.mxu0
      %6314 = vmatprep.mubr.bf16.mxu0 0
      %6315 = vmatmul.mubr.bf16.gmra.mxu0 %v5079
      %v6316 = vpop.f32.mrf.mxu0
      %v6317 = vadd.f32 0.0, %v6316
      %v6318 = vpop.f32.mrf.mxu0
      %v6319 = vpop.f32.mrf.mxu0
      %v6320 = vadd.f32 0.0, %v6319
      %v6321 = vpop.f32.mrf.mxu0
      %6322 = vmatprep.mubr.bf16.mxu0 0
      %6323 = vmatmul.mubr.bf16.gmra.mxu0 %v5082
      %v6324 = vpop.f32.mrf.mxu0
      %v6325 = vadd.f32 0.0, %v6324
      %v6326 = vpop.f32.mrf.mxu0
      %v6327 = vpop.f32.mrf.mxu0
      %v6328 = vadd.f32 0.0, %v6327
      %v6329 = vpop.f32.mrf.mxu0
      %6330 = vmatprep.mubr.bf16.mxu0 0
      %6331 = vmatmul.mubr.bf16.gmra.mxu0 %v5085
      %v6332 = vpop.f32.mrf.mxu0
      %v6333 = vadd.f32 0.0, %v6332
      %v6334 = vpop.f32.mrf.mxu0
      %v6335 = vpop.f32.mrf.mxu0
      %v6336 = vadd.f32 0.0, %v6335
      %v6337 = vpop.f32.mrf.mxu0
      %6338 = vmatprep.mubr.bf16.mxu0 0
      %6339 = vmatmul.mubr.bf16.gmra.mxu0 %v5088
      %v6340 = vpop.f32.mrf.mxu0
      %v6341 = vadd.f32 0.0, %v6340
      %v6342 = vpop.f32.mrf.mxu0
      %v6343 = vpop.f32.mrf.mxu0
      %v6344 = vadd.f32 0.0, %v6343
      %v6345 = vpop.f32.mrf.mxu0
      %6346 = vmatprep.mubr.bf16.mxu0 0
      %6347 = vmatmul.mubr.bf16.gmra.mxu0 %v5091
      %v6348 = vpop.f32.mrf.mxu0
      %v6349 = vadd.f32 0.0, %v6348
      %v6350 = vpop.f32.mrf.mxu0
      %v6351 = vpop.f32.mrf.mxu0
      %v6352 = vadd.f32 0.0, %v6351
      %v6353 = vpop.f32.mrf.mxu0
      %6354 = vmatprep.mubr.bf16.mxu0 0
      %6355 = vmatmul.mubr.bf16.gmra.mxu0 %v5094
      %v6356 = vpop.f32.mrf.mxu0
      %v6357 = vadd.f32 0.0, %v6356
      %v6358 = vpop.f32.mrf.mxu0
      %v6359 = vpop.f32.mrf.mxu0
      %v6360 = vadd.f32 0.0, %v6359
      %v6361 = vpop.f32.mrf.mxu0
      %6362 = vmatprep.mubr.bf16.mxu0 0
      %6363 = vmatmul.mubr.bf16.gmra.mxu0 %v5097
      %v6364 = vpop.f32.mrf.mxu0
      %v6365 = vadd.f32 0.0, %v6364
      %v6366 = vpop.f32.mrf.mxu0
      %v6367 = vpop.f32.mrf.mxu0
      %v6368 = vadd.f32 0.0, %v6367
      %v6369 = vpop.f32.mrf.mxu0
      %6370 = vmatprep.mubr.bf16.mxu0 0
      %6371 = vmatmul.mubr.bf16.gmra.mxu0 %v6213
      %v6372 = vpop.f32.mrf.mxu0
      %v6373 = vadd.f32 0.0, %v6372
      %v6374 = vpop.f32.mrf.mxu0
      %v6375 = vpop.f32.mrf.mxu0
      %v6376 = vadd.f32 0.0, %v6375
      %v6377 = vpop.f32.mrf.mxu0
      %6378 = vdwg.mxu0
      %v6379 = vadd.f32 %v6151, %v6253
      %v6380 = vadd.f32 %v6152, %v6256
      %v6381 = vadd.f32 %v6153, %v6261
      %v6382 = vadd.f32 %v6154, %v6264
      %v6383 = vadd.f32 %v6155, %v6269
      %v6384 = vadd.f32 %v6156, %v6272
      %v6385 = vadd.f32 %v6157, %v6277
      %v6386 = vadd.f32 %v6158, %v6280
      %v6387 = vadd.f32 %v6159, %v6285
      %v6388 = vadd.f32 %v6160, %v6288
      %v6389 = vadd.f32 %v6161, %v6293
      %v6390 = vadd.f32 %v6162, %v6296
      %v6391 = vadd.f32 %v6163, %v6301
      %v6392 = vadd.f32 %v6164, %v6304
      %v6393 = vadd.f32 %v6165, %v6309
      %v6394 = vadd.f32 %v6166, %v6312
      %v6395 = vadd.f32 %v6167, %v6317
      %v6396 = vadd.f32 %v6168, %v6320
      %v6397 = vadd.f32 %v6169, %v6325
      %v6398 = vadd.f32 %v6170, %v6328
      %v6399 = vadd.f32 %v6171, %v6333
      %v6400 = vadd.f32 %v6172, %v6336
      %v6401 = vadd.f32 %v6173, %v6341
      %v6402 = vadd.f32 %v6174, %v6344
      %v6403 = vadd.f32 %v6175, %v6349
      %v6404 = vadd.f32 %v6176, %v6352
      %v6405 = vadd.f32 %v6177, %v6357
      %v6406 = vadd.f32 %v6178, %v6360
      %v6407 = vadd.f32 %v6179, %v6365
      %v6408 = vadd.f32 %v6180, %v6368
      %v6409 = vadd.f32 %v6181, %v6373
      %v6410 = vadd.f32 %v6182, %v6376
      %s6411 = scalar_lea.vmem %s2, 10
      %v6412 = vld [vmem:[%s6411] sm:$0x3]
      %v6414 = vrot.slane %v4610, 5
      %v6415 = vrot.slane %v6414, 4
      %v6416 = vrot.slane %v4611, 5
      %v6417 = vsel %vm2033, %v6415, %v6416
      %v6418 = vrot.slane %v6416, 4
      %v6419 = vrot.slane %v4612, 5
      %v6420 = vsel %vm2033, %v6418, %v6419
      %v6421 = vunpack.c.l.b16 %v6417
      %v6422 = vunpack.c.l.b16 %v6420
      %v6423 = vpack.c.b16 %v6422, %v6421
      %v6425 = vsel %vm1507, %v6423, 0
      %v6428 = vsel %vm1556, %v6412, 0
      %6430 = vmatprep.subr.bf16.mxu0 0
      %6431 = vmatpush1.bf16.msra.mxu0 0
      %6432 = vmatprep.subr.bf16.mxu0 0
      %6433 = vmatpush1.bf16.msra.mxu0 0
      %6434 = vmatprep.subr.bf16.mxu0 0
      %6435 = vmatpush1.bf16.msra.mxu0 0
      %6436 = vmatprep.subr.bf16.mxu0 0
      %6437 = vmatpush1.bf16.msra.mxu0 0
      %6438 = vmatprep.subr.bf16.mxu0 0
      %6439 = vmatpush1.bf16.msra.mxu0 0
      %6440 = vmatprep.subr.bf16.mxu0 0
      %6441 = vmatpush1.bf16.msra.mxu0 0
      %6442 = vmatprep.subr.bf16.mxu0 0
      %6443 = vmatpush1.bf16.msra.mxu0 0
      %6444 = vmatprep.subr.bf16.mxu0 0
      %6445 = vmatpush1.bf16.msra.mxu0 %v6428
      %6446 = vmatprep.subr.bf16.mxu0 0
      %6447 = vmatpush2.bf16.msra.mxu0 0
      %6448 = vmatprep.subr.bf16.mxu0 0
      %6449 = vmatpush2.bf16.msra.mxu0 0
      %6450 = vmatprep.subr.bf16.mxu0 0
      %6451 = vmatpush2.bf16.msra.mxu0 0
      %6452 = vmatprep.subr.bf16.mxu0 0
      %6453 = vmatpush2.bf16.msra.mxu0 0
      %6454 = vmatprep.subr.bf16.mxu0 0
      %6455 = vmatpush2.bf16.msra.mxu0 0
      %6456 = vmatprep.subr.bf16.mxu0 0
      %6457 = vmatpush2.bf16.msra.mxu0 0
      %6458 = vmatprep.subr.bf16.mxu0 0
      %6459 = vmatpush2.bf16.msra.mxu0 0
      %6460 = vmatprep.subr.bf16.mxu0 0
      %6461 = vmatpush2.bf16.msra.mxu0 0
      %6462 = vmatprep.mubr.bf16.mxu0 0
      %6463 = vmatmul.mubr.bf16.gmra.mxu0 %v5737
      %v6464 = vpop.f32.mrf.mxu0
      %v6465 = vadd.f32 0.0, %v6464
      %v6466 = vpop.f32.mrf.mxu0
      %v6467 = vpop.f32.mrf.mxu0
      %v6468 = vadd.f32 0.0, %v6467
      %v6469 = vpop.f32.mrf.mxu0
      %6470 = vmatprep.mubr.bf16.mxu0 0
      %6471 = vmatmul.mubr.bf16.gmra.mxu0 %v5740
      %v6472 = vpop.f32.mrf.mxu0
      %v6473 = vadd.f32 0.0, %v6472
      %v6474 = vpop.f32.mrf.mxu0
      %v6475 = vpop.f32.mrf.mxu0
      %v6476 = vadd.f32 0.0, %v6475
      %v6477 = vpop.f32.mrf.mxu0
      %6478 = vmatprep.mubr.bf16.mxu0 0
      %6479 = vmatmul.mubr.bf16.gmra.mxu0 %v5743
      %v6480 = vpop.f32.mrf.mxu0
      %v6481 = vadd.f32 0.0, %v6480
      %v6482 = vpop.f32.mrf.mxu0
      %v6483 = vpop.f32.mrf.mxu0
      %v6484 = vadd.f32 0.0, %v6483
      %v6485 = vpop.f32.mrf.mxu0
      %6486 = vmatprep.mubr.bf16.mxu0 0
      %6487 = vmatmul.mubr.bf16.gmra.mxu0 %v5746
      %v6488 = vpop.f32.mrf.mxu0
      %v6489 = vadd.f32 0.0, %v6488
      %v6490 = vpop.f32.mrf.mxu0
      %v6491 = vpop.f32.mrf.mxu0
      %v6492 = vadd.f32 0.0, %v6491
      %v6493 = vpop.f32.mrf.mxu0
      %6494 = vmatprep.mubr.bf16.mxu0 0
      %6495 = vmatmul.mubr.bf16.gmra.mxu0 %v5749
      %v6496 = vpop.f32.mrf.mxu0
      %v6497 = vadd.f32 0.0, %v6496
      %v6498 = vpop.f32.mrf.mxu0
      %v6499 = vpop.f32.mrf.mxu0
      %v6500 = vadd.f32 0.0, %v6499
      %v6501 = vpop.f32.mrf.mxu0
      %6502 = vmatprep.mubr.bf16.mxu0 0
      %6503 = vmatmul.mubr.bf16.gmra.mxu0 %v5752
      %v6504 = vpop.f32.mrf.mxu0
      %v6505 = vadd.f32 0.0, %v6504
      %v6506 = vpop.f32.mrf.mxu0
      %v6507 = vpop.f32.mrf.mxu0
      %v6508 = vadd.f32 0.0, %v6507
      %v6509 = vpop.f32.mrf.mxu0
      %6510 = vmatprep.mubr.bf16.mxu0 0
      %6511 = vmatmul.mubr.bf16.gmra.mxu0 %v5755
      %v6512 = vpop.f32.mrf.mxu0
      %v6513 = vadd.f32 0.0, %v6512
      %v6514 = vpop.f32.mrf.mxu0
      %v6515 = vpop.f32.mrf.mxu0
      %v6516 = vadd.f32 0.0, %v6515
      %v6517 = vpop.f32.mrf.mxu0
      %6518 = vmatprep.mubr.bf16.mxu0 0
      %6519 = vmatmul.mubr.bf16.gmra.mxu0 %v5758
      %v6520 = vpop.f32.mrf.mxu0
      %v6521 = vadd.f32 0.0, %v6520
      %v6522 = vpop.f32.mrf.mxu0
      %v6523 = vpop.f32.mrf.mxu0
      %v6524 = vadd.f32 0.0, %v6523
      %v6525 = vpop.f32.mrf.mxu0
      %6526 = vmatprep.mubr.bf16.mxu0 0
      %6527 = vmatmul.mubr.bf16.gmra.mxu0 %v5761
      %v6528 = vpop.f32.mrf.mxu0
      %v6529 = vadd.f32 0.0, %v6528
      %v6530 = vpop.f32.mrf.mxu0
      %v6531 = vpop.f32.mrf.mxu0
      %v6532 = vadd.f32 0.0, %v6531
      %v6533 = vpop.f32.mrf.mxu0
      %6534 = vmatprep.mubr.bf16.mxu0 0
      %6535 = vmatmul.mubr.bf16.gmra.mxu0 %v5764
      %v6536 = vpop.f32.mrf.mxu0
      %v6537 = vadd.f32 0.0, %v6536
      %v6538 = vpop.f32.mrf.mxu0
      %v6539 = vpop.f32.mrf.mxu0
      %v6540 = vadd.f32 0.0, %v6539
      %v6541 = vpop.f32.mrf.mxu0
      %6542 = vmatprep.mubr.bf16.mxu0 0
      %6543 = vmatmul.mubr.bf16.gmra.mxu0 %v5767
      %v6544 = vpop.f32.mrf.mxu0
      %v6545 = vadd.f32 0.0, %v6544
      %v6546 = vpop.f32.mrf.mxu0
      %v6547 = vpop.f32.mrf.mxu0
      %v6548 = vadd.f32 0.0, %v6547
      %v6549 = vpop.f32.mrf.mxu0
      %6550 = vmatprep.mubr.bf16.mxu0 0
      %6551 = vmatmul.mubr.bf16.gmra.mxu0 %v5770
      %v6552 = vpop.f32.mrf.mxu0
      %v6553 = vadd.f32 0.0, %v6552
      %v6554 = vpop.f32.mrf.mxu0
      %v6555 = vpop.f32.mrf.mxu0
      %v6556 = vadd.f32 0.0, %v6555
      %v6557 = vpop.f32.mrf.mxu0
      %6558 = vmatprep.mubr.bf16.mxu0 0
      %6559 = vmatmul.mubr.bf16.gmra.mxu0 %v5773
      %v6560 = vpop.f32.mrf.mxu0
      %v6561 = vadd.f32 0.0, %v6560
      %v6562 = vpop.f32.mrf.mxu0
      %v6563 = vpop.f32.mrf.mxu0
      %v6564 = vadd.f32 0.0, %v6563
      %v6565 = vpop.f32.mrf.mxu0
      %6566 = vmatprep.mubr.bf16.mxu0 0
      %6567 = vmatmul.mubr.bf16.gmra.mxu0 %v5776
      %v6568 = vpop.f32.mrf.mxu0
      %v6569 = vadd.f32 0.0, %v6568
      %v6570 = vpop.f32.mrf.mxu0
      %v6571 = vpop.f32.mrf.mxu0
      %v6572 = vadd.f32 0.0, %v6571
      %v6573 = vpop.f32.mrf.mxu0
      %6574 = vmatprep.mubr.bf16.mxu0 0
      %6575 = vmatmul.mubr.bf16.gmra.mxu0 %v5779
      %v6576 = vpop.f32.mrf.mxu0
      %v6577 = vadd.f32 0.0, %v6576
      %v6578 = vpop.f32.mrf.mxu0
      %v6579 = vpop.f32.mrf.mxu0
      %v6580 = vadd.f32 0.0, %v6579
      %v6581 = vpop.f32.mrf.mxu0
      %6582 = vmatprep.mubr.bf16.mxu0 0
      %6583 = vmatmul.mubr.bf16.gmra.mxu0 %v6425
      %v6584 = vpop.f32.mrf.mxu0
      %v6585 = vadd.f32 0.0, %v6584
      %v6586 = vpop.f32.mrf.mxu0
      %v6587 = vpop.f32.mrf.mxu0
      %v6588 = vadd.f32 0.0, %v6587
      %v6589 = vpop.f32.mrf.mxu0
      %6590 = vdwg.mxu0
      %v6591 = vadd.f32 %v6379, %v6465
      %v6592 = vadd.f32 %v6380, %v6468
      %v6593 = vadd.f32 %v6381, %v6473
      %v6594 = vadd.f32 %v6382, %v6476
      %v6595 = vadd.f32 %v6383, %v6481
      %v6596 = vadd.f32 %v6384, %v6484
      %v6597 = vadd.f32 %v6385, %v6489
      %v6598 = vadd.f32 %v6386, %v6492
      %v6599 = vadd.f32 %v6387, %v6497
      %v6600 = vadd.f32 %v6388, %v6500
      %v6601 = vadd.f32 %v6389, %v6505
      %v6602 = vadd.f32 %v6390, %v6508
      %v6603 = vadd.f32 %v6391, %v6513
      %v6604 = vadd.f32 %v6392, %v6516
      %v6605 = vadd.f32 %v6393, %v6521
      %v6606 = vadd.f32 %v6394, %v6524
      %v6607 = vadd.f32 %v6395, %v6529
      %v6608 = vadd.f32 %v6396, %v6532
      %v6609 = vadd.f32 %v6397, %v6537
      %v6610 = vadd.f32 %v6398, %v6540
      %v6611 = vadd.f32 %v6399, %v6545
      %v6612 = vadd.f32 %v6400, %v6548
      %v6613 = vadd.f32 %v6401, %v6553
      %v6614 = vadd.f32 %v6402, %v6556
      %v6615 = vadd.f32 %v6403, %v6561
      %v6616 = vadd.f32 %v6404, %v6564
      %v6617 = vadd.f32 %v6405, %v6569
      %v6618 = vadd.f32 %v6406, %v6572
      %v6619 = vadd.f32 %v6407, %v6577
      %v6620 = vadd.f32 %v6408, %v6580
      %v6621 = vadd.f32 %v6409, %v6585
      %v6622 = vadd.f32 %v6410, %v6588
      %s6623 = scalar_lea.vmem %s2, 12
      %v6624 = vld [vmem:[%s6623] sm:$0x3]
      %v6627 = vunpack.c.l.b16 %v4613
      %v6628 = vunpack.c.l.b16 %v4614
      %v6629 = vpack.c.b16 %v6628, %v6627
      %v6631 = vsel %vm1507, %v6629, 0
      %v6634 = vsel %vm1556, %v6624, 0
      %6636 = vmatprep.subr.bf16.mxu0 0
      %6637 = vmatpush1.bf16.msra.mxu0 0
      %6638 = vmatprep.subr.bf16.mxu0 0
      %6639 = vmatpush1.bf16.msra.mxu0 0
      %6640 = vmatprep.subr.bf16.mxu0 0
      %6641 = vmatpush1.bf16.msra.mxu0 0
      %6642 = vmatprep.subr.bf16.mxu0 0
      %6643 = vmatpush1.bf16.msra.mxu0 0
      %6644 = vmatprep.subr.bf16.mxu0 0
      %6645 = vmatpush1.bf16.msra.mxu0 0
      %6646 = vmatprep.subr.bf16.mxu0 0
      %6647 = vmatpush1.bf16.msra.mxu0 0
      %6648 = vmatprep.subr.bf16.mxu0 0
      %6649 = vmatpush1.bf16.msra.mxu0 0
      %6650 = vmatprep.subr.bf16.mxu0 0
      %6651 = vmatpush1.bf16.msra.mxu0 %v6634
      %6652 = vmatprep.subr.bf16.mxu0 0
      %6653 = vmatpush2.bf16.msra.mxu0 0
      %6654 = vmatprep.subr.bf16.mxu0 0
      %6655 = vmatpush2.bf16.msra.mxu0 0
      %6656 = vmatprep.subr.bf16.mxu0 0
      %6657 = vmatpush2.bf16.msra.mxu0 0
      %6658 = vmatprep.subr.bf16.mxu0 0
      %6659 = vmatpush2.bf16.msra.mxu0 0
      %6660 = vmatprep.subr.bf16.mxu0 0
      %6661 = vmatpush2.bf16.msra.mxu0 0
      %6662 = vmatprep.subr.bf16.mxu0 0
      %6663 = vmatpush2.bf16.msra.mxu0 0
      %6664 = vmatprep.subr.bf16.mxu0 0
      %6665 = vmatpush2.bf16.msra.mxu0 0
      %6666 = vmatprep.subr.bf16.mxu0 0
      %6667 = vmatpush2.bf16.msra.mxu0 0
      %6668 = vmatprep.mubr.bf16.mxu0 0
      %6669 = vmatmul.mubr.bf16.gmra.mxu0 %v5350
      %v6670 = vpop.f32.mrf.mxu0
      %v6671 = vadd.f32 0.0, %v6670
      %v6672 = vpop.f32.mrf.mxu0
      %v6673 = vpop.f32.mrf.mxu0
      %v6674 = vadd.f32 0.0, %v6673
      %v6675 = vpop.f32.mrf.mxu0
      %6676 = vmatprep.mubr.bf16.mxu0 0
      %6677 = vmatmul.mubr.bf16.gmra.mxu0 %v5353
      %v6678 = vpop.f32.mrf.mxu0
      %v6679 = vadd.f32 0.0, %v6678
      %v6680 = vpop.f32.mrf.mxu0
      %v6681 = vpop.f32.mrf.mxu0
      %v6682 = vadd.f32 0.0, %v6681
      %v6683 = vpop.f32.mrf.mxu0
      %6684 = vmatprep.mubr.bf16.mxu0 0
      %6685 = vmatmul.mubr.bf16.gmra.mxu0 %v5356
      %v6686 = vpop.f32.mrf.mxu0
      %v6687 = vadd.f32 0.0, %v6686
      %v6688 = vpop.f32.mrf.mxu0
      %v6689 = vpop.f32.mrf.mxu0
      %v6690 = vadd.f32 0.0, %v6689
      %v6691 = vpop.f32.mrf.mxu0
      %6692 = vmatprep.mubr.bf16.mxu0 0
      %6693 = vmatmul.mubr.bf16.gmra.mxu0 %v5359
      %v6694 = vpop.f32.mrf.mxu0
      %v6695 = vadd.f32 0.0, %v6694
      %v6696 = vpop.f32.mrf.mxu0
      %v6697 = vpop.f32.mrf.mxu0
      %v6698 = vadd.f32 0.0, %v6697
      %v6699 = vpop.f32.mrf.mxu0
      %6700 = vmatprep.mubr.bf16.mxu0 0
      %6701 = vmatmul.mubr.bf16.gmra.mxu0 %v5362
      %v6702 = vpop.f32.mrf.mxu0
      %v6703 = vadd.f32 0.0, %v6702
      %v6704 = vpop.f32.mrf.mxu0
      %v6705 = vpop.f32.mrf.mxu0
      %v6706 = vadd.f32 0.0, %v6705
      %v6707 = vpop.f32.mrf.mxu0
      %6708 = vmatprep.mubr.bf16.mxu0 0
      %6709 = vmatmul.mubr.bf16.gmra.mxu0 %v5365
      %v6710 = vpop.f32.mrf.mxu0
      %v6711 = vadd.f32 0.0, %v6710
      %v6712 = vpop.f32.mrf.mxu0
      %v6713 = vpop.f32.mrf.mxu0
      %v6714 = vadd.f32 0.0, %v6713
      %v6715 = vpop.f32.mrf.mxu0
      %6716 = vmatprep.mubr.bf16.mxu0 0
      %6717 = vmatmul.mubr.bf16.gmra.mxu0 %v5368
      %v6718 = vpop.f32.mrf.mxu0
      %v6719 = vadd.f32 0.0, %v6718
      %v6720 = vpop.f32.mrf.mxu0
      %v6721 = vpop.f32.mrf.mxu0
      %v6722 = vadd.f32 0.0, %v6721
      %v6723 = vpop.f32.mrf.mxu0
      %6724 = vmatprep.mubr.bf16.mxu0 0
      %6725 = vmatmul.mubr.bf16.gmra.mxu0 %v5371
      %v6726 = vpop.f32.mrf.mxu0
      %v6727 = vadd.f32 0.0, %v6726
      %v6728 = vpop.f32.mrf.mxu0
      %v6729 = vpop.f32.mrf.mxu0
      %v6730 = vadd.f32 0.0, %v6729
      %v6731 = vpop.f32.mrf.mxu0
      %6732 = vmatprep.mubr.bf16.mxu0 0
      %6733 = vmatmul.mubr.bf16.gmra.mxu0 %v5374
      %v6734 = vpop.f32.mrf.mxu0
      %v6735 = vadd.f32 0.0, %v6734
      %v6736 = vpop.f32.mrf.mxu0
      %v6737 = vpop.f32.mrf.mxu0
      %v6738 = vadd.f32 0.0, %v6737
      %v6739 = vpop.f32.mrf.mxu0
      %6740 = vmatprep.mubr.bf16.mxu0 0
      %6741 = vmatmul.mubr.bf16.gmra.mxu0 %v5377
      %v6742 = vpop.f32.mrf.mxu0
      %v6743 = vadd.f32 0.0, %v6742
      %v6744 = vpop.f32.mrf.mxu0
      %v6745 = vpop.f32.mrf.mxu0
      %v6746 = vadd.f32 0.0, %v6745
      %v6747 = vpop.f32.mrf.mxu0
      %6748 = vmatprep.mubr.bf16.mxu0 0
      %6749 = vmatmul.mubr.bf16.gmra.mxu0 %v5380
      %v6750 = vpop.f32.mrf.mxu0
      %v6751 = vadd.f32 0.0, %v6750
      %v6752 = vpop.f32.mrf.mxu0
      %v6753 = vpop.f32.mrf.mxu0
      %v6754 = vadd.f32 0.0, %v6753
      %v6755 = vpop.f32.mrf.mxu0
      %6756 = vmatprep.mubr.bf16.mxu0 0
      %6757 = vmatmul.mubr.bf16.gmra.mxu0 %v5383
      %v6758 = vpop.f32.mrf.mxu0
      %v6759 = vadd.f32 0.0, %v6758
      %v6760 = vpop.f32.mrf.mxu0
      %v6761 = vpop.f32.mrf.mxu0
      %v6762 = vadd.f32 0.0, %v6761
      %v6763 = vpop.f32.mrf.mxu0
      %6764 = vmatprep.mubr.bf16.mxu0 0
      %6765 = vmatmul.mubr.bf16.gmra.mxu0 %v5386
      %v6766 = vpop.f32.mrf.mxu0
      %v6767 = vadd.f32 0.0, %v6766
      %v6768 = vpop.f32.mrf.mxu0
      %v6769 = vpop.f32.mrf.mxu0
      %v6770 = vadd.f32 0.0, %v6769
      %v6771 = vpop.f32.mrf.mxu0
      %6772 = vmatprep.mubr.bf16.mxu0 0
      %6773 = vmatmul.mubr.bf16.gmra.mxu0 %v5389
      %v6774 = vpop.f32.mrf.mxu0
      %v6775 = vadd.f32 0.0, %v6774
      %v6776 = vpop.f32.mrf.mxu0
      %v6777 = vpop.f32.mrf.mxu0
      %v6778 = vadd.f32 0.0, %v6777
      %v6779 = vpop.f32.mrf.mxu0
      %6780 = vmatprep.mubr.bf16.mxu0 0
      %6781 = vmatmul.mubr.bf16.gmra.mxu0 %v5985
      %v6782 = vpop.f32.mrf.mxu0
      %v6783 = vadd.f32 0.0, %v6782
      %v6784 = vpop.f32.mrf.mxu0
      %v6785 = vpop.f32.mrf.mxu0
      %v6786 = vadd.f32 0.0, %v6785
      %v6787 = vpop.f32.mrf.mxu0
      %6788 = vmatprep.mubr.bf16.mxu0 0
      %6789 = vmatmul.mubr.bf16.gmra.mxu0 %v6631
      %v6790 = vpop.f32.mrf.mxu0
      %v6791 = vadd.f32 0.0, %v6790
      %v6792 = vpop.f32.mrf.mxu0
      %v6793 = vpop.f32.mrf.mxu0
      %v6794 = vadd.f32 0.0, %v6793
      %v6795 = vpop.f32.mrf.mxu0
      %6796 = vdwg.mxu0
      %v6797 = vadd.f32 %v6591, %v6671
      %v6798 = vadd.f32 %v6592, %v6674
      %v6799 = vadd.f32 %v6593, %v6679
      %v6800 = vadd.f32 %v6594, %v6682
      %v6801 = vadd.f32 %v6595, %v6687
      %v6802 = vadd.f32 %v6596, %v6690
      %v6803 = vadd.f32 %v6597, %v6695
      %v6804 = vadd.f32 %v6598, %v6698
      %v6805 = vadd.f32 %v6599, %v6703
      %v6806 = vadd.f32 %v6600, %v6706
      %v6807 = vadd.f32 %v6601, %v6711
      %v6808 = vadd.f32 %v6602, %v6714
      %v6809 = vadd.f32 %v6603, %v6719
      %v6810 = vadd.f32 %v6604, %v6722
      %v6811 = vadd.f32 %v6605, %v6727
      %v6812 = vadd.f32 %v6606, %v6730
      %v6813 = vadd.f32 %v6607, %v6735
      %v6814 = vadd.f32 %v6608, %v6738
      %v6815 = vadd.f32 %v6609, %v6743
      %v6816 = vadd.f32 %v6610, %v6746
      %v6817 = vadd.f32 %v6611, %v6751
      %v6818 = vadd.f32 %v6612, %v6754
      %v6819 = vadd.f32 %v6613, %v6759
      %v6820 = vadd.f32 %v6614, %v6762
      %v6821 = vadd.f32 %v6615, %v6767
      %v6822 = vadd.f32 %v6616, %v6770
      %v6823 = vadd.f32 %v6617, %v6775
      %v6824 = vadd.f32 %v6618, %v6778
      %v6825 = vadd.f32 %v6619, %v6783
      %v6826 = vadd.f32 %v6620, %v6786
      %v6827 = vadd.f32 %v6621, %v6791
      %v6828 = vadd.f32 %v6622, %v6794
      %s6829 = scalar_lea.vmem %s2, 14
      %v6830 = vld [vmem:[%s6829] sm:$0x3]
      %v6832 = vshrl.u32 %v4613, 16
      %v6834 = vrot.slane %v6832, 4
      %v6835 = vshll.u32 %v4613, 16
      %v6837 = vrot.slane %v6835, 5
      %v6838 = vor.u32 %v6834, %v6837
      %v6839 = vrot.slane %v6838, 4
      %v6841 = vshll.u32 %v4614, 16
      %v6843 = vrot.slane %v6841, 5
      %v6844 = vsel %vm1074, %v6839, %v6843
      %v6845 = vshrl.u32 %v4614, 16
      %v6847 = vrot.slane %v6845, 4
      %v6848 = vor.u32 %v6847, %v6843
      %v6849 = vrot.slane %v6848, 4
      %v6851 = vshll.u32 %v4615, 16
      %v6853 = vrot.slane %v6851, 5
      %v6854 = vsel %vm1074, %v6849, %v6853
      %v6855 = vunpack.c.l.b16 %v6844
      %v6856 = vunpack.c.l.b16 %v6854
      %v6857 = vpack.c.b16 %v6856, %v6855
      %v6859 = vsel %vm1507, %v6857, 0
      %v6862 = vsel %vm1556, %v6830, 0
      %6864 = vmatprep.subr.bf16.mxu0 0
      %6865 = vmatpush1.bf16.msra.mxu0 0
      %6866 = vmatprep.subr.bf16.mxu0 0
      %6867 = vmatpush1.bf16.msra.mxu0 0
      %6868 = vmatprep.subr.bf16.mxu0 0
      %6869 = vmatpush1.bf16.msra.mxu0 0
      %6870 = vmatprep.subr.bf16.mxu0 0
      %6871 = vmatpush1.bf16.msra.mxu0 0
      %6872 = vmatprep.subr.bf16.mxu0 0
      %6873 = vmatpush1.bf16.msra.mxu0 0
      %6874 = vmatprep.subr.bf16.mxu0 0
      %6875 = vmatpush1.bf16.msra.mxu0 0
      %6876 = vmatprep.subr.bf16.mxu0 0
      %6877 = vmatpush1.bf16.msra.mxu0 0
      %6878 = vmatprep.subr.bf16.mxu0 0
      %6879 = vmatpush1.bf16.msra.mxu0 %v6862
      %6880 = vmatprep.subr.bf16.mxu0 0
      %6881 = vmatpush2.bf16.msra.mxu0 0
      %6882 = vmatprep.subr.bf16.mxu0 0
      %6883 = vmatpush2.bf16.msra.mxu0 0
      %6884 = vmatprep.subr.bf16.mxu0 0
      %6885 = vmatpush2.bf16.msra.mxu0 0
      %6886 = vmatprep.subr.bf16.mxu0 0
      %6887 = vmatpush2.bf16.msra.mxu0 0
      %6888 = vmatprep.subr.bf16.mxu0 0
      %6889 = vmatpush2.bf16.msra.mxu0 0
      %6890 = vmatprep.subr.bf16.mxu0 0
      %6891 = vmatpush2.bf16.msra.mxu0 0
      %6892 = vmatprep.subr.bf16.mxu0 0
      %6893 = vmatpush2.bf16.msra.mxu0 0
      %6894 = vmatprep.subr.bf16.mxu0 0
      %6895 = vmatpush2.bf16.msra.mxu0 0
      %6896 = vmatprep.mubr.bf16.mxu0 0
      %6897 = vmatmul.mubr.bf16.gmra.mxu0 %v5058
      %v6898 = vpop.f32.mrf.mxu0
      %v6899 = vadd.f32 0.0, %v6898
      %v6900 = vpop.f32.mrf.mxu0
      %v6901 = vpop.f32.mrf.mxu0
      %v6902 = vadd.f32 0.0, %v6901
      %v6903 = vpop.f32.mrf.mxu0
      %6904 = vmatprep.mubr.bf16.mxu0 0
      %6905 = vmatmul.mubr.bf16.gmra.mxu0 %v5061
      %v6906 = vpop.f32.mrf.mxu0
      %v6907 = vadd.f32 0.0, %v6906
      %v6908 = vpop.f32.mrf.mxu0
      %v6909 = vpop.f32.mrf.mxu0
      %v6910 = vadd.f32 0.0, %v6909
      %v6911 = vpop.f32.mrf.mxu0
      %6912 = vmatprep.mubr.bf16.mxu0 0
      %6913 = vmatmul.mubr.bf16.gmra.mxu0 %v5064
      %v6914 = vpop.f32.mrf.mxu0
      %v6915 = vadd.f32 0.0, %v6914
      %v6916 = vpop.f32.mrf.mxu0
      %v6917 = vpop.f32.mrf.mxu0
      %v6918 = vadd.f32 0.0, %v6917
      %v6919 = vpop.f32.mrf.mxu0
      %6920 = vmatprep.mubr.bf16.mxu0 0
      %6921 = vmatmul.mubr.bf16.gmra.mxu0 %v5067
      %v6922 = vpop.f32.mrf.mxu0
      %v6923 = vadd.f32 0.0, %v6922
      %v6924 = vpop.f32.mrf.mxu0
      %v6925 = vpop.f32.mrf.mxu0
      %v6926 = vadd.f32 0.0, %v6925
      %v6927 = vpop.f32.mrf.mxu0
      %6928 = vmatprep.mubr.bf16.mxu0 0
      %6929 = vmatmul.mubr.bf16.gmra.mxu0 %v5070
      %v6930 = vpop.f32.mrf.mxu0
      %v6931 = vadd.f32 0.0, %v6930
      %v6932 = vpop.f32.mrf.mxu0
      %v6933 = vpop.f32.mrf.mxu0
      %v6934 = vadd.f32 0.0, %v6933
      %v6935 = vpop.f32.mrf.mxu0
      %6936 = vmatprep.mubr.bf16.mxu0 0
      %6937 = vmatmul.mubr.bf16.gmra.mxu0 %v5073
      %v6938 = vpop.f32.mrf.mxu0
      %v6939 = vadd.f32 0.0, %v6938
      %v6940 = vpop.f32.mrf.mxu0
      %v6941 = vpop.f32.mrf.mxu0
      %v6942 = vadd.f32 0.0, %v6941
      %v6943 = vpop.f32.mrf.mxu0
      %6944 = vmatprep.mubr.bf16.mxu0 0
      %6945 = vmatmul.mubr.bf16.gmra.mxu0 %v5076
      %v6946 = vpop.f32.mrf.mxu0
      %v6947 = vadd.f32 0.0, %v6946
      %v6948 = vpop.f32.mrf.mxu0
      %v6949 = vpop.f32.mrf.mxu0
      %v6950 = vadd.f32 0.0, %v6949
      %v6951 = vpop.f32.mrf.mxu0
      %6952 = vmatprep.mubr.bf16.mxu0 0
      %6953 = vmatmul.mubr.bf16.gmra.mxu0 %v5079
      %v6954 = vpop.f32.mrf.mxu0
      %v6955 = vadd.f32 0.0, %v6954
      %v6956 = vpop.f32.mrf.mxu0
      %v6957 = vpop.f32.mrf.mxu0
      %v6958 = vadd.f32 0.0, %v6957
      %v6959 = vpop.f32.mrf.mxu0
      %6960 = vmatprep.mubr.bf16.mxu0 0
      %6961 = vmatmul.mubr.bf16.gmra.mxu0 %v5082
      %v6962 = vpop.f32.mrf.mxu0
      %v6963 = vadd.f32 0.0, %v6962
      %v6964 = vpop.f32.mrf.mxu0
      %v6965 = vpop.f32.mrf.mxu0
      %v6966 = vadd.f32 0.0, %v6965
      %v6967 = vpop.f32.mrf.mxu0
      %6968 = vmatprep.mubr.bf16.mxu0 0
      %6969 = vmatmul.mubr.bf16.gmra.mxu0 %v5085
      %v6970 = vpop.f32.mrf.mxu0
      %v6971 = vadd.f32 0.0, %v6970
      %v6972 = vpop.f32.mrf.mxu0
      %v6973 = vpop.f32.mrf.mxu0
      %v6974 = vadd.f32 0.0, %v6973
      %v6975 = vpop.f32.mrf.mxu0
      %6976 = vmatprep.mubr.bf16.mxu0 0
      %6977 = vmatmul.mubr.bf16.gmra.mxu0 %v5088
      %v6978 = vpop.f32.mrf.mxu0
      %v6979 = vadd.f32 0.0, %v6978
      %v6980 = vpop.f32.mrf.mxu0
      %v6981 = vpop.f32.mrf.mxu0
      %v6982 = vadd.f32 0.0, %v6981
      %v6983 = vpop.f32.mrf.mxu0
      %6984 = vmatprep.mubr.bf16.mxu0 0
      %6985 = vmatmul.mubr.bf16.gmra.mxu0 %v5091
      %v6986 = vpop.f32.mrf.mxu0
      %v6987 = vadd.f32 0.0, %v6986
      %v6988 = vpop.f32.mrf.mxu0
      %v6989 = vpop.f32.mrf.mxu0
      %v6990 = vadd.f32 0.0, %v6989
      %v6991 = vpop.f32.mrf.mxu0
      %6992 = vmatprep.mubr.bf16.mxu0 0
      %6993 = vmatmul.mubr.bf16.gmra.mxu0 %v5094
      %v6994 = vpop.f32.mrf.mxu0
      %v6995 = vadd.f32 0.0, %v6994
      %v6996 = vpop.f32.mrf.mxu0
      %v6997 = vpop.f32.mrf.mxu0
      %v6998 = vadd.f32 0.0, %v6997
      %v6999 = vpop.f32.mrf.mxu0
      %7000 = vmatprep.mubr.bf16.mxu0 0
      %7001 = vmatmul.mubr.bf16.gmra.mxu0 %v5097
      %v7002 = vpop.f32.mrf.mxu0
      %v7003 = vadd.f32 0.0, %v7002
      %v7004 = vpop.f32.mrf.mxu0
      %v7005 = vpop.f32.mrf.mxu0
      %v7006 = vadd.f32 0.0, %v7005
      %v7007 = vpop.f32.mrf.mxu0
      %7008 = vmatprep.mubr.bf16.mxu0 0
      %7009 = vmatmul.mubr.bf16.gmra.mxu0 %v6213
      %v7010 = vpop.f32.mrf.mxu0
      %v7011 = vadd.f32 0.0, %v7010
      %v7012 = vpop.f32.mrf.mxu0
      %v7013 = vpop.f32.mrf.mxu0
      %v7014 = vadd.f32 0.0, %v7013
      %v7015 = vpop.f32.mrf.mxu0
      %7016 = vmatprep.mubr.bf16.mxu0 0
      %7017 = vmatmul.mubr.bf16.gmra.mxu0 %v6859
      %v7018 = vpop.f32.mrf.mxu0
      %v7019 = vadd.f32 0.0, %v7018
      %v7020 = vpop.f32.mrf.mxu0
      %v7021 = vpop.f32.mrf.mxu0
      %v7022 = vadd.f32 0.0, %v7021
      %v7023 = vpop.f32.mrf.mxu0
      %7024 = vdwg.mxu0
      %v7025 = vadd.f32 %v6797, %v6899
      %v7026 = vadd.f32 %v6798, %v6902
      %v7027 = vadd.f32 %v6799, %v6907
      %v7028 = vadd.f32 %v6800, %v6910
      %v7029 = vadd.f32 %v6801, %v6915
      %v7030 = vadd.f32 %v6802, %v6918
      %v7031 = vadd.f32 %v6803, %v6923
      %v7032 = vadd.f32 %v6804, %v6926
      %v7033 = vadd.f32 %v6805, %v6931
      %v7034 = vadd.f32 %v6806, %v6934
      %v7035 = vadd.f32 %v6807, %v6939
      %v7036 = vadd.f32 %v6808, %v6942
      %v7037 = vadd.f32 %v6809, %v6947
      %v7038 = vadd.f32 %v6810, %v6950
      %v7039 = vadd.f32 %v6811, %v6955
      %v7040 = vadd.f32 %v6812, %v6958
      %v7041 = vadd.f32 %v6813, %v6963
      %v7042 = vadd.f32 %v6814, %v6966
      %v7043 = vadd.f32 %v6815, %v6971
      %v7044 = vadd.f32 %v6816, %v6974
      %v7045 = vadd.f32 %v6817, %v6979
      %v7046 = vadd.f32 %v6818, %v6982
      %v7047 = vadd.f32 %v6819, %v6987
      %v7048 = vadd.f32 %v6820, %v6990
      %v7049 = vadd.f32 %v6821, %v6995
      %v7050 = vadd.f32 %v6822, %v6998
      %v7051 = vadd.f32 %v6823, %v7003
      %v7052 = vadd.f32 %v6824, %v7006
      %v7053 = vadd.f32 %v6825, %v7011
      %v7054 = vadd.f32 %v6826, %v7014
      %v7055 = vadd.f32 %v6827, %v7019
      %v7056 = vadd.f32 %v6828, %v7022
      %s7057 = scalar_lea.vmem %s2, 16
      %v7058 = vld [vmem:[%s7057] sm:$0x3]
      %v7060 = vrot.slane %v4613, 5
      %v7061 = vrot.slane %v7060, 4
      %v7062 = vrot.slane %v4614, 5
      %v7063 = vsel %vm2033, %v7061, %v7062
      %v7064 = vrot.slane %v7062, 4
      %v7065 = vrot.slane %v4615, 5
      %v7066 = vsel %vm2033, %v7064, %v7065
      %v7067 = vunpack.c.l.b16 %v7063
      %v7068 = vunpack.c.l.b16 %v7066
      %v7069 = vpack.c.b16 %v7068, %v7067
      %v7071 = vsel %vm1507, %v7069, 0
      %v7074 = vsel %vm1556, %v7058, 0
      %7076 = vmatprep.subr.bf16.mxu0 0
      %7077 = vmatpush1.bf16.msra.mxu0 0
      %7078 = vmatprep.subr.bf16.mxu0 0
      %7079 = vmatpush1.bf16.msra.mxu0 0
      %7080 = vmatprep.subr.bf16.mxu0 0
      %7081 = vmatpush1.bf16.msra.mxu0 0
      %7082 = vmatprep.subr.bf16.mxu0 0
      %7083 = vmatpush1.bf16.msra.mxu0 0
      %7084 = vmatprep.subr.bf16.mxu0 0
      %7085 = vmatpush1.bf16.msra.mxu0 0
      %7086 = vmatprep.subr.bf16.mxu0 0
      %7087 = vmatpush1.bf16.msra.mxu0 0
      %7088 = vmatprep.subr.bf16.mxu0 0
      %7089 = vmatpush1.bf16.msra.mxu0 0
      %7090 = vmatprep.subr.bf16.mxu0 0
      %7091 = vmatpush1.bf16.msra.mxu0 %v7074
      %7092 = vmatprep.subr.bf16.mxu0 0
      %7093 = vmatpush2.bf16.msra.mxu0 0
      %7094 = vmatprep.subr.bf16.mxu0 0
      %7095 = vmatpush2.bf16.msra.mxu0 0
      %7096 = vmatprep.subr.bf16.mxu0 0
      %7097 = vmatpush2.bf16.msra.mxu0 0
      %7098 = vmatprep.subr.bf16.mxu0 0
      %7099 = vmatpush2.bf16.msra.mxu0 0
      %7100 = vmatprep.subr.bf16.mxu0 0
      %7101 = vmatpush2.bf16.msra.mxu0 0
      %7102 = vmatprep.subr.bf16.mxu0 0
      %7103 = vmatpush2.bf16.msra.mxu0 0
      %7104 = vmatprep.subr.bf16.mxu0 0
      %7105 = vmatpush2.bf16.msra.mxu0 0
      %7106 = vmatprep.subr.bf16.mxu0 0
      %7107 = vmatpush2.bf16.msra.mxu0 0
      %7108 = vmatprep.mubr.bf16.mxu0 0
      %7109 = vmatmul.mubr.bf16.gmra.mxu0 %v5740
      %v7110 = vpop.f32.mrf.mxu0
      %v7111 = vadd.f32 0.0, %v7110
      %v7112 = vpop.f32.mrf.mxu0
      %v7113 = vpop.f32.mrf.mxu0
      %v7114 = vadd.f32 0.0, %v7113
      %v7115 = vpop.f32.mrf.mxu0
      %7116 = vmatprep.mubr.bf16.mxu0 0
      %7117 = vmatmul.mubr.bf16.gmra.mxu0 %v5743
      %v7118 = vpop.f32.mrf.mxu0
      %v7119 = vadd.f32 0.0, %v7118
      %v7120 = vpop.f32.mrf.mxu0
      %v7121 = vpop.f32.mrf.mxu0
      %v7122 = vadd.f32 0.0, %v7121
      %v7123 = vpop.f32.mrf.mxu0
      %7124 = vmatprep.mubr.bf16.mxu0 0
      %7125 = vmatmul.mubr.bf16.gmra.mxu0 %v5746
      %v7126 = vpop.f32.mrf.mxu0
      %v7127 = vadd.f32 0.0, %v7126
      %v7128 = vpop.f32.mrf.mxu0
      %v7129 = vpop.f32.mrf.mxu0
      %v7130 = vadd.f32 0.0, %v7129
      %v7131 = vpop.f32.mrf.mxu0
      %7132 = vmatprep.mubr.bf16.mxu0 0
      %7133 = vmatmul.mubr.bf16.gmra.mxu0 %v5749
      %v7134 = vpop.f32.mrf.mxu0
      %v7135 = vadd.f32 0.0, %v7134
      %v7136 = vpop.f32.mrf.mxu0
      %v7137 = vpop.f32.mrf.mxu0
      %v7138 = vadd.f32 0.0, %v7137
      %v7139 = vpop.f32.mrf.mxu0
      %7140 = vmatprep.mubr.bf16.mxu0 0
      %7141 = vmatmul.mubr.bf16.gmra.mxu0 %v5752
      %v7142 = vpop.f32.mrf.mxu0
      %v7143 = vadd.f32 0.0, %v7142
      %v7144 = vpop.f32.mrf.mxu0
      %v7145 = vpop.f32.mrf.mxu0
      %v7146 = vadd.f32 0.0, %v7145
      %v7147 = vpop.f32.mrf.mxu0
      %7148 = vmatprep.mubr.bf16.mxu0 0
      %7149 = vmatmul.mubr.bf16.gmra.mxu0 %v5755
      %v7150 = vpop.f32.mrf.mxu0
      %v7151 = vadd.f32 0.0, %v7150
      %v7152 = vpop.f32.mrf.mxu0
      %v7153 = vpop.f32.mrf.mxu0
      %v7154 = vadd.f32 0.0, %v7153
      %v7155 = vpop.f32.mrf.mxu0
      %7156 = vmatprep.mubr.bf16.mxu0 0
      %7157 = vmatmul.mubr.bf16.gmra.mxu0 %v5758
      %v7158 = vpop.f32.mrf.mxu0
      %v7159 = vadd.f32 0.0, %v7158
      %v7160 = vpop.f32.mrf.mxu0
      %v7161 = vpop.f32.mrf.mxu0
      %v7162 = vadd.f32 0.0, %v7161
      %v7163 = vpop.f32.mrf.mxu0
      %7164 = vmatprep.mubr.bf16.mxu0 0
      %7165 = vmatmul.mubr.bf16.gmra.mxu0 %v5761
      %v7166 = vpop.f32.mrf.mxu0
      %v7167 = vadd.f32 0.0, %v7166
      %v7168 = vpop.f32.mrf.mxu0
      %v7169 = vpop.f32.mrf.mxu0
      %v7170 = vadd.f32 0.0, %v7169
      %v7171 = vpop.f32.mrf.mxu0
      %7172 = vmatprep.mubr.bf16.mxu0 0
      %7173 = vmatmul.mubr.bf16.gmra.mxu0 %v5764
      %v7174 = vpop.f32.mrf.mxu0
      %v7175 = vadd.f32 0.0, %v7174
      %v7176 = vpop.f32.mrf.mxu0
      %v7177 = vpop.f32.mrf.mxu0
      %v7178 = vadd.f32 0.0, %v7177
      %v7179 = vpop.f32.mrf.mxu0
      %7180 = vmatprep.mubr.bf16.mxu0 0
      %7181 = vmatmul.mubr.bf16.gmra.mxu0 %v5767
      %v7182 = vpop.f32.mrf.mxu0
      %v7183 = vadd.f32 0.0, %v7182
      %v7184 = vpop.f32.mrf.mxu0
      %v7185 = vpop.f32.mrf.mxu0
      %v7186 = vadd.f32 0.0, %v7185
      %v7187 = vpop.f32.mrf.mxu0
      %7188 = vmatprep.mubr.bf16.mxu0 0
      %7189 = vmatmul.mubr.bf16.gmra.mxu0 %v5770
      %v7190 = vpop.f32.mrf.mxu0
      %v7191 = vadd.f32 0.0, %v7190
      %v7192 = vpop.f32.mrf.mxu0
      %v7193 = vpop.f32.mrf.mxu0
      %v7194 = vadd.f32 0.0, %v7193
      %v7195 = vpop.f32.mrf.mxu0
      %7196 = vmatprep.mubr.bf16.mxu0 0
      %7197 = vmatmul.mubr.bf16.gmra.mxu0 %v5773
      %v7198 = vpop.f32.mrf.mxu0
      %v7199 = vadd.f32 0.0, %v7198
      %v7200 = vpop.f32.mrf.mxu0
      %v7201 = vpop.f32.mrf.mxu0
      %v7202 = vadd.f32 0.0, %v7201
      %v7203 = vpop.f32.mrf.mxu0
      %7204 = vmatprep.mubr.bf16.mxu0 0
      %7205 = vmatmul.mubr.bf16.gmra.mxu0 %v5776
      %v7206 = vpop.f32.mrf.mxu0
      %v7207 = vadd.f32 0.0, %v7206
      %v7208 = vpop.f32.mrf.mxu0
      %v7209 = vpop.f32.mrf.mxu0
      %v7210 = vadd.f32 0.0, %v7209
      %v7211 = vpop.f32.mrf.mxu0
      %7212 = vmatprep.mubr.bf16.mxu0 0
      %7213 = vmatmul.mubr.bf16.gmra.mxu0 %v5779
      %v7214 = vpop.f32.mrf.mxu0
      %v7215 = vadd.f32 0.0, %v7214
      %v7216 = vpop.f32.mrf.mxu0
      %v7217 = vpop.f32.mrf.mxu0
      %v7218 = vadd.f32 0.0, %v7217
      %v7219 = vpop.f32.mrf.mxu0
      %7220 = vmatprep.mubr.bf16.mxu0 0
      %7221 = vmatmul.mubr.bf16.gmra.mxu0 %v6425
      %v7222 = vpop.f32.mrf.mxu0
      %v7223 = vadd.f32 0.0, %v7222
      %v7224 = vpop.f32.mrf.mxu0
      %v7225 = vpop.f32.mrf.mxu0
      %v7226 = vadd.f32 0.0, %v7225
      %v7227 = vpop.f32.mrf.mxu0
      %7228 = vmatprep.mubr.bf16.mxu0 0
      %7229 = vmatmul.mubr.bf16.gmra.mxu0 %v7071
      %v7230 = vpop.f32.mrf.mxu0
      %v7231 = vadd.f32 0.0, %v7230
      %v7232 = vpop.f32.mrf.mxu0
      %v7233 = vpop.f32.mrf.mxu0
      %v7234 = vadd.f32 0.0, %v7233
      %v7235 = vpop.f32.mrf.mxu0
      %7236 = vdwg.mxu0
      %v7237 = vadd.f32 %v7025, %v7111
      %v7238 = vadd.f32 %v7026, %v7114
      %v7239 = vadd.f32 %v7027, %v7119
      %v7240 = vadd.f32 %v7028, %v7122
      %v7241 = vadd.f32 %v7029, %v7127
      %v7242 = vadd.f32 %v7030, %v7130
      %v7243 = vadd.f32 %v7031, %v7135
      %v7244 = vadd.f32 %v7032, %v7138
      %v7245 = vadd.f32 %v7033, %v7143
      %v7246 = vadd.f32 %v7034, %v7146
      %v7247 = vadd.f32 %v7035, %v7151
      %v7248 = vadd.f32 %v7036, %v7154
      %v7249 = vadd.f32 %v7037, %v7159
      %v7250 = vadd.f32 %v7038, %v7162
      %v7251 = vadd.f32 %v7039, %v7167
      %v7252 = vadd.f32 %v7040, %v7170
      %v7253 = vadd.f32 %v7041, %v7175
      %v7254 = vadd.f32 %v7042, %v7178
      %v7255 = vadd.f32 %v7043, %v7183
      %v7256 = vadd.f32 %v7044, %v7186
      %v7257 = vadd.f32 %v7045, %v7191
      %v7258 = vadd.f32 %v7046, %v7194
      %v7259 = vadd.f32 %v7047, %v7199
      %v7260 = vadd.f32 %v7048, %v7202
      %v7261 = vadd.f32 %v7049, %v7207
      %v7262 = vadd.f32 %v7050, %v7210
      %v7263 = vadd.f32 %v7051, %v7215
      %v7264 = vadd.f32 %v7052, %v7218
      %v7265 = vadd.f32 %v7053, %v7223
      %v7266 = vadd.f32 %v7054, %v7226
      %v7267 = vadd.f32 %v7055, %v7231
      %v7268 = vadd.f32 %v7056, %v7234
      %v7269 = vld [vmem:[%s165] sm:$0xff]
      %v7270 = vld [vmem:[%s165 + $0x8] sm:$0xff]
      %v7271 = vld [vmem:[%s165 + $0x10] sm:$0xff]
      %v7272 = vld [vmem:[%s165 + $0x18] sm:$0xff]
      %v7273 = vld [vmem:[%s165 + $0x20] sm:$0xff]
      %v7274 = vld [vmem:[%s165 + $0x28] sm:$0xff]
      %v7275 = vld [vmem:[%s165 + $0x30] sm:$0xff]
      %v7276 = vld [vmem:[%s165 + $0x38] sm:$0xff]
      %v7277 = vld [vmem:[%s165 + $0x40] sm:$0xff]
      %v7278 = vld [vmem:[%s165 + $0x48] sm:$0xff]
      %v7279 = vld [vmem:[%s165 + $0x50] sm:$0xff]
      %v7280 = vld [vmem:[%s165 + $0x58] sm:$0xff]
      %v7281 = vld [vmem:[%s165 + $0x60] sm:$0xff]
      %v7282 = vld [vmem:[%s165 + $0x68] sm:$0xff]
      %v7283 = vld [vmem:[%s165 + $0x70] sm:$0xff]
      %v7284 = vld [vmem:[%s165 + $0x78] sm:$0xff]
      %v7285 = vld [vmem:[%s165 + $0x80] sm:$0xff]
      %v7286 = vld [vmem:[%s165 + $0x88] sm:$0xff]
      %v7287 = vld [vmem:[%s165 + $0x90] sm:$0xff]
      %v7288 = vld [vmem:[%s165 + $0x98] sm:$0xff]
      %v7289 = vld [vmem:[%s165 + $0xa0] sm:$0xff]
      %v7290 = vld [vmem:[%s165 + $0xa8] sm:$0xff]
      %v7291 = vld [vmem:[%s165 + $0xb0] sm:$0xff]
      %v7292 = vld [vmem:[%s165 + $0xb8] sm:$0xff]
      %v7293 = vld [vmem:[%s165 + $0xc0] sm:$0xff]
      %v7294 = vld [vmem:[%s165 + $0xc8] sm:$0xff]
      %v7295 = vld [vmem:[%s165 + $0xd0] sm:$0xff]
      %v7296 = vld [vmem:[%s165 + $0xd8] sm:$0xff]
      %v7297 = vld [vmem:[%s165 + $0xe0] sm:$0xff]
      %v7298 = vld [vmem:[%s165 + $0xe8] sm:$0xff]
      %v7299 = vld [vmem:[%s165 + $0xf0] sm:$0xff]
      %v7300 = vld [vmem:[%s165 + $0xf8] sm:$0xff]
      %v7301 = vadd.f32 %v7269, %v7237
      %v7302 = vadd.f32 %v7270, %v7238
      %v7303 = vadd.f32 %v7271, %v7239
      %v7304 = vadd.f32 %v7272, %v7240
      %v7305 = vadd.f32 %v7273, %v7241
      %v7306 = vadd.f32 %v7274, %v7242
      %v7307 = vadd.f32 %v7275, %v7243
      %v7308 = vadd.f32 %v7276, %v7244
      %v7309 = vadd.f32 %v7277, %v7245
      %v7310 = vadd.f32 %v7278, %v7246
      %v7311 = vadd.f32 %v7279, %v7247
      %v7312 = vadd.f32 %v7280, %v7248
      %v7313 = vadd.f32 %v7281, %v7249
      %v7314 = vadd.f32 %v7282, %v7250
      %v7315 = vadd.f32 %v7283, %v7251
      %v7316 = vadd.f32 %v7284, %v7252
      %v7317 = vadd.f32 %v7285, %v7253
      %v7318 = vadd.f32 %v7286, %v7254
      %v7319 = vadd.f32 %v7287, %v7255
      %v7320 = vadd.f32 %v7288, %v7256
      %v7321 = vadd.f32 %v7289, %v7257
      %v7322 = vadd.f32 %v7290, %v7258
      %v7323 = vadd.f32 %v7291, %v7259
      %v7324 = vadd.f32 %v7292, %v7260
      %v7325 = vadd.f32 %v7293, %v7261
      %v7326 = vadd.f32 %v7294, %v7262
      %v7327 = vadd.f32 %v7295, %v7263
      %v7328 = vadd.f32 %v7296, %v7264
      %v7329 = vadd.f32 %v7297, %v7265
      %v7330 = vadd.f32 %v7298, %v7266
      %v7331 = vadd.f32 %v7299, %v7267
      %v7332 = vadd.f32 %v7300, %v7268
      %7333 = vst.msk [vmem:[%s170] sm:$0xff] %vm1507, %v7301
      %7334 = vst.msk [vmem:[%s170 + $0x8] sm:$0xff] %vm1507, %v7302
      %7335 = vst.msk [vmem:[%s170 + $0x10] sm:$0xff] %vm1507, %v7303
      %7336 = vst.msk [vmem:[%s170 + $0x18] sm:$0xff] %vm1507, %v7304
      %7337 = vst.msk [vmem:[%s170 + $0x20] sm:$0xff] %vm1507, %v7305
      %7338 = vst.msk [vmem:[%s170 + $0x28] sm:$0xff] %vm1507, %v7306
      %7339 = vst.msk [vmem:[%s170 + $0x30] sm:$0xff] %vm1507, %v7307
      %7340 = vst.msk [vmem:[%s170 + $0x38] sm:$0xff] %vm1507, %v7308
      %7341 = vst.msk [vmem:[%s170 + $0x40] sm:$0xff] %vm1507, %v7309
      %7342 = vst.msk [vmem:[%s170 + $0x48] sm:$0xff] %vm1507, %v7310
      %7343 = vst.msk [vmem:[%s170 + $0x50] sm:$0xff] %vm1507, %v7311
      %7344 = vst.msk [vmem:[%s170 + $0x58] sm:$0xff] %vm1507, %v7312
      %7345 = vst.msk [vmem:[%s170 + $0x60] sm:$0xff] %vm1507, %v7313
      %7346 = vst.msk [vmem:[%s170 + $0x68] sm:$0xff] %vm1507, %v7314
      %7347 = vst.msk [vmem:[%s170 + $0x70] sm:$0xff] %vm1507, %v7315
      %7348 = vst.msk [vmem:[%s170 + $0x78] sm:$0xff] %vm1507, %v7316
      %7349 = vst.msk [vmem:[%s170 + $0x80] sm:$0xff] %vm1507, %v7317
      %7350 = vst.msk [vmem:[%s170 + $0x88] sm:$0xff] %vm1507, %v7318
      %7351 = vst.msk [vmem:[%s170 + $0x90] sm:$0xff] %vm1507, %v7319
      %7352 = vst.msk [vmem:[%s170 + $0x98] sm:$0xff] %vm1507, %v7320
      %7353 = vst.msk [vmem:[%s170 + $0xa0] sm:$0xff] %vm1507, %v7321
      %7354 = vst.msk [vmem:[%s170 + $0xa8] sm:$0xff] %vm1507, %v7322
      %7355 = vst.msk [vmem:[%s170 + $0xb0] sm:$0xff] %vm1507, %v7323
      %7356 = vst.msk [vmem:[%s170 + $0xb8] sm:$0xff] %vm1507, %v7324
      %7357 = vst.msk [vmem:[%s170 + $0xc0] sm:$0xff] %vm1507, %v7325
      %7358 = vst.msk [vmem:[%s170 + $0xc8] sm:$0xff] %vm1507, %v7326
      %7359 = vst.msk [vmem:[%s170 + $0xd0] sm:$0xff] %vm1507, %v7327
      %7360 = vst.msk [vmem:[%s170 + $0xd8] sm:$0xff] %vm1507, %v7328
      %7361 = vst.msk [vmem:[%s170 + $0xe0] sm:$0xff] %vm1507, %v7329
      %7362 = vst.msk [vmem:[%s170 + $0xe8] sm:$0xff] %vm1507, %v7330
      %7363 = vst.msk [vmem:[%s170 + $0xf0] sm:$0xff] %vm1507, %v7331
      %7364 = vst.msk [vmem:[%s170 + $0xf8] sm:$0xff] %vm1507, %v7332
      %p7365 = scmp.lt.s32.totalorder %s14, 1
      %s7366 = scalar_select %p7365, %s14, 1
      %s7367 = smul.addr %s7366, 32
      %s7368 = smul.addr %s7367, 8
      %s7369 = scalar_lea.vmem %s3, %s7368
      // Predicated region
      $region33: #{resnet_block_remove_in.1} parent=31 // pred_check
        %p7370 = pneg %p100
      $region34: #{resnet_block_remove_in.1} parent=31 // pred_check_branch
        %7372 = sbr.rel (%p7370) target = $region36
      $region35: #{resnet_block_remove_in.1} parent=31 // pred_region
        _
      $region36: #{resnet_block_remove_in.1} parent=31 // pred_fallthru
        _
    $region32: #{resnet_block_remove_in.1} parent=5 // pred_fallthru
      _
    %p7373 = scmp.le.s32.totalorder 2, %s9
    // Predicated region
    $region37: #{resnet_block_remove_in.1} parent=5 // pred_check
      %p7374 = pneg %p7373
    $region38: #{resnet_block_remove_in.1} parent=5 // pred_check_branch
      %7376 = sbr.rel (%p7374) target = $region40
    $region39: #{resnet_block_remove_in.1} parent=5 // pred_region
      %s7377 = ssub.s32 %s9, 2
      // Predicated region
      $region41: #{resnet_block_remove_in.1} parent=39 // pred_check
        %p7378 = pneg %p106
      $region42: #{resnet_block_remove_in.1} parent=39 // pred_check_branch
        %7380 = sbr.rel (%p7378) target = $region44
      $region43: #{resnet_block_remove_in.1} parent=39 // pred_region
        %p7381 = scmp.lt.s32.totalorder %s15, 1
        %s7382 = scalar_select %p7381, %s15, 1
        %s7383 = smul.addr %s7382, 32
        %s7384 = smul.addr %s7383, 8
        %s7385 = scalar_lea.vmem %s3, %s7384
      $region44: #{resnet_block_remove_in.1} parent=39 // pred_fallthru
        _
    $region40: #{resnet_block_remove_in.1} parent=5 // pred_fallthru
      _
  $region6: #{resnet_block_remove_in.1} parent=0 // loop_footer
    %s13 = sadd.s32 1, %s9
  $region7: #{resnet_block_remove_in.1} parent=0 // loop_footer_branch
    %8 = sbr.rel target = $region3
  $region8: #{resnet_block_remove_in.1} parent=0 // loop_exit
    _

</llo_original>
